<compile_context>
chip_gen: v7x
topology: tpu7x:2x2x1
jax: 0.10.0
libtpu: 0.0.40
codegen_flags: <defaults>
</compile_context>

<pallas_src>
import functools

import jax
import jax.numpy as jnp
from jax import lax
from jax.experimental import pallas as pl
from jax.experimental.pallas import tpu as pltpu

LANE = 128            # vreg lane width; each gate occupies one 128-lane slab
NUM_GATES = 4         # PyTorch LSTM gate order: i, f, g, o
G = NUM_GATES * LANE  # 512


def _lstm_cell(gates, c_prev):
    """One LSTM cell update. `gates` is (B, 4*LANE) f32 in lane-slab layout."""
    i = jax.nn.sigmoid(gates[:, 0 * LANE:1 * LANE])
    f = jax.nn.sigmoid(gates[:, 1 * LANE:2 * LANE])
    g = jnp.tanh(gates[:, 2 * LANE:3 * LANE])
    o = jax.nn.sigmoid(gates[:, 3 * LANE:4 * LANE])
    c_new = f * c_prev + i * g          # padded lanes: 0.5*0 + 0.5*0 = 0
    h_new = o * jnp.tanh(c_new)         # padded lanes: 0.5*tanh(0)   = 0
    return h_new, c_new


def _autoencoder_kernel(T, B,
                        x_ref, w1i_ref, b1_ref, w1h_ref,
                        w2_ref, b2_ref,
                        w3_hbm, b3_ref,
                        w4_hbm, b4_ref,
                        out_ref,
                        gx1_ref, w3_vmem, w4_vmem, dma_sem):
    f32 = jnp.float32
    bf16 = jnp.bfloat16

    # Kick off the decoder-weight DMAs immediately; they overlap with the
    # hoisted gx1 projection and the first encoder layer-steps below.
    cp3 = pltpu.make_async_copy(w3_hbm, w3_vmem, dma_sem.at[0])
    cp4 = pltpu.make_async_copy(w4_hbm, w4_vmem, dma_sem.at[1])
    cp3.start()
    cp4.start()

    # Hoisted layer-1 input projection (+bias) for every time step at once:
    # (T*B, 8) bf16 @ (8, 512) bf16 -> f32 VMEM scratch.
    gx1_ref[...] = (
        jnp.dot(x_ref[...], w1i_ref[...], preferred_element_type=f32)
        + b1_ref[...])

    # Hoist bias broadcasts out of the unrolled loop (JAX does not CSE them).
    b2v = jnp.broadcast_to(b2_ref[...], (B, G))
    b3v = jnp.broadcast_to(b3_ref[...], (B, G))
    b4v = jnp.broadcast_to(b4_ref[...], (B, G))

    zeros = jnp.zeros((B, LANE), f32)
    h1, c1 = zeros, zeros
    h2, c2 = zeros, zeros
    h3, c3 = zeros, zeros
    h4, c4 = zeros, zeros

    # Statically unrolled time recurrence; the four layers are interleaved per
    # step so intermediate sequences never leave VMEM/vregs.
    for t in range(T):
        lo, hi = t * B, (t + 1) * B

        # Encoder.lstm1 (7 -> 128): only the recurrent matmul is in the loop.
        g1 = gx1_ref[lo:hi, :] + jnp.dot(
            h1.astype(bf16), w1h_ref[...], preferred_element_type=f32)
        h1, c1 = _lstm_cell(g1, c1)

        # Encoder.lstm2 (128 -> 16): fused [Wi; Wh], single K=256 matmul.
        lhs2 = jnp.concatenate([h1.astype(bf16), h2.astype(bf16)], axis=1)
        g2 = jnp.dot(lhs2, w2_ref[...], preferred_element_type=f32) + b2v
        h2, c2 = _lstm_cell(g2, c2)

        if t == 0:
            cp3.wait()   # first (and only) wait for the dec.lstm1 weights
        # Decoder.lstm1 (16 -> 128): fused [Wi; Wh].
        lhs3 = jnp.concatenate([h2.astype(bf16), h3.astype(bf16)], axis=1)
        g3 = jnp.dot(lhs3, w3_vmem[...], preferred_element_type=f32) + b3v
        h3, c3 = _lstm_cell(g3, c3)

        if t == 0:
            cp4.wait()   # first (and only) wait for the dec.lstm2 weights
        # Decoder.lstm2 (128 -> 7): fused [Wi; Wh].
        lhs4 = jnp.concatenate([h3.astype(bf16), h4.astype(bf16)], axis=1)
        g4 = jnp.dot(lhs4, w4_vmem[...], preferred_element_type=f32) + b4v
        h4, c4 = _lstm_cell(g4, c4)

        # Lane-dense, 128-wide aligned store of this step's final output.
        out_ref[lo:hi, :] = h4


# --------------------- weight re-layout (wrapper-side) ----------------------
def _slab_transpose(w, rows):
    """(4H, C) PyTorch weight -> (rows, 4*LANE) lane-slab layout, zero padded.

    Gate g occupies lanes [g*LANE, g*LANE + H); all padded entries are 0.
    """
    h4, c = w.shape
    h = h4 // NUM_GATES
    out = jnp.zeros((rows, G), jnp.float32)
    for g in range(NUM_GATES):
        out = out.at[:c, g * LANE:g * LANE + h].set(
            w[g * h:(g + 1) * h, :].astype(jnp.float32).T)
    return out


def _slab_bias(b_ih, b_hh):
    h4 = b_ih.shape[0]
    h = h4 // NUM_GATES
    bias = (b_ih + b_hh).astype(jnp.float32)
    out = jnp.zeros((1, G), jnp.float32)
    for g in range(NUM_GATES):
        out = out.at[0, g * LANE:g * LANE + h].set(bias[g * h:(g + 1) * h])
    return out


def _prep_fused(w_ih, w_hh, b_ih, b_hh):
    """Stacked [Wi; Wh] -> (2*LANE, 4*LANE) bf16, bias -> (1, 4*LANE) f32."""
    wi = _slab_transpose(w_ih, rows=LANE)
    wh = _slab_transpose(w_hh, rows=LANE)
    w = jnp.concatenate([wi, wh], axis=0).astype(jnp.bfloat16)
    return w, _slab_bias(b_ih, b_hh)


def lstm_autoencoder_forward(x, params):
    """Pallas forward of LSTMAutoEncoder: (B, T, 7) -> (B, T, 7)."""
    B0, T, F = x.shape
    H_out = params["dec2"][1].shape[1]   # 7

    # Pad batch to a multiple of 8 so in-kernel slices are sublane aligned.
    B = ((B0 + 7) // 8) * 8
    if B != B0:
        x = jnp.concatenate(
            [x, jnp.zeros((B - B0, T, F), x.dtype)], axis=0)

    # Batch-parallel leading grid axis so v7x can use both TensorCores when
    # the batch is large enough; demo (B=8) runs as a single block.
    n_blk = 2 if (B >= 16 and B % 16 == 0) else 1
    b_blk = B // n_blk
    rows = T * b_blk

    # Time-major, per-block flattened input (feature dim zero-padded 7 -> 8)
    # so the hoisted layer-1 projection is one matmul per block.
    x_tm = jnp.transpose(x, (1, 0, 2)).astype(jnp.float32)       # (T, B, F)
    x_tm = jnp.pad(x_tm, ((0, 0), (0, 0), (0, 8 - F)))           # (T, B, 8)
    x_tm = (x_tm.reshape(T, n_blk, b_blk, 8)
                .transpose(1, 0, 2, 3)
                .reshape(n_blk * rows, 8)
                .astype(jnp.bfloat16))

    # Layer 1 keeps input/recurrent weights separate (input proj is hoisted).
    w1_ih, w1_hh, b1_ih, b1_hh = params["enc1"]
    w1i = _slab_transpose(w1_ih, rows=8).astype(jnp.bfloat16)     # (8,   512)
    w1h = _slab_transpose(w1_hh, rows=LANE).astype(jnp.bfloat16)  # (128, 512)
    b1 = _slab_bias(b1_ih, b1_hh)
    # Layers 2-4: fused [Wi; Wh] stacks, K = 256.
    w2, b2 = _prep_fused(*params["enc2"])
    w3, b3 = _prep_fused(*params["dec1"])
    w4, b4 = _prep_fused(*params["dec2"])

    inputs = (x_tm, w1i, b1, w1h, w2, b2, w3, b3, w4, b4)

    in_specs = [
        pl.BlockSpec((rows, 8), lambda i: (i, 0)),          # x (per-block)
        pl.BlockSpec((8, G), lambda i: (0, 0)),             # w1i
        pl.BlockSpec((1, G), lambda i: (0, 0)),             # b1
        pl.BlockSpec((LANE, G), lambda i: (0, 0)),          # w1h
        pl.BlockSpec((2 * LANE, G), lambda i: (0, 0)),      # w2 (fused)
        pl.BlockSpec((1, G), lambda i: (0, 0)),             # b2
        pl.BlockSpec(memory_space=pl.ANY),                  # w3 -> manual DMA
        pl.BlockSpec((1, G), lambda i: (0, 0)),             # b3
        pl.BlockSpec(memory_space=pl.ANY),                  # w4 -> manual DMA
        pl.BlockSpec((1, G), lambda i: (0, 0)),             # b4
    ]

    out_flat = pl.pallas_call(
        functools.partial(_autoencoder_kernel, T, b_blk),
        out_shape=jax.ShapeDtypeStruct((n_blk * rows, LANE), jnp.float32),
        grid=(n_blk,),
        in_specs=in_specs,
        out_specs=pl.BlockSpec((rows, LANE), lambda i: (i, 0)),
        scratch_shapes=[
            pltpu.VMEM((rows, G), jnp.float32),              # hoisted gx1
            pltpu.VMEM((2 * LANE, G), jnp.bfloat16),         # w3 landing buf
            pltpu.VMEM((2 * LANE, G), jnp.bfloat16),         # w4 landing buf
            pltpu.SemaphoreType.DMA((2,)),
        ],
        compiler_params=pltpu.CompilerParams(
            dimension_semantics=("parallel",)),
    )(*inputs)

    # (n_blk*T*b_blk, 128) lane-padded, block/time-major -> (B, T, H_out)
    y = out_flat.reshape(n_blk, T, b_blk, LANE)[..., :H_out]
    y = jnp.transpose(y, (0, 2, 1, 3)).reshape(B, T, H_out)
    return y[:B0]


# ---------------- pure-JAX reference (correctness sanity check) -------------
def _lstm_layer_ref(x, w_ih, w_hh, b_ih, b_hh):
    B, T, _ = x.shape
    H = w_hh.shape[1]
    wih_t = w_ih.T.astype(jnp.float32)
    whh_t = w_hh.T.astype(jnp.float32)
    bias = (b_ih + b_hh).astype(jnp.float32)

    def step(carry, x_t):
        h, c = carry
        gates = (jnp.dot(x_t, wih_t, precision=lax.Precision.HIGHEST)
                 + jnp.dot(h, whh_t, precision=lax.Precision.HIGHEST) + bias)
        i = jax.nn.sigmoid(gates[:, 0 * H:1 * H])
        f = jax.nn.sigmoid(gates[:, 1 * H:2 * H])
        g = jnp.tanh(gates[:, 2 * H:3 * H])
        o = jax.nn.sigmoid(gates[:, 3 * H:4 * H])
        c = f * c + i * g
        h = o * jnp.tanh(c)
        return (h, c), h

    h0 = jnp.zeros((B, H), jnp.float32)
    c0 = jnp.zeros((B, H), jnp.float32)
    _, ys = lax.scan(step, (h0, c0), jnp.swapaxes(x, 0, 1))
    return jnp.swapaxes(ys, 0, 1)


def lstm_autoencoder_forward_ref(x, params):
    y = _lstm_layer_ref(x, *params["enc1"])
    y = _lstm_layer_ref(y, *params["enc2"])
    y = _lstm_layer_ref(y, *params["dec1"])
    y = _lstm_layer_ref(y, *params["dec2"])
    return y


def init_params(key):
    """Deterministic init matching PyTorch LSTM parameter shapes."""
    def layer(key, in_size, hidden):
        k1, k2, k3, k4 = jax.random.split(key, 4)
        s = 1.0 / jnp.sqrt(hidden)
        return (
            jax.random.uniform(k1, (4 * hidden, in_size), jnp.float32, -s, s),
            jax.random.uniform(k2, (4 * hidden, hidden), jnp.float32, -s, s),
            jax.random.uniform(k3, (4 * hidden,), jnp.float32, -s, s),
            jax.random.uniform(k4, (4 * hidden,), jnp.float32, -s, s),
        )

    k1, k2, k3, k4 = jax.random.split(key, 4)
    return {
        "enc1": layer(k1, 7, 128),    # Encoder.lstm1: nn.LSTM(7,   128)
        "enc2": layer(k2, 128, 16),   # Encoder.lstm2: nn.LSTM(128, 16)
        "dec1": layer(k3, 16, 128),   # Decoder.lstm1: nn.LSTM(16,  128)
        "dec2": layer(k4, 128, 7),    # Decoder.lstm2: nn.LSTM(128, 7)
    }


if __name__ == "__main__":
    key = jax.random.PRNGKey(0)
    k_param, k_x = jax.random.split(key)

    # batch_first input (batch, seq, features=7); B=8 fills the f32 sublanes.
    B, T, F = 8, 8, 7
    x = jax.random.normal(k_x, (B, T, F), jnp.float32)
    params = init_params(k_param)

    fwd = jax.jit(lstm_autoencoder_forward)
    out = jax.block_until_ready(fwd(x, params))
    assert out.shape == (B, T, F), out.shape

    ref = jax.block_until_ready(lstm_autoencoder_forward_ref(x, params))
    max_err = float(jnp.max(jnp.abs(out - ref)))
    # bf16 MXU operands with f32 accumulation vs. f32 HIGHEST reference:
    # structural bugs show up as O(0.3-1) errors, bf16 rounding as O(1e-3..1e-2).
    assert jnp.allclose(out, ref, atol=5e-2, rtol=5e-2), max_err

    print("KERNEL_OK")
</pallas_src>

<mosaic_0001>
module attributes {stable_mosaic.version = 11 : i64} {
  func.func @_autoencoder_kernel(%arg0: i32, %arg1: memref<64x8xbf16, #tpu.memory_space<vmem>>, %arg2: memref<8x512xbf16, #tpu.memory_space<vmem>>, %arg3: memref<1x512xf32, #tpu.memory_space<vmem>>, %arg4: memref<128x512xbf16, #tpu.memory_space<vmem>>, %arg5: memref<256x512xbf16, #tpu.memory_space<vmem>>, %arg6: memref<1x512xf32, #tpu.memory_space<vmem>>, %arg7: memref<256x512xbf16, #tpu.memory_space<any>>, %arg8: memref<1x512xf32, #tpu.memory_space<vmem>>, %arg9: memref<256x512xbf16, #tpu.memory_space<any>>, %arg10: memref<1x512xf32, #tpu.memory_space<vmem>>, %arg11: memref<64x128xf32, #tpu.memory_space<vmem>>, %arg12: memref<64x512xf32, #tpu.memory_space<vmem>>, %arg13: memref<256x512xbf16, #tpu.memory_space<vmem>>, %arg14: memref<256x512xbf16, #tpu.memory_space<vmem>>, %arg15: memref<2x!tpu.dma_semaphore, #tpu.memory_space<semaphore_mem>>) attributes {dimension_semantics = [#tpu.dimension_semantics<parallel>], iteration_bounds = array<i64: 1>, scalar_prefetch = 0 : i64, scratch_operands = 4 : i64, tpu.core_type = #tpu.core_type<tc>, window_params = [{transform_indices = @transform_0, window_bounds = array<i64: 64, 8>}, {pipeline_mode = #tpu.pipeline_mode<synchronous>, transform_indices = @transform_1, window_bounds = array<i64: 8, 512>}, {pipeline_mode = #tpu.pipeline_mode<synchronous>, transform_indices = @transform_2, window_bounds = array<i64: 1, 512>}, {pipeline_mode = #tpu.pipeline_mode<synchronous>, transform_indices = @transform_3, window_bounds = array<i64: 128, 512>}, {pipeline_mode = #tpu.pipeline_mode<synchronous>, transform_indices = @transform_4, window_bounds = array<i64: 256, 512>}, {pipeline_mode = #tpu.pipeline_mode<synchronous>, transform_indices = @transform_5, window_bounds = array<i64: 1, 512>}, {}, {pipeline_mode = #tpu.pipeline_mode<synchronous>, transform_indices = @transform_7, window_bounds = array<i64: 1, 512>}, {}, {pipeline_mode = #tpu.pipeline_mode<synchronous>, transform_indices = @transform_9, window_bounds = array<i64: 1, 512>}, {transform_indices = @transform_10, window_bounds = array<i64: 64, 128>}]} {
    %c0_i32 = arith.constant 0 : i32
    %0 = tpu.memref_slice %arg15[%c0_i32] : memref<2x!tpu.dma_semaphore, #tpu.memory_space<semaphore_mem>> -> memref<1x!tpu.dma_semaphore, #tpu.memory_space<semaphore_mem>>
    %1 = tpu.memref_squeeze %0 : memref<1x!tpu.dma_semaphore, #tpu.memory_space<semaphore_mem>> -> memref<!tpu.dma_semaphore, #tpu.memory_space<semaphore_mem>>
    tpu.enqueue_dma source(%arg7 : memref<256x512xbf16, #tpu.memory_space<any>>) target(%arg13 : memref<256x512xbf16, #tpu.memory_space<vmem>>) target_semaphore(%1 : memref<!tpu.dma_semaphore, #tpu.memory_space<semaphore_mem>>)
    %c1_i32 = arith.constant 1 : i32
    %2 = tpu.memref_slice %arg15[%c1_i32] : memref<2x!tpu.dma_semaphore, #tpu.memory_space<semaphore_mem>> -> memref<1x!tpu.dma_semaphore, #tpu.memory_space<semaphore_mem>>
    %3 = tpu.memref_squeeze %2 : memref<1x!tpu.dma_semaphore, #tpu.memory_space<semaphore_mem>> -> memref<!tpu.dma_semaphore, #tpu.memory_space<semaphore_mem>>
    tpu.enqueue_dma source(%arg9 : memref<256x512xbf16, #tpu.memory_space<any>>) target(%arg14 : memref<256x512xbf16, #tpu.memory_space<vmem>>) target_semaphore(%3 : memref<!tpu.dma_semaphore, #tpu.memory_space<semaphore_mem>>)
    %c0 = arith.constant 0 : index
    %c0_0 = arith.constant 0 : index
    %4 = vector.load %arg1[%c0, %c0_0] : memref<64x8xbf16, #tpu.memory_space<vmem>>, vector<64x8xbf16>
    %c0_1 = arith.constant 0 : index
    %c0_2 = arith.constant 0 : index
    %5 = vector.load %arg2[%c0_1, %c0_2] : memref<8x512xbf16, #tpu.memory_space<vmem>>, vector<8x512xbf16>
    %cst = arith.constant dense<0.000000e+00> : vector<64x512xf32>
    %6 = tpu.matmul %4, %5, %cst {dimension_numbers = #tpu.dot_dimension_numbers<[1], [0], [0], [1], [0, 0, 1, 1], [], []>} : vector<64x8xbf16>, vector<8x512xbf16>, vector<64x512xf32> -> vector<64x512xf32>
    %c0_3 = arith.constant 0 : index
    %c0_4 = arith.constant 0 : index
    %7 = vector.load %arg3[%c0_3, %c0_4] : memref<1x512xf32, #tpu.memory_space<vmem>>, vector<1x512xf32>
    %8 = vector.broadcast %7 : vector<1x512xf32> to vector<64x512xf32>
    %9 = arith.addf %6, %8 : vector<64x512xf32>
    %c0_5 = arith.constant 0 : index
    %c0_6 = arith.constant 0 : index
    %10 = vector.load %arg12[%c0_5, %c0_6] : memref<64x512xf32, #tpu.memory_space<vmem>>, vector<64x512xf32>
    tpu.vector_store %arg12[%c0_5, %c0_6], %9 {strides = array<i32>} : memref<64x512xf32, #tpu.memory_space<vmem>>, vector<64x512xf32>,
    %c0_7 = arith.constant 0 : index
    %c0_8 = arith.constant 0 : index
    %11 = vector.load %arg6[%c0_7, %c0_8] : memref<1x512xf32, #tpu.memory_space<vmem>>, vector<1x512xf32>
    %12 = vector.shape_cast %11 : vector<1x512xf32> to vector<1x512xf32>
    %13 = vector.broadcast %12 : vector<1x512xf32> to vector<8x512xf32>
    %c0_9 = arith.constant 0 : index
    %c0_10 = arith.constant 0 : index
    %14 = vector.load %arg8[%c0_9, %c0_10] : memref<1x512xf32, #tpu.memory_space<vmem>>, vector<1x512xf32>
    %15 = vector.shape_cast %14 : vector<1x512xf32> to vector<1x512xf32>
    %16 = vector.broadcast %15 : vector<1x512xf32> to vector<8x512xf32>
    %c0_11 = arith.constant 0 : index
    %c0_12 = arith.constant 0 : index
    %17 = vector.load %arg10[%c0_11, %c0_12] : memref<1x512xf32, #tpu.memory_space<vmem>>, vector<1x512xf32>
    %18 = vector.shape_cast %17 : vector<1x512xf32> to vector<1x512xf32>
    %19 = vector.broadcast %18 : vector<1x512xf32> to vector<8x512xf32>
    %cst_13 = arith.constant 0.000000e+00 : f32
    %20 = vector.broadcast %cst_13 : f32 to vector<8x128xf32>
    %c0_14 = arith.constant 0 : index
    %c0_15 = arith.constant 0 : index
    %21 = vector.load %arg12[%c0_14, %c0_15] : memref<64x512xf32, #tpu.memory_space<vmem>>, vector<8x512xf32>
    %22 = arith.truncf %20 : vector<8x128xf32> to vector<8x128xbf16>
    %c0_16 = arith.constant 0 : index
    %c0_17 = arith.constant 0 : index
    %23 = vector.load %arg4[%c0_16, %c0_17] : memref<128x512xbf16, #tpu.memory_space<vmem>>, vector<128x512xbf16>
    %cst_18 = arith.constant dense<0.000000e+00> : vector<8x512xf32>
    %24 = tpu.matmul %22, %23, %cst_18 {dimension_numbers = #tpu.dot_dimension_numbers<[1], [0], [0], [1], [0, 0, 1, 1], [], []>} : vector<8x128xbf16>, vector<128x512xbf16>, vector<8x512xf32> -> vector<8x512xf32>
    %25 = arith.addf %21, %24 : vector<8x512xf32>
    %26 = vector.extract_strided_slice %25 {offsets = [0, 0], sizes = [8, 128], strides = [1, 1]} : vector<8x512xf32> to vector<8x128xf32>
    %27 = arith.negf %26 : vector<8x128xf32>
    %28 = math.exp %27 : vector<8x128xf32>
    %cst_19 = arith.constant 1.000000e+00 : f32
    %29 = vector.broadcast %cst_19 : f32 to vector<8x128xf32>
    %30 = arith.addf %29, %28 : vector<8x128xf32>
    %31 = arith.divf %29, %30 : vector<8x128xf32>
    %32 = vector.extract_strided_slice %25 {offsets = [0, 128], sizes = [8, 128], strides = [1, 1]} : vector<8x512xf32> to vector<8x128xf32>
    %33 = arith.negf %32 : vector<8x128xf32>
    %34 = math.exp %33 : vector<8x128xf32>
    %cst_20 = arith.constant 1.000000e+00 : f32
    %35 = vector.broadcast %cst_20 : f32 to vector<8x128xf32>
    %36 = arith.addf %35, %34 : vector<8x128xf32>
    %37 = arith.divf %35, %36 : vector<8x128xf32>
    %38 = vector.extract_strided_slice %25 {offsets = [0, 256], sizes = [8, 128], strides = [1, 1]} : vector<8x512xf32> to vector<8x128xf32>
    %39 = math.tanh %38 : vector<8x128xf32>
    %40 = vector.extract_strided_slice %25 {offsets = [0, 384], sizes = [8, 128], strides = [1, 1]} : vector<8x512xf32> to vector<8x128xf32>
    %41 = arith.negf %40 : vector<8x128xf32>
    %42 = math.exp %41 : vector<8x128xf32>
    %cst_21 = arith.constant 1.000000e+00 : f32
    %43 = vector.broadcast %cst_21 : f32 to vector<8x128xf32>
    %44 = arith.addf %43, %42 : vector<8x128xf32>
    %45 = arith.divf %43, %44 : vector<8x128xf32>
    %46 = arith.mulf %37, %20 : vector<8x128xf32>
    %47 = arith.mulf %31, %39 : vector<8x128xf32>
    %48 = arith.addf %46, %47 : vector<8x128xf32>
    %49 = math.tanh %48 : vector<8x128xf32>
    %50 = arith.mulf %45, %49 : vector<8x128xf32>
    %51 = arith.truncf %50 : vector<8x128xf32> to vector<8x128xbf16>
    %52 = arith.truncf %20 : vector<8x128xf32> to vector<8x128xbf16>
    %53 = tpu.concatenate %51, %52 in 1 : vector<8x128xbf16>, vector<8x128xbf16> -> vector<8x256xbf16>
    %c0_22 = arith.constant 0 : index
    %c0_23 = arith.constant 0 : index
    %54 = vector.load %arg5[%c0_22, %c0_23] : memref<256x512xbf16, #tpu.memory_space<vmem>>, vector<256x512xbf16>
    %cst_24 = arith.constant dense<0.000000e+00> : vector<8x512xf32>
    %55 = tpu.matmul %53, %54, %cst_24 {dimension_numbers = #tpu.dot_dimension_numbers<[1], [0], [0], [1], [0, 0, 1, 1], [], []>} : vector<8x256xbf16>, vector<256x512xbf16>, vector<8x512xf32> -> vector<8x512xf32>
    %56 = arith.addf %55, %13 : vector<8x512xf32>
    %57 = vector.extract_strided_slice %56 {offsets = [0, 0], sizes = [8, 128], strides = [1, 1]} : vector<8x512xf32> to vector<8x128xf32>
    %58 = arith.negf %57 : vector<8x128xf32>
    %59 = math.exp %58 : vector<8x128xf32>
    %cst_25 = arith.constant 1.000000e+00 : f32
    %60 = vector.broadcast %cst_25 : f32 to vector<8x128xf32>
    %61 = arith.addf %60, %59 : vector<8x128xf32>
    %62 = arith.divf %60, %61 : vector<8x128xf32>
    %63 = vector.extract_strided_slice %56 {offsets = [0, 128], sizes = [8, 128], strides = [1, 1]} : vector<8x512xf32> to vector<8x128xf32>
    %64 = arith.negf %63 : vector<8x128xf32>
    %65 = math.exp %64 : vector<8x128xf32>
    %cst_26 = arith.constant 1.000000e+00 : f32
    %66 = vector.broadcast %cst_26 : f32 to vector<8x128xf32>
    %67 = arith.addf %66, %65 : vector<8x128xf32>
    %68 = arith.divf %66, %67 : vector<8x128xf32>
    %69 = vector.extract_strided_slice %56 {offsets = [0, 256], sizes = [8, 128], strides = [1, 1]} : vector<8x512xf32> to vector<8x128xf32>
    %70 = math.tanh %69 : vector<8x128xf32>
    %71 = vector.extract_strided_slice %56 {offsets = [0, 384], sizes = [8, 128], strides = [1, 1]} : vector<8x512xf32> to vector<8x128xf32>
    %72 = arith.negf %71 : vector<8x128xf32>
    %73 = math.exp %72 : vector<8x128xf32>
    %cst_27 = arith.constant 1.000000e+00 : f32
    %74 = vector.broadcast %cst_27 : f32 to vector<8x128xf32>
    %75 = arith.addf %74, %73 : vector<8x128xf32>
    %76 = arith.divf %74, %75 : vector<8x128xf32>
    %77 = arith.mulf %68, %20 : vector<8x128xf32>
    %78 = arith.mulf %62, %70 : vector<8x128xf32>
    %79 = arith.addf %77, %78 : vector<8x128xf32>
    %80 = math.tanh %79 : vector<8x128xf32>
    %81 = arith.mulf %76, %80 : vector<8x128xf32>
    %c0_i32_28 = arith.constant 0 : i32
    %82 = tpu.memref_slice %arg15[%c0_i32_28] : memref<2x!tpu.dma_semaphore, #tpu.memory_space<semaphore_mem>> -> memref<1x!tpu.dma_semaphore, #tpu.memory_space<semaphore_mem>>
    %83 = tpu.memref_squeeze %82 : memref<1x!tpu.dma_semaphore, #tpu.memory_space<semaphore_mem>> -> memref<!tpu.dma_semaphore, #tpu.memory_space<semaphore_mem>>
    tpu.wait_dma2 semaphore(%83 : memref<!tpu.dma_semaphore, #tpu.memory_space<semaphore_mem>>) src(%arg7 : memref<256x512xbf16, #tpu.memory_space<any>>) dst(%arg13 : memref<256x512xbf16, #tpu.memory_space<vmem>>)
    %84 = arith.truncf %81 : vector<8x128xf32> to vector<8x128xbf16>
    %85 = arith.truncf %20 : vector<8x128xf32> to vector<8x128xbf16>
    %86 = tpu.concatenate %84, %85 in 1 : vector<8x128xbf16>, vector<8x128xbf16> -> vector<8x256xbf16>
    %c0_29 = arith.constant 0 : index
    %c0_30 = arith.constant 0 : index
    %87 = vector.load %arg13[%c0_29, %c0_30] : memref<256x512xbf16, #tpu.memory_space<vmem>>, vector<256x512xbf16>
    %cst_31 = arith.constant dense<0.000000e+00> : vector<8x512xf32>
    %88 = tpu.matmul %86, %87, %cst_31 {dimension_numbers = #tpu.dot_dimension_numbers<[1], [0], [0], [1], [0, 0, 1, 1], [], []>} : vector<8x256xbf16>, vector<256x512xbf16>, vector<8x512xf32> -> vector<8x512xf32>
    %89 = arith.addf %88, %16 : vector<8x512xf32>
    %90 = vector.extract_strided_slice %89 {offsets = [0, 0], sizes = [8, 128], strides = [1, 1]} : vector<8x512xf32> to vector<8x128xf32>
    %91 = arith.negf %90 : vector<8x128xf32>
    %92 = math.exp %91 : vector<8x128xf32>
    %cst_32 = arith.constant 1.000000e+00 : f32
    %93 = vector.broadcast %cst_32 : f32 to vector<8x128xf32>
    %94 = arith.addf %93, %92 : vector<8x128xf32>
    %95 = arith.divf %93, %94 : vector<8x128xf32>
    %96 = vector.extract_strided_slice %89 {offsets = [0, 128], sizes = [8, 128], strides = [1, 1]} : vector<8x512xf32> to vector<8x128xf32>
    %97 = arith.negf %96 : vector<8x128xf32>
    %98 = math.exp %97 : vector<8x128xf32>
    %cst_33 = arith.constant 1.000000e+00 : f32
    %99 = vector.broadcast %cst_33 : f32 to vector<8x128xf32>
    %100 = arith.addf %99, %98 : vector<8x128xf32>
    %101 = arith.divf %99, %100 : vector<8x128xf32>
    %102 = vector.extract_strided_slice %89 {offsets = [0, 256], sizes = [8, 128], strides = [1, 1]} : vector<8x512xf32> to vector<8x128xf32>
    %103 = math.tanh %102 : vector<8x128xf32>
    %104 = vector.extract_strided_slice %89 {offsets = [0, 384], sizes = [8, 128], strides = [1, 1]} : vector<8x512xf32> to vector<8x128xf32>
    %105 = arith.negf %104 : vector<8x128xf32>
    %106 = math.exp %105 : vector<8x128xf32>
    %cst_34 = arith.constant 1.000000e+00 : f32
    %107 = vector.broadcast %cst_34 : f32 to vector<8x128xf32>
    %108 = arith.addf %107, %106 : vector<8x128xf32>
    %109 = arith.divf %107, %108 : vector<8x128xf32>
    %110 = arith.mulf %101, %20 : vector<8x128xf32>
    %111 = arith.mulf %95, %103 : vector<8x128xf32>
    %112 = arith.addf %110, %111 : vector<8x128xf32>
    %113 = math.tanh %112 : vector<8x128xf32>
    %114 = arith.mulf %109, %113 : vector<8x128xf32>
    %c1_i32_35 = arith.constant 1 : i32
    %115 = tpu.memref_slice %arg15[%c1_i32_35] : memref<2x!tpu.dma_semaphore, #tpu.memory_space<semaphore_mem>> -> memref<1x!tpu.dma_semaphore, #tpu.memory_space<semaphore_mem>>
    %116 = tpu.memref_squeeze %115 : memref<1x!tpu.dma_semaphore, #tpu.memory_space<semaphore_mem>> -> memref<!tpu.dma_semaphore, #tpu.memory_space<semaphore_mem>>
    tpu.wait_dma2 semaphore(%116 : memref<!tpu.dma_semaphore, #tpu.memory_space<semaphore_mem>>) src(%arg9 : memref<256x512xbf16, #tpu.memory_space<any>>) dst(%arg14 : memref<256x512xbf16, #tpu.memory_space<vmem>>)
    %117 = arith.truncf %114 : vector<8x128xf32> to vector<8x128xbf16>
    %118 = arith.truncf %20 : vector<8x128xf32> to vector<8x128xbf16>
    %119 = tpu.concatenate %117, %118 in 1 : vector<8x128xbf16>, vector<8x128xbf16> -> vector<8x256xbf16>
    %c0_36 = arith.constant 0 : index
    %c0_37 = arith.constant 0 : index
    %120 = vector.load %arg14[%c0_36, %c0_37] : memref<256x512xbf16, #tpu.memory_space<vmem>>, vector<256x512xbf16>
    %cst_38 = arith.constant dense<0.000000e+00> : vector<8x512xf32>
    %121 = tpu.matmul %119, %120, %cst_38 {dimension_numbers = #tpu.dot_dimension_numbers<[1], [0], [0], [1], [0, 0, 1, 1], [], []>} : vector<8x256xbf16>, vector<256x512xbf16>, vector<8x512xf32> -> vector<8x512xf32>
    %122 = arith.addf %121, %19 : vector<8x512xf32>
    %123 = vector.extract_strided_slice %122 {offsets = [0, 0], sizes = [8, 128], strides = [1, 1]} : vector<8x512xf32> to vector<8x128xf32>
    %124 = arith.negf %123 : vector<8x128xf32>
    %125 = math.exp %124 : vector<8x128xf32>
    %cst_39 = arith.constant 1.000000e+00 : f32
    %126 = vector.broadcast %cst_39 : f32 to vector<8x128xf32>
    %127 = arith.addf %126, %125 : vector<8x128xf32>
    %128 = arith.divf %126, %127 : vector<8x128xf32>
    %129 = vector.extract_strided_slice %122 {offsets = [0, 128], sizes = [8, 128], strides = [1, 1]} : vector<8x512xf32> to vector<8x128xf32>
    %130 = arith.negf %129 : vector<8x128xf32>
    %131 = math.exp %130 : vector<8x128xf32>
    %cst_40 = arith.constant 1.000000e+00 : f32
    %132 = vector.broadcast %cst_40 : f32 to vector<8x128xf32>
    %133 = arith.addf %132, %131 : vector<8x128xf32>
    %134 = arith.divf %132, %133 : vector<8x128xf32>
    %135 = vector.extract_strided_slice %122 {offsets = [0, 256], sizes = [8, 128], strides = [1, 1]} : vector<8x512xf32> to vector<8x128xf32>
    %136 = math.tanh %135 : vector<8x128xf32>
    %137 = vector.extract_strided_slice %122 {offsets = [0, 384], sizes = [8, 128], strides = [1, 1]} : vector<8x512xf32> to vector<8x128xf32>
    %138 = arith.negf %137 : vector<8x128xf32>
    %139 = math.exp %138 : vector<8x128xf32>
    %cst_41 = arith.constant 1.000000e+00 : f32
    %140 = vector.broadcast %cst_41 : f32 to vector<8x128xf32>
    %141 = arith.addf %140, %139 : vector<8x128xf32>
    %142 = arith.divf %140, %141 : vector<8x128xf32>
    %143 = arith.mulf %134, %20 : vector<8x128xf32>
    %144 = arith.mulf %128, %136 : vector<8x128xf32>
    %145 = arith.addf %143, %144 : vector<8x128xf32>
    %146 = math.tanh %145 : vector<8x128xf32>
    %147 = arith.mulf %142, %146 : vector<8x128xf32>
    %c0_42 = arith.constant 0 : index
    %c0_43 = arith.constant 0 : index
    %148 = vector.load %arg11[%c0_42, %c0_43] : memref<64x128xf32, #tpu.memory_space<vmem>>, vector<8x128xf32>
    tpu.vector_store %arg11[%c0_42, %c0_43], %147 {strides = array<i32>} : memref<64x128xf32, #tpu.memory_space<vmem>>, vector<8x128xf32>,
    %c8 = arith.constant 8 : index
    %c0_44 = arith.constant 0 : index
    %149 = vector.load %arg12[%c8, %c0_44] : memref<64x512xf32, #tpu.memory_space<vmem>>, vector<8x512xf32>
    %150 = arith.truncf %50 : vector<8x128xf32> to vector<8x128xbf16>
    %c0_45 = arith.constant 0 : index
    %c0_46 = arith.constant 0 : index
    %151 = vector.load %arg4[%c0_45, %c0_46] : memref<128x512xbf16, #tpu.memory_space<vmem>>, vector<128x512xbf16>
    %cst_47 = arith.constant dense<0.000000e+00> : vector<8x512xf32>
    %152 = tpu.matmul %150, %151, %cst_47 {dimension_numbers = #tpu.dot_dimension_numbers<[1], [0], [0], [1], [0, 0, 1, 1], [], []>} : vector<8x128xbf16>, vector<128x512xbf16>, vector<8x512xf32> -> vector<8x512xf32>
    %153 = arith.addf %149, %152 : vector<8x512xf32>
    %154 = vector.extract_strided_slice %153 {offsets = [0, 0], sizes = [8, 128], strides = [1, 1]} : vector<8x512xf32> to vector<8x128xf32>
    %155 = arith.negf %154 : vector<8x128xf32>
    %156 = math.exp %155 : vector<8x128xf32>
    %cst_48 = arith.constant 1.000000e+00 : f32
    %157 = vector.broadcast %cst_48 : f32 to vector<8x128xf32>
    %158 = arith.addf %157, %156 : vector<8x128xf32>
    %159 = arith.divf %157, %158 : vector<8x128xf32>
    %160 = vector.extract_strided_slice %153 {offsets = [0, 128], sizes = [8, 128], strides = [1, 1]} : vector<8x512xf32> to vector<8x128xf32>
    %161 = arith.negf %160 : vector<8x128xf32>
    %162 = math.exp %161 : vector<8x128xf32>
    %cst_49 = arith.constant 1.000000e+00 : f32
    %163 = vector.broadcast %cst_49 : f32 to vector<8x128xf32>
    %164 = arith.addf %163, %162 : vector<8x128xf32>
    %165 = arith.divf %163, %164 : vector<8x128xf32>
    %166 = vector.extract_strided_slice %153 {offsets = [0, 256], sizes = [8, 128], strides = [1, 1]} : vector<8x512xf32> to vector<8x128xf32>
    %167 = math.tanh %166 : vector<8x128xf32>
    %168 = vector.extract_strided_slice %153 {offsets = [0, 384], sizes = [8, 128], strides = [1, 1]} : vector<8x512xf32> to vector<8x128xf32>
    %169 = arith.negf %168 : vector<8x128xf32>
    %170 = math.exp %169 : vector<8x128xf32>
    %cst_50 = arith.constant 1.000000e+00 : f32
    %171 = vector.broadcast %cst_50 : f32 to vector<8x128xf32>
    %172 = arith.addf %171, %170 : vector<8x128xf32>
    %173 = arith.divf %171, %172 : vector<8x128xf32>
    %174 = arith.mulf %165, %48 : vector<8x128xf32>
    %175 = arith.mulf %159, %167 : vector<8x128xf32>
    %176 = arith.addf %174, %175 : vector<8x128xf32>
    %177 = math.tanh %176 : vector<8x128xf32>
    %178 = arith.mulf %173, %177 : vector<8x128xf32>
    %179 = arith.truncf %178 : vector<8x128xf32> to vector<8x128xbf16>
    %180 = arith.truncf %81 : vector<8x128xf32> to vector<8x128xbf16>
    %181 = tpu.concatenate %179, %180 in 1 : vector<8x128xbf16>, vector<8x128xbf16> -> vector<8x256xbf16>
    %c0_51 = arith.constant 0 : index
    %c0_52 = arith.constant 0 : index
    %182 = vector.load %arg5[%c0_51, %c0_52] : memref<256x512xbf16, #tpu.memory_space<vmem>>, vector<256x512xbf16>
    %cst_53 = arith.constant dense<0.000000e+00> : vector<8x512xf32>
    %183 = tpu.matmul %181, %182, %cst_53 {dimension_numbers = #tpu.dot_dimension_numbers<[1], [0], [0], [1], [0, 0, 1, 1], [], []>} : vector<8x256xbf16>, vector<256x512xbf16>, vector<8x512xf32> -> vector<8x512xf32>
    %184 = arith.addf %183, %13 : vector<8x512xf32>
    %185 = vector.extract_strided_slice %184 {offsets = [0, 0], sizes = [8, 128], strides = [1, 1]} : vector<8x512xf32> to vector<8x128xf32>
    %186 = arith.negf %185 : vector<8x128xf32>
    %187 = math.exp %186 : vector<8x128xf32>
    %cst_54 = arith.constant 1.000000e+00 : f32
    %188 = vector.broadcast %cst_54 : f32 to vector<8x128xf32>
    %189 = arith.addf %188, %187 : vector<8x128xf32>
    %190 = arith.divf %188, %189 : vector<8x128xf32>
    %191 = vector.extract_strided_slice %184 {offsets = [0, 128], sizes = [8, 128], strides = [1, 1]} : vector<8x512xf32> to vector<8x128xf32>
    %192 = arith.negf %191 : vector<8x128xf32>
    %193 = math.exp %192 : vector<8x128xf32>
    %cst_55 = arith.constant 1.000000e+00 : f32
    %194 = vector.broadcast %cst_55 : f32 to vector<8x128xf32>
    %195 = arith.addf %194, %193 : vector<8x128xf32>
    %196 = arith.divf %194, %195 : vector<8x128xf32>
    %197 = vector.extract_strided_slice %184 {offsets = [0, 256], sizes = [8, 128], strides = [1, 1]} : vector<8x512xf32> to vector<8x128xf32>
    %198 = math.tanh %197 : vector<8x128xf32>
    %199 = vector.extract_strided_slice %184 {offsets = [0, 384], sizes = [8, 128], strides = [1, 1]} : vector<8x512xf32> to vector<8x128xf32>
    %200 = arith.negf %199 : vector<8x128xf32>
    %201 = math.exp %200 : vector<8x128xf32>
    %cst_56 = arith.constant 1.000000e+00 : f32
    %202 = vector.broadcast %cst_56 : f32 to vector<8x128xf32>
    %203 = arith.addf %202, %201 : vector<8x128xf32>
    %204 = arith.divf %202, %203 : vector<8x128xf32>
    %205 = arith.mulf %196, %79 : vector<8x128xf32>
    %206 = arith.mulf %190, %198 : vector<8x128xf32>
    %207 = arith.addf %205, %206 : vector<8x128xf32>
    %208 = math.tanh %207 : vector<8x128xf32>
    %209 = arith.mulf %204, %208 : vector<8x128xf32>
    %210 = arith.truncf %209 : vector<8x128xf32> to vector<8x128xbf16>
    %211 = arith.truncf %114 : vector<8x128xf32> to vector<8x128xbf16>
    %212 = tpu.concatenate %210, %211 in 1 : vector<8x128xbf16>, vector<8x128xbf16> -> vector<8x256xbf16>
    %c0_57 = arith.constant 0 : index
    %c0_58 = arith.constant 0 : index
    %213 = vector.load %arg13[%c0_57, %c0_58] : memref<256x512xbf16, #tpu.memory_space<vmem>>, vector<256x512xbf16>
    %cst_59 = arith.constant dense<0.000000e+00> : vector<8x512xf32>
    %214 = tpu.matmul %212, %213, %cst_59 {dimension_numbers = #tpu.dot_dimension_numbers<[1], [0], [0], [1], [0, 0, 1, 1], [], []>} : vector<8x256xbf16>, vector<256x512xbf16>, vector<8x512xf32> -> vector<8x512xf32>
    %215 = arith.addf %214, %16 : vector<8x512xf32>
    %216 = vector.extract_strided_slice %215 {offsets = [0, 0], sizes = [8, 128], strides = [1, 1]} : vector<8x512xf32> to vector<8x128xf32>
    %217 = arith.negf %216 : vector<8x128xf32>
    %218 = math.exp %217 : vector<8x128xf32>
    %cst_60 = arith.constant 1.000000e+00 : f32
    %219 = vector.broadcast %cst_60 : f32 to vector<8x128xf32>
    %220 = arith.addf %219, %218 : vector<8x128xf32>
    %221 = arith.divf %219, %220 : vector<8x128xf32>
    %222 = vector.extract_strided_slice %215 {offsets = [0, 128], sizes = [8, 128], strides = [1, 1]} : vector<8x512xf32> to vector<8x128xf32>
    %223 = arith.negf %222 : vector<8x128xf32>
    %224 = math.exp %223 : vector<8x128xf32>
    %cst_61 = arith.constant 1.000000e+00 : f32
    %225 = vector.broadcast %cst_61 : f32 to vector<8x128xf32>
    %226 = arith.addf %225, %224 : vector<8x128xf32>
    %227 = arith.divf %225, %226 : vector<8x128xf32>
    %228 = vector.extract_strided_slice %215 {offsets = [0, 256], sizes = [8, 128], strides = [1, 1]} : vector<8x512xf32> to vector<8x128xf32>
    %229 = math.tanh %228 : vector<8x128xf32>
    %230 = vector.extract_strided_slice %215 {offsets = [0, 384], sizes = [8, 128], strides = [1, 1]} : vector<8x512xf32> to vector<8x128xf32>
    %231 = arith.negf %230 : vector<8x128xf32>
    %232 = math.exp %231 : vector<8x128xf32>
    %cst_62 = arith.constant 1.000000e+00 : f32
    %233 = vector.broadcast %cst_62 : f32 to vector<8x128xf32>
    %234 = arith.addf %233, %232 : vector<8x128xf32>
    %235 = arith.divf %233, %234 : vector<8x128xf32>
    %236 = arith.mulf %227, %112 : vector<8x128xf32>
    %237 = arith.mulf %221, %229 : vector<8x128xf32>
    %238 = arith.addf %236, %237 : vector<8x128xf32>
    %239 = math.tanh %238 : vector<8x128xf32>
    %240 = arith.mulf %235, %239 : vector<8x128xf32>
    %241 = arith.truncf %240 : vector<8x128xf32> to vector<8x128xbf16>
    %242 = arith.truncf %147 : vector<8x128xf32> to vector<8x128xbf16>
    %243 = tpu.concatenate %241, %242 in 1 : vector<8x128xbf16>, vector<8x128xbf16> -> vector<8x256xbf16>
    %c0_63 = arith.constant 0 : index
    %c0_64 = arith.constant 0 : index
    %244 = vector.load %arg14[%c0_63, %c0_64] : memref<256x512xbf16, #tpu.memory_space<vmem>>, vector<256x512xbf16>
    %cst_65 = arith.constant dense<0.000000e+00> : vector<8x512xf32>
    %245 = tpu.matmul %243, %244, %cst_65 {dimension_numbers = #tpu.dot_dimension_numbers<[1], [0], [0], [1], [0, 0, 1, 1], [], []>} : vector<8x256xbf16>, vector<256x512xbf16>, vector<8x512xf32> -> vector<8x512xf32>
    %246 = arith.addf %245, %19 : vector<8x512xf32>
    %247 = vector.extract_strided_slice %246 {offsets = [0, 0], sizes = [8, 128], strides = [1, 1]} : vector<8x512xf32> to vector<8x128xf32>
    %248 = arith.negf %247 : vector<8x128xf32>
    %249 = math.exp %248 : vector<8x128xf32>
    %cst_66 = arith.constant 1.000000e+00 : f32
    %250 = vector.broadcast %cst_66 : f32 to vector<8x128xf32>
    %251 = arith.addf %250, %249 : vector<8x128xf32>
    %252 = arith.divf %250, %251 : vector<8x128xf32>
    %253 = vector.extract_strided_slice %246 {offsets = [0, 128], sizes = [8, 128], strides = [1, 1]} : vector<8x512xf32> to vector<8x128xf32>
    %254 = arith.negf %253 : vector<8x128xf32>
    %255 = math.exp %254 : vector<8x128xf32>
    %cst_67 = arith.constant 1.000000e+00 : f32
    %256 = vector.broadcast %cst_67 : f32 to vector<8x128xf32>
    %257 = arith.addf %256, %255 : vector<8x128xf32>
    %258 = arith.divf %256, %257 : vector<8x128xf32>
    %259 = vector.extract_strided_slice %246 {offsets = [0, 256], sizes = [8, 128], strides = [1, 1]} : vector<8x512xf32> to vector<8x128xf32>
    %260 = math.tanh %259 : vector<8x128xf32>
    %261 = vector.extract_strided_slice %246 {offsets = [0, 384], sizes = [8, 128], strides = [1, 1]} : vector<8x512xf32> to vector<8x128xf32>
    %262 = arith.negf %261 : vector<8x128xf32>
    %263 = math.exp %262 : vector<8x128xf32>
    %cst_68 = arith.constant 1.000000e+00 : f32
    %264 = vector.broadcast %cst_68 : f32 to vector<8x128xf32>
    %265 = arith.addf %264, %263 : vector<8x128xf32>
    %266 = arith.divf %264, %265 : vector<8x128xf32>
    %267 = arith.mulf %258, %145 : vector<8x128xf32>
    %268 = arith.mulf %252, %260 : vector<8x128xf32>
    %269 = arith.addf %267, %268 : vector<8x128xf32>
    %270 = math.tanh %269 : vector<8x128xf32>
    %271 = arith.mulf %266, %270 : vector<8x128xf32>
    %c8_69 = arith.constant 8 : index
    %c0_70 = arith.constant 0 : index
    %272 = vector.load %arg11[%c8_69, %c0_70] : memref<64x128xf32, #tpu.memory_space<vmem>>, vector<8x128xf32>
    tpu.vector_store %arg11[%c8_69, %c0_70], %271 {strides = array<i32>} : memref<64x128xf32, #tpu.memory_space<vmem>>, vector<8x128xf32>,
    %c16 = arith.constant 16 : index
    %c0_71 = arith.constant 0 : index
    %273 = vector.load %arg12[%c16, %c0_71] : memref<64x512xf32, #tpu.memory_space<vmem>>, vector<8x512xf32>
    %274 = arith.truncf %178 : vector<8x128xf32> to vector<8x128xbf16>
    %c0_72 = arith.constant 0 : index
    %c0_73 = arith.constant 0 : index
    %275 = vector.load %arg4[%c0_72, %c0_73] : memref<128x512xbf16, #tpu.memory_space<vmem>>, vector<128x512xbf16>
    %cst_74 = arith.constant dense<0.000000e+00> : vector<8x512xf32>
    %276 = tpu.matmul %274, %275, %cst_74 {dimension_numbers = #tpu.dot_dimension_numbers<[1], [0], [0], [1], [0, 0, 1, 1], [], []>} : vector<8x128xbf16>, vector<128x512xbf16>, vector<8x512xf32> -> vector<8x512xf32>
    %277 = arith.addf %273, %276 : vector<8x512xf32>
    %278 = vector.extract_strided_slice %277 {offsets = [0, 0], sizes = [8, 128], strides = [1, 1]} : vector<8x512xf32> to vector<8x128xf32>
    %279 = arith.negf %278 : vector<8x128xf32>
    %280 = math.exp %279 : vector<8x128xf32>
    %cst_75 = arith.constant 1.000000e+00 : f32
    %281 = vector.broadcast %cst_75 : f32 to vector<8x128xf32>
    %282 = arith.addf %281, %280 : vector<8x128xf32>
    %283 = arith.divf %281, %282 : vector<8x128xf32>
    %284 = vector.extract_strided_slice %277 {offsets = [0, 128], sizes = [8, 128], strides = [1, 1]} : vector<8x512xf32> to vector<8x128xf32>
    %285 = arith.negf %284 : vector<8x128xf32>
    %286 = math.exp %285 : vector<8x128xf32>
    %cst_76 = arith.constant 1.000000e+00 : f32
    %287 = vector.broadcast %cst_76 : f32 to vector<8x128xf32>
    %288 = arith.addf %287, %286 : vector<8x128xf32>
    %289 = arith.divf %287, %288 : vector<8x128xf32>
    %290 = vector.extract_strided_slice %277 {offsets = [0, 256], sizes = [8, 128], strides = [1, 1]} : vector<8x512xf32> to vector<8x128xf32>
    %291 = math.tanh %290 : vector<8x128xf32>
    %292 = vector.extract_strided_slice %277 {offsets = [0, 384], sizes = [8, 128], strides = [1, 1]} : vector<8x512xf32> to vector<8x128xf32>
    %293 = arith.negf %292 : vector<8x128xf32>
    %294 = math.exp %293 : vector<8x128xf32>
    %cst_77 = arith.constant 1.000000e+00 : f32
    %295 = vector.broadcast %cst_77 : f32 to vector<8x128xf32>
    %296 = arith.addf %295, %294 : vector<8x128xf32>
    %297 = arith.divf %295, %296 : vector<8x128xf32>
    %298 = arith.mulf %289, %176 : vector<8x128xf32>
    %299 = arith.mulf %283, %291 : vector<8x128xf32>
    %300 = arith.addf %298, %299 : vector<8x128xf32>
    %301 = math.tanh %300 : vector<8x128xf32>
    %302 = arith.mulf %297, %301 : vector<8x128xf32>
    %303 = arith.truncf %302 : vector<8x128xf32> to vector<8x128xbf16>
    %304 = arith.truncf %209 : vector<8x128xf32> to vector<8x128xbf16>
    %305 = tpu.concatenate %303, %304 in 1 : vector<8x128xbf16>, vector<8x128xbf16> -> vector<8x256xbf16>
    %c0_78 = arith.constant 0 : index
    %c0_79 = arith.constant 0 : index
    %306 = vector.load %arg5[%c0_78, %c0_79] : memref<256x512xbf16, #tpu.memory_space<vmem>>, vector<256x512xbf16>
    %cst_80 = arith.constant dense<0.000000e+00> : vector<8x512xf32>
    %307 = tpu.matmul %305, %306, %cst_80 {dimension_numbers = #tpu.dot_dimension_numbers<[1], [0], [0], [1], [0, 0, 1, 1], [], []>} : vector<8x256xbf16>, vector<256x512xbf16>, vector<8x512xf32> -> vector<8x512xf32>
    %308 = arith.addf %307, %13 : vector<8x512xf32>
    %309 = vector.extract_strided_slice %308 {offsets = [0, 0], sizes = [8, 128], strides = [1, 1]} : vector<8x512xf32> to vector<8x128xf32>
    %310 = arith.negf %309 : vector<8x128xf32>
    %311 = math.exp %310 : vector<8x128xf32>
    %cst_81 = arith.constant 1.000000e+00 : f32
    %312 = vector.broadcast %cst_81 : f32 to vector<8x128xf32>
    %313 = arith.addf %312, %311 : vector<8x128xf32>
    %314 = arith.divf %312, %313 : vector<8x128xf32>
    %315 = vector.extract_strided_slice %308 {offsets = [0, 128], sizes = [8, 128], strides = [1, 1]} : vector<8x512xf32> to vector<8x128xf32>
    %316 = arith.negf %315 : vector<8x128xf32>
    %317 = math.exp %316 : vector<8x128xf32>
    %cst_82 = arith.constant 1.000000e+00 : f32
    %318 = vector.broadcast %cst_82 : f32 to vector<8x128xf32>
    %319 = arith.addf %318, %317 : vector<8x128xf32>
    %320 = arith.divf %318, %319 : vector<8x128xf32>
    %321 = vector.extract_strided_slice %308 {offsets = [0, 256], sizes = [8, 128], strides = [1, 1]} : vector<8x512xf32> to vector<8x128xf32>
    %322 = math.tanh %321 : vector<8x128xf32>
    %323 = vector.extract_strided_slice %308 {offsets = [0, 384], sizes = [8, 128], strides = [1, 1]} : vector<8x512xf32> to vector<8x128xf32>
    %324 = arith.negf %323 : vector<8x128xf32>
    %325 = math.exp %324 : vector<8x128xf32>
    %cst_83 = arith.constant 1.000000e+00 : f32
    %326 = vector.broadcast %cst_83 : f32 to vector<8x128xf32>
    %327 = arith.addf %326, %325 : vector<8x128xf32>
    %328 = arith.divf %326, %327 : vector<8x128xf32>
    %329 = arith.mulf %320, %207 : vector<8x128xf32>
    %330 = arith.mulf %314, %322 : vector<8x128xf32>
    %331 = arith.addf %329, %330 : vector<8x128xf32>
    %332 = math.tanh %331 : vector<8x128xf32>
    %333 = arith.mulf %328, %332 : vector<8x128xf32>
    %334 = arith.truncf %333 : vector<8x128xf32> to vector<8x128xbf16>
    %335 = arith.truncf %240 : vector<8x128xf32> to vector<8x128xbf16>
    %336 = tpu.concatenate %334, %335 in 1 : vector<8x128xbf16>, vector<8x128xbf16> -> vector<8x256xbf16>
    %c0_84 = arith.constant 0 : index
    %c0_85 = arith.constant 0 : index
    %337 = vector.load %arg13[%c0_84, %c0_85] : memref<256x512xbf16, #tpu.memory_space<vmem>>, vector<256x512xbf16>
    %cst_86 = arith.constant dense<0.000000e+00> : vector<8x512xf32>
    %338 = tpu.matmul %336, %337, %cst_86 {dimension_numbers = #tpu.dot_dimension_numbers<[1], [0], [0], [1], [0, 0, 1, 1], [], []>} : vector<8x256xbf16>, vector<256x512xbf16>, vector<8x512xf32> -> vector<8x512xf32>
    %339 = arith.addf %338, %16 : vector<8x512xf32>
    %340 = vector.extract_strided_slice %339 {offsets = [0, 0], sizes = [8, 128], strides = [1, 1]} : vector<8x512xf32> to vector<8x128xf32>
    %341 = arith.negf %340 : vector<8x128xf32>
    %342 = math.exp %341 : vector<8x128xf32>
    %cst_87 = arith.constant 1.000000e+00 : f32
    %343 = vector.broadcast %cst_87 : f32 to vector<8x128xf32>
    %344 = arith.addf %343, %342 : vector<8x128xf32>
    %345 = arith.divf %343, %344 : vector<8x128xf32>
    %346 = vector.extract_strided_slice %339 {offsets = [0, 128], sizes = [8, 128], strides = [1, 1]} : vector<8x512xf32> to vector<8x128xf32>
    %347 = arith.negf %346 : vector<8x128xf32>
    %348 = math.exp %347 : vector<8x128xf32>
    %cst_88 = arith.constant 1.000000e+00 : f32
    %349 = vector.broadcast %cst_88 : f32 to vector<8x128xf32>
    %350 = arith.addf %349, %348 : vector<8x128xf32>
    %351 = arith.divf %349, %350 : vector<8x128xf32>
    %352 = vector.extract_strided_slice %339 {offsets = [0, 256], sizes = [8, 128], strides = [1, 1]} : vector<8x512xf32> to vector<8x128xf32>
    %353 = math.tanh %352 : vector<8x128xf32>
    %354 = vector.extract_strided_slice %339 {offsets = [0, 384], sizes = [8, 128], strides = [1, 1]} : vector<8x512xf32> to vector<8x128xf32>
    %355 = arith.negf %354 : vector<8x128xf32>
    %356 = math.exp %355 : vector<8x128xf32>
    %cst_89 = arith.constant 1.000000e+00 : f32
    %357 = vector.broadcast %cst_89 : f32 to vector<8x128xf32>
    %358 = arith.addf %357, %356 : vector<8x128xf32>
    %359 = arith.divf %357, %358 : vector<8x128xf32>
    %360 = arith.mulf %351, %238 : vector<8x128xf32>
    %361 = arith.mulf %345, %353 : vector<8x128xf32>
    %362 = arith.addf %360, %361 : vector<8x128xf32>
    %363 = math.tanh %362 : vector<8x128xf32>
    %364 = arith.mulf %359, %363 : vector<8x128xf32>
    %365 = arith.truncf %364 : vector<8x128xf32> to vector<8x128xbf16>
    %366 = arith.truncf %271 : vector<8x128xf32> to vector<8x128xbf16>
    %367 = tpu.concatenate %365, %366 in 1 : vector<8x128xbf16>, vector<8x128xbf16> -> vector<8x256xbf16>
    %c0_90 = arith.constant 0 : index
    %c0_91 = arith.constant 0 : index
    %368 = vector.load %arg14[%c0_90, %c0_91] : memref<256x512xbf16, #tpu.memory_space<vmem>>, vector<256x512xbf16>
    %cst_92 = arith.constant dense<0.000000e+00> : vector<8x512xf32>
    %369 = tpu.matmul %367, %368, %cst_92 {dimension_numbers = #tpu.dot_dimension_numbers<[1], [0], [0], [1], [0, 0, 1, 1], [], []>} : vector<8x256xbf16>, vector<256x512xbf16>, vector<8x512xf32> -> vector<8x512xf32>
    %370 = arith.addf %369, %19 : vector<8x512xf32>
    %371 = vector.extract_strided_slice %370 {offsets = [0, 0], sizes = [8, 128], strides = [1, 1]} : vector<8x512xf32> to vector<8x128xf32>
    %372 = arith.negf %371 : vector<8x128xf32>
    %373 = math.exp %372 : vector<8x128xf32>
    %cst_93 = arith.constant 1.000000e+00 : f32
    %374 = vector.broadcast %cst_93 : f32 to vector<8x128xf32>
    %375 = arith.addf %374, %373 : vector<8x128xf32>
    %376 = arith.divf %374, %375 : vector<8x128xf32>
    %377 = vector.extract_strided_slice %370 {offsets = [0, 128], sizes = [8, 128], strides = [1, 1]} : vector<8x512xf32> to vector<8x128xf32>
    %378 = arith.negf %377 : vector<8x128xf32>
    %379 = math.exp %378 : vector<8x128xf32>
    %cst_94 = arith.constant 1.000000e+00 : f32
    %380 = vector.broadcast %cst_94 : f32 to vector<8x128xf32>
    %381 = arith.addf %380, %379 : vector<8x128xf32>
    %382 = arith.divf %380, %381 : vector<8x128xf32>
    %383 = vector.extract_strided_slice %370 {offsets = [0, 256], sizes = [8, 128], strides = [1, 1]} : vector<8x512xf32> to vector<8x128xf32>
    %384 = math.tanh %383 : vector<8x128xf32>
    %385 = vector.extract_strided_slice %370 {offsets = [0, 384], sizes = [8, 128], strides = [1, 1]} : vector<8x512xf32> to vector<8x128xf32>
    %386 = arith.negf %385 : vector<8x128xf32>
    %387 = math.exp %386 : vector<8x128xf32>
    %cst_95 = arith.constant 1.000000e+00 : f32
    %388 = vector.broadcast %cst_95 : f32 to vector<8x128xf32>
    %389 = arith.addf %388, %387 : vector<8x128xf32>
    %390 = arith.divf %388, %389 : vector<8x128xf32>
    %391 = arith.mulf %382, %269 : vector<8x128xf32>
    %392 = arith.mulf %376, %384 : vector<8x128xf32>
    %393 = arith.addf %391, %392 : vector<8x128xf32>
    %394 = math.tanh %393 : vector<8x128xf32>
    %395 = arith.mulf %390, %394 : vector<8x128xf32>
    %c16_96 = arith.constant 16 : index
    %c0_97 = arith.constant 0 : index
    %396 = vector.load %arg11[%c16_96, %c0_97] : memref<64x128xf32, #tpu.memory_space<vmem>>, vector<8x128xf32>
    tpu.vector_store %arg11[%c16_96, %c0_97], %395 {strides = array<i32>} : memref<64x128xf32, #tpu.memory_space<vmem>>, vector<8x128xf32>,
    %c24 = arith.constant 24 : index
    %c0_98 = arith.constant 0 : index
    %397 = vector.load %arg12[%c24, %c0_98] : memref<64x512xf32, #tpu.memory_space<vmem>>, vector<8x512xf32>
    %398 = arith.truncf %302 : vector<8x128xf32> to vector<8x128xbf16>
    %c0_99 = arith.constant 0 : index
    %c0_100 = arith.constant 0 : index
    %399 = vector.load %arg4[%c0_99, %c0_100] : memref<128x512xbf16, #tpu.memory_space<vmem>>, vector<128x512xbf16>
    %cst_101 = arith.constant dense<0.000000e+00> : vector<8x512xf32>
    %400 = tpu.matmul %398, %399, %cst_101 {dimension_numbers = #tpu.dot_dimension_numbers<[1], [0], [0], [1], [0, 0, 1, 1], [], []>} : vector<8x128xbf16>, vector<128x512xbf16>, vector<8x512xf32> -> vector<8x512xf32>
    %401 = arith.addf %397, %400 : vector<8x512xf32>
    %402 = vector.extract_strided_slice %401 {offsets = [0, 0], sizes = [8, 128], strides = [1, 1]} : vector<8x512xf32> to vector<8x128xf32>
    %403 = arith.negf %402 : vector<8x128xf32>
    %404 = math.exp %403 : vector<8x128xf32>
    %cst_102 = arith.constant 1.000000e+00 : f32
    %405 = vector.broadcast %cst_102 : f32 to vector<8x128xf32>
    %406 = arith.addf %405, %404 : vector<8x128xf32>
    %407 = arith.divf %405, %406 : vector<8x128xf32>
    %408 = vector.extract_strided_slice %401 {offsets = [0, 128], sizes = [8, 128], strides = [1, 1]} : vector<8x512xf32> to vector<8x128xf32>
    %409 = arith.negf %408 : vector<8x128xf32>
    %410 = math.exp %409 : vector<8x128xf32>
    %cst_103 = arith.constant 1.000000e+00 : f32
    %411 = vector.broadcast %cst_103 : f32 to vector<8x128xf32>
    %412 = arith.addf %411, %410 : vector<8x128xf32>
    %413 = arith.divf %411, %412 : vector<8x128xf32>
    %414 = vector.extract_strided_slice %401 {offsets = [0, 256], sizes = [8, 128], strides = [1, 1]} : vector<8x512xf32> to vector<8x128xf32>
    %415 = math.tanh %414 : vector<8x128xf32>
    %416 = vector.extract_strided_slice %401 {offsets = [0, 384], sizes = [8, 128], strides = [1, 1]} : vector<8x512xf32> to vector<8x128xf32>
    %417 = arith.negf %416 : vector<8x128xf32>
    %418 = math.exp %417 : vector<8x128xf32>
    %cst_104 = arith.constant 1.000000e+00 : f32
    %419 = vector.broadcast %cst_104 : f32 to vector<8x128xf32>
    %420 = arith.addf %419, %418 : vector<8x128xf32>
    %421 = arith.divf %419, %420 : vector<8x128xf32>
    %422 = arith.mulf %413, %300 : vector<8x128xf32>
    %423 = arith.mulf %407, %415 : vector<8x128xf32>
    %424 = arith.addf %422, %423 : vector<8x128xf32>
    %425 = math.tanh %424 : vector<8x128xf32>
    %426 = arith.mulf %421, %425 : vector<8x128xf32>
    %427 = arith.truncf %426 : vector<8x128xf32> to vector<8x128xbf16>
    %428 = arith.truncf %333 : vector<8x128xf32> to vector<8x128xbf16>
    %429 = tpu.concatenate %427, %428 in 1 : vector<8x128xbf16>, vector<8x128xbf16> -> vector<8x256xbf16>
    %c0_105 = arith.constant 0 : index
    %c0_106 = arith.constant 0 : index
    %430 = vector.load %arg5[%c0_105, %c0_106] : memref<256x512xbf16, #tpu.memory_space<vmem>>, vector<256x512xbf16>
    %cst_107 = arith.constant dense<0.000000e+00> : vector<8x512xf32>
    %431 = tpu.matmul %429, %430, %cst_107 {dimension_numbers = #tpu.dot_dimension_numbers<[1], [0], [0], [1], [0, 0, 1, 1], [], []>} : vector<8x256xbf16>, vector<256x512xbf16>, vector<8x512xf32> -> vector<8x512xf32>
    %432 = arith.addf %431, %13 : vector<8x512xf32>
    %433 = vector.extract_strided_slice %432 {offsets = [0, 0], sizes = [8, 128], strides = [1, 1]} : vector<8x512xf32> to vector<8x128xf32>
    %434 = arith.negf %433 : vector<8x128xf32>
    %435 = math.exp %434 : vector<8x128xf32>
    %cst_108 = arith.constant 1.000000e+00 : f32
    %436 = vector.broadcast %cst_108 : f32 to vector<8x128xf32>
    %437 = arith.addf %436, %435 : vector<8x128xf32>
    %438 = arith.divf %436, %437 : vector<8x128xf32>
    %439 = vector.extract_strided_slice %432 {offsets = [0, 128], sizes = [8, 128], strides = [1, 1]} : vector<8x512xf32> to vector<8x128xf32>
    %440 = arith.negf %439 : vector<8x128xf32>
    %441 = math.exp %440 : vector<8x128xf32>
    %cst_109 = arith.constant 1.000000e+00 : f32
    %442 = vector.broadcast %cst_109 : f32 to vector<8x128xf32>
    %443 = arith.addf %442, %441 : vector<8x128xf32>
    %444 = arith.divf %442, %443 : vector<8x128xf32>
    %445 = vector.extract_strided_slice %432 {offsets = [0, 256], sizes = [8, 128], strides = [1, 1]} : vector<8x512xf32> to vector<8x128xf32>
    %446 = math.tanh %445 : vector<8x128xf32>
    %447 = vector.extract_strided_slice %432 {offsets = [0, 384], sizes = [8, 128], strides = [1, 1]} : vector<8x512xf32> to vector<8x128xf32>
    %448 = arith.negf %447 : vector<8x128xf32>
    %449 = math.exp %448 : vector<8x128xf32>
    %cst_110 = arith.constant 1.000000e+00 : f32
    %450 = vector.broadcast %cst_110 : f32 to vector<8x128xf32>
    %451 = arith.addf %450, %449 : vector<8x128xf32>
    %452 = arith.divf %450, %451 : vector<8x128xf32>
    %453 = arith.mulf %444, %331 : vector<8x128xf32>
    %454 = arith.mulf %438, %446 : vector<8x128xf32>
    %455 = arith.addf %453, %454 : vector<8x128xf32>
    %456 = math.tanh %455 : vector<8x128xf32>
    %457 = arith.mulf %452, %456 : vector<8x128xf32>
    %458 = arith.truncf %457 : vector<8x128xf32> to vector<8x128xbf16>
    %459 = arith.truncf %364 : vector<8x128xf32> to vector<8x128xbf16>
    %460 = tpu.concatenate %458, %459 in 1 : vector<8x128xbf16>, vector<8x128xbf16> -> vector<8x256xbf16>
    %c0_111 = arith.constant 0 : index
    %c0_112 = arith.constant 0 : index
    %461 = vector.load %arg13[%c0_111, %c0_112] : memref<256x512xbf16, #tpu.memory_space<vmem>>, vector<256x512xbf16>
    %cst_113 = arith.constant dense<0.000000e+00> : vector<8x512xf32>
    %462 = tpu.matmul %460, %461, %cst_113 {dimension_numbers = #tpu.dot_dimension_numbers<[1], [0], [0], [1], [0, 0, 1, 1], [], []>} : vector<8x256xbf16>, vector<256x512xbf16>, vector<8x512xf32> -> vector<8x512xf32>
    %463 = arith.addf %462, %16 : vector<8x512xf32>
    %464 = vector.extract_strided_slice %463 {offsets = [0, 0], sizes = [8, 128], strides = [1, 1]} : vector<8x512xf32> to vector<8x128xf32>
    %465 = arith.negf %464 : vector<8x128xf32>
    %466 = math.exp %465 : vector<8x128xf32>
    %cst_114 = arith.constant 1.000000e+00 : f32
    %467 = vector.broadcast %cst_114 : f32 to vector<8x128xf32>
    %468 = arith.addf %467, %466 : vector<8x128xf32>
    %469 = arith.divf %467, %468 : vector<8x128xf32>
    %470 = vector.extract_strided_slice %463 {offsets = [0, 128], sizes = [8, 128], strides = [1, 1]} : vector<8x512xf32> to vector<8x128xf32>
    %471 = arith.negf %470 : vector<8x128xf32>
    %472 = math.exp %471 : vector<8x128xf32>
    %cst_115 = arith.constant 1.000000e+00 : f32
    %473 = vector.broadcast %cst_115 : f32 to vector<8x128xf32>
    %474 = arith.addf %473, %472 : vector<8x128xf32>
    %475 = arith.divf %473, %474 : vector<8x128xf32>
    %476 = vector.extract_strided_slice %463 {offsets = [0, 256], sizes = [8, 128], strides = [1, 1]} : vector<8x512xf32> to vector<8x128xf32>
    %477 = math.tanh %476 : vector<8x128xf32>
    %478 = vector.extract_strided_slice %463 {offsets = [0, 384], sizes = [8, 128], strides = [1, 1]} : vector<8x512xf32> to vector<8x128xf32>
    %479 = arith.negf %478 : vector<8x128xf32>
    %480 = math.exp %479 : vector<8x128xf32>
    %cst_116 = arith.constant 1.000000e+00 : f32
    %481 = vector.broadcast %cst_116 : f32 to vector<8x128xf32>
    %482 = arith.addf %481, %480 : vector<8x128xf32>
    %483 = arith.divf %481, %482 : vector<8x128xf32>
    %484 = arith.mulf %475, %362 : vector<8x128xf32>
    %485 = arith.mulf %469, %477 : vector<8x128xf32>
    %486 = arith.addf %484, %485 : vector<8x128xf32>
    %487 = math.tanh %486 : vector<8x128xf32>
    %488 = arith.mulf %483, %487 : vector<8x128xf32>
    %489 = arith.truncf %488 : vector<8x128xf32> to vector<8x128xbf16>
    %490 = arith.truncf %395 : vector<8x128xf32> to vector<8x128xbf16>
    %491 = tpu.concatenate %489, %490 in 1 : vector<8x128xbf16>, vector<8x128xbf16> -> vector<8x256xbf16>
    %c0_117 = arith.constant 0 : index
    %c0_118 = arith.constant 0 : index
    %492 = vector.load %arg14[%c0_117, %c0_118] : memref<256x512xbf16, #tpu.memory_space<vmem>>, vector<256x512xbf16>
    %cst_119 = arith.constant dense<0.000000e+00> : vector<8x512xf32>
    %493 = tpu.matmul %491, %492, %cst_119 {dimension_numbers = #tpu.dot_dimension_numbers<[1], [0], [0], [1], [0, 0, 1, 1], [], []>} : vector<8x256xbf16>, vector<256x512xbf16>, vector<8x512xf32> -> vector<8x512xf32>
    %494 = arith.addf %493, %19 : vector<8x512xf32>
    %495 = vector.extract_strided_slice %494 {offsets = [0, 0], sizes = [8, 128], strides = [1, 1]} : vector<8x512xf32> to vector<8x128xf32>
    %496 = arith.negf %495 : vector<8x128xf32>
    %497 = math.exp %496 : vector<8x128xf32>
    %cst_120 = arith.constant 1.000000e+00 : f32
    %498 = vector.broadcast %cst_120 : f32 to vector<8x128xf32>
    %499 = arith.addf %498, %497 : vector<8x128xf32>
    %500 = arith.divf %498, %499 : vector<8x128xf32>
    %501 = vector.extract_strided_slice %494 {offsets = [0, 128], sizes = [8, 128], strides = [1, 1]} : vector<8x512xf32> to vector<8x128xf32>
    %502 = arith.negf %501 : vector<8x128xf32>
    %503 = math.exp %502 : vector<8x128xf32>
    %cst_121 = arith.constant 1.000000e+00 : f32
    %504 = vector.broadcast %cst_121 : f32 to vector<8x128xf32>
    %505 = arith.addf %504, %503 : vector<8x128xf32>
    %506 = arith.divf %504, %505 : vector<8x128xf32>
    %507 = vector.extract_strided_slice %494 {offsets = [0, 256], sizes = [8, 128], strides = [1, 1]} : vector<8x512xf32> to vector<8x128xf32>
    %508 = math.tanh %507 : vector<8x128xf32>
    %509 = vector.extract_strided_slice %494 {offsets = [0, 384], sizes = [8, 128], strides = [1, 1]} : vector<8x512xf32> to vector<8x128xf32>
    %510 = arith.negf %509 : vector<8x128xf32>
    %511 = math.exp %510 : vector<8x128xf32>
    %cst_122 = arith.constant 1.000000e+00 : f32
    %512 = vector.broadcast %cst_122 : f32 to vector<8x128xf32>
    %513 = arith.addf %512, %511 : vector<8x128xf32>
    %514 = arith.divf %512, %513 : vector<8x128xf32>
    %515 = arith.mulf %506, %393 : vector<8x128xf32>
    %516 = arith.mulf %500, %508 : vector<8x128xf32>
    %517 = arith.addf %515, %516 : vector<8x128xf32>
    %518 = math.tanh %517 : vector<8x128xf32>
    %519 = arith.mulf %514, %518 : vector<8x128xf32>
    %c24_123 = arith.constant 24 : index
    %c0_124 = arith.constant 0 : index
    %520 = vector.load %arg11[%c24_123, %c0_124] : memref<64x128xf32, #tpu.memory_space<vmem>>, vector<8x128xf32>
    tpu.vector_store %arg11[%c24_123, %c0_124], %519 {strides = array<i32>} : memref<64x128xf32, #tpu.memory_space<vmem>>, vector<8x128xf32>,
    %c32 = arith.constant 32 : index
    %c0_125 = arith.constant 0 : index
    %521 = vector.load %arg12[%c32, %c0_125] : memref<64x512xf32, #tpu.memory_space<vmem>>, vector<8x512xf32>
    %522 = arith.truncf %426 : vector<8x128xf32> to vector<8x128xbf16>
    %c0_126 = arith.constant 0 : index
    %c0_127 = arith.constant 0 : index
    %523 = vector.load %arg4[%c0_126, %c0_127] : memref<128x512xbf16, #tpu.memory_space<vmem>>, vector<128x512xbf16>
    %cst_128 = arith.constant dense<0.000000e+00> : vector<8x512xf32>
    %524 = tpu.matmul %522, %523, %cst_128 {dimension_numbers = #tpu.dot_dimension_numbers<[1], [0], [0], [1], [0, 0, 1, 1], [], []>} : vector<8x128xbf16>, vector<128x512xbf16>, vector<8x512xf32> -> vector<8x512xf32>
    %525 = arith.addf %521, %524 : vector<8x512xf32>
    %526 = vector.extract_strided_slice %525 {offsets = [0, 0], sizes = [8, 128], strides = [1, 1]} : vector<8x512xf32> to vector<8x128xf32>
    %527 = arith.negf %526 : vector<8x128xf32>
    %528 = math.exp %527 : vector<8x128xf32>
    %cst_129 = arith.constant 1.000000e+00 : f32
    %529 = vector.broadcast %cst_129 : f32 to vector<8x128xf32>
    %530 = arith.addf %529, %528 : vector<8x128xf32>
    %531 = arith.divf %529, %530 : vector<8x128xf32>
    %532 = vector.extract_strided_slice %525 {offsets = [0, 128], sizes = [8, 128], strides = [1, 1]} : vector<8x512xf32> to vector<8x128xf32>
    %533 = arith.negf %532 : vector<8x128xf32>
    %534 = math.exp %533 : vector<8x128xf32>
    %cst_130 = arith.constant 1.000000e+00 : f32
    %535 = vector.broadcast %cst_130 : f32 to vector<8x128xf32>
    %536 = arith.addf %535, %534 : vector<8x128xf32>
    %537 = arith.divf %535, %536 : vector<8x128xf32>
    %538 = vector.extract_strided_slice %525 {offsets = [0, 256], sizes = [8, 128], strides = [1, 1]} : vector<8x512xf32> to vector<8x128xf32>
    %539 = math.tanh %538 : vector<8x128xf32>
    %540 = vector.extract_strided_slice %525 {offsets = [0, 384], sizes = [8, 128], strides = [1, 1]} : vector<8x512xf32> to vector<8x128xf32>
    %541 = arith.negf %540 : vector<8x128xf32>
    %542 = math.exp %541 : vector<8x128xf32>
    %cst_131 = arith.constant 1.000000e+00 : f32
    %543 = vector.broadcast %cst_131 : f32 to vector<8x128xf32>
    %544 = arith.addf %543, %542 : vector<8x128xf32>
    %545 = arith.divf %543, %544 : vector<8x128xf32>
    %546 = arith.mulf %537, %424 : vector<8x128xf32>
    %547 = arith.mulf %531, %539 : vector<8x128xf32>
    %548 = arith.addf %546, %547 : vector<8x128xf32>
    %549 = math.tanh %548 : vector<8x128xf32>
    %550 = arith.mulf %545, %549 : vector<8x128xf32>
    %551 = arith.truncf %550 : vector<8x128xf32> to vector<8x128xbf16>
    %552 = arith.truncf %457 : vector<8x128xf32> to vector<8x128xbf16>
    %553 = tpu.concatenate %551, %552 in 1 : vector<8x128xbf16>, vector<8x128xbf16> -> vector<8x256xbf16>
    %c0_132 = arith.constant 0 : index
    %c0_133 = arith.constant 0 : index
    %554 = vector.load %arg5[%c0_132, %c0_133] : memref<256x512xbf16, #tpu.memory_space<vmem>>, vector<256x512xbf16>
    %cst_134 = arith.constant dense<0.000000e+00> : vector<8x512xf32>
    %555 = tpu.matmul %553, %554, %cst_134 {dimension_numbers = #tpu.dot_dimension_numbers<[1], [0], [0], [1], [0, 0, 1, 1], [], []>} : vector<8x256xbf16>, vector<256x512xbf16>, vector<8x512xf32> -> vector<8x512xf32>
    %556 = arith.addf %555, %13 : vector<8x512xf32>
    %557 = vector.extract_strided_slice %556 {offsets = [0, 0], sizes = [8, 128], strides = [1, 1]} : vector<8x512xf32> to vector<8x128xf32>
    %558 = arith.negf %557 : vector<8x128xf32>
    %559 = math.exp %558 : vector<8x128xf32>
    %cst_135 = arith.constant 1.000000e+00 : f32
    %560 = vector.broadcast %cst_135 : f32 to vector<8x128xf32>
    %561 = arith.addf %560, %559 : vector<8x128xf32>
    %562 = arith.divf %560, %561 : vector<8x128xf32>
    %563 = vector.extract_strided_slice %556 {offsets = [0, 128], sizes = [8, 128], strides = [1, 1]} : vector<8x512xf32> to vector<8x128xf32>
    %564 = arith.negf %563 : vector<8x128xf32>
    %565 = math.exp %564 : vector<8x128xf32>
    %cst_136 = arith.constant 1.000000e+00 : f32
    %566 = vector.broadcast %cst_136 : f32 to vector<8x128xf32>
    %567 = arith.addf %566, %565 : vector<8x128xf32>
    %568 = arith.divf %566, %567 : vector<8x128xf32>
    %569 = vector.extract_strided_slice %556 {offsets = [0, 256], sizes = [8, 128], strides = [1, 1]} : vector<8x512xf32> to vector<8x128xf32>
    %570 = math.tanh %569 : vector<8x128xf32>
    %571 = vector.extract_strided_slice %556 {offsets = [0, 384], sizes = [8, 128], strides = [1, 1]} : vector<8x512xf32> to vector<8x128xf32>
    %572 = arith.negf %571 : vector<8x128xf32>
    %573 = math.exp %572 : vector<8x128xf32>
    %cst_137 = arith.constant 1.000000e+00 : f32
    %574 = vector.broadcast %cst_137 : f32 to vector<8x128xf32>
    %575 = arith.addf %574, %573 : vector<8x128xf32>
    %576 = arith.divf %574, %575 : vector<8x128xf32>
    %577 = arith.mulf %568, %455 : vector<8x128xf32>
    %578 = arith.mulf %562, %570 : vector<8x128xf32>
    %579 = arith.addf %577, %578 : vector<8x128xf32>
    %580 = math.tanh %579 : vector<8x128xf32>
    %581 = arith.mulf %576, %580 : vector<8x128xf32>
    %582 = arith.truncf %581 : vector<8x128xf32> to vector<8x128xbf16>
    %583 = arith.truncf %488 : vector<8x128xf32> to vector<8x128xbf16>
    %584 = tpu.concatenate %582, %583 in 1 : vector<8x128xbf16>, vector<8x128xbf16> -> vector<8x256xbf16>
    %c0_138 = arith.constant 0 : index
    %c0_139 = arith.constant 0 : index
    %585 = vector.load %arg13[%c0_138, %c0_139] : memref<256x512xbf16, #tpu.memory_space<vmem>>, vector<256x512xbf16>
    %cst_140 = arith.constant dense<0.000000e+00> : vector<8x512xf32>
    %586 = tpu.matmul %584, %585, %cst_140 {dimension_numbers = #tpu.dot_dimension_numbers<[1], [0], [0], [1], [0, 0, 1, 1], [], []>} : vector<8x256xbf16>, vector<256x512xbf16>, vector<8x512xf32> -> vector<8x512xf32>
    %587 = arith.addf %586, %16 : vector<8x512xf32>
    %588 = vector.extract_strided_slice %587 {offsets = [0, 0], sizes = [8, 128], strides = [1, 1]} : vector<8x512xf32> to vector<8x128xf32>
    %589 = arith.negf %588 : vector<8x128xf32>
    %590 = math.exp %589 : vector<8x128xf32>
    %cst_141 = arith.constant 1.000000e+00 : f32
    %591 = vector.broadcast %cst_141 : f32 to vector<8x128xf32>
    %592 = arith.addf %591, %590 : vector<8x128xf32>
    %593 = arith.divf %591, %592 : vector<8x128xf32>
    %594 = vector.extract_strided_slice %587 {offsets = [0, 128], sizes = [8, 128], strides = [1, 1]} : vector<8x512xf32> to vector<8x128xf32>
    %595 = arith.negf %594 : vector<8x128xf32>
    %596 = math.exp %595 : vector<8x128xf32>
    %cst_142 = arith.constant 1.000000e+00 : f32
    %597 = vector.broadcast %cst_142 : f32 to vector<8x128xf32>
    %598 = arith.addf %597, %596 : vector<8x128xf32>
    %599 = arith.divf %597, %598 : vector<8x128xf32>
    %600 = vector.extract_strided_slice %587 {offsets = [0, 256], sizes = [8, 128], strides = [1, 1]} : vector<8x512xf32> to vector<8x128xf32>
    %601 = math.tanh %600 : vector<8x128xf32>
    %602 = vector.extract_strided_slice %587 {offsets = [0, 384], sizes = [8, 128], strides = [1, 1]} : vector<8x512xf32> to vector<8x128xf32>
    %603 = arith.negf %602 : vector<8x128xf32>
    %604 = math.exp %603 : vector<8x128xf32>
    %cst_143 = arith.constant 1.000000e+00 : f32
    %605 = vector.broadcast %cst_143 : f32 to vector<8x128xf32>
    %606 = arith.addf %605, %604 : vector<8x128xf32>
    %607 = arith.divf %605, %606 : vector<8x128xf32>
    %608 = arith.mulf %599, %486 : vector<8x128xf32>
    %609 = arith.mulf %593, %601 : vector<8x128xf32>
    %610 = arith.addf %608, %609 : vector<8x128xf32>
    %611 = math.tanh %610 : vector<8x128xf32>
    %612 = arith.mulf %607, %611 : vector<8x128xf32>
    %613 = arith.truncf %612 : vector<8x128xf32> to vector<8x128xbf16>
    %614 = arith.truncf %519 : vector<8x128xf32> to vector<8x128xbf16>
    %615 = tpu.concatenate %613, %614 in 1 : vector<8x128xbf16>, vector<8x128xbf16> -> vector<8x256xbf16>
    %c0_144 = arith.constant 0 : index
    %c0_145 = arith.constant 0 : index
    %616 = vector.load %arg14[%c0_144, %c0_145] : memref<256x512xbf16, #tpu.memory_space<vmem>>, vector<256x512xbf16>
    %cst_146 = arith.constant dense<0.000000e+00> : vector<8x512xf32>
    %617 = tpu.matmul %615, %616, %cst_146 {dimension_numbers = #tpu.dot_dimension_numbers<[1], [0], [0], [1], [0, 0, 1, 1], [], []>} : vector<8x256xbf16>, vector<256x512xbf16>, vector<8x512xf32> -> vector<8x512xf32>
    %618 = arith.addf %617, %19 : vector<8x512xf32>
    %619 = vector.extract_strided_slice %618 {offsets = [0, 0], sizes = [8, 128], strides = [1, 1]} : vector<8x512xf32> to vector<8x128xf32>
    %620 = arith.negf %619 : vector<8x128xf32>
    %621 = math.exp %620 : vector<8x128xf32>
    %cst_147 = arith.constant 1.000000e+00 : f32
    %622 = vector.broadcast %cst_147 : f32 to vector<8x128xf32>
    %623 = arith.addf %622, %621 : vector<8x128xf32>
    %624 = arith.divf %622, %623 : vector<8x128xf32>
    %625 = vector.extract_strided_slice %618 {offsets = [0, 128], sizes = [8, 128], strides = [1, 1]} : vector<8x512xf32> to vector<8x128xf32>
    %626 = arith.negf %625 : vector<8x128xf32>
    %627 = math.exp %626 : vector<8x128xf32>
    %cst_148 = arith.constant 1.000000e+00 : f32
    %628 = vector.broadcast %cst_148 : f32 to vector<8x128xf32>
    %629 = arith.addf %628, %627 : vector<8x128xf32>
    %630 = arith.divf %628, %629 : vector<8x128xf32>
    %631 = vector.extract_strided_slice %618 {offsets = [0, 256], sizes = [8, 128], strides = [1, 1]} : vector<8x512xf32> to vector<8x128xf32>
    %632 = math.tanh %631 : vector<8x128xf32>
    %633 = vector.extract_strided_slice %618 {offsets = [0, 384], sizes = [8, 128], strides = [1, 1]} : vector<8x512xf32> to vector<8x128xf32>
    %634 = arith.negf %633 : vector<8x128xf32>
    %635 = math.exp %634 : vector<8x128xf32>
    %cst_149 = arith.constant 1.000000e+00 : f32
    %636 = vector.broadcast %cst_149 : f32 to vector<8x128xf32>
    %637 = arith.addf %636, %635 : vector<8x128xf32>
    %638 = arith.divf %636, %637 : vector<8x128xf32>
    %639 = arith.mulf %630, %517 : vector<8x128xf32>
    %640 = arith.mulf %624, %632 : vector<8x128xf32>
    %641 = arith.addf %639, %640 : vector<8x128xf32>
    %642 = math.tanh %641 : vector<8x128xf32>
    %643 = arith.mulf %638, %642 : vector<8x128xf32>
    %c32_150 = arith.constant 32 : index
    %c0_151 = arith.constant 0 : index
    %644 = vector.load %arg11[%c32_150, %c0_151] : memref<64x128xf32, #tpu.memory_space<vmem>>, vector<8x128xf32>
    tpu.vector_store %arg11[%c32_150, %c0_151], %643 {strides = array<i32>} : memref<64x128xf32, #tpu.memory_space<vmem>>, vector<8x128xf32>,
    %c40 = arith.constant 40 : index
    %c0_152 = arith.constant 0 : index
    %645 = vector.load %arg12[%c40, %c0_152] : memref<64x512xf32, #tpu.memory_space<vmem>>, vector<8x512xf32>
    %646 = arith.truncf %550 : vector<8x128xf32> to vector<8x128xbf16>
    %c0_153 = arith.constant 0 : index
    %c0_154 = arith.constant 0 : index
    %647 = vector.load %arg4[%c0_153, %c0_154] : memref<128x512xbf16, #tpu.memory_space<vmem>>, vector<128x512xbf16>
    %cst_155 = arith.constant dense<0.000000e+00> : vector<8x512xf32>
    %648 = tpu.matmul %646, %647, %cst_155 {dimension_numbers = #tpu.dot_dimension_numbers<[1], [0], [0], [1], [0, 0, 1, 1], [], []>} : vector<8x128xbf16>, vector<128x512xbf16>, vector<8x512xf32> -> vector<8x512xf32>
    %649 = arith.addf %645, %648 : vector<8x512xf32>
    %650 = vector.extract_strided_slice %649 {offsets = [0, 0], sizes = [8, 128], strides = [1, 1]} : vector<8x512xf32> to vector<8x128xf32>
    %651 = arith.negf %650 : vector<8x128xf32>
    %652 = math.exp %651 : vector<8x128xf32>
    %cst_156 = arith.constant 1.000000e+00 : f32
    %653 = vector.broadcast %cst_156 : f32 to vector<8x128xf32>
    %654 = arith.addf %653, %652 : vector<8x128xf32>
    %655 = arith.divf %653, %654 : vector<8x128xf32>
    %656 = vector.extract_strided_slice %649 {offsets = [0, 128], sizes = [8, 128], strides = [1, 1]} : vector<8x512xf32> to vector<8x128xf32>
    %657 = arith.negf %656 : vector<8x128xf32>
    %658 = math.exp %657 : vector<8x128xf32>
    %cst_157 = arith.constant 1.000000e+00 : f32
    %659 = vector.broadcast %cst_157 : f32 to vector<8x128xf32>
    %660 = arith.addf %659, %658 : vector<8x128xf32>
    %661 = arith.divf %659, %660 : vector<8x128xf32>
    %662 = vector.extract_strided_slice %649 {offsets = [0, 256], sizes = [8, 128], strides = [1, 1]} : vector<8x512xf32> to vector<8x128xf32>
    %663 = math.tanh %662 : vector<8x128xf32>
    %664 = vector.extract_strided_slice %649 {offsets = [0, 384], sizes = [8, 128], strides = [1, 1]} : vector<8x512xf32> to vector<8x128xf32>
    %665 = arith.negf %664 : vector<8x128xf32>
    %666 = math.exp %665 : vector<8x128xf32>
    %cst_158 = arith.constant 1.000000e+00 : f32
    %667 = vector.broadcast %cst_158 : f32 to vector<8x128xf32>
    %668 = arith.addf %667, %666 : vector<8x128xf32>
    %669 = arith.divf %667, %668 : vector<8x128xf32>
    %670 = arith.mulf %661, %548 : vector<8x128xf32>
    %671 = arith.mulf %655, %663 : vector<8x128xf32>
    %672 = arith.addf %670, %671 : vector<8x128xf32>
    %673 = math.tanh %672 : vector<8x128xf32>
    %674 = arith.mulf %669, %673 : vector<8x128xf32>
    %675 = arith.truncf %674 : vector<8x128xf32> to vector<8x128xbf16>
    %676 = arith.truncf %581 : vector<8x128xf32> to vector<8x128xbf16>
    %677 = tpu.concatenate %675, %676 in 1 : vector<8x128xbf16>, vector<8x128xbf16> -> vector<8x256xbf16>
    %c0_159 = arith.constant 0 : index
    %c0_160 = arith.constant 0 : index
    %678 = vector.load %arg5[%c0_159, %c0_160] : memref<256x512xbf16, #tpu.memory_space<vmem>>, vector<256x512xbf16>
    %cst_161 = arith.constant dense<0.000000e+00> : vector<8x512xf32>
    %679 = tpu.matmul %677, %678, %cst_161 {dimension_numbers = #tpu.dot_dimension_numbers<[1], [0], [0], [1], [0, 0, 1, 1], [], []>} : vector<8x256xbf16>, vector<256x512xbf16>, vector<8x512xf32> -> vector<8x512xf32>
    %680 = arith.addf %679, %13 : vector<8x512xf32>
    %681 = vector.extract_strided_slice %680 {offsets = [0, 0], sizes = [8, 128], strides = [1, 1]} : vector<8x512xf32> to vector<8x128xf32>
    %682 = arith.negf %681 : vector<8x128xf32>
    %683 = math.exp %682 : vector<8x128xf32>
    %cst_162 = arith.constant 1.000000e+00 : f32
    %684 = vector.broadcast %cst_162 : f32 to vector<8x128xf32>
    %685 = arith.addf %684, %683 : vector<8x128xf32>
    %686 = arith.divf %684, %685 : vector<8x128xf32>
    %687 = vector.extract_strided_slice %680 {offsets = [0, 128], sizes = [8, 128], strides = [1, 1]} : vector<8x512xf32> to vector<8x128xf32>
    %688 = arith.negf %687 : vector<8x128xf32>
    %689 = math.exp %688 : vector<8x128xf32>
    %cst_163 = arith.constant 1.000000e+00 : f32
    %690 = vector.broadcast %cst_163 : f32 to vector<8x128xf32>
    %691 = arith.addf %690, %689 : vector<8x128xf32>
    %692 = arith.divf %690, %691 : vector<8x128xf32>
    %693 = vector.extract_strided_slice %680 {offsets = [0, 256], sizes = [8, 128], strides = [1, 1]} : vector<8x512xf32> to vector<8x128xf32>
    %694 = math.tanh %693 : vector<8x128xf32>
    %695 = vector.extract_strided_slice %680 {offsets = [0, 384], sizes = [8, 128], strides = [1, 1]} : vector<8x512xf32> to vector<8x128xf32>
    %696 = arith.negf %695 : vector<8x128xf32>
    %697 = math.exp %696 : vector<8x128xf32>
    %cst_164 = arith.constant 1.000000e+00 : f32
    %698 = vector.broadcast %cst_164 : f32 to vector<8x128xf32>
    %699 = arith.addf %698, %697 : vector<8x128xf32>
    %700 = arith.divf %698, %699 : vector<8x128xf32>
    %701 = arith.mulf %692, %579 : vector<8x128xf32>
    %702 = arith.mulf %686, %694 : vector<8x128xf32>
    %703 = arith.addf %701, %702 : vector<8x128xf32>
    %704 = math.tanh %703 : vector<8x128xf32>
    %705 = arith.mulf %700, %704 : vector<8x128xf32>
    %706 = arith.truncf %705 : vector<8x128xf32> to vector<8x128xbf16>
    %707 = arith.truncf %612 : vector<8x128xf32> to vector<8x128xbf16>
    %708 = tpu.concatenate %706, %707 in 1 : vector<8x128xbf16>, vector<8x128xbf16> -> vector<8x256xbf16>
    %c0_165 = arith.constant 0 : index
    %c0_166 = arith.constant 0 : index
    %709 = vector.load %arg13[%c0_165, %c0_166] : memref<256x512xbf16, #tpu.memory_space<vmem>>, vector<256x512xbf16>
    %cst_167 = arith.constant dense<0.000000e+00> : vector<8x512xf32>
    %710 = tpu.matmul %708, %709, %cst_167 {dimension_numbers = #tpu.dot_dimension_numbers<[1], [0], [0], [1], [0, 0, 1, 1], [], []>} : vector<8x256xbf16>, vector<256x512xbf16>, vector<8x512xf32> -> vector<8x512xf32>
    %711 = arith.addf %710, %16 : vector<8x512xf32>
    %712 = vector.extract_strided_slice %711 {offsets = [0, 0], sizes = [8, 128], strides = [1, 1]} : vector<8x512xf32> to vector<8x128xf32>
    %713 = arith.negf %712 : vector<8x128xf32>
    %714 = math.exp %713 : vector<8x128xf32>
    %cst_168 = arith.constant 1.000000e+00 : f32
    %715 = vector.broadcast %cst_168 : f32 to vector<8x128xf32>
    %716 = arith.addf %715, %714 : vector<8x128xf32>
    %717 = arith.divf %715, %716 : vector<8x128xf32>
    %718 = vector.extract_strided_slice %711 {offsets = [0, 128], sizes = [8, 128], strides = [1, 1]} : vector<8x512xf32> to vector<8x128xf32>
    %719 = arith.negf %718 : vector<8x128xf32>
    %720 = math.exp %719 : vector<8x128xf32>
    %cst_169 = arith.constant 1.000000e+00 : f32
    %721 = vector.broadcast %cst_169 : f32 to vector<8x128xf32>
    %722 = arith.addf %721, %720 : vector<8x128xf32>
    %723 = arith.divf %721, %722 : vector<8x128xf32>
    %724 = vector.extract_strided_slice %711 {offsets = [0, 256], sizes = [8, 128], strides = [1, 1]} : vector<8x512xf32> to vector<8x128xf32>
    %725 = math.tanh %724 : vector<8x128xf32>
    %726 = vector.extract_strided_slice %711 {offsets = [0, 384], sizes = [8, 128], strides = [1, 1]} : vector<8x512xf32> to vector<8x128xf32>
    %727 = arith.negf %726 : vector<8x128xf32>
    %728 = math.exp %727 : vector<8x128xf32>
    %cst_170 = arith.constant 1.000000e+00 : f32
    %729 = vector.broadcast %cst_170 : f32 to vector<8x128xf32>
    %730 = arith.addf %729, %728 : vector<8x128xf32>
    %731 = arith.divf %729, %730 : vector<8x128xf32>
    %732 = arith.mulf %723, %610 : vector<8x128xf32>
    %733 = arith.mulf %717, %725 : vector<8x128xf32>
    %734 = arith.addf %732, %733 : vector<8x128xf32>
    %735 = math.tanh %734 : vector<8x128xf32>
    %736 = arith.mulf %731, %735 : vector<8x128xf32>
    %737 = arith.truncf %736 : vector<8x128xf32> to vector<8x128xbf16>
    %738 = arith.truncf %643 : vector<8x128xf32> to vector<8x128xbf16>
    %739 = tpu.concatenate %737, %738 in 1 : vector<8x128xbf16>, vector<8x128xbf16> -> vector<8x256xbf16>
    %c0_171 = arith.constant 0 : index
    %c0_172 = arith.constant 0 : index
    %740 = vector.load %arg14[%c0_171, %c0_172] : memref<256x512xbf16, #tpu.memory_space<vmem>>, vector<256x512xbf16>
    %cst_173 = arith.constant dense<0.000000e+00> : vector<8x512xf32>
    %741 = tpu.matmul %739, %740, %cst_173 {dimension_numbers = #tpu.dot_dimension_numbers<[1], [0], [0], [1], [0, 0, 1, 1], [], []>} : vector<8x256xbf16>, vector<256x512xbf16>, vector<8x512xf32> -> vector<8x512xf32>
    %742 = arith.addf %741, %19 : vector<8x512xf32>
    %743 = vector.extract_strided_slice %742 {offsets = [0, 0], sizes = [8, 128], strides = [1, 1]} : vector<8x512xf32> to vector<8x128xf32>
    %744 = arith.negf %743 : vector<8x128xf32>
    %745 = math.exp %744 : vector<8x128xf32>
    %cst_174 = arith.constant 1.000000e+00 : f32
    %746 = vector.broadcast %cst_174 : f32 to vector<8x128xf32>
    %747 = arith.addf %746, %745 : vector<8x128xf32>
    %748 = arith.divf %746, %747 : vector<8x128xf32>
    %749 = vector.extract_strided_slice %742 {offsets = [0, 128], sizes = [8, 128], strides = [1, 1]} : vector<8x512xf32> to vector<8x128xf32>
    %750 = arith.negf %749 : vector<8x128xf32>
    %751 = math.exp %750 : vector<8x128xf32>
    %cst_175 = arith.constant 1.000000e+00 : f32
    %752 = vector.broadcast %cst_175 : f32 to vector<8x128xf32>
    %753 = arith.addf %752, %751 : vector<8x128xf32>
    %754 = arith.divf %752, %753 : vector<8x128xf32>
    %755 = vector.extract_strided_slice %742 {offsets = [0, 256], sizes = [8, 128], strides = [1, 1]} : vector<8x512xf32> to vector<8x128xf32>
    %756 = math.tanh %755 : vector<8x128xf32>
    %757 = vector.extract_strided_slice %742 {offsets = [0, 384], sizes = [8, 128], strides = [1, 1]} : vector<8x512xf32> to vector<8x128xf32>
    %758 = arith.negf %757 : vector<8x128xf32>
    %759 = math.exp %758 : vector<8x128xf32>
    %cst_176 = arith.constant 1.000000e+00 : f32
    %760 = vector.broadcast %cst_176 : f32 to vector<8x128xf32>
    %761 = arith.addf %760, %759 : vector<8x128xf32>
    %762 = arith.divf %760, %761 : vector<8x128xf32>
    %763 = arith.mulf %754, %641 : vector<8x128xf32>
    %764 = arith.mulf %748, %756 : vector<8x128xf32>
    %765 = arith.addf %763, %764 : vector<8x128xf32>
    %766 = math.tanh %765 : vector<8x128xf32>
    %767 = arith.mulf %762, %766 : vector<8x128xf32>
    %c40_177 = arith.constant 40 : index
    %c0_178 = arith.constant 0 : index
    %768 = vector.load %arg11[%c40_177, %c0_178] : memref<64x128xf32, #tpu.memory_space<vmem>>, vector<8x128xf32>
    tpu.vector_store %arg11[%c40_177, %c0_178], %767 {strides = array<i32>} : memref<64x128xf32, #tpu.memory_space<vmem>>, vector<8x128xf32>,
    %c48 = arith.constant 48 : index
    %c0_179 = arith.constant 0 : index
    %769 = vector.load %arg12[%c48, %c0_179] : memref<64x512xf32, #tpu.memory_space<vmem>>, vector<8x512xf32>
    %770 = arith.truncf %674 : vector<8x128xf32> to vector<8x128xbf16>
    %c0_180 = arith.constant 0 : index
    %c0_181 = arith.constant 0 : index
    %771 = vector.load %arg4[%c0_180, %c0_181] : memref<128x512xbf16, #tpu.memory_space<vmem>>, vector<128x512xbf16>
    %cst_182 = arith.constant dense<0.000000e+00> : vector<8x512xf32>
    %772 = tpu.matmul %770, %771, %cst_182 {dimension_numbers = #tpu.dot_dimension_numbers<[1], [0], [0], [1], [0, 0, 1, 1], [], []>} : vector<8x128xbf16>, vector<128x512xbf16>, vector<8x512xf32> -> vector<8x512xf32>
    %773 = arith.addf %769, %772 : vector<8x512xf32>
    %774 = vector.extract_strided_slice %773 {offsets = [0, 0], sizes = [8, 128], strides = [1, 1]} : vector<8x512xf32> to vector<8x128xf32>
    %775 = arith.negf %774 : vector<8x128xf32>
    %776 = math.exp %775 : vector<8x128xf32>
    %cst_183 = arith.constant 1.000000e+00 : f32
    %777 = vector.broadcast %cst_183 : f32 to vector<8x128xf32>
    %778 = arith.addf %777, %776 : vector<8x128xf32>
    %779 = arith.divf %777, %778 : vector<8x128xf32>
    %780 = vector.extract_strided_slice %773 {offsets = [0, 128], sizes = [8, 128], strides = [1, 1]} : vector<8x512xf32> to vector<8x128xf32>
    %781 = arith.negf %780 : vector<8x128xf32>
    %782 = math.exp %781 : vector<8x128xf32>
    %cst_184 = arith.constant 1.000000e+00 : f32
    %783 = vector.broadcast %cst_184 : f32 to vector<8x128xf32>
    %784 = arith.addf %783, %782 : vector<8x128xf32>
    %785 = arith.divf %783, %784 : vector<8x128xf32>
    %786 = vector.extract_strided_slice %773 {offsets = [0, 256], sizes = [8, 128], strides = [1, 1]} : vector<8x512xf32> to vector<8x128xf32>
    %787 = math.tanh %786 : vector<8x128xf32>
    %788 = vector.extract_strided_slice %773 {offsets = [0, 384], sizes = [8, 128], strides = [1, 1]} : vector<8x512xf32> to vector<8x128xf32>
    %789 = arith.negf %788 : vector<8x128xf32>
    %790 = math.exp %789 : vector<8x128xf32>
    %cst_185 = arith.constant 1.000000e+00 : f32
    %791 = vector.broadcast %cst_185 : f32 to vector<8x128xf32>
    %792 = arith.addf %791, %790 : vector<8x128xf32>
    %793 = arith.divf %791, %792 : vector<8x128xf32>
    %794 = arith.mulf %785, %672 : vector<8x128xf32>
    %795 = arith.mulf %779, %787 : vector<8x128xf32>
    %796 = arith.addf %794, %795 : vector<8x128xf32>
    %797 = math.tanh %796 : vector<8x128xf32>
    %798 = arith.mulf %793, %797 : vector<8x128xf32>
    %799 = arith.truncf %798 : vector<8x128xf32> to vector<8x128xbf16>
    %800 = arith.truncf %705 : vector<8x128xf32> to vector<8x128xbf16>
    %801 = tpu.concatenate %799, %800 in 1 : vector<8x128xbf16>, vector<8x128xbf16> -> vector<8x256xbf16>
    %c0_186 = arith.constant 0 : index
    %c0_187 = arith.constant 0 : index
    %802 = vector.load %arg5[%c0_186, %c0_187] : memref<256x512xbf16, #tpu.memory_space<vmem>>, vector<256x512xbf16>
    %cst_188 = arith.constant dense<0.000000e+00> : vector<8x512xf32>
    %803 = tpu.matmul %801, %802, %cst_188 {dimension_numbers = #tpu.dot_dimension_numbers<[1], [0], [0], [1], [0, 0, 1, 1], [], []>} : vector<8x256xbf16>, vector<256x512xbf16>, vector<8x512xf32> -> vector<8x512xf32>
    %804 = arith.addf %803, %13 : vector<8x512xf32>
    %805 = vector.extract_strided_slice %804 {offsets = [0, 0], sizes = [8, 128], strides = [1, 1]} : vector<8x512xf32> to vector<8x128xf32>
    %806 = arith.negf %805 : vector<8x128xf32>
    %807 = math.exp %806 : vector<8x128xf32>
    %cst_189 = arith.constant 1.000000e+00 : f32
    %808 = vector.broadcast %cst_189 : f32 to vector<8x128xf32>
    %809 = arith.addf %808, %807 : vector<8x128xf32>
    %810 = arith.divf %808, %809 : vector<8x128xf32>
    %811 = vector.extract_strided_slice %804 {offsets = [0, 128], sizes = [8, 128], strides = [1, 1]} : vector<8x512xf32> to vector<8x128xf32>
    %812 = arith.negf %811 : vector<8x128xf32>
    %813 = math.exp %812 : vector<8x128xf32>
    %cst_190 = arith.constant 1.000000e+00 : f32
    %814 = vector.broadcast %cst_190 : f32 to vector<8x128xf32>
    %815 = arith.addf %814, %813 : vector<8x128xf32>
    %816 = arith.divf %814, %815 : vector<8x128xf32>
    %817 = vector.extract_strided_slice %804 {offsets = [0, 256], sizes = [8, 128], strides = [1, 1]} : vector<8x512xf32> to vector<8x128xf32>
    %818 = math.tanh %817 : vector<8x128xf32>
    %819 = vector.extract_strided_slice %804 {offsets = [0, 384], sizes = [8, 128], strides = [1, 1]} : vector<8x512xf32> to vector<8x128xf32>
    %820 = arith.negf %819 : vector<8x128xf32>
    %821 = math.exp %820 : vector<8x128xf32>
    %cst_191 = arith.constant 1.000000e+00 : f32
    %822 = vector.broadcast %cst_191 : f32 to vector<8x128xf32>
    %823 = arith.addf %822, %821 : vector<8x128xf32>
    %824 = arith.divf %822, %823 : vector<8x128xf32>
    %825 = arith.mulf %816, %703 : vector<8x128xf32>
    %826 = arith.mulf %810, %818 : vector<8x128xf32>
    %827 = arith.addf %825, %826 : vector<8x128xf32>
    %828 = math.tanh %827 : vector<8x128xf32>
    %829 = arith.mulf %824, %828 : vector<8x128xf32>
    %830 = arith.truncf %829 : vector<8x128xf32> to vector<8x128xbf16>
    %831 = arith.truncf %736 : vector<8x128xf32> to vector<8x128xbf16>
    %832 = tpu.concatenate %830, %831 in 1 : vector<8x128xbf16>, vector<8x128xbf16> -> vector<8x256xbf16>
    %c0_192 = arith.constant 0 : index
    %c0_193 = arith.constant 0 : index
    %833 = vector.load %arg13[%c0_192, %c0_193] : memref<256x512xbf16, #tpu.memory_space<vmem>>, vector<256x512xbf16>
    %cst_194 = arith.constant dense<0.000000e+00> : vector<8x512xf32>
    %834 = tpu.matmul %832, %833, %cst_194 {dimension_numbers = #tpu.dot_dimension_numbers<[1], [0], [0], [1], [0, 0, 1, 1], [], []>} : vector<8x256xbf16>, vector<256x512xbf16>, vector<8x512xf32> -> vector<8x512xf32>
    %835 = arith.addf %834, %16 : vector<8x512xf32>
    %836 = vector.extract_strided_slice %835 {offsets = [0, 0], sizes = [8, 128], strides = [1, 1]} : vector<8x512xf32> to vector<8x128xf32>
    %837 = arith.negf %836 : vector<8x128xf32>
    %838 = math.exp %837 : vector<8x128xf32>
    %cst_195 = arith.constant 1.000000e+00 : f32
    %839 = vector.broadcast %cst_195 : f32 to vector<8x128xf32>
    %840 = arith.addf %839, %838 : vector<8x128xf32>
    %841 = arith.divf %839, %840 : vector<8x128xf32>
    %842 = vector.extract_strided_slice %835 {offsets = [0, 128], sizes = [8, 128], strides = [1, 1]} : vector<8x512xf32> to vector<8x128xf32>
    %843 = arith.negf %842 : vector<8x128xf32>
    %844 = math.exp %843 : vector<8x128xf32>
    %cst_196 = arith.constant 1.000000e+00 : f32
    %845 = vector.broadcast %cst_196 : f32 to vector<8x128xf32>
    %846 = arith.addf %845, %844 : vector<8x128xf32>
    %847 = arith.divf %845, %846 : vector<8x128xf32>
    %848 = vector.extract_strided_slice %835 {offsets = [0, 256], sizes = [8, 128], strides = [1, 1]} : vector<8x512xf32> to vector<8x128xf32>
    %849 = math.tanh %848 : vector<8x128xf32>
    %850 = vector.extract_strided_slice %835 {offsets = [0, 384], sizes = [8, 128], strides = [1, 1]} : vector<8x512xf32> to vector<8x128xf32>
    %851 = arith.negf %850 : vector<8x128xf32>
    %852 = math.exp %851 : vector<8x128xf32>
    %cst_197 = arith.constant 1.000000e+00 : f32
    %853 = vector.broadcast %cst_197 : f32 to vector<8x128xf32>
    %854 = arith.addf %853, %852 : vector<8x128xf32>
    %855 = arith.divf %853, %854 : vector<8x128xf32>
    %856 = arith.mulf %847, %734 : vector<8x128xf32>
    %857 = arith.mulf %841, %849 : vector<8x128xf32>
    %858 = arith.addf %856, %857 : vector<8x128xf32>
    %859 = math.tanh %858 : vector<8x128xf32>
    %860 = arith.mulf %855, %859 : vector<8x128xf32>
    %861 = arith.truncf %860 : vector<8x128xf32> to vector<8x128xbf16>
    %862 = arith.truncf %767 : vector<8x128xf32> to vector<8x128xbf16>
    %863 = tpu.concatenate %861, %862 in 1 : vector<8x128xbf16>, vector<8x128xbf16> -> vector<8x256xbf16>
    %c0_198 = arith.constant 0 : index
    %c0_199 = arith.constant 0 : index
    %864 = vector.load %arg14[%c0_198, %c0_199] : memref<256x512xbf16, #tpu.memory_space<vmem>>, vector<256x512xbf16>
    %cst_200 = arith.constant dense<0.000000e+00> : vector<8x512xf32>
    %865 = tpu.matmul %863, %864, %cst_200 {dimension_numbers = #tpu.dot_dimension_numbers<[1], [0], [0], [1], [0, 0, 1, 1], [], []>} : vector<8x256xbf16>, vector<256x512xbf16>, vector<8x512xf32> -> vector<8x512xf32>
    %866 = arith.addf %865, %19 : vector<8x512xf32>
    %867 = vector.extract_strided_slice %866 {offsets = [0, 0], sizes = [8, 128], strides = [1, 1]} : vector<8x512xf32> to vector<8x128xf32>
    %868 = arith.negf %867 : vector<8x128xf32>
    %869 = math.exp %868 : vector<8x128xf32>
    %cst_201 = arith.constant 1.000000e+00 : f32
    %870 = vector.broadcast %cst_201 : f32 to vector<8x128xf32>
    %871 = arith.addf %870, %869 : vector<8x128xf32>
    %872 = arith.divf %870, %871 : vector<8x128xf32>
    %873 = vector.extract_strided_slice %866 {offsets = [0, 128], sizes = [8, 128], strides = [1, 1]} : vector<8x512xf32> to vector<8x128xf32>
    %874 = arith.negf %873 : vector<8x128xf32>
    %875 = math.exp %874 : vector<8x128xf32>
    %cst_202 = arith.constant 1.000000e+00 : f32
    %876 = vector.broadcast %cst_202 : f32 to vector<8x128xf32>
    %877 = arith.addf %876, %875 : vector<8x128xf32>
    %878 = arith.divf %876, %877 : vector<8x128xf32>
    %879 = vector.extract_strided_slice %866 {offsets = [0, 256], sizes = [8, 128], strides = [1, 1]} : vector<8x512xf32> to vector<8x128xf32>
    %880 = math.tanh %879 : vector<8x128xf32>
    %881 = vector.extract_strided_slice %866 {offsets = [0, 384], sizes = [8, 128], strides = [1, 1]} : vector<8x512xf32> to vector<8x128xf32>
    %882 = arith.negf %881 : vector<8x128xf32>
    %883 = math.exp %882 : vector<8x128xf32>
    %cst_203 = arith.constant 1.000000e+00 : f32
    %884 = vector.broadcast %cst_203 : f32 to vector<8x128xf32>
    %885 = arith.addf %884, %883 : vector<8x128xf32>
    %886 = arith.divf %884, %885 : vector<8x128xf32>
    %887 = arith.mulf %878, %765 : vector<8x128xf32>
    %888 = arith.mulf %872, %880 : vector<8x128xf32>
    %889 = arith.addf %887, %888 : vector<8x128xf32>
    %890 = math.tanh %889 : vector<8x128xf32>
    %891 = arith.mulf %886, %890 : vector<8x128xf32>
    %c48_204 = arith.constant 48 : index
    %c0_205 = arith.constant 0 : index
    %892 = vector.load %arg11[%c48_204, %c0_205] : memref<64x128xf32, #tpu.memory_space<vmem>>, vector<8x128xf32>
    tpu.vector_store %arg11[%c48_204, %c0_205], %891 {strides = array<i32>} : memref<64x128xf32, #tpu.memory_space<vmem>>, vector<8x128xf32>,
    %c56 = arith.constant 56 : index
    %c0_206 = arith.constant 0 : index
    %893 = vector.load %arg12[%c56, %c0_206] : memref<64x512xf32, #tpu.memory_space<vmem>>, vector<8x512xf32>
    %894 = arith.truncf %798 : vector<8x128xf32> to vector<8x128xbf16>
    %c0_207 = arith.constant 0 : index
    %c0_208 = arith.constant 0 : index
    %895 = vector.load %arg4[%c0_207, %c0_208] : memref<128x512xbf16, #tpu.memory_space<vmem>>, vector<128x512xbf16>
    %cst_209 = arith.constant dense<0.000000e+00> : vector<8x512xf32>
    %896 = tpu.matmul %894, %895, %cst_209 {dimension_numbers = #tpu.dot_dimension_numbers<[1], [0], [0], [1], [0, 0, 1, 1], [], []>} : vector<8x128xbf16>, vector<128x512xbf16>, vector<8x512xf32> -> vector<8x512xf32>
    %897 = arith.addf %893, %896 : vector<8x512xf32>
    %898 = vector.extract_strided_slice %897 {offsets = [0, 0], sizes = [8, 128], strides = [1, 1]} : vector<8x512xf32> to vector<8x128xf32>
    %899 = arith.negf %898 : vector<8x128xf32>
    %900 = math.exp %899 : vector<8x128xf32>
    %cst_210 = arith.constant 1.000000e+00 : f32
    %901 = vector.broadcast %cst_210 : f32 to vector<8x128xf32>
    %902 = arith.addf %901, %900 : vector<8x128xf32>
    %903 = arith.divf %901, %902 : vector<8x128xf32>
    %904 = vector.extract_strided_slice %897 {offsets = [0, 128], sizes = [8, 128], strides = [1, 1]} : vector<8x512xf32> to vector<8x128xf32>
    %905 = arith.negf %904 : vector<8x128xf32>
    %906 = math.exp %905 : vector<8x128xf32>
    %cst_211 = arith.constant 1.000000e+00 : f32
    %907 = vector.broadcast %cst_211 : f32 to vector<8x128xf32>
    %908 = arith.addf %907, %906 : vector<8x128xf32>
    %909 = arith.divf %907, %908 : vector<8x128xf32>
    %910 = vector.extract_strided_slice %897 {offsets = [0, 256], sizes = [8, 128], strides = [1, 1]} : vector<8x512xf32> to vector<8x128xf32>
    %911 = math.tanh %910 : vector<8x128xf32>
    %912 = vector.extract_strided_slice %897 {offsets = [0, 384], sizes = [8, 128], strides = [1, 1]} : vector<8x512xf32> to vector<8x128xf32>
    %913 = arith.negf %912 : vector<8x128xf32>
    %914 = math.exp %913 : vector<8x128xf32>
    %cst_212 = arith.constant 1.000000e+00 : f32
    %915 = vector.broadcast %cst_212 : f32 to vector<8x128xf32>
    %916 = arith.addf %915, %914 : vector<8x128xf32>
    %917 = arith.divf %915, %916 : vector<8x128xf32>
    %918 = arith.mulf %909, %796 : vector<8x128xf32>
    %919 = arith.mulf %903, %911 : vector<8x128xf32>
    %920 = arith.addf %918, %919 : vector<8x128xf32>
    %921 = math.tanh %920 : vector<8x128xf32>
    %922 = arith.mulf %917, %921 : vector<8x128xf32>
    %923 = arith.truncf %922 : vector<8x128xf32> to vector<8x128xbf16>
    %924 = arith.truncf %829 : vector<8x128xf32> to vector<8x128xbf16>
    %925 = tpu.concatenate %923, %924 in 1 : vector<8x128xbf16>, vector<8x128xbf16> -> vector<8x256xbf16>
    %c0_213 = arith.constant 0 : index
    %c0_214 = arith.constant 0 : index
    %926 = vector.load %arg5[%c0_213, %c0_214] : memref<256x512xbf16, #tpu.memory_space<vmem>>, vector<256x512xbf16>
    %cst_215 = arith.constant dense<0.000000e+00> : vector<8x512xf32>
    %927 = tpu.matmul %925, %926, %cst_215 {dimension_numbers = #tpu.dot_dimension_numbers<[1], [0], [0], [1], [0, 0, 1, 1], [], []>} : vector<8x256xbf16>, vector<256x512xbf16>, vector<8x512xf32> -> vector<8x512xf32>
    %928 = arith.addf %927, %13 : vector<8x512xf32>
    %929 = vector.extract_strided_slice %928 {offsets = [0, 0], sizes = [8, 128], strides = [1, 1]} : vector<8x512xf32> to vector<8x128xf32>
    %930 = arith.negf %929 : vector<8x128xf32>
    %931 = math.exp %930 : vector<8x128xf32>
    %cst_216 = arith.constant 1.000000e+00 : f32
    %932 = vector.broadcast %cst_216 : f32 to vector<8x128xf32>
    %933 = arith.addf %932, %931 : vector<8x128xf32>
    %934 = arith.divf %932, %933 : vector<8x128xf32>
    %935 = vector.extract_strided_slice %928 {offsets = [0, 128], sizes = [8, 128], strides = [1, 1]} : vector<8x512xf32> to vector<8x128xf32>
    %936 = arith.negf %935 : vector<8x128xf32>
    %937 = math.exp %936 : vector<8x128xf32>
    %cst_217 = arith.constant 1.000000e+00 : f32
    %938 = vector.broadcast %cst_217 : f32 to vector<8x128xf32>
    %939 = arith.addf %938, %937 : vector<8x128xf32>
    %940 = arith.divf %938, %939 : vector<8x128xf32>
    %941 = vector.extract_strided_slice %928 {offsets = [0, 256], sizes = [8, 128], strides = [1, 1]} : vector<8x512xf32> to vector<8x128xf32>
    %942 = math.tanh %941 : vector<8x128xf32>
    %943 = vector.extract_strided_slice %928 {offsets = [0, 384], sizes = [8, 128], strides = [1, 1]} : vector<8x512xf32> to vector<8x128xf32>
    %944 = arith.negf %943 : vector<8x128xf32>
    %945 = math.exp %944 : vector<8x128xf32>
    %cst_218 = arith.constant 1.000000e+00 : f32
    %946 = vector.broadcast %cst_218 : f32 to vector<8x128xf32>
    %947 = arith.addf %946, %945 : vector<8x128xf32>
    %948 = arith.divf %946, %947 : vector<8x128xf32>
    %949 = arith.mulf %940, %827 : vector<8x128xf32>
    %950 = arith.mulf %934, %942 : vector<8x128xf32>
    %951 = arith.addf %949, %950 : vector<8x128xf32>
    %952 = math.tanh %951 : vector<8x128xf32>
    %953 = arith.mulf %948, %952 : vector<8x128xf32>
    %954 = arith.truncf %953 : vector<8x128xf32> to vector<8x128xbf16>
    %955 = arith.truncf %860 : vector<8x128xf32> to vector<8x128xbf16>
    %956 = tpu.concatenate %954, %955 in 1 : vector<8x128xbf16>, vector<8x128xbf16> -> vector<8x256xbf16>
    %c0_219 = arith.constant 0 : index
    %c0_220 = arith.constant 0 : index
    %957 = vector.load %arg13[%c0_219, %c0_220] : memref<256x512xbf16, #tpu.memory_space<vmem>>, vector<256x512xbf16>
    %cst_221 = arith.constant dense<0.000000e+00> : vector<8x512xf32>
    %958 = tpu.matmul %956, %957, %cst_221 {dimension_numbers = #tpu.dot_dimension_numbers<[1], [0], [0], [1], [0, 0, 1, 1], [], []>} : vector<8x256xbf16>, vector<256x512xbf16>, vector<8x512xf32> -> vector<8x512xf32>
    %959 = arith.addf %958, %16 : vector<8x512xf32>
    %960 = vector.extract_strided_slice %959 {offsets = [0, 0], sizes = [8, 128], strides = [1, 1]} : vector<8x512xf32> to vector<8x128xf32>
    %961 = arith.negf %960 : vector<8x128xf32>
    %962 = math.exp %961 : vector<8x128xf32>
    %cst_222 = arith.constant 1.000000e+00 : f32
    %963 = vector.broadcast %cst_222 : f32 to vector<8x128xf32>
    %964 = arith.addf %963, %962 : vector<8x128xf32>
    %965 = arith.divf %963, %964 : vector<8x128xf32>
    %966 = vector.extract_strided_slice %959 {offsets = [0, 128], sizes = [8, 128], strides = [1, 1]} : vector<8x512xf32> to vector<8x128xf32>
    %967 = arith.negf %966 : vector<8x128xf32>
    %968 = math.exp %967 : vector<8x128xf32>
    %cst_223 = arith.constant 1.000000e+00 : f32
    %969 = vector.broadcast %cst_223 : f32 to vector<8x128xf32>
    %970 = arith.addf %969, %968 : vector<8x128xf32>
    %971 = arith.divf %969, %970 : vector<8x128xf32>
    %972 = vector.extract_strided_slice %959 {offsets = [0, 256], sizes = [8, 128], strides = [1, 1]} : vector<8x512xf32> to vector<8x128xf32>
    %973 = math.tanh %972 : vector<8x128xf32>
    %974 = vector.extract_strided_slice %959 {offsets = [0, 384], sizes = [8, 128], strides = [1, 1]} : vector<8x512xf32> to vector<8x128xf32>
    %975 = arith.negf %974 : vector<8x128xf32>
    %976 = math.exp %975 : vector<8x128xf32>
    %cst_224 = arith.constant 1.000000e+00 : f32
    %977 = vector.broadcast %cst_224 : f32 to vector<8x128xf32>
    %978 = arith.addf %977, %976 : vector<8x128xf32>
    %979 = arith.divf %977, %978 : vector<8x128xf32>
    %980 = arith.mulf %971, %858 : vector<8x128xf32>
    %981 = arith.mulf %965, %973 : vector<8x128xf32>
    %982 = arith.addf %980, %981 : vector<8x128xf32>
    %983 = math.tanh %982 : vector<8x128xf32>
    %984 = arith.mulf %979, %983 : vector<8x128xf32>
    %985 = arith.truncf %984 : vector<8x128xf32> to vector<8x128xbf16>
    %986 = arith.truncf %891 : vector<8x128xf32> to vector<8x128xbf16>
    %987 = tpu.concatenate %985, %986 in 1 : vector<8x128xbf16>, vector<8x128xbf16> -> vector<8x256xbf16>
    %c0_225 = arith.constant 0 : index
    %c0_226 = arith.constant 0 : index
    %988 = vector.load %arg14[%c0_225, %c0_226] : memref<256x512xbf16, #tpu.memory_space<vmem>>, vector<256x512xbf16>
    %cst_227 = arith.constant dense<0.000000e+00> : vector<8x512xf32>
    %989 = tpu.matmul %987, %988, %cst_227 {dimension_numbers = #tpu.dot_dimension_numbers<[1], [0], [0], [1], [0, 0, 1, 1], [], []>} : vector<8x256xbf16>, vector<256x512xbf16>, vector<8x512xf32> -> vector<8x512xf32>
    %990 = arith.addf %989, %19 : vector<8x512xf32>
    %991 = vector.extract_strided_slice %990 {offsets = [0, 0], sizes = [8, 128], strides = [1, 1]} : vector<8x512xf32> to vector<8x128xf32>
    %992 = arith.negf %991 : vector<8x128xf32>
    %993 = math.exp %992 : vector<8x128xf32>
    %cst_228 = arith.constant 1.000000e+00 : f32
    %994 = vector.broadcast %cst_228 : f32 to vector<8x128xf32>
    %995 = arith.addf %994, %993 : vector<8x128xf32>
    %996 = arith.divf %994, %995 : vector<8x128xf32>
    %997 = vector.extract_strided_slice %990 {offsets = [0, 128], sizes = [8, 128], strides = [1, 1]} : vector<8x512xf32> to vector<8x128xf32>
    %998 = arith.negf %997 : vector<8x128xf32>
    %999 = math.exp %998 : vector<8x128xf32>
    %cst_229 = arith.constant 1.000000e+00 : f32
    %1000 = vector.broadcast %cst_229 : f32 to vector<8x128xf32>
    %1001 = arith.addf %1000, %999 : vector<8x128xf32>
    %1002 = arith.divf %1000, %1001 : vector<8x128xf32>
    %1003 = vector.extract_strided_slice %990 {offsets = [0, 256], sizes = [8, 128], strides = [1, 1]} : vector<8x512xf32> to vector<8x128xf32>
    %1004 = math.tanh %1003 : vector<8x128xf32>
    %1005 = vector.extract_strided_slice %990 {offsets = [0, 384], sizes = [8, 128], strides = [1, 1]} : vector<8x512xf32> to vector<8x128xf32>
    %1006 = arith.negf %1005 : vector<8x128xf32>
    %1007 = math.exp %1006 : vector<8x128xf32>
    %cst_230 = arith.constant 1.000000e+00 : f32
    %1008 = vector.broadcast %cst_230 : f32 to vector<8x128xf32>
    %1009 = arith.addf %1008, %1007 : vector<8x128xf32>
    %1010 = arith.divf %1008, %1009 : vector<8x128xf32>
    %1011 = arith.mulf %1002, %889 : vector<8x128xf32>
    %1012 = arith.mulf %996, %1004 : vector<8x128xf32>
    %1013 = arith.addf %1011, %1012 : vector<8x128xf32>
    %1014 = math.tanh %1013 : vector<8x128xf32>
    %1015 = arith.mulf %1010, %1014 : vector<8x128xf32>
    %c56_231 = arith.constant 56 : index
    %c0_232 = arith.constant 0 : index
    %1016 = vector.load %arg11[%c56_231, %c0_232] : memref<64x128xf32, #tpu.memory_space<vmem>>, vector<8x128xf32>
    tpu.vector_store %arg11[%c56_231, %c0_232], %1015 {strides = array<i32>} : memref<64x128xf32, #tpu.memory_space<vmem>>, vector<8x128xf32>,
    return
  }
  func.func @transform_0(%arg0: i32) -> (i32, i32) {
    %c0_i32 = arith.constant 0 : i32
    %c0_i32_0 = arith.constant 0 : i32
    return %arg0, %c0_i32 : i32, i32
  }
  func.func @transform_1(%arg0: i32) -> (i32, i32) {
    %c0_i32 = arith.constant 0 : i32
    %c0_i32_0 = arith.constant 0 : i32
    %c0_i32_1 = arith.constant 0 : i32
    return %c0_i32, %c0_i32_0 : i32, i32
  }
  func.func @transform_2(%arg0: i32) -> (i32, i32) {
    %c0_i32 = arith.constant 0 : i32
    %c0_i32_0 = arith.constant 0 : i32
    %c0_i32_1 = arith.constant 0 : i32
    return %c0_i32, %c0_i32_0 : i32, i32
  }
  func.func @transform_3(%arg0: i32) -> (i32, i32) {
    %c0_i32 = arith.constant 0 : i32
    %c0_i32_0 = arith.constant 0 : i32
    %c0_i32_1 = arith.constant 0 : i32
    return %c0_i32, %c0_i32_0 : i32, i32
  }
  func.func @transform_4(%arg0: i32) -> (i32, i32) {
    %c0_i32 = arith.constant 0 : i32
    %c0_i32_0 = arith.constant 0 : i32
    %c0_i32_1 = arith.constant 0 : i32
    return %c0_i32, %c0_i32_0 : i32, i32
  }
  func.func @transform_5(%arg0: i32) -> (i32, i32) {
    %c0_i32 = arith.constant 0 : i32
    %c0_i32_0 = arith.constant 0 : i32
    %c0_i32_1 = arith.constant 0 : i32
    return %c0_i32, %c0_i32_0 : i32, i32
  }
  func.func @transform_7(%arg0: i32) -> (i32, i32) {
    %c0_i32 = arith.constant 0 : i32
    %c0_i32_0 = arith.constant 0 : i32
    %c0_i32_1 = arith.constant 0 : i32
    return %c0_i32, %c0_i32_0 : i32, i32
  }
  func.func @transform_9(%arg0: i32) -> (i32, i32) {
    %c0_i32 = arith.constant 0 : i32
    %c0_i32_0 = arith.constant 0 : i32
    %c0_i32_1 = arith.constant 0 : i32
    return %c0_i32, %c0_i32_0 : i32, i32
  }
  func.func @transform_10(%arg0: i32) -> (i32, i32) {
    %c0_i32 = arith.constant 0 : i32
    %c0_i32_0 = arith.constant 0 : i32
    return %arg0, %c0_i32 : i32, i32
  }
}

</mosaic_0001>

<llo_original>
// kernel: lstm_autoencoder_forward.1
$region0: #{lstm_autoencoder_forward.1}
  #allocation0 [shape = 'u32[]', space=smem, size = 0x4, offset = 0x4, fixed_abs, tag = 'smem constant byte address 0x4 - core index']
  #allocation1 [shape = 'u32[144,128]{1,0:T(1,128)}', space=vmem, size = 0x12000, scoped, tag = 'internal scratch']
  #allocation2 [shape = 'f32[64,512]{1,0:T(8,128)}', space=vmem, size = 0x20000, scoped, tag = 'scratch operand']
  #allocation3 [shape = 'bf16[256,512]{1,0:T(16,128)(2,1)}', space=vmem, size = 0x40000, scoped, tag = 'scratch operand']
  #allocation4 [shape = 'bf16[256,512]{1,0:T(16,128)(2,1)}', space=vmem, size = 0x40000, scoped, tag = 'scratch operand']
  #allocation5 [shape = 's32[2]{0}', space=sflag, size = 0x8, scoped, tag = 'scratch operand']
  #allocation6 [shape = 's32[]', space=sflag, size = 0x4, offset = 0, fixed_abs, tag = 'sflag constant byte address 0x0 - dummy sync flag']
  #allocation7 [shape = 's32[]', space=sflag, size = 0x4, offset = 0, fixed_abs, tag = 'sflag constant byte address 0x0 - dummy sync flag']
  %s0 = inlined_call_operand.vmem [shape: bf16[64,8], index: 0, kind: input, shape index: {}]
  %s1 = inlined_call_operand.vmem [shape: bf16[8,512], index: 1, kind: input, shape index: {}]
  %s2 = inlined_call_operand.vmem [shape: f32[1,512], index: 2, kind: input, shape index: {}]
  %s3 = inlined_call_operand.vmem [shape: bf16[128,512], index: 3, kind: input, shape index: {}]
  %s4 = inlined_call_operand.vmem [shape: bf16[256,512], index: 4, kind: input, shape index: {}]
  %s5 = inlined_call_operand.vmem [shape: f32[1,512], index: 5, kind: input, shape index: {}]
  %s6 = inlined_call_operand.vmem [shape: bf16[256,512], index: 6, kind: input, shape index: {}]
  %s7 = inlined_call_operand.vmem [shape: f32[1,512], index: 7, kind: input, shape index: {}]
  %s8 = inlined_call_operand.vmem [shape: bf16[256,512], index: 8, kind: input, shape index: {}]
  %s9 = inlined_call_operand.vmem [shape: f32[1,512], index: 9, kind: input, shape index: {}]
  %s10 = inlined_call_operand.vmem [shape: f32[64,128], index: 10, kind: output, shape index: {}]
  %s11 = sld [smem:[#allocation0]]
  $region116: #{lstm_autoencoder_forward.1} parent=0
    _
  %s13 = ssub.s32 1, %s11
  %s14 = scalar_select 0, %s13, %s11
  // Predicated region
  $region2: #{lstm_autoencoder_forward.1} parent=0 // pred_check
    _
  $region3: #{lstm_autoencoder_forward.1} parent=0 // pred_check_branch
    %16 = sbr.rel (0) target = $region5
  $region4: #{lstm_autoencoder_forward.1} parent=0 // pred_region
    _
  $region5: #{lstm_autoencoder_forward.1} parent=0 // pred_fallthru
    _
  // Predicated region
  $region6: #{lstm_autoencoder_forward.1} parent=0 // pred_check
    _
  $region7: #{lstm_autoencoder_forward.1} parent=0 // pred_check_branch
    %18 = sbr.rel (0) target = $region9
  $region8: #{lstm_autoencoder_forward.1} parent=0 // pred_region
    _
  $region9: #{lstm_autoencoder_forward.1} parent=0 // pred_fallthru
    _
  // Predicated region
  $region10: #{lstm_autoencoder_forward.1} parent=0 // pred_check
    _
  $region11: #{lstm_autoencoder_forward.1} parent=0 // pred_check_branch
    %20 = sbr.rel (0) target = $region13
  $region12: #{lstm_autoencoder_forward.1} parent=0 // pred_region
    _
  $region13: #{lstm_autoencoder_forward.1} parent=0 // pred_fallthru
    _
  // Predicated region
  $region14: #{lstm_autoencoder_forward.1} parent=0 // pred_check
    _
  $region15: #{lstm_autoencoder_forward.1} parent=0 // pred_check_branch
    %22 = sbr.rel (0) target = $region17
  $region16: #{lstm_autoencoder_forward.1} parent=0 // pred_region
    _
  $region17: #{lstm_autoencoder_forward.1} parent=0 // pred_fallthru
    _
  // Predicated region
  $region18: #{lstm_autoencoder_forward.1} parent=0 // pred_check
    _
  $region19: #{lstm_autoencoder_forward.1} parent=0 // pred_check_branch
    %24 = sbr.rel (0) target = $region21
  $region20: #{lstm_autoencoder_forward.1} parent=0 // pred_region
    _
  $region21: #{lstm_autoencoder_forward.1} parent=0 // pred_fallthru
    _
  // Predicated region
  $region22: #{lstm_autoencoder_forward.1} parent=0 // pred_check
    _
  $region23: #{lstm_autoencoder_forward.1} parent=0 // pred_check_branch
    %26 = sbr.rel (0) target = $region25
  $region24: #{lstm_autoencoder_forward.1} parent=0 // pred_region
    _
  $region25: #{lstm_autoencoder_forward.1} parent=0 // pred_fallthru
    _
  // Predicated region
  $region26: #{lstm_autoencoder_forward.1} parent=0 // pred_check
    _
  $region27: #{lstm_autoencoder_forward.1} parent=0 // pred_check_branch
    %28 = sbr.rel (0) target = $region29
  $region28: #{lstm_autoencoder_forward.1} parent=0 // pred_region
    _
  $region29: #{lstm_autoencoder_forward.1} parent=0 // pred_fallthru
    _
  // Predicated region
  $region30: #{lstm_autoencoder_forward.1} parent=0 // pred_check
    _
  $region31: #{lstm_autoencoder_forward.1} parent=0 // pred_check_branch
    %30 = sbr.rel (0) target = $region33
  $region32: #{lstm_autoencoder_forward.1} parent=0 // pred_region
    _
  $region33: #{lstm_autoencoder_forward.1} parent=0 // pred_fallthru
    _
  %p33 = scmp.lt.u32.totalorder 4, 8
  %p34 = pneg %p33
  // Predicated region
  $region34: #{lstm_autoencoder_forward.1} parent=0 // pred_check
    _
  $region35: #{lstm_autoencoder_forward.1} parent=0 // pred_check_branch
    %36 = sbr.rel (%p33) target = $region37
  $region36: #{lstm_autoencoder_forward.1} parent=0 // pred_region
    %s305 = sand.u32 4, 7
    %p306 = scmp.eq.s32.totalorder %s305, 0
    %p307 = pneg %p306
    // Predicated region
    $region49: #{lstm_autoencoder_forward.1} parent=36 // pred_check
      _
    $region50: #{lstm_autoencoder_forward.1} parent=36 // pred_check_branch
      %309 = sbr.rel (%p306) target = $region52
    $region51: #{lstm_autoencoder_forward.1} parent=36 // pred_region
      %s310 = sand.u32 4, 7
      %s311 = ssub.s32 4, %s310
      %s312 = scalar_lea.vmem %s6, %s311
      %s313 = ssub.s32 4, %s310
      %s314 = scalar_lea.vmem [#allocation3], %s313
      loop: start=0, step=1, limit=1
      $region53: #{lstm_autoencoder_forward.1} parent=51 // loop_pre_header
        _
      $region54: #{lstm_autoencoder_forward.1} parent=51 // loop_header
        %s316 = sphi 0, %s320
        %p317 = scmp.ge.s32.totalorder %s316, 1
        %s321 = sphi %s6, %s6
        %s322 = sphi [#allocation3], [#allocation3]
      $region55: #{lstm_autoencoder_forward.1} parent=51 // loop_header_branch
        %319 = sbr.rel (%p317) target = $region59
      $region56: #{lstm_autoencoder_forward.1} parent=51 // loop_body
        _
      $region57: #{lstm_autoencoder_forward.1} parent=51 // loop_footer
        %s320 = sadd.s32 1, %s316
      $region58: #{lstm_autoencoder_forward.1} parent=51 // loop_footer_branch
        %315 = sbr.rel target = $region54
      $region59: #{lstm_autoencoder_forward.1} parent=51 // loop_exit
        _
      %s323 = sshllo.u32 0, %s310
      loop: start=0, step=1, limit=1
      $region60: #{lstm_autoencoder_forward.1} parent=51 // loop_pre_header
        _
      $region61: #{lstm_autoencoder_forward.1} parent=51 // loop_header
        %s325 = sphi 0, %s329
        %p326 = scmp.ge.s32.totalorder %s325, 1
        %s330 = sphi %s312, %s312
        %s331 = sphi %s314, %s314
      $region62: #{lstm_autoencoder_forward.1} parent=51 // loop_header_branch
        %328 = sbr.rel (%p326) target = $region66
      $region63: #{lstm_autoencoder_forward.1} parent=51 // loop_body
        %v332 = vld [vmem:[%s330] sm:%s323]
        %333 = vst [vmem:[%s331] sm:%s323] %v332
        %v334 = vld [vmem:[%s330 + $0x10] sm:%s323]
        %335 = vst [vmem:[%s331 + $0x4] sm:%s323] %v334
        %v336 = vld [vmem:[%s330 + $0x4] sm:%s323]
        %337 = vst [vmem:[%s331 + $0x8] sm:%s323] %v336
        %v338 = vld [vmem:[%s330 + $0x14] sm:%s323]
        %339 = vst [vmem:[%s331 + $0xc] sm:%s323] %v338
        %v340 = vld [vmem:[%s330 + $0x8] sm:%s323]
        %341 = vst [vmem:[%s331 + $0x10] sm:%s323] %v340
        %v342 = vld [vmem:[%s330 + $0x18] sm:%s323]
        %343 = vst [vmem:[%s331 + $0x14] sm:%s323] %v342
        %v344 = vld [vmem:[%s330 + $0xc] sm:%s323]
        %345 = vst [vmem:[%s331 + $0x18] sm:%s323] %v344
        %v346 = vld [vmem:[%s330 + $0x1c] sm:%s323]
        %347 = vst [vmem:[%s331 + $0x1c] sm:%s323] %v346
        %v348 = vld [vmem:[%s330 + $0x20] sm:%s323]
        %349 = vst [vmem:[%s331 + $0x20] sm:%s323] %v348
        %v350 = vld [vmem:[%s330 + $0x30] sm:%s323]
        %351 = vst [vmem:[%s331 + $0x24] sm:%s323] %v350
        %v352 = vld [vmem:[%s330 + $0x24] sm:%s323]
        %353 = vst [vmem:[%s331 + $0x28] sm:%s323] %v352
        %v354 = vld [vmem:[%s330 + $0x34] sm:%s323]
        %355 = vst [vmem:[%s331 + $0x2c] sm:%s323] %v354
        %v356 = vld [vmem:[%s330 + $0x28] sm:%s323]
        %357 = vst [vmem:[%s331 + $0x30] sm:%s323] %v356
        %v358 = vld [vmem:[%s330 + $0x38] sm:%s323]
        %359 = vst [vmem:[%s331 + $0x34] sm:%s323] %v358
        %v360 = vld [vmem:[%s330 + $0x2c] sm:%s323]
        %361 = vst [vmem:[%s331 + $0x38] sm:%s323] %v360
        %v362 = vld [vmem:[%s330 + $0x3c] sm:%s323]
        %363 = vst [vmem:[%s331 + $0x3c] sm:%s323] %v362
        %v364 = vld [vmem:[%s330 + $0x40] sm:%s323]
        %365 = vst [vmem:[%s331 + $0x40] sm:%s323] %v364
        %v366 = vld [vmem:[%s330 + $0x50] sm:%s323]
        %367 = vst [vmem:[%s331 + $0x44] sm:%s323] %v366
        %v368 = vld [vmem:[%s330 + $0x44] sm:%s323]
        %369 = vst [vmem:[%s331 + $0x48] sm:%s323] %v368
        %v370 = vld [vmem:[%s330 + $0x54] sm:%s323]
        %371 = vst [vmem:[%s331 + $0x4c] sm:%s323] %v370
        %v372 = vld [vmem:[%s330 + $0x48] sm:%s323]
        %373 = vst [vmem:[%s331 + $0x50] sm:%s323] %v372
        %v374 = vld [vmem:[%s330 + $0x58] sm:%s323]
        %375 = vst [vmem:[%s331 + $0x54] sm:%s323] %v374
        %v376 = vld [vmem:[%s330 + $0x4c] sm:%s323]
        %377 = vst [vmem:[%s331 + $0x58] sm:%s323] %v376
        %v378 = vld [vmem:[%s330 + $0x5c] sm:%s323]
        %379 = vst [vmem:[%s331 + $0x5c] sm:%s323] %v378
        %v380 = vld [vmem:[%s330 + $0x60] sm:%s323]
        %381 = vst [vmem:[%s331 + $0x60] sm:%s323] %v380
        %v382 = vld [vmem:[%s330 + $0x70] sm:%s323]
        %383 = vst [vmem:[%s331 + $0x64] sm:%s323] %v382
        %v384 = vld [vmem:[%s330 + $0x64] sm:%s323]
        %385 = vst [vmem:[%s331 + $0x68] sm:%s323] %v384
        %v386 = vld [vmem:[%s330 + $0x74] sm:%s323]
        %387 = vst [vmem:[%s331 + $0x6c] sm:%s323] %v386
        %v388 = vld [vmem:[%s330 + $0x68] sm:%s323]
        %389 = vst [vmem:[%s331 + $0x70] sm:%s323] %v388
        %v390 = vld [vmem:[%s330 + $0x78] sm:%s323]
        %391 = vst [vmem:[%s331 + $0x74] sm:%s323] %v390
        %v392 = vld [vmem:[%s330 + $0x6c] sm:%s323]
        %393 = vst [vmem:[%s331 + $0x78] sm:%s323] %v392
        %v394 = vld [vmem:[%s330 + $0x7c] sm:%s323]
        %395 = vst [vmem:[%s331 + $0x7c] sm:%s323] %v394
        %v396 = vld [vmem:[%s330 + $0x80] sm:%s323]
        %397 = vst [vmem:[%s331 + $0x80] sm:%s323] %v396
        %v398 = vld [vmem:[%s330 + $0x90] sm:%s323]
        %399 = vst [vmem:[%s331 + $0x84] sm:%s323] %v398
        %v400 = vld [vmem:[%s330 + $0x84] sm:%s323]
        %401 = vst [vmem:[%s331 + $0x88] sm:%s323] %v400
        %v402 = vld [vmem:[%s330 + $0x94] sm:%s323]
        %403 = vst [vmem:[%s331 + $0x8c] sm:%s323] %v402
        %v404 = vld [vmem:[%s330 + $0x88] sm:%s323]
        %405 = vst [vmem:[%s331 + $0x90] sm:%s323] %v404
        %v406 = vld [vmem:[%s330 + $0x98] sm:%s323]
        %407 = vst [vmem:[%s331 + $0x94] sm:%s323] %v406
        %v408 = vld [vmem:[%s330 + $0x8c] sm:%s323]
        %409 = vst [vmem:[%s331 + $0x98] sm:%s323] %v408
        %v410 = vld [vmem:[%s330 + $0x9c] sm:%s323]
        %411 = vst [vmem:[%s331 + $0x9c] sm:%s323] %v410
        %v412 = vld [vmem:[%s330 + $0xa0] sm:%s323]
        %413 = vst [vmem:[%s331 + $0xa0] sm:%s323] %v412
        %v414 = vld [vmem:[%s330 + $0xb0] sm:%s323]
        %415 = vst [vmem:[%s331 + $0xa4] sm:%s323] %v414
        %v416 = vld [vmem:[%s330 + $0xa4] sm:%s323]
        %417 = vst [vmem:[%s331 + $0xa8] sm:%s323] %v416
        %v418 = vld [vmem:[%s330 + $0xb4] sm:%s323]
        %419 = vst [vmem:[%s331 + $0xac] sm:%s323] %v418
        %v420 = vld [vmem:[%s330 + $0xa8] sm:%s323]
        %421 = vst [vmem:[%s331 + $0xb0] sm:%s323] %v420
        %v422 = vld [vmem:[%s330 + $0xb8] sm:%s323]
        %423 = vst [vmem:[%s331 + $0xb4] sm:%s323] %v422
        %v424 = vld [vmem:[%s330 + $0xac] sm:%s323]
        %425 = vst [vmem:[%s331 + $0xb8] sm:%s323] %v424
        %v426 = vld [vmem:[%s330 + $0xbc] sm:%s323]
        %427 = vst [vmem:[%s331 + $0xbc] sm:%s323] %v426
        %v428 = vld [vmem:[%s330 + $0xc0] sm:%s323]
        %429 = vst [vmem:[%s331 + $0xc0] sm:%s323] %v428
        %v430 = vld [vmem:[%s330 + $0xd0] sm:%s323]
        %431 = vst [vmem:[%s331 + $0xc4] sm:%s323] %v430
        %v432 = vld [vmem:[%s330 + $0xc4] sm:%s323]
        %433 = vst [vmem:[%s331 + $0xc8] sm:%s323] %v432
        %v434 = vld [vmem:[%s330 + $0xd4] sm:%s323]
        %435 = vst [vmem:[%s331 + $0xcc] sm:%s323] %v434
        %v436 = vld [vmem:[%s330 + $0xc8] sm:%s323]
        %437 = vst [vmem:[%s331 + $0xd0] sm:%s323] %v436
        %v438 = vld [vmem:[%s330 + $0xd8] sm:%s323]
        %439 = vst [vmem:[%s331 + $0xd4] sm:%s323] %v438
        %v440 = vld [vmem:[%s330 + $0xcc] sm:%s323]
        %441 = vst [vmem:[%s331 + $0xd8] sm:%s323] %v440
        %v442 = vld [vmem:[%s330 + $0xdc] sm:%s323]
        %443 = vst [vmem:[%s331 + $0xdc] sm:%s323] %v442
        %v444 = vld [vmem:[%s330 + $0xe0] sm:%s323]
        %445 = vst [vmem:[%s331 + $0xe0] sm:%s323] %v444
        %v446 = vld [vmem:[%s330 + $0xf0] sm:%s323]
        %447 = vst [vmem:[%s331 + $0xe4] sm:%s323] %v446
        %v448 = vld [vmem:[%s330 + $0xe4] sm:%s323]
        %449 = vst [vmem:[%s331 + $0xe8] sm:%s323] %v448
        %v450 = vld [vmem:[%s330 + $0xf4] sm:%s323]
        %451 = vst [vmem:[%s331 + $0xec] sm:%s323] %v450
        %v452 = vld [vmem:[%s330 + $0xe8] sm:%s323]
        %453 = vst [vmem:[%s331 + $0xf0] sm:%s323] %v452
        %v454 = vld [vmem:[%s330 + $0xf8] sm:%s323]
        %455 = vst [vmem:[%s331 + $0xf4] sm:%s323] %v454
        %v456 = vld [vmem:[%s330 + $0xec] sm:%s323]
        %457 = vst [vmem:[%s331 + $0xf8] sm:%s323] %v456
        %v458 = vld [vmem:[%s330 + $0xfc] sm:%s323]
        %459 = vst [vmem:[%s331 + $0xfc] sm:%s323] %v458
        %v460 = vld [vmem:[%s330 + $0x100] sm:%s323]
        %461 = vst [vmem:[%s331 + $0x100] sm:%s323] %v460
        %v462 = vld [vmem:[%s330 + $0x110] sm:%s323]
        %463 = vst [vmem:[%s331 + $0x104] sm:%s323] %v462
        %v464 = vld [vmem:[%s330 + $0x104] sm:%s323]
        %465 = vst [vmem:[%s331 + $0x108] sm:%s323] %v464
        %v466 = vld [vmem:[%s330 + $0x114] sm:%s323]
        %467 = vst [vmem:[%s331 + $0x10c] sm:%s323] %v466
        %v468 = vld [vmem:[%s330 + $0x108] sm:%s323]
        %469 = vst [vmem:[%s331 + $0x110] sm:%s323] %v468
        %v470 = vld [vmem:[%s330 + $0x118] sm:%s323]
        %471 = vst [vmem:[%s331 + $0x114] sm:%s323] %v470
        %v472 = vld [vmem:[%s330 + $0x10c] sm:%s323]
        %473 = vst [vmem:[%s331 + $0x118] sm:%s323] %v472
        %v474 = vld [vmem:[%s330 + $0x11c] sm:%s323]
        %475 = vst [vmem:[%s331 + $0x11c] sm:%s323] %v474
        %v476 = vld [vmem:[%s330 + $0x120] sm:%s323]
        %477 = vst [vmem:[%s331 + $0x120] sm:%s323] %v476
        %v478 = vld [vmem:[%s330 + $0x130] sm:%s323]
        %479 = vst [vmem:[%s331 + $0x124] sm:%s323] %v478
        %v480 = vld [vmem:[%s330 + $0x124] sm:%s323]
        %481 = vst [vmem:[%s331 + $0x128] sm:%s323] %v480
        %v482 = vld [vmem:[%s330 + $0x134] sm:%s323]
        %483 = vst [vmem:[%s331 + $0x12c] sm:%s323] %v482
        %v484 = vld [vmem:[%s330 + $0x128] sm:%s323]
        %485 = vst [vmem:[%s331 + $0x130] sm:%s323] %v484
        %v486 = vld [vmem:[%s330 + $0x138] sm:%s323]
        %487 = vst [vmem:[%s331 + $0x134] sm:%s323] %v486
        %v488 = vld [vmem:[%s330 + $0x12c] sm:%s323]
        %489 = vst [vmem:[%s331 + $0x138] sm:%s323] %v488
        %v490 = vld [vmem:[%s330 + $0x13c] sm:%s323]
        %491 = vst [vmem:[%s331 + $0x13c] sm:%s323] %v490
        %v492 = vld [vmem:[%s330 + $0x140] sm:%s323]
        %493 = vst [vmem:[%s331 + $0x140] sm:%s323] %v492
        %v494 = vld [vmem:[%s330 + $0x150] sm:%s323]
        %495 = vst [vmem:[%s331 + $0x144] sm:%s323] %v494
        %v496 = vld [vmem:[%s330 + $0x144] sm:%s323]
        %497 = vst [vmem:[%s331 + $0x148] sm:%s323] %v496
        %v498 = vld [vmem:[%s330 + $0x154] sm:%s323]
        %499 = vst [vmem:[%s331 + $0x14c] sm:%s323] %v498
        %v500 = vld [vmem:[%s330 + $0x148] sm:%s323]
        %501 = vst [vmem:[%s331 + $0x150] sm:%s323] %v500
        %v502 = vld [vmem:[%s330 + $0x158] sm:%s323]
        %503 = vst [vmem:[%s331 + $0x154] sm:%s323] %v502
        %v504 = vld [vmem:[%s330 + $0x14c] sm:%s323]
        %505 = vst [vmem:[%s331 + $0x158] sm:%s323] %v504
        %v506 = vld [vmem:[%s330 + $0x15c] sm:%s323]
        %507 = vst [vmem:[%s331 + $0x15c] sm:%s323] %v506
        %v508 = vld [vmem:[%s330 + $0x160] sm:%s323]
        %509 = vst [vmem:[%s331 + $0x160] sm:%s323] %v508
        %v510 = vld [vmem:[%s330 + $0x170] sm:%s323]
        %511 = vst [vmem:[%s331 + $0x164] sm:%s323] %v510
        %v512 = vld [vmem:[%s330 + $0x164] sm:%s323]
        %513 = vst [vmem:[%s331 + $0x168] sm:%s323] %v512
        %v514 = vld [vmem:[%s330 + $0x174] sm:%s323]
        %515 = vst [vmem:[%s331 + $0x16c] sm:%s323] %v514
        %v516 = vld [vmem:[%s330 + $0x168] sm:%s323]
        %517 = vst [vmem:[%s331 + $0x170] sm:%s323] %v516
        %v518 = vld [vmem:[%s330 + $0x178] sm:%s323]
        %519 = vst [vmem:[%s331 + $0x174] sm:%s323] %v518
        %v520 = vld [vmem:[%s330 + $0x16c] sm:%s323]
        %521 = vst [vmem:[%s331 + $0x178] sm:%s323] %v520
        %v522 = vld [vmem:[%s330 + $0x17c] sm:%s323]
        %523 = vst [vmem:[%s331 + $0x17c] sm:%s323] %v522
        %v524 = vld [vmem:[%s330 + $0x180] sm:%s323]
        %525 = vst [vmem:[%s331 + $0x180] sm:%s323] %v524
        %v526 = vld [vmem:[%s330 + $0x190] sm:%s323]
        %527 = vst [vmem:[%s331 + $0x184] sm:%s323] %v526
        %v528 = vld [vmem:[%s330 + $0x184] sm:%s323]
        %529 = vst [vmem:[%s331 + $0x188] sm:%s323] %v528
        %v530 = vld [vmem:[%s330 + $0x194] sm:%s323]
        %531 = vst [vmem:[%s331 + $0x18c] sm:%s323] %v530
        %v532 = vld [vmem:[%s330 + $0x188] sm:%s323]
        %533 = vst [vmem:[%s331 + $0x190] sm:%s323] %v532
        %v534 = vld [vmem:[%s330 + $0x198] sm:%s323]
        %535 = vst [vmem:[%s331 + $0x194] sm:%s323] %v534
        %v536 = vld [vmem:[%s330 + $0x18c] sm:%s323]
        %537 = vst [vmem:[%s331 + $0x198] sm:%s323] %v536
        %v538 = vld [vmem:[%s330 + $0x19c] sm:%s323]
        %539 = vst [vmem:[%s331 + $0x19c] sm:%s323] %v538
        %v540 = vld [vmem:[%s330 + $0x1a0] sm:%s323]
        %541 = vst [vmem:[%s331 + $0x1a0] sm:%s323] %v540
        %v542 = vld [vmem:[%s330 + $0x1b0] sm:%s323]
        %543 = vst [vmem:[%s331 + $0x1a4] sm:%s323] %v542
        %v544 = vld [vmem:[%s330 + $0x1a4] sm:%s323]
        %545 = vst [vmem:[%s331 + $0x1a8] sm:%s323] %v544
        %v546 = vld [vmem:[%s330 + $0x1b4] sm:%s323]
        %547 = vst [vmem:[%s331 + $0x1ac] sm:%s323] %v546
        %v548 = vld [vmem:[%s330 + $0x1a8] sm:%s323]
        %549 = vst [vmem:[%s331 + $0x1b0] sm:%s323] %v548
        %v550 = vld [vmem:[%s330 + $0x1b8] sm:%s323]
        %551 = vst [vmem:[%s331 + $0x1b4] sm:%s323] %v550
        %v552 = vld [vmem:[%s330 + $0x1ac] sm:%s323]
        %553 = vst [vmem:[%s331 + $0x1b8] sm:%s323] %v552
        %v554 = vld [vmem:[%s330 + $0x1bc] sm:%s323]
        %555 = vst [vmem:[%s331 + $0x1bc] sm:%s323] %v554
        %v556 = vld [vmem:[%s330 + $0x1c0] sm:%s323]
        %557 = vst [vmem:[%s331 + $0x1c0] sm:%s323] %v556
        %v558 = vld [vmem:[%s330 + $0x1d0] sm:%s323]
        %559 = vst [vmem:[%s331 + $0x1c4] sm:%s323] %v558
        %v560 = vld [vmem:[%s330 + $0x1c4] sm:%s323]
        %561 = vst [vmem:[%s331 + $0x1c8] sm:%s323] %v560
        %v562 = vld [vmem:[%s330 + $0x1d4] sm:%s323]
        %563 = vst [vmem:[%s331 + $0x1cc] sm:%s323] %v562
        %v564 = vld [vmem:[%s330 + $0x1c8] sm:%s323]
        %565 = vst [vmem:[%s331 + $0x1d0] sm:%s323] %v564
        %v566 = vld [vmem:[%s330 + $0x1d8] sm:%s323]
        %567 = vst [vmem:[%s331 + $0x1d4] sm:%s323] %v566
        %v568 = vld [vmem:[%s330 + $0x1cc] sm:%s323]
        %569 = vst [vmem:[%s331 + $0x1d8] sm:%s323] %v568
        %v570 = vld [vmem:[%s330 + $0x1dc] sm:%s323]
        %571 = vst [vmem:[%s331 + $0x1dc] sm:%s323] %v570
        %v572 = vld [vmem:[%s330 + $0x1e0] sm:%s323]
        %573 = vst [vmem:[%s331 + $0x1e0] sm:%s323] %v572
        %v574 = vld [vmem:[%s330 + $0x1f0] sm:%s323]
        %575 = vst [vmem:[%s331 + $0x1e4] sm:%s323] %v574
        %v576 = vld [vmem:[%s330 + $0x1e4] sm:%s323]
        %577 = vst [vmem:[%s331 + $0x1e8] sm:%s323] %v576
        %v578 = vld [vmem:[%s330 + $0x1f4] sm:%s323]
        %579 = vst [vmem:[%s331 + $0x1ec] sm:%s323] %v578
        %v580 = vld [vmem:[%s330 + $0x1e8] sm:%s323]
        %581 = vst [vmem:[%s331 + $0x1f0] sm:%s323] %v580
        %v582 = vld [vmem:[%s330 + $0x1f8] sm:%s323]
        %583 = vst [vmem:[%s331 + $0x1f4] sm:%s323] %v582
        %v584 = vld [vmem:[%s330 + $0x1ec] sm:%s323]
        %585 = vst [vmem:[%s331 + $0x1f8] sm:%s323] %v584
        %v586 = vld [vmem:[%s330 + $0x1fc] sm:%s323]
        %587 = vst [vmem:[%s331 + $0x1fc] sm:%s323] %v586
      $region64: #{lstm_autoencoder_forward.1} parent=51 // loop_footer
        %s329 = sadd.s32 1, %s325
      $region65: #{lstm_autoencoder_forward.1} parent=51 // loop_footer_branch
        %324 = sbr.rel target = $region61
      $region66: #{lstm_autoencoder_forward.1} parent=51 // loop_exit
        _
    $region52: #{lstm_autoencoder_forward.1} parent=36 // pred_fallthru
      _
  $region37: #{lstm_autoencoder_forward.1} parent=0 // pred_fallthru
    _
  // Predicated region
  $region38: #{lstm_autoencoder_forward.1} parent=0 // pred_check
    %p37 = pneg %p33
  $region39: #{lstm_autoencoder_forward.1} parent=0 // pred_check_branch
    %39 = sbr.rel (%p37) target = $region41
  $region40: #{lstm_autoencoder_forward.1} parent=0 // pred_region
    %s40 = sshllo.u32 0, 4
    loop: start=0, step=1, limit=1
    $region42: #{lstm_autoencoder_forward.1} parent=40 // loop_pre_header
      _
    $region43: #{lstm_autoencoder_forward.1} parent=40 // loop_header
      %s42 = sphi 0, %s46
      %p43 = scmp.ge.s32.totalorder %s42, 1
      %s47 = sphi %s6, %s6
      %s48 = sphi [#allocation3], [#allocation3]
    $region44: #{lstm_autoencoder_forward.1} parent=40 // loop_header_branch
      %45 = sbr.rel (%p43) target = $region48
    $region45: #{lstm_autoencoder_forward.1} parent=40 // loop_body
      %v49 = vld [vmem:[%s47] sm:%s40]
      %50 = vst [vmem:[%s48] sm:%s40] %v49
      %v51 = vld [vmem:[%s47 + $0x10] sm:%s40]
      %52 = vst [vmem:[%s48 + $0x4] sm:%s40] %v51
      %v53 = vld [vmem:[%s47 + $0x4] sm:%s40]
      %54 = vst [vmem:[%s48 + $0x8] sm:%s40] %v53
      %v55 = vld [vmem:[%s47 + $0x14] sm:%s40]
      %56 = vst [vmem:[%s48 + $0xc] sm:%s40] %v55
      %v57 = vld [vmem:[%s47 + $0x8] sm:%s40]
      %58 = vst [vmem:[%s48 + $0x10] sm:%s40] %v57
      %v59 = vld [vmem:[%s47 + $0x18] sm:%s40]
      %60 = vst [vmem:[%s48 + $0x14] sm:%s40] %v59
      %v61 = vld [vmem:[%s47 + $0xc] sm:%s40]
      %62 = vst [vmem:[%s48 + $0x18] sm:%s40] %v61
      %v63 = vld [vmem:[%s47 + $0x1c] sm:%s40]
      %64 = vst [vmem:[%s48 + $0x1c] sm:%s40] %v63
      %v65 = vld [vmem:[%s47 + $0x20] sm:%s40]
      %66 = vst [vmem:[%s48 + $0x20] sm:%s40] %v65
      %v67 = vld [vmem:[%s47 + $0x30] sm:%s40]
      %68 = vst [vmem:[%s48 + $0x24] sm:%s40] %v67
      %v69 = vld [vmem:[%s47 + $0x24] sm:%s40]
      %70 = vst [vmem:[%s48 + $0x28] sm:%s40] %v69
      %v71 = vld [vmem:[%s47 + $0x34] sm:%s40]
      %72 = vst [vmem:[%s48 + $0x2c] sm:%s40] %v71
      %v73 = vld [vmem:[%s47 + $0x28] sm:%s40]
      %74 = vst [vmem:[%s48 + $0x30] sm:%s40] %v73
      %v75 = vld [vmem:[%s47 + $0x38] sm:%s40]
      %76 = vst [vmem:[%s48 + $0x34] sm:%s40] %v75
      %v77 = vld [vmem:[%s47 + $0x2c] sm:%s40]
      %78 = vst [vmem:[%s48 + $0x38] sm:%s40] %v77
      %v79 = vld [vmem:[%s47 + $0x3c] sm:%s40]
      %80 = vst [vmem:[%s48 + $0x3c] sm:%s40] %v79
      %v81 = vld [vmem:[%s47 + $0x40] sm:%s40]
      %82 = vst [vmem:[%s48 + $0x40] sm:%s40] %v81
      %v83 = vld [vmem:[%s47 + $0x50] sm:%s40]
      %84 = vst [vmem:[%s48 + $0x44] sm:%s40] %v83
      %v85 = vld [vmem:[%s47 + $0x44] sm:%s40]
      %86 = vst [vmem:[%s48 + $0x48] sm:%s40] %v85
      %v87 = vld [vmem:[%s47 + $0x54] sm:%s40]
      %88 = vst [vmem:[%s48 + $0x4c] sm:%s40] %v87
      %v89 = vld [vmem:[%s47 + $0x48] sm:%s40]
      %90 = vst [vmem:[%s48 + $0x50] sm:%s40] %v89
      %v91 = vld [vmem:[%s47 + $0x58] sm:%s40]
      %92 = vst [vmem:[%s48 + $0x54] sm:%s40] %v91
      %v93 = vld [vmem:[%s47 + $0x4c] sm:%s40]
      %94 = vst [vmem:[%s48 + $0x58] sm:%s40] %v93
      %v95 = vld [vmem:[%s47 + $0x5c] sm:%s40]
      %96 = vst [vmem:[%s48 + $0x5c] sm:%s40] %v95
      %v97 = vld [vmem:[%s47 + $0x60] sm:%s40]
      %98 = vst [vmem:[%s48 + $0x60] sm:%s40] %v97
      %v99 = vld [vmem:[%s47 + $0x70] sm:%s40]
      %100 = vst [vmem:[%s48 + $0x64] sm:%s40] %v99
      %v101 = vld [vmem:[%s47 + $0x64] sm:%s40]
      %102 = vst [vmem:[%s48 + $0x68] sm:%s40] %v101
      %v103 = vld [vmem:[%s47 + $0x74] sm:%s40]
      %104 = vst [vmem:[%s48 + $0x6c] sm:%s40] %v103
      %v105 = vld [vmem:[%s47 + $0x68] sm:%s40]
      %106 = vst [vmem:[%s48 + $0x70] sm:%s40] %v105
      %v107 = vld [vmem:[%s47 + $0x78] sm:%s40]
      %108 = vst [vmem:[%s48 + $0x74] sm:%s40] %v107
      %v109 = vld [vmem:[%s47 + $0x6c] sm:%s40]
      %110 = vst [vmem:[%s48 + $0x78] sm:%s40] %v109
      %v111 = vld [vmem:[%s47 + $0x7c] sm:%s40]
      %112 = vst [vmem:[%s48 + $0x7c] sm:%s40] %v111
      %v113 = vld [vmem:[%s47 + $0x80] sm:%s40]
      %114 = vst [vmem:[%s48 + $0x80] sm:%s40] %v113
      %v115 = vld [vmem:[%s47 + $0x90] sm:%s40]
      %116 = vst [vmem:[%s48 + $0x84] sm:%s40] %v115
      %v117 = vld [vmem:[%s47 + $0x84] sm:%s40]
      %118 = vst [vmem:[%s48 + $0x88] sm:%s40] %v117
      %v119 = vld [vmem:[%s47 + $0x94] sm:%s40]
      %120 = vst [vmem:[%s48 + $0x8c] sm:%s40] %v119
      %v121 = vld [vmem:[%s47 + $0x88] sm:%s40]
      %122 = vst [vmem:[%s48 + $0x90] sm:%s40] %v121
      %v123 = vld [vmem:[%s47 + $0x98] sm:%s40]
      %124 = vst [vmem:[%s48 + $0x94] sm:%s40] %v123
      %v125 = vld [vmem:[%s47 + $0x8c] sm:%s40]
      %126 = vst [vmem:[%s48 + $0x98] sm:%s40] %v125
      %v127 = vld [vmem:[%s47 + $0x9c] sm:%s40]
      %128 = vst [vmem:[%s48 + $0x9c] sm:%s40] %v127
      %v129 = vld [vmem:[%s47 + $0xa0] sm:%s40]
      %130 = vst [vmem:[%s48 + $0xa0] sm:%s40] %v129
      %v131 = vld [vmem:[%s47 + $0xb0] sm:%s40]
      %132 = vst [vmem:[%s48 + $0xa4] sm:%s40] %v131
      %v133 = vld [vmem:[%s47 + $0xa4] sm:%s40]
      %134 = vst [vmem:[%s48 + $0xa8] sm:%s40] %v133
      %v135 = vld [vmem:[%s47 + $0xb4] sm:%s40]
      %136 = vst [vmem:[%s48 + $0xac] sm:%s40] %v135
      %v137 = vld [vmem:[%s47 + $0xa8] sm:%s40]
      %138 = vst [vmem:[%s48 + $0xb0] sm:%s40] %v137
      %v139 = vld [vmem:[%s47 + $0xb8] sm:%s40]
      %140 = vst [vmem:[%s48 + $0xb4] sm:%s40] %v139
      %v141 = vld [vmem:[%s47 + $0xac] sm:%s40]
      %142 = vst [vmem:[%s48 + $0xb8] sm:%s40] %v141
      %v143 = vld [vmem:[%s47 + $0xbc] sm:%s40]
      %144 = vst [vmem:[%s48 + $0xbc] sm:%s40] %v143
      %v145 = vld [vmem:[%s47 + $0xc0] sm:%s40]
      %146 = vst [vmem:[%s48 + $0xc0] sm:%s40] %v145
      %v147 = vld [vmem:[%s47 + $0xd0] sm:%s40]
      %148 = vst [vmem:[%s48 + $0xc4] sm:%s40] %v147
      %v149 = vld [vmem:[%s47 + $0xc4] sm:%s40]
      %150 = vst [vmem:[%s48 + $0xc8] sm:%s40] %v149
      %v151 = vld [vmem:[%s47 + $0xd4] sm:%s40]
      %152 = vst [vmem:[%s48 + $0xcc] sm:%s40] %v151
      %v153 = vld [vmem:[%s47 + $0xc8] sm:%s40]
      %154 = vst [vmem:[%s48 + $0xd0] sm:%s40] %v153
      %v155 = vld [vmem:[%s47 + $0xd8] sm:%s40]
      %156 = vst [vmem:[%s48 + $0xd4] sm:%s40] %v155
      %v157 = vld [vmem:[%s47 + $0xcc] sm:%s40]
      %158 = vst [vmem:[%s48 + $0xd8] sm:%s40] %v157
      %v159 = vld [vmem:[%s47 + $0xdc] sm:%s40]
      %160 = vst [vmem:[%s48 + $0xdc] sm:%s40] %v159
      %v161 = vld [vmem:[%s47 + $0xe0] sm:%s40]
      %162 = vst [vmem:[%s48 + $0xe0] sm:%s40] %v161
      %v163 = vld [vmem:[%s47 + $0xf0] sm:%s40]
      %164 = vst [vmem:[%s48 + $0xe4] sm:%s40] %v163
      %v165 = vld [vmem:[%s47 + $0xe4] sm:%s40]
      %166 = vst [vmem:[%s48 + $0xe8] sm:%s40] %v165
      %v167 = vld [vmem:[%s47 + $0xf4] sm:%s40]
      %168 = vst [vmem:[%s48 + $0xec] sm:%s40] %v167
      %v169 = vld [vmem:[%s47 + $0xe8] sm:%s40]
      %170 = vst [vmem:[%s48 + $0xf0] sm:%s40] %v169
      %v171 = vld [vmem:[%s47 + $0xf8] sm:%s40]
      %172 = vst [vmem:[%s48 + $0xf4] sm:%s40] %v171
      %v173 = vld [vmem:[%s47 + $0xec] sm:%s40]
      %174 = vst [vmem:[%s48 + $0xf8] sm:%s40] %v173
      %v175 = vld [vmem:[%s47 + $0xfc] sm:%s40]
      %176 = vst [vmem:[%s48 + $0xfc] sm:%s40] %v175
      %v177 = vld [vmem:[%s47 + $0x100] sm:%s40]
      %178 = vst [vmem:[%s48 + $0x100] sm:%s40] %v177
      %v179 = vld [vmem:[%s47 + $0x110] sm:%s40]
      %180 = vst [vmem:[%s48 + $0x104] sm:%s40] %v179
      %v181 = vld [vmem:[%s47 + $0x104] sm:%s40]
      %182 = vst [vmem:[%s48 + $0x108] sm:%s40] %v181
      %v183 = vld [vmem:[%s47 + $0x114] sm:%s40]
      %184 = vst [vmem:[%s48 + $0x10c] sm:%s40] %v183
      %v185 = vld [vmem:[%s47 + $0x108] sm:%s40]
      %186 = vst [vmem:[%s48 + $0x110] sm:%s40] %v185
      %v187 = vld [vmem:[%s47 + $0x118] sm:%s40]
      %188 = vst [vmem:[%s48 + $0x114] sm:%s40] %v187
      %v189 = vld [vmem:[%s47 + $0x10c] sm:%s40]
      %190 = vst [vmem:[%s48 + $0x118] sm:%s40] %v189
      %v191 = vld [vmem:[%s47 + $0x11c] sm:%s40]
      %192 = vst [vmem:[%s48 + $0x11c] sm:%s40] %v191
      %v193 = vld [vmem:[%s47 + $0x120] sm:%s40]
      %194 = vst [vmem:[%s48 + $0x120] sm:%s40] %v193
      %v195 = vld [vmem:[%s47 + $0x130] sm:%s40]
      %196 = vst [vmem:[%s48 + $0x124] sm:%s40] %v195
      %v197 = vld [vmem:[%s47 + $0x124] sm:%s40]
      %198 = vst [vmem:[%s48 + $0x128] sm:%s40] %v197
      %v199 = vld [vmem:[%s47 + $0x134] sm:%s40]
      %200 = vst [vmem:[%s48 + $0x12c] sm:%s40] %v199
      %v201 = vld [vmem:[%s47 + $0x128] sm:%s40]
      %202 = vst [vmem:[%s48 + $0x130] sm:%s40] %v201
      %v203 = vld [vmem:[%s47 + $0x138] sm:%s40]
      %204 = vst [vmem:[%s48 + $0x134] sm:%s40] %v203
      %v205 = vld [vmem:[%s47 + $0x12c] sm:%s40]
      %206 = vst [vmem:[%s48 + $0x138] sm:%s40] %v205
      %v207 = vld [vmem:[%s47 + $0x13c] sm:%s40]
      %208 = vst [vmem:[%s48 + $0x13c] sm:%s40] %v207
      %v209 = vld [vmem:[%s47 + $0x140] sm:%s40]
      %210 = vst [vmem:[%s48 + $0x140] sm:%s40] %v209
      %v211 = vld [vmem:[%s47 + $0x150] sm:%s40]
      %212 = vst [vmem:[%s48 + $0x144] sm:%s40] %v211
      %v213 = vld [vmem:[%s47 + $0x144] sm:%s40]
      %214 = vst [vmem:[%s48 + $0x148] sm:%s40] %v213
      %v215 = vld [vmem:[%s47 + $0x154] sm:%s40]
      %216 = vst [vmem:[%s48 + $0x14c] sm:%s40] %v215
      %v217 = vld [vmem:[%s47 + $0x148] sm:%s40]
      %218 = vst [vmem:[%s48 + $0x150] sm:%s40] %v217
      %v219 = vld [vmem:[%s47 + $0x158] sm:%s40]
      %220 = vst [vmem:[%s48 + $0x154] sm:%s40] %v219
      %v221 = vld [vmem:[%s47 + $0x14c] sm:%s40]
      %222 = vst [vmem:[%s48 + $0x158] sm:%s40] %v221
      %v223 = vld [vmem:[%s47 + $0x15c] sm:%s40]
      %224 = vst [vmem:[%s48 + $0x15c] sm:%s40] %v223
      %v225 = vld [vmem:[%s47 + $0x160] sm:%s40]
      %226 = vst [vmem:[%s48 + $0x160] sm:%s40] %v225
      %v227 = vld [vmem:[%s47 + $0x170] sm:%s40]
      %228 = vst [vmem:[%s48 + $0x164] sm:%s40] %v227
      %v229 = vld [vmem:[%s47 + $0x164] sm:%s40]
      %230 = vst [vmem:[%s48 + $0x168] sm:%s40] %v229
      %v231 = vld [vmem:[%s47 + $0x174] sm:%s40]
      %232 = vst [vmem:[%s48 + $0x16c] sm:%s40] %v231
      %v233 = vld [vmem:[%s47 + $0x168] sm:%s40]
      %234 = vst [vmem:[%s48 + $0x170] sm:%s40] %v233
      %v235 = vld [vmem:[%s47 + $0x178] sm:%s40]
      %236 = vst [vmem:[%s48 + $0x174] sm:%s40] %v235
      %v237 = vld [vmem:[%s47 + $0x16c] sm:%s40]
      %238 = vst [vmem:[%s48 + $0x178] sm:%s40] %v237
      %v239 = vld [vmem:[%s47 + $0x17c] sm:%s40]
      %240 = vst [vmem:[%s48 + $0x17c] sm:%s40] %v239
      %v241 = vld [vmem:[%s47 + $0x180] sm:%s40]
      %242 = vst [vmem:[%s48 + $0x180] sm:%s40] %v241
      %v243 = vld [vmem:[%s47 + $0x190] sm:%s40]
      %244 = vst [vmem:[%s48 + $0x184] sm:%s40] %v243
      %v245 = vld [vmem:[%s47 + $0x184] sm:%s40]
      %246 = vst [vmem:[%s48 + $0x188] sm:%s40] %v245
      %v247 = vld [vmem:[%s47 + $0x194] sm:%s40]
      %248 = vst [vmem:[%s48 + $0x18c] sm:%s40] %v247
      %v249 = vld [vmem:[%s47 + $0x188] sm:%s40]
      %250 = vst [vmem:[%s48 + $0x190] sm:%s40] %v249
      %v251 = vld [vmem:[%s47 + $0x198] sm:%s40]
      %252 = vst [vmem:[%s48 + $0x194] sm:%s40] %v251
      %v253 = vld [vmem:[%s47 + $0x18c] sm:%s40]
      %254 = vst [vmem:[%s48 + $0x198] sm:%s40] %v253
      %v255 = vld [vmem:[%s47 + $0x19c] sm:%s40]
      %256 = vst [vmem:[%s48 + $0x19c] sm:%s40] %v255
      %v257 = vld [vmem:[%s47 + $0x1a0] sm:%s40]
      %258 = vst [vmem:[%s48 + $0x1a0] sm:%s40] %v257
      %v259 = vld [vmem:[%s47 + $0x1b0] sm:%s40]
      %260 = vst [vmem:[%s48 + $0x1a4] sm:%s40] %v259
      %v261 = vld [vmem:[%s47 + $0x1a4] sm:%s40]
      %262 = vst [vmem:[%s48 + $0x1a8] sm:%s40] %v261
      %v263 = vld [vmem:[%s47 + $0x1b4] sm:%s40]
      %264 = vst [vmem:[%s48 + $0x1ac] sm:%s40] %v263
      %v265 = vld [vmem:[%s47 + $0x1a8] sm:%s40]
      %266 = vst [vmem:[%s48 + $0x1b0] sm:%s40] %v265
      %v267 = vld [vmem:[%s47 + $0x1b8] sm:%s40]
      %268 = vst [vmem:[%s48 + $0x1b4] sm:%s40] %v267
      %v269 = vld [vmem:[%s47 + $0x1ac] sm:%s40]
      %270 = vst [vmem:[%s48 + $0x1b8] sm:%s40] %v269
      %v271 = vld [vmem:[%s47 + $0x1bc] sm:%s40]
      %272 = vst [vmem:[%s48 + $0x1bc] sm:%s40] %v271
      %v273 = vld [vmem:[%s47 + $0x1c0] sm:%s40]
      %274 = vst [vmem:[%s48 + $0x1c0] sm:%s40] %v273
      %v275 = vld [vmem:[%s47 + $0x1d0] sm:%s40]
      %276 = vst [vmem:[%s48 + $0x1c4] sm:%s40] %v275
      %v277 = vld [vmem:[%s47 + $0x1c4] sm:%s40]
      %278 = vst [vmem:[%s48 + $0x1c8] sm:%s40] %v277
      %v279 = vld [vmem:[%s47 + $0x1d4] sm:%s40]
      %280 = vst [vmem:[%s48 + $0x1cc] sm:%s40] %v279
      %v281 = vld [vmem:[%s47 + $0x1c8] sm:%s40]
      %282 = vst [vmem:[%s48 + $0x1d0] sm:%s40] %v281
      %v283 = vld [vmem:[%s47 + $0x1d8] sm:%s40]
      %284 = vst [vmem:[%s48 + $0x1d4] sm:%s40] %v283
      %v285 = vld [vmem:[%s47 + $0x1cc] sm:%s40]
      %286 = vst [vmem:[%s48 + $0x1d8] sm:%s40] %v285
      %v287 = vld [vmem:[%s47 + $0x1dc] sm:%s40]
      %288 = vst [vmem:[%s48 + $0x1dc] sm:%s40] %v287
      %v289 = vld [vmem:[%s47 + $0x1e0] sm:%s40]
      %290 = vst [vmem:[%s48 + $0x1e0] sm:%s40] %v289
      %v291 = vld [vmem:[%s47 + $0x1f0] sm:%s40]
      %292 = vst [vmem:[%s48 + $0x1e4] sm:%s40] %v291
      %v293 = vld [vmem:[%s47 + $0x1e4] sm:%s40]
      %294 = vst [vmem:[%s48 + $0x1e8] sm:%s40] %v293
      %v295 = vld [vmem:[%s47 + $0x1f4] sm:%s40]
      %296 = vst [vmem:[%s48 + $0x1ec] sm:%s40] %v295
      %v297 = vld [vmem:[%s47 + $0x1e8] sm:%s40]
      %298 = vst [vmem:[%s48 + $0x1f0] sm:%s40] %v297
      %v299 = vld [vmem:[%s47 + $0x1f8] sm:%s40]
      %300 = vst [vmem:[%s48 + $0x1f4] sm:%s40] %v299
      %v301 = vld [vmem:[%s47 + $0x1ec] sm:%s40]
      %302 = vst [vmem:[%s48 + $0x1f8] sm:%s40] %v301
      %v303 = vld [vmem:[%s47 + $0x1fc] sm:%s40]
      %304 = vst [vmem:[%s48 + $0x1fc] sm:%s40] %v303
    $region46: #{lstm_autoencoder_forward.1} parent=40 // loop_footer
      %s46 = sadd.s32 1, %s42
    $region47: #{lstm_autoencoder_forward.1} parent=40 // loop_footer_branch
      %41 = sbr.rel target = $region43
    $region48: #{lstm_autoencoder_forward.1} parent=40 // loop_exit
      _
  $region41: #{lstm_autoencoder_forward.1} parent=0 // pred_fallthru
    _
  // Predicated region
  $region67: #{lstm_autoencoder_forward.1} parent=0 // pred_check
    _
  $region68: #{lstm_autoencoder_forward.1} parent=0 // pred_check_branch
    %590 = sbr.rel (0) target = $region70
  $region69: #{lstm_autoencoder_forward.1} parent=0 // pred_region
    %591 = vsyncadd [#allocation5], 8192
  $region70: #{lstm_autoencoder_forward.1} parent=0 // pred_fallthru
    _
  %s592 = scalar_lea.sflag [#allocation5], 1
  %p594 = scmp.lt.u32.totalorder 4, 8
  %p595 = pneg %p594
  // Predicated region
  $region71: #{lstm_autoencoder_forward.1} parent=0 // pred_check
    _
  $region72: #{lstm_autoencoder_forward.1} parent=0 // pred_check_branch
    %597 = sbr.rel (%p594) target = $region74
  $region73: #{lstm_autoencoder_forward.1} parent=0 // pred_region
    %s866 = sand.u32 4, 7
    %p867 = scmp.eq.s32.totalorder %s866, 0
    %p868 = pneg %p867
    // Predicated region
    $region86: #{lstm_autoencoder_forward.1} parent=73 // pred_check
      _
    $region87: #{lstm_autoencoder_forward.1} parent=73 // pred_check_branch
      %870 = sbr.rel (%p867) target = $region89
    $region88: #{lstm_autoencoder_forward.1} parent=73 // pred_region
      %s871 = sand.u32 4, 7
      %s872 = ssub.s32 4, %s871
      %s873 = scalar_lea.vmem %s8, %s872
      %s874 = ssub.s32 4, %s871
      %s875 = scalar_lea.vmem [#allocation4], %s874
      loop: start=0, step=1, limit=1
      $region90: #{lstm_autoencoder_forward.1} parent=88 // loop_pre_header
        _
      $region91: #{lstm_autoencoder_forward.1} parent=88 // loop_header
        %s877 = sphi 0, %s881
        %p878 = scmp.ge.s32.totalorder %s877, 1
        %s882 = sphi %s8, %s8
        %s883 = sphi [#allocation4], [#allocation4]
      $region92: #{lstm_autoencoder_forward.1} parent=88 // loop_header_branch
        %880 = sbr.rel (%p878) target = $region96
      $region93: #{lstm_autoencoder_forward.1} parent=88 // loop_body
        _
      $region94: #{lstm_autoencoder_forward.1} parent=88 // loop_footer
        %s881 = sadd.s32 1, %s877
      $region95: #{lstm_autoencoder_forward.1} parent=88 // loop_footer_branch
        %876 = sbr.rel target = $region91
      $region96: #{lstm_autoencoder_forward.1} parent=88 // loop_exit
        _
      %s884 = sshllo.u32 0, %s871
      loop: start=0, step=1, limit=1
      $region97: #{lstm_autoencoder_forward.1} parent=88 // loop_pre_header
        _
      $region98: #{lstm_autoencoder_forward.1} parent=88 // loop_header
        %s886 = sphi 0, %s890
        %p887 = scmp.ge.s32.totalorder %s886, 1
        %s891 = sphi %s873, %s873
        %s892 = sphi %s875, %s875
      $region99: #{lstm_autoencoder_forward.1} parent=88 // loop_header_branch
        %889 = sbr.rel (%p887) target = $region103
      $region100: #{lstm_autoencoder_forward.1} parent=88 // loop_body
        %v893 = vld [vmem:[%s891] sm:%s884]
        %894 = vst [vmem:[%s892] sm:%s884] %v893
        %v895 = vld [vmem:[%s891 + $0x10] sm:%s884]
        %896 = vst [vmem:[%s892 + $0x4] sm:%s884] %v895
        %v897 = vld [vmem:[%s891 + $0x4] sm:%s884]
        %898 = vst [vmem:[%s892 + $0x8] sm:%s884] %v897
        %v899 = vld [vmem:[%s891 + $0x14] sm:%s884]
        %900 = vst [vmem:[%s892 + $0xc] sm:%s884] %v899
        %v901 = vld [vmem:[%s891 + $0x8] sm:%s884]
        %902 = vst [vmem:[%s892 + $0x10] sm:%s884] %v901
        %v903 = vld [vmem:[%s891 + $0x18] sm:%s884]
        %904 = vst [vmem:[%s892 + $0x14] sm:%s884] %v903
        %v905 = vld [vmem:[%s891 + $0xc] sm:%s884]
        %906 = vst [vmem:[%s892 + $0x18] sm:%s884] %v905
        %v907 = vld [vmem:[%s891 + $0x1c] sm:%s884]
        %908 = vst [vmem:[%s892 + $0x1c] sm:%s884] %v907
        %v909 = vld [vmem:[%s891 + $0x20] sm:%s884]
        %910 = vst [vmem:[%s892 + $0x20] sm:%s884] %v909
        %v911 = vld [vmem:[%s891 + $0x30] sm:%s884]
        %912 = vst [vmem:[%s892 + $0x24] sm:%s884] %v911
        %v913 = vld [vmem:[%s891 + $0x24] sm:%s884]
        %914 = vst [vmem:[%s892 + $0x28] sm:%s884] %v913
        %v915 = vld [vmem:[%s891 + $0x34] sm:%s884]
        %916 = vst [vmem:[%s892 + $0x2c] sm:%s884] %v915
        %v917 = vld [vmem:[%s891 + $0x28] sm:%s884]
        %918 = vst [vmem:[%s892 + $0x30] sm:%s884] %v917
        %v919 = vld [vmem:[%s891 + $0x38] sm:%s884]
        %920 = vst [vmem:[%s892 + $0x34] sm:%s884] %v919
        %v921 = vld [vmem:[%s891 + $0x2c] sm:%s884]
        %922 = vst [vmem:[%s892 + $0x38] sm:%s884] %v921
        %v923 = vld [vmem:[%s891 + $0x3c] sm:%s884]
        %924 = vst [vmem:[%s892 + $0x3c] sm:%s884] %v923
        %v925 = vld [vmem:[%s891 + $0x40] sm:%s884]
        %926 = vst [vmem:[%s892 + $0x40] sm:%s884] %v925
        %v927 = vld [vmem:[%s891 + $0x50] sm:%s884]
        %928 = vst [vmem:[%s892 + $0x44] sm:%s884] %v927
        %v929 = vld [vmem:[%s891 + $0x44] sm:%s884]
        %930 = vst [vmem:[%s892 + $0x48] sm:%s884] %v929
        %v931 = vld [vmem:[%s891 + $0x54] sm:%s884]
        %932 = vst [vmem:[%s892 + $0x4c] sm:%s884] %v931
        %v933 = vld [vmem:[%s891 + $0x48] sm:%s884]
        %934 = vst [vmem:[%s892 + $0x50] sm:%s884] %v933
        %v935 = vld [vmem:[%s891 + $0x58] sm:%s884]
        %936 = vst [vmem:[%s892 + $0x54] sm:%s884] %v935
        %v937 = vld [vmem:[%s891 + $0x4c] sm:%s884]
        %938 = vst [vmem:[%s892 + $0x58] sm:%s884] %v937
        %v939 = vld [vmem:[%s891 + $0x5c] sm:%s884]
        %940 = vst [vmem:[%s892 + $0x5c] sm:%s884] %v939
        %v941 = vld [vmem:[%s891 + $0x60] sm:%s884]
        %942 = vst [vmem:[%s892 + $0x60] sm:%s884] %v941
        %v943 = vld [vmem:[%s891 + $0x70] sm:%s884]
        %944 = vst [vmem:[%s892 + $0x64] sm:%s884] %v943
        %v945 = vld [vmem:[%s891 + $0x64] sm:%s884]
        %946 = vst [vmem:[%s892 + $0x68] sm:%s884] %v945
        %v947 = vld [vmem:[%s891 + $0x74] sm:%s884]
        %948 = vst [vmem:[%s892 + $0x6c] sm:%s884] %v947
        %v949 = vld [vmem:[%s891 + $0x68] sm:%s884]
        %950 = vst [vmem:[%s892 + $0x70] sm:%s884] %v949
        %v951 = vld [vmem:[%s891 + $0x78] sm:%s884]
        %952 = vst [vmem:[%s892 + $0x74] sm:%s884] %v951
        %v953 = vld [vmem:[%s891 + $0x6c] sm:%s884]
        %954 = vst [vmem:[%s892 + $0x78] sm:%s884] %v953
        %v955 = vld [vmem:[%s891 + $0x7c] sm:%s884]
        %956 = vst [vmem:[%s892 + $0x7c] sm:%s884] %v955
        %v957 = vld [vmem:[%s891 + $0x80] sm:%s884]
        %958 = vst [vmem:[%s892 + $0x80] sm:%s884] %v957
        %v959 = vld [vmem:[%s891 + $0x90] sm:%s884]
        %960 = vst [vmem:[%s892 + $0x84] sm:%s884] %v959
        %v961 = vld [vmem:[%s891 + $0x84] sm:%s884]
        %962 = vst [vmem:[%s892 + $0x88] sm:%s884] %v961
        %v963 = vld [vmem:[%s891 + $0x94] sm:%s884]
        %964 = vst [vmem:[%s892 + $0x8c] sm:%s884] %v963
        %v965 = vld [vmem:[%s891 + $0x88] sm:%s884]
        %966 = vst [vmem:[%s892 + $0x90] sm:%s884] %v965
        %v967 = vld [vmem:[%s891 + $0x98] sm:%s884]
        %968 = vst [vmem:[%s892 + $0x94] sm:%s884] %v967
        %v969 = vld [vmem:[%s891 + $0x8c] sm:%s884]
        %970 = vst [vmem:[%s892 + $0x98] sm:%s884] %v969
        %v971 = vld [vmem:[%s891 + $0x9c] sm:%s884]
        %972 = vst [vmem:[%s892 + $0x9c] sm:%s884] %v971
        %v973 = vld [vmem:[%s891 + $0xa0] sm:%s884]
        %974 = vst [vmem:[%s892 + $0xa0] sm:%s884] %v973
        %v975 = vld [vmem:[%s891 + $0xb0] sm:%s884]
        %976 = vst [vmem:[%s892 + $0xa4] sm:%s884] %v975
        %v977 = vld [vmem:[%s891 + $0xa4] sm:%s884]
        %978 = vst [vmem:[%s892 + $0xa8] sm:%s884] %v977
        %v979 = vld [vmem:[%s891 + $0xb4] sm:%s884]
        %980 = vst [vmem:[%s892 + $0xac] sm:%s884] %v979
        %v981 = vld [vmem:[%s891 + $0xa8] sm:%s884]
        %982 = vst [vmem:[%s892 + $0xb0] sm:%s884] %v981
        %v983 = vld [vmem:[%s891 + $0xb8] sm:%s884]
        %984 = vst [vmem:[%s892 + $0xb4] sm:%s884] %v983
        %v985 = vld [vmem:[%s891 + $0xac] sm:%s884]
        %986 = vst [vmem:[%s892 + $0xb8] sm:%s884] %v985
        %v987 = vld [vmem:[%s891 + $0xbc] sm:%s884]
        %988 = vst [vmem:[%s892 + $0xbc] sm:%s884] %v987
        %v989 = vld [vmem:[%s891 + $0xc0] sm:%s884]
        %990 = vst [vmem:[%s892 + $0xc0] sm:%s884] %v989
        %v991 = vld [vmem:[%s891 + $0xd0] sm:%s884]
        %992 = vst [vmem:[%s892 + $0xc4] sm:%s884] %v991
        %v993 = vld [vmem:[%s891 + $0xc4] sm:%s884]
        %994 = vst [vmem:[%s892 + $0xc8] sm:%s884] %v993
        %v995 = vld [vmem:[%s891 + $0xd4] sm:%s884]
        %996 = vst [vmem:[%s892 + $0xcc] sm:%s884] %v995
        %v997 = vld [vmem:[%s891 + $0xc8] sm:%s884]
        %998 = vst [vmem:[%s892 + $0xd0] sm:%s884] %v997
        %v999 = vld [vmem:[%s891 + $0xd8] sm:%s884]
        %1000 = vst [vmem:[%s892 + $0xd4] sm:%s884] %v999
        %v1001 = vld [vmem:[%s891 + $0xcc] sm:%s884]
        %1002 = vst [vmem:[%s892 + $0xd8] sm:%s884] %v1001
        %v1003 = vld [vmem:[%s891 + $0xdc] sm:%s884]
        %1004 = vst [vmem:[%s892 + $0xdc] sm:%s884] %v1003
        %v1005 = vld [vmem:[%s891 + $0xe0] sm:%s884]
        %1006 = vst [vmem:[%s892 + $0xe0] sm:%s884] %v1005
        %v1007 = vld [vmem:[%s891 + $0xf0] sm:%s884]
        %1008 = vst [vmem:[%s892 + $0xe4] sm:%s884] %v1007
        %v1009 = vld [vmem:[%s891 + $0xe4] sm:%s884]
        %1010 = vst [vmem:[%s892 + $0xe8] sm:%s884] %v1009
        %v1011 = vld [vmem:[%s891 + $0xf4] sm:%s884]
        %1012 = vst [vmem:[%s892 + $0xec] sm:%s884] %v1011
        %v1013 = vld [vmem:[%s891 + $0xe8] sm:%s884]
        %1014 = vst [vmem:[%s892 + $0xf0] sm:%s884] %v1013
        %v1015 = vld [vmem:[%s891 + $0xf8] sm:%s884]
        %1016 = vst [vmem:[%s892 + $0xf4] sm:%s884] %v1015
        %v1017 = vld [vmem:[%s891 + $0xec] sm:%s884]
        %1018 = vst [vmem:[%s892 + $0xf8] sm:%s884] %v1017
        %v1019 = vld [vmem:[%s891 + $0xfc] sm:%s884]
        %1020 = vst [vmem:[%s892 + $0xfc] sm:%s884] %v1019
        %v1021 = vld [vmem:[%s891 + $0x100] sm:%s884]
        %1022 = vst [vmem:[%s892 + $0x100] sm:%s884] %v1021
        %v1023 = vld [vmem:[%s891 + $0x110] sm:%s884]
        %1024 = vst [vmem:[%s892 + $0x104] sm:%s884] %v1023
        %v1025 = vld [vmem:[%s891 + $0x104] sm:%s884]
        %1026 = vst [vmem:[%s892 + $0x108] sm:%s884] %v1025
        %v1027 = vld [vmem:[%s891 + $0x114] sm:%s884]
        %1028 = vst [vmem:[%s892 + $0x10c] sm:%s884] %v1027
        %v1029 = vld [vmem:[%s891 + $0x108] sm:%s884]
        %1030 = vst [vmem:[%s892 + $0x110] sm:%s884] %v1029
        %v1031 = vld [vmem:[%s891 + $0x118] sm:%s884]
        %1032 = vst [vmem:[%s892 + $0x114] sm:%s884] %v1031
        %v1033 = vld [vmem:[%s891 + $0x10c] sm:%s884]
        %1034 = vst [vmem:[%s892 + $0x118] sm:%s884] %v1033
        %v1035 = vld [vmem:[%s891 + $0x11c] sm:%s884]
        %1036 = vst [vmem:[%s892 + $0x11c] sm:%s884] %v1035
        %v1037 = vld [vmem:[%s891 + $0x120] sm:%s884]
        %1038 = vst [vmem:[%s892 + $0x120] sm:%s884] %v1037
        %v1039 = vld [vmem:[%s891 + $0x130] sm:%s884]
        %1040 = vst [vmem:[%s892 + $0x124] sm:%s884] %v1039
        %v1041 = vld [vmem:[%s891 + $0x124] sm:%s884]
        %1042 = vst [vmem:[%s892 + $0x128] sm:%s884] %v1041
        %v1043 = vld [vmem:[%s891 + $0x134] sm:%s884]
        %1044 = vst [vmem:[%s892 + $0x12c] sm:%s884] %v1043
        %v1045 = vld [vmem:[%s891 + $0x128] sm:%s884]
        %1046 = vst [vmem:[%s892 + $0x130] sm:%s884] %v1045
        %v1047 = vld [vmem:[%s891 + $0x138] sm:%s884]
        %1048 = vst [vmem:[%s892 + $0x134] sm:%s884] %v1047
        %v1049 = vld [vmem:[%s891 + $0x12c] sm:%s884]
        %1050 = vst [vmem:[%s892 + $0x138] sm:%s884] %v1049
        %v1051 = vld [vmem:[%s891 + $0x13c] sm:%s884]
        %1052 = vst [vmem:[%s892 + $0x13c] sm:%s884] %v1051
        %v1053 = vld [vmem:[%s891 + $0x140] sm:%s884]
        %1054 = vst [vmem:[%s892 + $0x140] sm:%s884] %v1053
        %v1055 = vld [vmem:[%s891 + $0x150] sm:%s884]
        %1056 = vst [vmem:[%s892 + $0x144] sm:%s884] %v1055
        %v1057 = vld [vmem:[%s891 + $0x144] sm:%s884]
        %1058 = vst [vmem:[%s892 + $0x148] sm:%s884] %v1057
        %v1059 = vld [vmem:[%s891 + $0x154] sm:%s884]
        %1060 = vst [vmem:[%s892 + $0x14c] sm:%s884] %v1059
        %v1061 = vld [vmem:[%s891 + $0x148] sm:%s884]
        %1062 = vst [vmem:[%s892 + $0x150] sm:%s884] %v1061
        %v1063 = vld [vmem:[%s891 + $0x158] sm:%s884]
        %1064 = vst [vmem:[%s892 + $0x154] sm:%s884] %v1063
        %v1065 = vld [vmem:[%s891 + $0x14c] sm:%s884]
        %1066 = vst [vmem:[%s892 + $0x158] sm:%s884] %v1065
        %v1067 = vld [vmem:[%s891 + $0x15c] sm:%s884]
        %1068 = vst [vmem:[%s892 + $0x15c] sm:%s884] %v1067
        %v1069 = vld [vmem:[%s891 + $0x160] sm:%s884]
        %1070 = vst [vmem:[%s892 + $0x160] sm:%s884] %v1069
        %v1071 = vld [vmem:[%s891 + $0x170] sm:%s884]
        %1072 = vst [vmem:[%s892 + $0x164] sm:%s884] %v1071
        %v1073 = vld [vmem:[%s891 + $0x164] sm:%s884]
        %1074 = vst [vmem:[%s892 + $0x168] sm:%s884] %v1073
        %v1075 = vld [vmem:[%s891 + $0x174] sm:%s884]
        %1076 = vst [vmem:[%s892 + $0x16c] sm:%s884] %v1075
        %v1077 = vld [vmem:[%s891 + $0x168] sm:%s884]
        %1078 = vst [vmem:[%s892 + $0x170] sm:%s884] %v1077
        %v1079 = vld [vmem:[%s891 + $0x178] sm:%s884]
        %1080 = vst [vmem:[%s892 + $0x174] sm:%s884] %v1079
        %v1081 = vld [vmem:[%s891 + $0x16c] sm:%s884]
        %1082 = vst [vmem:[%s892 + $0x178] sm:%s884] %v1081
        %v1083 = vld [vmem:[%s891 + $0x17c] sm:%s884]
        %1084 = vst [vmem:[%s892 + $0x17c] sm:%s884] %v1083
        %v1085 = vld [vmem:[%s891 + $0x180] sm:%s884]
        %1086 = vst [vmem:[%s892 + $0x180] sm:%s884] %v1085
        %v1087 = vld [vmem:[%s891 + $0x190] sm:%s884]
        %1088 = vst [vmem:[%s892 + $0x184] sm:%s884] %v1087
        %v1089 = vld [vmem:[%s891 + $0x184] sm:%s884]
        %1090 = vst [vmem:[%s892 + $0x188] sm:%s884] %v1089
        %v1091 = vld [vmem:[%s891 + $0x194] sm:%s884]
        %1092 = vst [vmem:[%s892 + $0x18c] sm:%s884] %v1091
        %v1093 = vld [vmem:[%s891 + $0x188] sm:%s884]
        %1094 = vst [vmem:[%s892 + $0x190] sm:%s884] %v1093
        %v1095 = vld [vmem:[%s891 + $0x198] sm:%s884]
        %1096 = vst [vmem:[%s892 + $0x194] sm:%s884] %v1095
        %v1097 = vld [vmem:[%s891 + $0x18c] sm:%s884]
        %1098 = vst [vmem:[%s892 + $0x198] sm:%s884] %v1097
        %v1099 = vld [vmem:[%s891 + $0x19c] sm:%s884]
        %1100 = vst [vmem:[%s892 + $0x19c] sm:%s884] %v1099
        %v1101 = vld [vmem:[%s891 + $0x1a0] sm:%s884]
        %1102 = vst [vmem:[%s892 + $0x1a0] sm:%s884] %v1101
        %v1103 = vld [vmem:[%s891 + $0x1b0] sm:%s884]
        %1104 = vst [vmem:[%s892 + $0x1a4] sm:%s884] %v1103
        %v1105 = vld [vmem:[%s891 + $0x1a4] sm:%s884]
        %1106 = vst [vmem:[%s892 + $0x1a8] sm:%s884] %v1105
        %v1107 = vld [vmem:[%s891 + $0x1b4] sm:%s884]
        %1108 = vst [vmem:[%s892 + $0x1ac] sm:%s884] %v1107
        %v1109 = vld [vmem:[%s891 + $0x1a8] sm:%s884]
        %1110 = vst [vmem:[%s892 + $0x1b0] sm:%s884] %v1109
        %v1111 = vld [vmem:[%s891 + $0x1b8] sm:%s884]
        %1112 = vst [vmem:[%s892 + $0x1b4] sm:%s884] %v1111
        %v1113 = vld [vmem:[%s891 + $0x1ac] sm:%s884]
        %1114 = vst [vmem:[%s892 + $0x1b8] sm:%s884] %v1113
        %v1115 = vld [vmem:[%s891 + $0x1bc] sm:%s884]
        %1116 = vst [vmem:[%s892 + $0x1bc] sm:%s884] %v1115
        %v1117 = vld [vmem:[%s891 + $0x1c0] sm:%s884]
        %1118 = vst [vmem:[%s892 + $0x1c0] sm:%s884] %v1117
        %v1119 = vld [vmem:[%s891 + $0x1d0] sm:%s884]
        %1120 = vst [vmem:[%s892 + $0x1c4] sm:%s884] %v1119
        %v1121 = vld [vmem:[%s891 + $0x1c4] sm:%s884]
        %1122 = vst [vmem:[%s892 + $0x1c8] sm:%s884] %v1121
        %v1123 = vld [vmem:[%s891 + $0x1d4] sm:%s884]
        %1124 = vst [vmem:[%s892 + $0x1cc] sm:%s884] %v1123
        %v1125 = vld [vmem:[%s891 + $0x1c8] sm:%s884]
        %1126 = vst [vmem:[%s892 + $0x1d0] sm:%s884] %v1125
        %v1127 = vld [vmem:[%s891 + $0x1d8] sm:%s884]
        %1128 = vst [vmem:[%s892 + $0x1d4] sm:%s884] %v1127
        %v1129 = vld [vmem:[%s891 + $0x1cc] sm:%s884]
        %1130 = vst [vmem:[%s892 + $0x1d8] sm:%s884] %v1129
        %v1131 = vld [vmem:[%s891 + $0x1dc] sm:%s884]
        %1132 = vst [vmem:[%s892 + $0x1dc] sm:%s884] %v1131
        %v1133 = vld [vmem:[%s891 + $0x1e0] sm:%s884]
        %1134 = vst [vmem:[%s892 + $0x1e0] sm:%s884] %v1133
        %v1135 = vld [vmem:[%s891 + $0x1f0] sm:%s884]
        %1136 = vst [vmem:[%s892 + $0x1e4] sm:%s884] %v1135
        %v1137 = vld [vmem:[%s891 + $0x1e4] sm:%s884]
        %1138 = vst [vmem:[%s892 + $0x1e8] sm:%s884] %v1137
        %v1139 = vld [vmem:[%s891 + $0x1f4] sm:%s884]
        %1140 = vst [vmem:[%s892 + $0x1ec] sm:%s884] %v1139
        %v1141 = vld [vmem:[%s891 + $0x1e8] sm:%s884]
        %1142 = vst [vmem:[%s892 + $0x1f0] sm:%s884] %v1141
        %v1143 = vld [vmem:[%s891 + $0x1f8] sm:%s884]
        %1144 = vst [vmem:[%s892 + $0x1f4] sm:%s884] %v1143
        %v1145 = vld [vmem:[%s891 + $0x1ec] sm:%s884]
        %1146 = vst [vmem:[%s892 + $0x1f8] sm:%s884] %v1145
        %v1147 = vld [vmem:[%s891 + $0x1fc] sm:%s884]
        %1148 = vst [vmem:[%s892 + $0x1fc] sm:%s884] %v1147
      $region101: #{lstm_autoencoder_forward.1} parent=88 // loop_footer
        %s890 = sadd.s32 1, %s886
      $region102: #{lstm_autoencoder_forward.1} parent=88 // loop_footer_branch
        %885 = sbr.rel target = $region98
      $region103: #{lstm_autoencoder_forward.1} parent=88 // loop_exit
        _
    $region89: #{lstm_autoencoder_forward.1} parent=73 // pred_fallthru
      _
  $region74: #{lstm_autoencoder_forward.1} parent=0 // pred_fallthru
    _
  // Predicated region
  $region75: #{lstm_autoencoder_forward.1} parent=0 // pred_check
    %p598 = pneg %p594
  $region76: #{lstm_autoencoder_forward.1} parent=0 // pred_check_branch
    %600 = sbr.rel (%p598) target = $region78
  $region77: #{lstm_autoencoder_forward.1} parent=0 // pred_region
    %s601 = sshllo.u32 0, 4
    loop: start=0, step=1, limit=1
    $region79: #{lstm_autoencoder_forward.1} parent=77 // loop_pre_header
      _
    $region80: #{lstm_autoencoder_forward.1} parent=77 // loop_header
      %s603 = sphi 0, %s607
      %p604 = scmp.ge.s32.totalorder %s603, 1
      %s608 = sphi %s8, %s8
      %s609 = sphi [#allocation4], [#allocation4]
    $region81: #{lstm_autoencoder_forward.1} parent=77 // loop_header_branch
      %606 = sbr.rel (%p604) target = $region85
    $region82: #{lstm_autoencoder_forward.1} parent=77 // loop_body
      %v610 = vld [vmem:[%s608] sm:%s601]
      %611 = vst [vmem:[%s609] sm:%s601] %v610
      %v612 = vld [vmem:[%s608 + $0x10] sm:%s601]
      %613 = vst [vmem:[%s609 + $0x4] sm:%s601] %v612
      %v614 = vld [vmem:[%s608 + $0x4] sm:%s601]
      %615 = vst [vmem:[%s609 + $0x8] sm:%s601] %v614
      %v616 = vld [vmem:[%s608 + $0x14] sm:%s601]
      %617 = vst [vmem:[%s609 + $0xc] sm:%s601] %v616
      %v618 = vld [vmem:[%s608 + $0x8] sm:%s601]
      %619 = vst [vmem:[%s609 + $0x10] sm:%s601] %v618
      %v620 = vld [vmem:[%s608 + $0x18] sm:%s601]
      %621 = vst [vmem:[%s609 + $0x14] sm:%s601] %v620
      %v622 = vld [vmem:[%s608 + $0xc] sm:%s601]
      %623 = vst [vmem:[%s609 + $0x18] sm:%s601] %v622
      %v624 = vld [vmem:[%s608 + $0x1c] sm:%s601]
      %625 = vst [vmem:[%s609 + $0x1c] sm:%s601] %v624
      %v626 = vld [vmem:[%s608 + $0x20] sm:%s601]
      %627 = vst [vmem:[%s609 + $0x20] sm:%s601] %v626
      %v628 = vld [vmem:[%s608 + $0x30] sm:%s601]
      %629 = vst [vmem:[%s609 + $0x24] sm:%s601] %v628
      %v630 = vld [vmem:[%s608 + $0x24] sm:%s601]
      %631 = vst [vmem:[%s609 + $0x28] sm:%s601] %v630
      %v632 = vld [vmem:[%s608 + $0x34] sm:%s601]
      %633 = vst [vmem:[%s609 + $0x2c] sm:%s601] %v632
      %v634 = vld [vmem:[%s608 + $0x28] sm:%s601]
      %635 = vst [vmem:[%s609 + $0x30] sm:%s601] %v634
      %v636 = vld [vmem:[%s608 + $0x38] sm:%s601]
      %637 = vst [vmem:[%s609 + $0x34] sm:%s601] %v636
      %v638 = vld [vmem:[%s608 + $0x2c] sm:%s601]
      %639 = vst [vmem:[%s609 + $0x38] sm:%s601] %v638
      %v640 = vld [vmem:[%s608 + $0x3c] sm:%s601]
      %641 = vst [vmem:[%s609 + $0x3c] sm:%s601] %v640
      %v642 = vld [vmem:[%s608 + $0x40] sm:%s601]
      %643 = vst [vmem:[%s609 + $0x40] sm:%s601] %v642
      %v644 = vld [vmem:[%s608 + $0x50] sm:%s601]
      %645 = vst [vmem:[%s609 + $0x44] sm:%s601] %v644
      %v646 = vld [vmem:[%s608 + $0x44] sm:%s601]
      %647 = vst [vmem:[%s609 + $0x48] sm:%s601] %v646
      %v648 = vld [vmem:[%s608 + $0x54] sm:%s601]
      %649 = vst [vmem:[%s609 + $0x4c] sm:%s601] %v648
      %v650 = vld [vmem:[%s608 + $0x48] sm:%s601]
      %651 = vst [vmem:[%s609 + $0x50] sm:%s601] %v650
      %v652 = vld [vmem:[%s608 + $0x58] sm:%s601]
      %653 = vst [vmem:[%s609 + $0x54] sm:%s601] %v652
      %v654 = vld [vmem:[%s608 + $0x4c] sm:%s601]
      %655 = vst [vmem:[%s609 + $0x58] sm:%s601] %v654
      %v656 = vld [vmem:[%s608 + $0x5c] sm:%s601]
      %657 = vst [vmem:[%s609 + $0x5c] sm:%s601] %v656
      %v658 = vld [vmem:[%s608 + $0x60] sm:%s601]
      %659 = vst [vmem:[%s609 + $0x60] sm:%s601] %v658
      %v660 = vld [vmem:[%s608 + $0x70] sm:%s601]
      %661 = vst [vmem:[%s609 + $0x64] sm:%s601] %v660
      %v662 = vld [vmem:[%s608 + $0x64] sm:%s601]
      %663 = vst [vmem:[%s609 + $0x68] sm:%s601] %v662
      %v664 = vld [vmem:[%s608 + $0x74] sm:%s601]
      %665 = vst [vmem:[%s609 + $0x6c] sm:%s601] %v664
      %v666 = vld [vmem:[%s608 + $0x68] sm:%s601]
      %667 = vst [vmem:[%s609 + $0x70] sm:%s601] %v666
      %v668 = vld [vmem:[%s608 + $0x78] sm:%s601]
      %669 = vst [vmem:[%s609 + $0x74] sm:%s601] %v668
      %v670 = vld [vmem:[%s608 + $0x6c] sm:%s601]
      %671 = vst [vmem:[%s609 + $0x78] sm:%s601] %v670
      %v672 = vld [vmem:[%s608 + $0x7c] sm:%s601]
      %673 = vst [vmem:[%s609 + $0x7c] sm:%s601] %v672
      %v674 = vld [vmem:[%s608 + $0x80] sm:%s601]
      %675 = vst [vmem:[%s609 + $0x80] sm:%s601] %v674
      %v676 = vld [vmem:[%s608 + $0x90] sm:%s601]
      %677 = vst [vmem:[%s609 + $0x84] sm:%s601] %v676
      %v678 = vld [vmem:[%s608 + $0x84] sm:%s601]
      %679 = vst [vmem:[%s609 + $0x88] sm:%s601] %v678
      %v680 = vld [vmem:[%s608 + $0x94] sm:%s601]
      %681 = vst [vmem:[%s609 + $0x8c] sm:%s601] %v680
      %v682 = vld [vmem:[%s608 + $0x88] sm:%s601]
      %683 = vst [vmem:[%s609 + $0x90] sm:%s601] %v682
      %v684 = vld [vmem:[%s608 + $0x98] sm:%s601]
      %685 = vst [vmem:[%s609 + $0x94] sm:%s601] %v684
      %v686 = vld [vmem:[%s608 + $0x8c] sm:%s601]
      %687 = vst [vmem:[%s609 + $0x98] sm:%s601] %v686
      %v688 = vld [vmem:[%s608 + $0x9c] sm:%s601]
      %689 = vst [vmem:[%s609 + $0x9c] sm:%s601] %v688
      %v690 = vld [vmem:[%s608 + $0xa0] sm:%s601]
      %691 = vst [vmem:[%s609 + $0xa0] sm:%s601] %v690
      %v692 = vld [vmem:[%s608 + $0xb0] sm:%s601]
      %693 = vst [vmem:[%s609 + $0xa4] sm:%s601] %v692
      %v694 = vld [vmem:[%s608 + $0xa4] sm:%s601]
      %695 = vst [vmem:[%s609 + $0xa8] sm:%s601] %v694
      %v696 = vld [vmem:[%s608 + $0xb4] sm:%s601]
      %697 = vst [vmem:[%s609 + $0xac] sm:%s601] %v696
      %v698 = vld [vmem:[%s608 + $0xa8] sm:%s601]
      %699 = vst [vmem:[%s609 + $0xb0] sm:%s601] %v698
      %v700 = vld [vmem:[%s608 + $0xb8] sm:%s601]
      %701 = vst [vmem:[%s609 + $0xb4] sm:%s601] %v700
      %v702 = vld [vmem:[%s608 + $0xac] sm:%s601]
      %703 = vst [vmem:[%s609 + $0xb8] sm:%s601] %v702
      %v704 = vld [vmem:[%s608 + $0xbc] sm:%s601]
      %705 = vst [vmem:[%s609 + $0xbc] sm:%s601] %v704
      %v706 = vld [vmem:[%s608 + $0xc0] sm:%s601]
      %707 = vst [vmem:[%s609 + $0xc0] sm:%s601] %v706
      %v708 = vld [vmem:[%s608 + $0xd0] sm:%s601]
      %709 = vst [vmem:[%s609 + $0xc4] sm:%s601] %v708
      %v710 = vld [vmem:[%s608 + $0xc4] sm:%s601]
      %711 = vst [vmem:[%s609 + $0xc8] sm:%s601] %v710
      %v712 = vld [vmem:[%s608 + $0xd4] sm:%s601]
      %713 = vst [vmem:[%s609 + $0xcc] sm:%s601] %v712
      %v714 = vld [vmem:[%s608 + $0xc8] sm:%s601]
      %715 = vst [vmem:[%s609 + $0xd0] sm:%s601] %v714
      %v716 = vld [vmem:[%s608 + $0xd8] sm:%s601]
      %717 = vst [vmem:[%s609 + $0xd4] sm:%s601] %v716
      %v718 = vld [vmem:[%s608 + $0xcc] sm:%s601]
      %719 = vst [vmem:[%s609 + $0xd8] sm:%s601] %v718
      %v720 = vld [vmem:[%s608 + $0xdc] sm:%s601]
      %721 = vst [vmem:[%s609 + $0xdc] sm:%s601] %v720
      %v722 = vld [vmem:[%s608 + $0xe0] sm:%s601]
      %723 = vst [vmem:[%s609 + $0xe0] sm:%s601] %v722
      %v724 = vld [vmem:[%s608 + $0xf0] sm:%s601]
      %725 = vst [vmem:[%s609 + $0xe4] sm:%s601] %v724
      %v726 = vld [vmem:[%s608 + $0xe4] sm:%s601]
      %727 = vst [vmem:[%s609 + $0xe8] sm:%s601] %v726
      %v728 = vld [vmem:[%s608 + $0xf4] sm:%s601]
      %729 = vst [vmem:[%s609 + $0xec] sm:%s601] %v728
      %v730 = vld [vmem:[%s608 + $0xe8] sm:%s601]
      %731 = vst [vmem:[%s609 + $0xf0] sm:%s601] %v730
      %v732 = vld [vmem:[%s608 + $0xf8] sm:%s601]
      %733 = vst [vmem:[%s609 + $0xf4] sm:%s601] %v732
      %v734 = vld [vmem:[%s608 + $0xec] sm:%s601]
      %735 = vst [vmem:[%s609 + $0xf8] sm:%s601] %v734
      %v736 = vld [vmem:[%s608 + $0xfc] sm:%s601]
      %737 = vst [vmem:[%s609 + $0xfc] sm:%s601] %v736
      %v738 = vld [vmem:[%s608 + $0x100] sm:%s601]
      %739 = vst [vmem:[%s609 + $0x100] sm:%s601] %v738
      %v740 = vld [vmem:[%s608 + $0x110] sm:%s601]
      %741 = vst [vmem:[%s609 + $0x104] sm:%s601] %v740
      %v742 = vld [vmem:[%s608 + $0x104] sm:%s601]
      %743 = vst [vmem:[%s609 + $0x108] sm:%s601] %v742
      %v744 = vld [vmem:[%s608 + $0x114] sm:%s601]
      %745 = vst [vmem:[%s609 + $0x10c] sm:%s601] %v744
      %v746 = vld [vmem:[%s608 + $0x108] sm:%s601]
      %747 = vst [vmem:[%s609 + $0x110] sm:%s601] %v746
      %v748 = vld [vmem:[%s608 + $0x118] sm:%s601]
      %749 = vst [vmem:[%s609 + $0x114] sm:%s601] %v748
      %v750 = vld [vmem:[%s608 + $0x10c] sm:%s601]
      %751 = vst [vmem:[%s609 + $0x118] sm:%s601] %v750
      %v752 = vld [vmem:[%s608 + $0x11c] sm:%s601]
      %753 = vst [vmem:[%s609 + $0x11c] sm:%s601] %v752
      %v754 = vld [vmem:[%s608 + $0x120] sm:%s601]
      %755 = vst [vmem:[%s609 + $0x120] sm:%s601] %v754
      %v756 = vld [vmem:[%s608 + $0x130] sm:%s601]
      %757 = vst [vmem:[%s609 + $0x124] sm:%s601] %v756
      %v758 = vld [vmem:[%s608 + $0x124] sm:%s601]
      %759 = vst [vmem:[%s609 + $0x128] sm:%s601] %v758
      %v760 = vld [vmem:[%s608 + $0x134] sm:%s601]
      %761 = vst [vmem:[%s609 + $0x12c] sm:%s601] %v760
      %v762 = vld [vmem:[%s608 + $0x128] sm:%s601]
      %763 = vst [vmem:[%s609 + $0x130] sm:%s601] %v762
      %v764 = vld [vmem:[%s608 + $0x138] sm:%s601]
      %765 = vst [vmem:[%s609 + $0x134] sm:%s601] %v764
      %v766 = vld [vmem:[%s608 + $0x12c] sm:%s601]
      %767 = vst [vmem:[%s609 + $0x138] sm:%s601] %v766
      %v768 = vld [vmem:[%s608 + $0x13c] sm:%s601]
      %769 = vst [vmem:[%s609 + $0x13c] sm:%s601] %v768
      %v770 = vld [vmem:[%s608 + $0x140] sm:%s601]
      %771 = vst [vmem:[%s609 + $0x140] sm:%s601] %v770
      %v772 = vld [vmem:[%s608 + $0x150] sm:%s601]
      %773 = vst [vmem:[%s609 + $0x144] sm:%s601] %v772
      %v774 = vld [vmem:[%s608 + $0x144] sm:%s601]
      %775 = vst [vmem:[%s609 + $0x148] sm:%s601] %v774
      %v776 = vld [vmem:[%s608 + $0x154] sm:%s601]
      %777 = vst [vmem:[%s609 + $0x14c] sm:%s601] %v776
      %v778 = vld [vmem:[%s608 + $0x148] sm:%s601]
      %779 = vst [vmem:[%s609 + $0x150] sm:%s601] %v778
      %v780 = vld [vmem:[%s608 + $0x158] sm:%s601]
      %781 = vst [vmem:[%s609 + $0x154] sm:%s601] %v780
      %v782 = vld [vmem:[%s608 + $0x14c] sm:%s601]
      %783 = vst [vmem:[%s609 + $0x158] sm:%s601] %v782
      %v784 = vld [vmem:[%s608 + $0x15c] sm:%s601]
      %785 = vst [vmem:[%s609 + $0x15c] sm:%s601] %v784
      %v786 = vld [vmem:[%s608 + $0x160] sm:%s601]
      %787 = vst [vmem:[%s609 + $0x160] sm:%s601] %v786
      %v788 = vld [vmem:[%s608 + $0x170] sm:%s601]
      %789 = vst [vmem:[%s609 + $0x164] sm:%s601] %v788
      %v790 = vld [vmem:[%s608 + $0x164] sm:%s601]
      %791 = vst [vmem:[%s609 + $0x168] sm:%s601] %v790
      %v792 = vld [vmem:[%s608 + $0x174] sm:%s601]
      %793 = vst [vmem:[%s609 + $0x16c] sm:%s601] %v792
      %v794 = vld [vmem:[%s608 + $0x168] sm:%s601]
      %795 = vst [vmem:[%s609 + $0x170] sm:%s601] %v794
      %v796 = vld [vmem:[%s608 + $0x178] sm:%s601]
      %797 = vst [vmem:[%s609 + $0x174] sm:%s601] %v796
      %v798 = vld [vmem:[%s608 + $0x16c] sm:%s601]
      %799 = vst [vmem:[%s609 + $0x178] sm:%s601] %v798
      %v800 = vld [vmem:[%s608 + $0x17c] sm:%s601]
      %801 = vst [vmem:[%s609 + $0x17c] sm:%s601] %v800
      %v802 = vld [vmem:[%s608 + $0x180] sm:%s601]
      %803 = vst [vmem:[%s609 + $0x180] sm:%s601] %v802
      %v804 = vld [vmem:[%s608 + $0x190] sm:%s601]
      %805 = vst [vmem:[%s609 + $0x184] sm:%s601] %v804
      %v806 = vld [vmem:[%s608 + $0x184] sm:%s601]
      %807 = vst [vmem:[%s609 + $0x188] sm:%s601] %v806
      %v808 = vld [vmem:[%s608 + $0x194] sm:%s601]
      %809 = vst [vmem:[%s609 + $0x18c] sm:%s601] %v808
      %v810 = vld [vmem:[%s608 + $0x188] sm:%s601]
      %811 = vst [vmem:[%s609 + $0x190] sm:%s601] %v810
      %v812 = vld [vmem:[%s608 + $0x198] sm:%s601]
      %813 = vst [vmem:[%s609 + $0x194] sm:%s601] %v812
      %v814 = vld [vmem:[%s608 + $0x18c] sm:%s601]
      %815 = vst [vmem:[%s609 + $0x198] sm:%s601] %v814
      %v816 = vld [vmem:[%s608 + $0x19c] sm:%s601]
      %817 = vst [vmem:[%s609 + $0x19c] sm:%s601] %v816
      %v818 = vld [vmem:[%s608 + $0x1a0] sm:%s601]
      %819 = vst [vmem:[%s609 + $0x1a0] sm:%s601] %v818
      %v820 = vld [vmem:[%s608 + $0x1b0] sm:%s601]
      %821 = vst [vmem:[%s609 + $0x1a4] sm:%s601] %v820
      %v822 = vld [vmem:[%s608 + $0x1a4] sm:%s601]
      %823 = vst [vmem:[%s609 + $0x1a8] sm:%s601] %v822
      %v824 = vld [vmem:[%s608 + $0x1b4] sm:%s601]
      %825 = vst [vmem:[%s609 + $0x1ac] sm:%s601] %v824
      %v826 = vld [vmem:[%s608 + $0x1a8] sm:%s601]
      %827 = vst [vmem:[%s609 + $0x1b0] sm:%s601] %v826
      %v828 = vld [vmem:[%s608 + $0x1b8] sm:%s601]
      %829 = vst [vmem:[%s609 + $0x1b4] sm:%s601] %v828
      %v830 = vld [vmem:[%s608 + $0x1ac] sm:%s601]
      %831 = vst [vmem:[%s609 + $0x1b8] sm:%s601] %v830
      %v832 = vld [vmem:[%s608 + $0x1bc] sm:%s601]
      %833 = vst [vmem:[%s609 + $0x1bc] sm:%s601] %v832
      %v834 = vld [vmem:[%s608 + $0x1c0] sm:%s601]
      %835 = vst [vmem:[%s609 + $0x1c0] sm:%s601] %v834
      %v836 = vld [vmem:[%s608 + $0x1d0] sm:%s601]
      %837 = vst [vmem:[%s609 + $0x1c4] sm:%s601] %v836
      %v838 = vld [vmem:[%s608 + $0x1c4] sm:%s601]
      %839 = vst [vmem:[%s609 + $0x1c8] sm:%s601] %v838
      %v840 = vld [vmem:[%s608 + $0x1d4] sm:%s601]
      %841 = vst [vmem:[%s609 + $0x1cc] sm:%s601] %v840
      %v842 = vld [vmem:[%s608 + $0x1c8] sm:%s601]
      %843 = vst [vmem:[%s609 + $0x1d0] sm:%s601] %v842
      %v844 = vld [vmem:[%s608 + $0x1d8] sm:%s601]
      %845 = vst [vmem:[%s609 + $0x1d4] sm:%s601] %v844
      %v846 = vld [vmem:[%s608 + $0x1cc] sm:%s601]
      %847 = vst [vmem:[%s609 + $0x1d8] sm:%s601] %v846
      %v848 = vld [vmem:[%s608 + $0x1dc] sm:%s601]
      %849 = vst [vmem:[%s609 + $0x1dc] sm:%s601] %v848
      %v850 = vld [vmem:[%s608 + $0x1e0] sm:%s601]
      %851 = vst [vmem:[%s609 + $0x1e0] sm:%s601] %v850
      %v852 = vld [vmem:[%s608 + $0x1f0] sm:%s601]
      %853 = vst [vmem:[%s609 + $0x1e4] sm:%s601] %v852
      %v854 = vld [vmem:[%s608 + $0x1e4] sm:%s601]
      %855 = vst [vmem:[%s609 + $0x1e8] sm:%s601] %v854
      %v856 = vld [vmem:[%s608 + $0x1f4] sm:%s601]
      %857 = vst [vmem:[%s609 + $0x1ec] sm:%s601] %v856
      %v858 = vld [vmem:[%s608 + $0x1e8] sm:%s601]
      %859 = vst [vmem:[%s609 + $0x1f0] sm:%s601] %v858
      %v860 = vld [vmem:[%s608 + $0x1f8] sm:%s601]
      %861 = vst [vmem:[%s609 + $0x1f4] sm:%s601] %v860
      %v862 = vld [vmem:[%s608 + $0x1ec] sm:%s601]
      %863 = vst [vmem:[%s609 + $0x1f8] sm:%s601] %v862
      %v864 = vld [vmem:[%s608 + $0x1fc] sm:%s601]
      %865 = vst [vmem:[%s609 + $0x1fc] sm:%s601] %v864
    $region83: #{lstm_autoencoder_forward.1} parent=77 // loop_footer
      %s607 = sadd.s32 1, %s603
    $region84: #{lstm_autoencoder_forward.1} parent=77 // loop_footer_branch
      %602 = sbr.rel target = $region80
    $region85: #{lstm_autoencoder_forward.1} parent=77 // loop_exit
      _
  $region78: #{lstm_autoencoder_forward.1} parent=0 // pred_fallthru
    _
  // Predicated region
  $region104: #{lstm_autoencoder_forward.1} parent=0 // pred_check
    _
  $region105: #{lstm_autoencoder_forward.1} parent=0 // pred_check_branch
    %1151 = sbr.rel (0) target = $region107
  $region106: #{lstm_autoencoder_forward.1} parent=0 // pred_region
    %1152 = vsyncadd %s592, 8192
  $region107: #{lstm_autoencoder_forward.1} parent=0 // pred_fallthru
    _
  %v1153 = vld [vmem:[%s0] sm:$0xf]
  %v1154 = vld [vmem:[%s0 + $0x4] sm:$0xf]
  %v1155 = vld [vmem:[%s0 + $0x8] sm:$0xf]
  %v1156 = vld [vmem:[%s0 + $0xc] sm:$0xf]
  %v1157 = vld [vmem:[%s0 + $0x10] sm:$0xf]
  %v1158 = vld [vmem:[%s0 + $0x14] sm:$0xf]
  %v1159 = vld [vmem:[%s0 + $0x18] sm:$0xf]
  %v1160 = vld [vmem:[%s0 + $0x1c] sm:$0xf]
  %v1161 = vld [vmem:[%s1] sm:$0xff]
  %v1162 = vld [vmem:[%s1 + $0x8] sm:$0xff]
  %v1163 = vld [vmem:[%s2] sm:$0xf]
  %v1165 = vlaneseq
  %v1166 = vshrl.u32 %v1165, 7
  %v1167 = vsub.s32 0, %v1166
  %v1168 = vrot.slane %v1163, %v1167
  %v1169 = vlaneseq
  %v1170 = vshrl.u32 %v1169, 7
  %v1171 = vsub.s32 1, %v1170
  %v1172 = vrot.slane %v1163, %v1171
  %v1173 = vlaneseq
  %v1174 = vshrl.u32 %v1173, 7
  %v1175 = vsub.s32 2, %v1174
  %v1176 = vrot.slane %v1163, %v1175
  %v1177 = vlaneseq
  %v1178 = vshrl.u32 %v1177, 7
  %v1179 = vsub.s32 3, %v1178
  %v1180 = vrot.slane %v1163, %v1179
  %v1193 = vunpack.c.l.b16 %v1153
  %v1194 = vunpack.c.l.b16 %v1154
  %v1195 = vunpack.c.l.b16 %v1155
  %v1196 = vunpack.c.l.b16 %v1156
  %v1197 = vunpack.c.l.b16 %v1157
  %v1198 = vunpack.c.l.b16 %v1158
  %v1199 = vunpack.c.l.b16 %v1159
  %v1200 = vunpack.c.l.b16 %v1160
  %v1201 = vpack.c.b16 %v1194, %v1193
  %v1202 = vpack.c.b16 %v1196, %v1195
  %v1203 = vpack.c.b16 %v1198, %v1197
  %v1204 = vpack.c.b16 %v1200, %v1199
  %v1207 = vunpack.c.l.b16 %v1161
  %v1208 = vunpack.c.h.b16 %v1161
  %v1209 = vunpack.c.l.b16 %v1162
  %v1210 = vunpack.c.h.b16 %v1162
  %v1211 = vpack.c.b16 %v1207, %v1207
  %v1212 = vpack.c.b16 %v1208, %v1208
  %v1213 = vpack.c.b16 %v1209, %v1209
  %v1214 = vpack.c.b16 %v1210, %v1210
  %vm1215 = vcmask 64512
  %v1217 = vsel %vm1215, %v1201, 0
  %v1220 = vsel %vm1215, %v1202, 0
  %v1223 = vsel %vm1215, %v1203, 0
  %v1226 = vsel %vm1215, %v1204, 0
  %vm1228 = vcmask 1043456
  %v1230 = vsel %vm1228, %v1211, 0
  %v1233 = vsel %vm1228, %v1212, 0
  %v1236 = vsel %vm1228, %v1213, 0
  %v1239 = vsel %vm1228, %v1214, 0
  %1241 = vmatprep.subr.bf16.mxu0 %v1233
  %1242 = vmatpush1.bf16.msra.mxu0 %v1230
  %1243 = vmatprep.subr.bf16.mxu0 0
  %1244 = vmatpush1.bf16.msra.mxu0 0
  %1245 = vmatprep.subr.bf16.mxu0 0
  %1246 = vmatpush1.bf16.msra.mxu0 0
  %1247 = vmatprep.subr.bf16.mxu0 0
  %1248 = vmatpush1.bf16.msra.mxu0 0
  %1249 = vmatprep.subr.bf16.mxu0 0
  %1250 = vmatpush1.bf16.msra.mxu0 0
  %1251 = vmatprep.subr.bf16.mxu0 0
  %1252 = vmatpush1.bf16.msra.mxu0 0
  %1253 = vmatprep.subr.bf16.mxu0 0
  %1254 = vmatpush1.bf16.msra.mxu0 0
  %1255 = vmatprep.subr.bf16.mxu0 0
  %1256 = vmatpush1.bf16.msra.mxu0 0
  %1257 = vmatprep.subr.bf16.mxu0 0
  %1258 = vmatpush1.bf16.msra.mxu0 0
  %1259 = vmatprep.subr.bf16.mxu0 0
  %1260 = vmatpush1.bf16.msra.mxu0 0
  %1261 = vmatprep.subr.bf16.mxu0 0
  %1262 = vmatpush1.bf16.msra.mxu0 0
  %1263 = vmatprep.subr.bf16.mxu0 0
  %1264 = vmatpush1.bf16.msra.mxu0 0
  %1265 = vmatprep.subr.bf16.mxu0 0
  %1266 = vmatpush1.bf16.msra.mxu0 0
  %1267 = vmatprep.subr.bf16.mxu0 0
  %1268 = vmatpush1.bf16.msra.mxu0 0
  %1269 = vmatprep.subr.bf16.mxu0 0
  %1270 = vmatpush1.bf16.msra.mxu0 0
  %1271 = vmatprep.subr.bf16.mxu0 0
  %1272 = vmatpush1.bf16.msra.mxu0 0
  %1273 = vmatprep.mubr.bf16.mxu0 0
  %1274 = vmatmul.mubr.bf16.gmra.mrb[0].mxu0 %v1217
  %v1275 = vpop.f32.mrb[0].mxu0
  %v1276 = vadd.f32 %v1168, %v1275
  %v1277 = vpop.f32.mrb[0].mxu0
  %v1278 = vadd.f32 %v1172, %v1277
  %v1279 = vpop.f32.mrb[0].mxu0
  %v1280 = vadd.f32 %v1168, %v1279
  %v1281 = vpop.f32.mrb[0].mxu0
  %v1282 = vadd.f32 %v1172, %v1281
  %1283 = vmatprep.mubr.bf16.mxu0 0
  %1284 = vmatmul.mubr.bf16.gmra.mrb[0].mxu0 %v1220
  %v1285 = vpop.f32.mrb[0].mxu0
  %v1286 = vadd.f32 %v1168, %v1285
  %v1287 = vpop.f32.mrb[0].mxu0
  %v1288 = vadd.f32 %v1172, %v1287
  %v1289 = vpop.f32.mrb[0].mxu0
  %v1290 = vadd.f32 %v1168, %v1289
  %v1291 = vpop.f32.mrb[0].mxu0
  %v1292 = vadd.f32 %v1172, %v1291
  %1293 = vmatprep.mubr.bf16.mxu0 0
  %1294 = vmatmul.mubr.bf16.gmra.mrb[0].mxu0 %v1223
  %v1295 = vpop.f32.mrb[0].mxu0
  %v1296 = vadd.f32 %v1168, %v1295
  %v1297 = vpop.f32.mrb[0].mxu0
  %v1298 = vadd.f32 %v1172, %v1297
  %v1299 = vpop.f32.mrb[0].mxu0
  %v1300 = vadd.f32 %v1168, %v1299
  %v1301 = vpop.f32.mrb[0].mxu0
  %v1302 = vadd.f32 %v1172, %v1301
  %1303 = vmatprep.mubr.bf16.mxu0 0
  %1304 = vmatmul.mubr.bf16.gmra.mrb[0].mxu0 %v1226
  %v1305 = vpop.f32.mrb[0].mxu0
  %v1306 = vadd.f32 %v1168, %v1305
  %v1307 = vpop.f32.mrb[0].mxu0
  %v1308 = vadd.f32 %v1172, %v1307
  %v1309 = vpop.f32.mrb[0].mxu0
  %v1310 = vadd.f32 %v1168, %v1309
  %v1311 = vpop.f32.mrb[0].mxu0
  %v1312 = vadd.f32 %v1172, %v1311
  %1313 = vdwg.mxu0
  %1314 = vmatprep.subr.bf16.mxu0 %v1239
  %1315 = vmatpush1.bf16.msra.mxu0 %v1236
  %1316 = vmatprep.subr.bf16.mxu0 0
  %1317 = vmatpush1.bf16.msra.mxu0 0
  %1318 = vmatprep.subr.bf16.mxu0 0
  %1319 = vmatpush1.bf16.msra.mxu0 0
  %1320 = vmatprep.subr.bf16.mxu0 0
  %1321 = vmatpush1.bf16.msra.mxu0 0
  %1322 = vmatprep.subr.bf16.mxu0 0
  %1323 = vmatpush1.bf16.msra.mxu0 0
  %1324 = vmatprep.subr.bf16.mxu0 0
  %1325 = vmatpush1.bf16.msra.mxu0 0
  %1326 = vmatprep.subr.bf16.mxu0 0
  %1327 = vmatpush1.bf16.msra.mxu0 0
  %1328 = vmatprep.subr.bf16.mxu0 0
  %1329 = vmatpush1.bf16.msra.mxu0 0
  %1330 = vmatprep.subr.bf16.mxu0 0
  %1331 = vmatpush1.bf16.msra.mxu0 0
  %1332 = vmatprep.subr.bf16.mxu0 0
  %1333 = vmatpush1.bf16.msra.mxu0 0
  %1334 = vmatprep.subr.bf16.mxu0 0
  %1335 = vmatpush1.bf16.msra.mxu0 0
  %1336 = vmatprep.subr.bf16.mxu0 0
  %1337 = vmatpush1.bf16.msra.mxu0 0
  %1338 = vmatprep.subr.bf16.mxu0 0
  %1339 = vmatpush1.bf16.msra.mxu0 0
  %1340 = vmatprep.subr.bf16.mxu0 0
  %1341 = vmatpush1.bf16.msra.mxu0 0
  %1342 = vmatprep.subr.bf16.mxu0 0
  %1343 = vmatpush1.bf16.msra.mxu0 0
  %1344 = vmatprep.subr.bf16.mxu0 0
  %1345 = vmatpush1.bf16.msra.mxu0 0
  %1346 = vmatprep.mubr.bf16.mxu0 0
  %1347 = vmatmul.mubr.bf16.gmra.mrb[0].mxu0 %v1217
  %v1348 = vpop.f32.mrb[0].mxu0
  %v1349 = vadd.f32 %v1176, %v1348
  %v1350 = vpop.f32.mrb[0].mxu0
  %v1351 = vadd.f32 %v1180, %v1350
  %v1352 = vpop.f32.mrb[0].mxu0
  %v1353 = vadd.f32 %v1176, %v1352
  %v1354 = vpop.f32.mrb[0].mxu0
  %v1355 = vadd.f32 %v1180, %v1354
  %1356 = vmatprep.mubr.bf16.mxu0 0
  %1357 = vmatmul.mubr.bf16.gmra.mrb[0].mxu0 %v1220
  %v1358 = vpop.f32.mrb[0].mxu0
  %v1359 = vadd.f32 %v1176, %v1358
  %v1360 = vpop.f32.mrb[0].mxu0
  %v1361 = vadd.f32 %v1180, %v1360
  %v1362 = vpop.f32.mrb[0].mxu0
  %v1363 = vadd.f32 %v1176, %v1362
  %v1364 = vpop.f32.mrb[0].mxu0
  %v1365 = vadd.f32 %v1180, %v1364
  %1366 = vmatprep.mubr.bf16.mxu0 0
  %1367 = vmatmul.mubr.bf16.gmra.mrb[0].mxu0 %v1223
  %v1368 = vpop.f32.mrb[0].mxu0
  %v1369 = vadd.f32 %v1176, %v1368
  %v1370 = vpop.f32.mrb[0].mxu0
  %v1371 = vadd.f32 %v1180, %v1370
  %v1372 = vpop.f32.mrb[0].mxu0
  %v1373 = vadd.f32 %v1176, %v1372
  %v1374 = vpop.f32.mrb[0].mxu0
  %v1375 = vadd.f32 %v1180, %v1374
  %1376 = vmatprep.mubr.bf16.mxu0 0
  %1377 = vmatmul.mubr.bf16.gmra.mrb[0].mxu0 %v1226
  %v1378 = vpop.f32.mrb[0].mxu0
  %v1379 = vadd.f32 %v1176, %v1378
  %v1380 = vpop.f32.mrb[0].mxu0
  %v1381 = vadd.f32 %v1180, %v1380
  %v1382 = vpop.f32.mrb[0].mxu0
  %v1383 = vadd.f32 %v1176, %v1382
  %v1384 = vpop.f32.mrb[0].mxu0
  %v1385 = vadd.f32 %v1180, %v1384
  %1386 = vdwg.mxu0
  %1387 = vst [vmem:[#allocation2] sm:$0xff] %v1276
  %1388 = vst [vmem:[#allocation2 + $0x8] sm:$0xff] %v1278
  %1389 = vst [vmem:[#allocation2 + $0x10] sm:$0xff] %v1349
  %1390 = vst [vmem:[#allocation2 + $0x18] sm:$0xff] %v1351
  %1391 = vst [vmem:[#allocation2 + $0x20] sm:$0xff] %v1280
  %1392 = vst [vmem:[#allocation2 + $0x28] sm:$0xff] %v1282
  %1393 = vst [vmem:[#allocation2 + $0x30] sm:$0xff] %v1353
  %1394 = vst [vmem:[#allocation2 + $0x38] sm:$0xff] %v1355
  %1395 = vst [vmem:[#allocation2 + $0x40] sm:$0xff] %v1286
  %1396 = vst [vmem:[#allocation2 + $0x48] sm:$0xff] %v1288
  %1397 = vst [vmem:[#allocation2 + $0x50] sm:$0xff] %v1359
  %1398 = vst [vmem:[#allocation2 + $0x58] sm:$0xff] %v1361
  %1399 = vst [vmem:[#allocation2 + $0x60] sm:$0xff] %v1290
  %1400 = vst [vmem:[#allocation2 + $0x68] sm:$0xff] %v1292
  %1401 = vst [vmem:[#allocation2 + $0x70] sm:$0xff] %v1363
  %1402 = vst [vmem:[#allocation2 + $0x78] sm:$0xff] %v1365
  %1403 = vst [vmem:[#allocation2 + $0x80] sm:$0xff] %v1296
  %1404 = vst [vmem:[#allocation2 + $0x88] sm:$0xff] %v1298
  %1405 = vst [vmem:[#allocation2 + $0x90] sm:$0xff] %v1369
  %1406 = vst [vmem:[#allocation2 + $0x98] sm:$0xff] %v1371
  %1407 = vst [vmem:[#allocation2 + $0xa0] sm:$0xff] %v1300
  %1408 = vst [vmem:[#allocation2 + $0xa8] sm:$0xff] %v1302
  %1409 = vst [vmem:[#allocation2 + $0xb0] sm:$0xff] %v1373
  %1410 = vst [vmem:[#allocation2 + $0xb8] sm:$0xff] %v1375
  %1411 = vst [vmem:[#allocation2 + $0xc0] sm:$0xff] %v1306
  %1412 = vst [vmem:[#allocation2 + $0xc8] sm:$0xff] %v1308
  %1413 = vst [vmem:[#allocation2 + $0xd0] sm:$0xff] %v1379
  %1414 = vst [vmem:[#allocation2 + $0xd8] sm:$0xff] %v1381
  %1415 = vst [vmem:[#allocation2 + $0xe0] sm:$0xff] %v1310
  %1416 = vst [vmem:[#allocation2 + $0xe8] sm:$0xff] %v1312
  %1417 = vst [vmem:[#allocation2 + $0xf0] sm:$0xff] %v1383
  %1418 = vst [vmem:[#allocation2 + $0xf8] sm:$0xff] %v1385
  %v1419 = vld [vmem:[%s5] sm:$0xf]
  %v1421 = vlaneseq
  %v1422 = vshrl.u32 %v1421, 7
  %v1423 = vsub.s32 0, %v1422
  %v1424 = vrot.slane %v1419, %v1423
  %v1425 = vlaneseq
  %v1426 = vshrl.u32 %v1425, 7
  %v1427 = vsub.s32 1, %v1426
  %v1428 = vrot.slane %v1419, %v1427
  %v1429 = vlaneseq
  %v1430 = vshrl.u32 %v1429, 7
  %v1431 = vsub.s32 2, %v1430
  %v1432 = vrot.slane %v1419, %v1431
  %v1433 = vlaneseq
  %v1434 = vshrl.u32 %v1433, 7
  %v1435 = vsub.s32 3, %v1434
  %v1436 = vrot.slane %v1419, %v1435
  %v1441 = vld [vmem:[%s7] sm:$0xf]
  %v1443 = vlaneseq
  %v1444 = vshrl.u32 %v1443, 7
  %v1445 = vsub.s32 0, %v1444
  %v1446 = vrot.slane %v1441, %v1445
  %v1447 = vlaneseq
  %v1448 = vshrl.u32 %v1447, 7
  %v1449 = vsub.s32 1, %v1448
  %v1450 = vrot.slane %v1441, %v1449
  %v1451 = vlaneseq
  %v1452 = vshrl.u32 %v1451, 7
  %v1453 = vsub.s32 2, %v1452
  %v1454 = vrot.slane %v1441, %v1453
  %v1455 = vlaneseq
  %v1456 = vshrl.u32 %v1455, 7
  %v1457 = vsub.s32 3, %v1456
  %v1458 = vrot.slane %v1441, %v1457
  %v1463 = vld [vmem:[%s9] sm:$0xf]
  %v1465 = vlaneseq
  %v1466 = vshrl.u32 %v1465, 7
  %v1467 = vsub.s32 0, %v1466
  %v1468 = vrot.slane %v1463, %v1467
  %v1469 = vlaneseq
  %v1470 = vshrl.u32 %v1469, 7
  %v1471 = vsub.s32 1, %v1470
  %v1472 = vrot.slane %v1463, %v1471
  %v1473 = vlaneseq
  %v1474 = vshrl.u32 %v1473, 7
  %v1475 = vsub.s32 2, %v1474
  %v1476 = vrot.slane %v1463, %v1475
  %v1477 = vlaneseq
  %v1478 = vshrl.u32 %v1477, 7
  %v1479 = vsub.s32 3, %v1478
  %v1480 = vrot.slane %v1463, %v1479
  %v1485 = vld [vmem:[#allocation2] sm:$0xff]
  %v1486 = vld [vmem:[#allocation2 + $0x8] sm:$0xff]
  %v1487 = vld [vmem:[#allocation2 + $0x10] sm:$0xff]
  %v1488 = vld [vmem:[#allocation2 + $0x18] sm:$0xff]
  %v1489 = vld [vmem:[%s3] sm:$0xff]
  %v1490 = vld [vmem:[%s3 + $0x8] sm:$0xff]
  %v1491 = vld [vmem:[%s3 + $0x10] sm:$0xff]
  %v1492 = vld [vmem:[%s3 + $0x18] sm:$0xff]
  %v1493 = vld [vmem:[%s3 + $0x20] sm:$0xff]
  %v1494 = vld [vmem:[%s3 + $0x28] sm:$0xff]
  %v1495 = vld [vmem:[%s3 + $0x30] sm:$0xff]
  %v1496 = vld [vmem:[%s3 + $0x38] sm:$0xff]
  %v1497 = vld [vmem:[%s3 + $0x40] sm:$0xff]
  %v1498 = vld [vmem:[%s3 + $0x48] sm:$0xff]
  %v1499 = vld [vmem:[%s3 + $0x50] sm:$0xff]
  %v1500 = vld [vmem:[%s3 + $0x58] sm:$0xff]
  %v1501 = vld [vmem:[%s3 + $0x60] sm:$0xff]
  %v1502 = vld [vmem:[%s3 + $0x68] sm:$0xff]
  %v1503 = vld [vmem:[%s3 + $0x70] sm:$0xff]
  %v1504 = vld [vmem:[%s3 + $0x78] sm:$0xff]
  %v1505 = vld [vmem:[%s3 + $0x80] sm:$0xff]
  %v1506 = vld [vmem:[%s3 + $0x88] sm:$0xff]
  %v1507 = vld [vmem:[%s3 + $0x90] sm:$0xff]
  %v1508 = vld [vmem:[%s3 + $0x98] sm:$0xff]
  %v1509 = vld [vmem:[%s3 + $0xa0] sm:$0xff]
  %v1510 = vld [vmem:[%s3 + $0xa8] sm:$0xff]
  %v1511 = vld [vmem:[%s3 + $0xb0] sm:$0xff]
  %v1512 = vld [vmem:[%s3 + $0xb8] sm:$0xff]
  %v1513 = vld [vmem:[%s3 + $0xc0] sm:$0xff]
  %v1514 = vld [vmem:[%s3 + $0xc8] sm:$0xff]
  %v1515 = vld [vmem:[%s3 + $0xd0] sm:$0xff]
  %v1516 = vld [vmem:[%s3 + $0xd8] sm:$0xff]
  %v1517 = vld [vmem:[%s3 + $0xe0] sm:$0xff]
  %v1518 = vld [vmem:[%s3 + $0xe8] sm:$0xff]
  %v1519 = vld [vmem:[%s3 + $0xf0] sm:$0xff]
  %v1520 = vld [vmem:[%s3 + $0xf8] sm:$0xff]
  %v1553 = vunpack.c.l.b16 %v1489
  %v1554 = vunpack.c.h.b16 %v1489
  %v1555 = vunpack.c.l.b16 %v1490
  %v1556 = vunpack.c.h.b16 %v1490
  %v1557 = vunpack.c.l.b16 %v1491
  %v1558 = vunpack.c.h.b16 %v1491
  %v1559 = vunpack.c.l.b16 %v1492
  %v1560 = vunpack.c.h.b16 %v1492
  %v1561 = vunpack.c.l.b16 %v1493
  %v1562 = vunpack.c.h.b16 %v1493
  %v1563 = vunpack.c.l.b16 %v1494
  %v1564 = vunpack.c.h.b16 %v1494
  %v1565 = vunpack.c.l.b16 %v1495
  %v1566 = vunpack.c.h.b16 %v1495
  %v1567 = vunpack.c.l.b16 %v1496
  %v1568 = vunpack.c.h.b16 %v1496
  %v1569 = vunpack.c.l.b16 %v1497
  %v1570 = vunpack.c.h.b16 %v1497
  %v1571 = vunpack.c.l.b16 %v1498
  %v1572 = vunpack.c.h.b16 %v1498
  %v1573 = vunpack.c.l.b16 %v1499
  %v1574 = vunpack.c.h.b16 %v1499
  %v1575 = vunpack.c.l.b16 %v1500
  %v1576 = vunpack.c.h.b16 %v1500
  %v1577 = vunpack.c.l.b16 %v1501
  %v1578 = vunpack.c.h.b16 %v1501
  %v1579 = vunpack.c.l.b16 %v1502
  %v1580 = vunpack.c.h.b16 %v1502
  %v1581 = vunpack.c.l.b16 %v1503
  %v1582 = vunpack.c.h.b16 %v1503
  %v1583 = vunpack.c.l.b16 %v1504
  %v1584 = vunpack.c.h.b16 %v1504
  %v1585 = vunpack.c.l.b16 %v1505
  %v1586 = vunpack.c.h.b16 %v1505
  %v1587 = vunpack.c.l.b16 %v1506
  %v1588 = vunpack.c.h.b16 %v1506
  %v1589 = vunpack.c.l.b16 %v1507
  %v1590 = vunpack.c.h.b16 %v1507
  %v1591 = vunpack.c.l.b16 %v1508
  %v1592 = vunpack.c.h.b16 %v1508
  %v1593 = vunpack.c.l.b16 %v1509
  %v1594 = vunpack.c.h.b16 %v1509
  %v1595 = vunpack.c.l.b16 %v1510
  %v1596 = vunpack.c.h.b16 %v1510
  %v1597 = vunpack.c.l.b16 %v1511
  %v1598 = vunpack.c.h.b16 %v1511
  %v1599 = vunpack.c.l.b16 %v1512
  %v1600 = vunpack.c.h.b16 %v1512
  %v1601 = vunpack.c.l.b16 %v1513
  %v1602 = vunpack.c.h.b16 %v1513
  %v1603 = vunpack.c.l.b16 %v1514
  %v1604 = vunpack.c.h.b16 %v1514
  %v1605 = vunpack.c.l.b16 %v1515
  %v1606 = vunpack.c.h.b16 %v1515
  %v1607 = vunpack.c.l.b16 %v1516
  %v1608 = vunpack.c.h.b16 %v1516
  %v1609 = vunpack.c.l.b16 %v1517
  %v1610 = vunpack.c.h.b16 %v1517
  %v1611 = vunpack.c.l.b16 %v1518
  %v1612 = vunpack.c.h.b16 %v1518
  %v1613 = vunpack.c.l.b16 %v1519
  %v1614 = vunpack.c.h.b16 %v1519
  %v1615 = vunpack.c.l.b16 %v1520
  %v1616 = vunpack.c.h.b16 %v1520
  %v1617 = vpack.c.b16 %v1557, %v1553
  %v1618 = vpack.c.b16 %v1558, %v1554
  %v1619 = vpack.c.b16 %v1559, %v1555
  %v1620 = vpack.c.b16 %v1560, %v1556
  %v1621 = vpack.c.b16 %v1565, %v1561
  %v1622 = vpack.c.b16 %v1566, %v1562
  %v1623 = vpack.c.b16 %v1567, %v1563
  %v1624 = vpack.c.b16 %v1568, %v1564
  %v1625 = vpack.c.b16 %v1573, %v1569
  %v1626 = vpack.c.b16 %v1574, %v1570
  %v1627 = vpack.c.b16 %v1575, %v1571
  %v1628 = vpack.c.b16 %v1576, %v1572
  %v1629 = vpack.c.b16 %v1581, %v1577
  %v1630 = vpack.c.b16 %v1582, %v1578
  %v1631 = vpack.c.b16 %v1583, %v1579
  %v1632 = vpack.c.b16 %v1584, %v1580
  %v1633 = vpack.c.b16 %v1589, %v1585
  %v1634 = vpack.c.b16 %v1590, %v1586
  %v1635 = vpack.c.b16 %v1591, %v1587
  %v1636 = vpack.c.b16 %v1592, %v1588
  %v1637 = vpack.c.b16 %v1597, %v1593
  %v1638 = vpack.c.b16 %v1598, %v1594
  %v1639 = vpack.c.b16 %v1599, %v1595
  %v1640 = vpack.c.b16 %v1600, %v1596
  %v1641 = vpack.c.b16 %v1605, %v1601
  %v1642 = vpack.c.b16 %v1606, %v1602
  %v1643 = vpack.c.b16 %v1607, %v1603
  %v1644 = vpack.c.b16 %v1608, %v1604
  %v1645 = vpack.c.b16 %v1613, %v1609
  %v1646 = vpack.c.b16 %v1614, %v1610
  %v1647 = vpack.c.b16 %v1615, %v1611
  %v1648 = vpack.c.b16 %v1616, %v1612
  %1681 = vmatprep.subr.bf16.mxu0 %v1618
  %1682 = vmatpush1.bf16.msra.mxu0 %v1617
  %1683 = vmatprep.subr.bf16.mxu0 %v1622
  %1684 = vmatpush1.bf16.msra.mxu0 %v1621
  %1685 = vmatprep.subr.bf16.mxu0 %v1626
  %1686 = vmatpush1.bf16.msra.mxu0 %v1625
  %1687 = vmatprep.subr.bf16.mxu0 %v1630
  %1688 = vmatpush1.bf16.msra.mxu0 %v1629
  %1689 = vmatprep.subr.bf16.mxu0 %v1634
  %1690 = vmatpush1.bf16.msra.mxu0 %v1633
  %1691 = vmatprep.subr.bf16.mxu0 %v1638
  %1692 = vmatpush1.bf16.msra.mxu0 %v1637
  %1693 = vmatprep.subr.bf16.mxu0 %v1642
  %1694 = vmatpush1.bf16.msra.mxu0 %v1641
  %1695 = vmatprep.subr.bf16.mxu0 %v1646
  %1696 = vmatpush1.bf16.msra.mxu0 %v1645
  %1697 = vmatprep.subr.bf16.mxu0 0
  %1698 = vmatpush1.bf16.msra.mxu0 0
  %1699 = vmatprep.subr.bf16.mxu0 0
  %1700 = vmatpush1.bf16.msra.mxu0 0
  %1701 = vmatprep.subr.bf16.mxu0 0
  %1702 = vmatpush1.bf16.msra.mxu0 0
  %1703 = vmatprep.subr.bf16.mxu0 0
  %1704 = vmatpush1.bf16.msra.mxu0 0
  %1705 = vmatprep.subr.bf16.mxu0 0
  %1706 = vmatpush1.bf16.msra.mxu0 0
  %1707 = vmatprep.subr.bf16.mxu0 0
  %1708 = vmatpush1.bf16.msra.mxu0 0
  %1709 = vmatprep.subr.bf16.mxu0 0
  %1710 = vmatpush1.bf16.msra.mxu0 0
  %1711 = vmatprep.subr.bf16.mxu0 0
  %1712 = vmatpush1.bf16.msra.mxu0 0
  %1713 = vmatprep.mubr.bf16.mxu0 0
  %1714 = vmatmul.mubr.bf16.gmra.mrb[0].mxu0 0
  %v1715 = vpop.f32.mrb[0].mxu0
  %v1716 = vadd.f32 0.0, %v1715
  %v1717 = vpop.f32.mrb[0].mxu0
  %v1718 = vadd.f32 0.0, %v1717
  %v1719 = vpop.f32.mrb[0].mxu0
  %v1720 = vpop.f32.mrb[0].mxu0
  %1721 = vdwg.mxu0
  %1722 = vmatprep.subr.bf16.mxu0 %v1620
  %1723 = vmatpush1.bf16.msra.mxu0 %v1619
  %1724 = vmatprep.subr.bf16.mxu0 %v1624
  %1725 = vmatpush1.bf16.msra.mxu0 %v1623
  %1726 = vmatprep.subr.bf16.mxu0 %v1628
  %1727 = vmatpush1.bf16.msra.mxu0 %v1627
  %1728 = vmatprep.subr.bf16.mxu0 %v1632
  %1729 = vmatpush1.bf16.msra.mxu0 %v1631
  %1730 = vmatprep.subr.bf16.mxu0 %v1636
  %1731 = vmatpush1.bf16.msra.mxu0 %v1635
  %1732 = vmatprep.subr.bf16.mxu0 %v1640
  %1733 = vmatpush1.bf16.msra.mxu0 %v1639
  %1734 = vmatprep.subr.bf16.mxu0 %v1644
  %1735 = vmatpush1.bf16.msra.mxu0 %v1643
  %1736 = vmatprep.subr.bf16.mxu0 %v1648
  %1737 = vmatpush1.bf16.msra.mxu0 %v1647
  %1738 = vmatprep.subr.bf16.mxu0 0
  %1739 = vmatpush1.bf16.msra.mxu0 0
  %1740 = vmatprep.subr.bf16.mxu0 0
  %1741 = vmatpush1.bf16.msra.mxu0 0
  %1742 = vmatprep.subr.bf16.mxu0 0
  %1743 = vmatpush1.bf16.msra.mxu0 0
  %1744 = vmatprep.subr.bf16.mxu0 0
  %1745 = vmatpush1.bf16.msra.mxu0 0
  %1746 = vmatprep.subr.bf16.mxu0 0
  %1747 = vmatpush1.bf16.msra.mxu0 0
  %1748 = vmatprep.subr.bf16.mxu0 0
  %1749 = vmatpush1.bf16.msra.mxu0 0
  %1750 = vmatprep.subr.bf16.mxu0 0
  %1751 = vmatpush1.bf16.msra.mxu0 0
  %1752 = vmatprep.subr.bf16.mxu0 0
  %1753 = vmatpush1.bf16.msra.mxu0 0
  %1754 = vmatprep.mubr.bf16.mxu0 0
  %1755 = vmatmul.mubr.bf16.gmra.mrb[0].mxu0 0
  %v1756 = vpop.f32.mrb[0].mxu0
  %v1757 = vadd.f32 0.0, %v1756
  %v1758 = vpop.f32.mrb[0].mxu0
  %v1759 = vadd.f32 0.0, %v1758
  %v1760 = vpop.f32.mrb[0].mxu0
  %v1761 = vpop.f32.mrb[0].mxu0
  %1762 = vdwg.mxu0
  %v1763 = vadd.f32 %v1485, %v1716
  %v1764 = vadd.f32 %v1486, %v1718
  %v1765 = vadd.f32 %v1487, %v1757
  %v1766 = vadd.f32 %v1488, %v1759
  %v1767 = vxor.u32 %v1763, 2147483648
  %v1768 = vmul.f32 %v1767, 1.442695
  %v1769 = vpow.pop %v1768
  %v1770 = vadd.f32 %v1769, 1.0
  %v1771 = vrcp.pop %v1770
  %v1772 = vmul.f32 1.0, %v1771
  %v1773 = vxor.u32 %v1764, 2147483648
  %v1774 = vmul.f32 %v1773, 1.442695
  %v1775 = vpow.pop %v1774
  %v1776 = vadd.f32 %v1775, 1.0
  %v1777 = vrcp.pop %v1776
  %v1778 = vmul.f32 1.0, %v1777
  %v1779 = vtanh.pop %v1765
  %v1780 = vxor.u32 %v1766, 2147483648
  %v1781 = vmul.f32 %v1780, 1.442695
  %v1782 = vpow.pop %v1781
  %v1783 = vadd.f32 %v1782, 1.0
  %v1784 = vrcp.pop %v1783
  %v1785 = vmul.f32 1.0, %v1784
  %v1786 = vmul.f32 %v1778, 0.0
  %v1787 = vmul.f32 %v1772, %v1779
  %v1788 = vadd.f32 %v1786, %v1787
  %v1789 = vtanh.pop %v1788
  %v1790 = vmul.f32 %v1785, %v1789
  %v1791 = vpack.c.bf16 %v1790, %v1790
  %v1792 = vld [vmem:[%s4] sm:$0xff]
  %v1793 = vld [vmem:[%s4 + $0x8] sm:$0xff]
  %v1794 = vld [vmem:[%s4 + $0x10] sm:$0xff]
  %v1795 = vld [vmem:[%s4 + $0x18] sm:$0xff]
  %v1796 = vld [vmem:[%s4 + $0x20] sm:$0xff]
  %v1797 = vld [vmem:[%s4 + $0x28] sm:$0xff]
  %v1798 = vld [vmem:[%s4 + $0x30] sm:$0xff]
  %v1799 = vld [vmem:[%s4 + $0x38] sm:$0xff]
  %v1800 = vld [vmem:[%s4 + $0x40] sm:$0xff]
  %v1801 = vld [vmem:[%s4 + $0x48] sm:$0xff]
  %v1802 = vld [vmem:[%s4 + $0x50] sm:$0xff]
  %v1803 = vld [vmem:[%s4 + $0x58] sm:$0xff]
  %v1804 = vld [vmem:[%s4 + $0x60] sm:$0xff]
  %v1805 = vld [vmem:[%s4 + $0x68] sm:$0xff]
  %v1806 = vld [vmem:[%s4 + $0x70] sm:$0xff]
  %v1807 = vld [vmem:[%s4 + $0x78] sm:$0xff]
  %v1808 = vld [vmem:[%s4 + $0x80] sm:$0xff]
  %v1809 = vld [vmem:[%s4 + $0x88] sm:$0xff]
  %v1810 = vld [vmem:[%s4 + $0x90] sm:$0xff]
  %v1811 = vld [vmem:[%s4 + $0x98] sm:$0xff]
  %v1812 = vld [vmem:[%s4 + $0xa0] sm:$0xff]
  %v1813 = vld [vmem:[%s4 + $0xa8] sm:$0xff]
  %v1814 = vld [vmem:[%s4 + $0xb0] sm:$0xff]
  %v1815 = vld [vmem:[%s4 + $0xb8] sm:$0xff]
  %v1816 = vld [vmem:[%s4 + $0xc0] sm:$0xff]
  %v1817 = vld [vmem:[%s4 + $0xc8] sm:$0xff]
  %v1818 = vld [vmem:[%s4 + $0xd0] sm:$0xff]
  %v1819 = vld [vmem:[%s4 + $0xd8] sm:$0xff]
  %v1820 = vld [vmem:[%s4 + $0xe0] sm:$0xff]
  %v1821 = vld [vmem:[%s4 + $0xe8] sm:$0xff]
  %v1822 = vld [vmem:[%s4 + $0xf0] sm:$0xff]
  %v1823 = vld [vmem:[%s4 + $0xf8] sm:$0xff]
  %v1824 = vld [vmem:[%s4 + $0x100] sm:$0xff]
  %v1825 = vld [vmem:[%s4 + $0x108] sm:$0xff]
  %v1826 = vld [vmem:[%s4 + $0x110] sm:$0xff]
  %v1827 = vld [vmem:[%s4 + $0x118] sm:$0xff]
  %v1828 = vld [vmem:[%s4 + $0x120] sm:$0xff]
  %v1829 = vld [vmem:[%s4 + $0x128] sm:$0xff]
  %v1830 = vld [vmem:[%s4 + $0x130] sm:$0xff]
  %v1831 = vld [vmem:[%s4 + $0x138] sm:$0xff]
  %v1832 = vld [vmem:[%s4 + $0x140] sm:$0xff]
  %v1833 = vld [vmem:[%s4 + $0x148] sm:$0xff]
  %v1834 = vld [vmem:[%s4 + $0x150] sm:$0xff]
  %v1835 = vld [vmem:[%s4 + $0x158] sm:$0xff]
  %v1836 = vld [vmem:[%s4 + $0x160] sm:$0xff]
  %v1837 = vld [vmem:[%s4 + $0x168] sm:$0xff]
  %v1838 = vld [vmem:[%s4 + $0x170] sm:$0xff]
  %v1839 = vld [vmem:[%s4 + $0x178] sm:$0xff]
  %v1840 = vld [vmem:[%s4 + $0x180] sm:$0xff]
  %v1841 = vld [vmem:[%s4 + $0x188] sm:$0xff]
  %v1842 = vld [vmem:[%s4 + $0x190] sm:$0xff]
  %v1843 = vld [vmem:[%s4 + $0x198] sm:$0xff]
  %v1844 = vld [vmem:[%s4 + $0x1a0] sm:$0xff]
  %v1845 = vld [vmem:[%s4 + $0x1a8] sm:$0xff]
  %v1846 = vld [vmem:[%s4 + $0x1b0] sm:$0xff]
  %v1847 = vld [vmem:[%s4 + $0x1b8] sm:$0xff]
  %v1848 = vld [vmem:[%s4 + $0x1c0] sm:$0xff]
  %v1849 = vld [vmem:[%s4 + $0x1c8] sm:$0xff]
  %v1850 = vld [vmem:[%s4 + $0x1d0] sm:$0xff]
  %v1851 = vld [vmem:[%s4 + $0x1d8] sm:$0xff]
  %v1852 = vld [vmem:[%s4 + $0x1e0] sm:$0xff]
  %v1853 = vld [vmem:[%s4 + $0x1e8] sm:$0xff]
  %v1854 = vld [vmem:[%s4 + $0x1f0] sm:$0xff]
  %v1855 = vld [vmem:[%s4 + $0x1f8] sm:$0xff]
  %v1920 = vunpack.c.l.b16 %v1792
  %v1921 = vunpack.c.h.b16 %v1792
  %v1922 = vunpack.c.l.b16 %v1793
  %v1923 = vunpack.c.h.b16 %v1793
  %v1924 = vunpack.c.l.b16 %v1794
  %v1925 = vunpack.c.h.b16 %v1794
  %v1926 = vunpack.c.l.b16 %v1795
  %v1927 = vunpack.c.h.b16 %v1795
  %v1928 = vunpack.c.l.b16 %v1796
  %v1929 = vunpack.c.h.b16 %v1796
  %v1930 = vunpack.c.l.b16 %v1797
  %v1931 = vunpack.c.h.b16 %v1797
  %v1932 = vunpack.c.l.b16 %v1798
  %v1933 = vunpack.c.h.b16 %v1798
  %v1934 = vunpack.c.l.b16 %v1799
  %v1935 = vunpack.c.h.b16 %v1799
  %v1936 = vunpack.c.l.b16 %v1800
  %v1937 = vunpack.c.h.b16 %v1800
  %v1938 = vunpack.c.l.b16 %v1801
  %v1939 = vunpack.c.h.b16 %v1801
  %v1940 = vunpack.c.l.b16 %v1802
  %v1941 = vunpack.c.h.b16 %v1802
  %v1942 = vunpack.c.l.b16 %v1803
  %v1943 = vunpack.c.h.b16 %v1803
  %v1944 = vunpack.c.l.b16 %v1804
  %v1945 = vunpack.c.h.b16 %v1804
  %v1946 = vunpack.c.l.b16 %v1805
  %v1947 = vunpack.c.h.b16 %v1805
  %v1948 = vunpack.c.l.b16 %v1806
  %v1949 = vunpack.c.h.b16 %v1806
  %v1950 = vunpack.c.l.b16 %v1807
  %v1951 = vunpack.c.h.b16 %v1807
  %v1952 = vunpack.c.l.b16 %v1808
  %v1953 = vunpack.c.h.b16 %v1808
  %v1954 = vunpack.c.l.b16 %v1809
  %v1955 = vunpack.c.h.b16 %v1809
  %v1956 = vunpack.c.l.b16 %v1810
  %v1957 = vunpack.c.h.b16 %v1810
  %v1958 = vunpack.c.l.b16 %v1811
  %v1959 = vunpack.c.h.b16 %v1811
  %v1960 = vunpack.c.l.b16 %v1812
  %v1961 = vunpack.c.h.b16 %v1812
  %v1962 = vunpack.c.l.b16 %v1813
  %v1963 = vunpack.c.h.b16 %v1813
  %v1964 = vunpack.c.l.b16 %v1814
  %v1965 = vunpack.c.h.b16 %v1814
  %v1966 = vunpack.c.l.b16 %v1815
  %v1967 = vunpack.c.h.b16 %v1815
  %v1968 = vunpack.c.l.b16 %v1816
  %v1969 = vunpack.c.h.b16 %v1816
  %v1970 = vunpack.c.l.b16 %v1817
  %v1971 = vunpack.c.h.b16 %v1817
  %v1972 = vunpack.c.l.b16 %v1818
  %v1973 = vunpack.c.h.b16 %v1818
  %v1974 = vunpack.c.l.b16 %v1819
  %v1975 = vunpack.c.h.b16 %v1819
  %v1976 = vunpack.c.l.b16 %v1820
  %v1977 = vunpack.c.h.b16 %v1820
  %v1978 = vunpack.c.l.b16 %v1821
  %v1979 = vunpack.c.h.b16 %v1821
  %v1980 = vunpack.c.l.b16 %v1822
  %v1981 = vunpack.c.h.b16 %v1822
  %v1982 = vunpack.c.l.b16 %v1823
  %v1983 = vunpack.c.h.b16 %v1823
  %v1984 = vunpack.c.l.b16 %v1824
  %v1985 = vunpack.c.h.b16 %v1824
  %v1986 = vunpack.c.l.b16 %v1825
  %v1987 = vunpack.c.h.b16 %v1825
  %v1988 = vunpack.c.l.b16 %v1826
  %v1989 = vunpack.c.h.b16 %v1826
  %v1990 = vunpack.c.l.b16 %v1827
  %v1991 = vunpack.c.h.b16 %v1827
  %v1992 = vunpack.c.l.b16 %v1828
  %v1993 = vunpack.c.h.b16 %v1828
  %v1994 = vunpack.c.l.b16 %v1829
  %v1995 = vunpack.c.h.b16 %v1829
  %v1996 = vunpack.c.l.b16 %v1830
  %v1997 = vunpack.c.h.b16 %v1830
  %v1998 = vunpack.c.l.b16 %v1831
  %v1999 = vunpack.c.h.b16 %v1831
  %v2000 = vunpack.c.l.b16 %v1832
  %v2001 = vunpack.c.h.b16 %v1832
  %v2002 = vunpack.c.l.b16 %v1833
  %v2003 = vunpack.c.h.b16 %v1833
  %v2004 = vunpack.c.l.b16 %v1834
  %v2005 = vunpack.c.h.b16 %v1834
  %v2006 = vunpack.c.l.b16 %v1835
  %v2007 = vunpack.c.h.b16 %v1835
  %v2008 = vunpack.c.l.b16 %v1836
  %v2009 = vunpack.c.h.b16 %v1836
  %v2010 = vunpack.c.l.b16 %v1837
  %v2011 = vunpack.c.h.b16 %v1837
  %v2012 = vunpack.c.l.b16 %v1838
  %v2013 = vunpack.c.h.b16 %v1838
  %v2014 = vunpack.c.l.b16 %v1839
  %v2015 = vunpack.c.h.b16 %v1839
  %v2016 = vunpack.c.l.b16 %v1840
  %v2017 = vunpack.c.h.b16 %v1840
  %v2018 = vunpack.c.l.b16 %v1841
  %v2019 = vunpack.c.h.b16 %v1841
  %v2020 = vunpack.c.l.b16 %v1842
  %v2021 = vunpack.c.h.b16 %v1842
  %v2022 = vunpack.c.l.b16 %v1843
  %v2023 = vunpack.c.h.b16 %v1843
  %v2024 = vunpack.c.l.b16 %v1844
  %v2025 = vunpack.c.h.b16 %v1844
  %v2026 = vunpack.c.l.b16 %v1845
  %v2027 = vunpack.c.h.b16 %v1845
  %v2028 = vunpack.c.l.b16 %v1846
  %v2029 = vunpack.c.h.b16 %v1846
  %v2030 = vunpack.c.l.b16 %v1847
  %v2031 = vunpack.c.h.b16 %v1847
  %v2032 = vunpack.c.l.b16 %v1848
  %v2033 = vunpack.c.h.b16 %v1848
  %v2034 = vunpack.c.l.b16 %v1849
  %v2035 = vunpack.c.h.b16 %v1849
  %v2036 = vunpack.c.l.b16 %v1850
  %v2037 = vunpack.c.h.b16 %v1850
  %v2038 = vunpack.c.l.b16 %v1851
  %v2039 = vunpack.c.h.b16 %v1851
  %v2040 = vunpack.c.l.b16 %v1852
  %v2041 = vunpack.c.h.b16 %v1852
  %v2042 = vunpack.c.l.b16 %v1853
  %v2043 = vunpack.c.h.b16 %v1853
  %v2044 = vunpack.c.l.b16 %v1854
  %v2045 = vunpack.c.h.b16 %v1854
  %v2046 = vunpack.c.l.b16 %v1855
  %v2047 = vunpack.c.h.b16 %v1855
  %v2048 = vpack.c.b16 %v1924, %v1920
  %v2049 = vpack.c.b16 %v1925, %v1921
  %v2050 = vpack.c.b16 %v1926, %v1922
  %v2051 = vpack.c.b16 %v1927, %v1923
  %v2052 = vpack.c.b16 %v1932, %v1928
  %v2053 = vpack.c.b16 %v1933, %v1929
  %v2054 = vpack.c.b16 %v1934, %v1930
  %v2055 = vpack.c.b16 %v1935, %v1931
  %v2056 = vpack.c.b16 %v1940, %v1936
  %v2057 = vpack.c.b16 %v1941, %v1937
  %v2058 = vpack.c.b16 %v1942, %v1938
  %v2059 = vpack.c.b16 %v1943, %v1939
  %v2060 = vpack.c.b16 %v1948, %v1944
  %v2061 = vpack.c.b16 %v1949, %v1945
  %v2062 = vpack.c.b16 %v1950, %v1946
  %v2063 = vpack.c.b16 %v1951, %v1947
  %v2064 = vpack.c.b16 %v1956, %v1952
  %v2065 = vpack.c.b16 %v1957, %v1953
  %v2066 = vpack.c.b16 %v1958, %v1954
  %v2067 = vpack.c.b16 %v1959, %v1955
  %v2068 = vpack.c.b16 %v1964, %v1960
  %v2069 = vpack.c.b16 %v1965, %v1961
  %v2070 = vpack.c.b16 %v1966, %v1962
  %v2071 = vpack.c.b16 %v1967, %v1963
  %v2072 = vpack.c.b16 %v1972, %v1968
  %v2073 = vpack.c.b16 %v1973, %v1969
  %v2074 = vpack.c.b16 %v1974, %v1970
  %v2075 = vpack.c.b16 %v1975, %v1971
  %v2076 = vpack.c.b16 %v1980, %v1976
  %v2077 = vpack.c.b16 %v1981, %v1977
  %v2078 = vpack.c.b16 %v1982, %v1978
  %v2079 = vpack.c.b16 %v1983, %v1979
  %v2080 = vpack.c.b16 %v1988, %v1984
  %v2081 = vpack.c.b16 %v1989, %v1985
  %v2082 = vpack.c.b16 %v1990, %v1986
  %v2083 = vpack.c.b16 %v1991, %v1987
  %v2084 = vpack.c.b16 %v1996, %v1992
  %v2085 = vpack.c.b16 %v1997, %v1993
  %v2086 = vpack.c.b16 %v1998, %v1994
  %v2087 = vpack.c.b16 %v1999, %v1995
  %v2088 = vpack.c.b16 %v2004, %v2000
  %v2089 = vpack.c.b16 %v2005, %v2001
  %v2090 = vpack.c.b16 %v2006, %v2002
  %v2091 = vpack.c.b16 %v2007, %v2003
  %v2092 = vpack.c.b16 %v2012, %v2008
  %v2093 = vpack.c.b16 %v2013, %v2009
  %v2094 = vpack.c.b16 %v2014, %v2010
  %v2095 = vpack.c.b16 %v2015, %v2011
  %v2096 = vpack.c.b16 %v2020, %v2016
  %v2097 = vpack.c.b16 %v2021, %v2017
  %v2098 = vpack.c.b16 %v2022, %v2018
  %v2099 = vpack.c.b16 %v2023, %v2019
  %v2100 = vpack.c.b16 %v2028, %v2024
  %v2101 = vpack.c.b16 %v2029, %v2025
  %v2102 = vpack.c.b16 %v2030, %v2026
  %v2103 = vpack.c.b16 %v2031, %v2027
  %v2104 = vpack.c.b16 %v2036, %v2032
  %v2105 = vpack.c.b16 %v2037, %v2033
  %v2106 = vpack.c.b16 %v2038, %v2034
  %v2107 = vpack.c.b16 %v2039, %v2035
  %v2108 = vpack.c.b16 %v2044, %v2040
  %v2109 = vpack.c.b16 %v2045, %v2041
  %v2110 = vpack.c.b16 %v2046, %v2042
  %v2111 = vpack.c.b16 %v2047, %v2043
  %2176 = vmatprep.subr.bf16.mxu0 %v2049
  %2177 = vmatpush1.bf16.msra.mxu0 %v2048
  %2178 = vmatprep.subr.bf16.mxu0 %v2053
  %2179 = vmatpush1.bf16.msra.mxu0 %v2052
  %2180 = vmatprep.subr.bf16.mxu0 %v2057
  %2181 = vmatpush1.bf16.msra.mxu0 %v2056
  %2182 = vmatprep.subr.bf16.mxu0 %v2061
  %2183 = vmatpush1.bf16.msra.mxu0 %v2060
  %2184 = vmatprep.subr.bf16.mxu0 %v2065
  %2185 = vmatpush1.bf16.msra.mxu0 %v2064
  %2186 = vmatprep.subr.bf16.mxu0 %v2069
  %2187 = vmatpush1.bf16.msra.mxu0 %v2068
  %2188 = vmatprep.subr.bf16.mxu0 %v2073
  %2189 = vmatpush1.bf16.msra.mxu0 %v2072
  %2190 = vmatprep.subr.bf16.mxu0 %v2077
  %2191 = vmatpush1.bf16.msra.mxu0 %v2076
  %2192 = vmatprep.subr.bf16.mxu0 %v2081
  %2193 = vmatpush1.bf16.msra.mxu0 %v2080
  %2194 = vmatprep.subr.bf16.mxu0 %v2085
  %2195 = vmatpush1.bf16.msra.mxu0 %v2084
  %2196 = vmatprep.subr.bf16.mxu0 %v2089
  %2197 = vmatpush1.bf16.msra.mxu0 %v2088
  %2198 = vmatprep.subr.bf16.mxu0 %v2093
  %2199 = vmatpush1.bf16.msra.mxu0 %v2092
  %2200 = vmatprep.subr.bf16.mxu0 %v2097
  %2201 = vmatpush1.bf16.msra.mxu0 %v2096
  %2202 = vmatprep.subr.bf16.mxu0 %v2101
  %2203 = vmatpush1.bf16.msra.mxu0 %v2100
  %2204 = vmatprep.subr.bf16.mxu0 %v2105
  %2205 = vmatpush1.bf16.msra.mxu0 %v2104
  %2206 = vmatprep.subr.bf16.mxu0 %v2109
  %2207 = vmatpush1.bf16.msra.mxu0 %v2108
  %2208 = vmatprep.mubr.bf16.mxu0 0
  %2209 = vmatmul.mubr.bf16.gmra.mrb[0].mxu0 %v1791
  %v2210 = vpop.f32.mrb[0].mxu0
  %v2211 = vadd.f32 %v1424, %v2210
  %v2212 = vpop.f32.mrb[0].mxu0
  %v2213 = vadd.f32 %v1428, %v2212
  %v2214 = vpop.f32.mrb[0].mxu0
  %v2215 = vpop.f32.mrb[0].mxu0
  %2216 = vdwg.mxu0
  %2217 = vmatprep.subr.bf16.mxu0 %v2051
  %2218 = vmatpush1.bf16.msra.mxu0 %v2050
  %2219 = vmatprep.subr.bf16.mxu0 %v2055
  %2220 = vmatpush1.bf16.msra.mxu0 %v2054
  %2221 = vmatprep.subr.bf16.mxu0 %v2059
  %2222 = vmatpush1.bf16.msra.mxu0 %v2058
  %2223 = vmatprep.subr.bf16.mxu0 %v2063
  %2224 = vmatpush1.bf16.msra.mxu0 %v2062
  %2225 = vmatprep.subr.bf16.mxu0 %v2067
  %2226 = vmatpush1.bf16.msra.mxu0 %v2066
  %2227 = vmatprep.subr.bf16.mxu0 %v2071
  %2228 = vmatpush1.bf16.msra.mxu0 %v2070
  %2229 = vmatprep.subr.bf16.mxu0 %v2075
  %2230 = vmatpush1.bf16.msra.mxu0 %v2074
  %2231 = vmatprep.subr.bf16.mxu0 %v2079
  %2232 = vmatpush1.bf16.msra.mxu0 %v2078
  %2233 = vmatprep.subr.bf16.mxu0 %v2083
  %2234 = vmatpush1.bf16.msra.mxu0 %v2082
  %2235 = vmatprep.subr.bf16.mxu0 %v2087
  %2236 = vmatpush1.bf16.msra.mxu0 %v2086
  %2237 = vmatprep.subr.bf16.mxu0 %v2091
  %2238 = vmatpush1.bf16.msra.mxu0 %v2090
  %2239 = vmatprep.subr.bf16.mxu0 %v2095
  %2240 = vmatpush1.bf16.msra.mxu0 %v2094
  %2241 = vmatprep.subr.bf16.mxu0 %v2099
  %2242 = vmatpush1.bf16.msra.mxu0 %v2098
  %2243 = vmatprep.subr.bf16.mxu0 %v2103
  %2244 = vmatpush1.bf16.msra.mxu0 %v2102
  %2245 = vmatprep.subr.bf16.mxu0 %v2107
  %2246 = vmatpush1.bf16.msra.mxu0 %v2106
  %2247 = vmatprep.subr.bf16.mxu0 %v2111
  %2248 = vmatpush1.bf16.msra.mxu0 %v2110
  %2249 = vmatprep.mubr.bf16.mxu0 0
  %2250 = vmatmul.mubr.bf16.gmra.mrb[0].mxu0 %v1791
  %v2251 = vpop.f32.mrb[0].mxu0
  %v2252 = vadd.f32 %v1432, %v2251
  %v2253 = vpop.f32.mrb[0].mxu0
  %v2254 = vadd.f32 %v1436, %v2253
  %v2255 = vpop.f32.mrb[0].mxu0
  %v2256 = vpop.f32.mrb[0].mxu0
  %2257 = vdwg.mxu0
  %v2258 = vxor.u32 %v2211, 2147483648
  %v2259 = vmul.f32 %v2258, 1.442695
  %v2260 = vpow.pop %v2259
  %v2261 = vadd.f32 %v2260, 1.0
  %v2262 = vrcp.pop %v2261
  %v2263 = vmul.f32 1.0, %v2262
  %v2264 = vxor.u32 %v2213, 2147483648
  %v2265 = vmul.f32 %v2264, 1.442695
  %v2266 = vpow.pop %v2265
  %v2267 = vadd.f32 %v2266, 1.0
  %v2268 = vrcp.pop %v2267
  %v2269 = vmul.f32 1.0, %v2268
  %v2270 = vtanh.pop %v2252
  %v2271 = vxor.u32 %v2254, 2147483648
  %v2272 = vmul.f32 %v2271, 1.442695
  %v2273 = vpow.pop %v2272
  %v2274 = vadd.f32 %v2273, 1.0
  %v2275 = vrcp.pop %v2274
  %v2276 = vmul.f32 1.0, %v2275
  %v2277 = vmul.f32 %v2269, 0.0
  %v2278 = vmul.f32 %v2263, %v2270
  %v2279 = vadd.f32 %v2277, %v2278
  %v2280 = vtanh.pop %v2279
  %v2281 = vmul.f32 %v2276, %v2280
  %s2282 = smul.u32 4, 32
  %s2283 = smul.u32 %s2282, 4
  %s2284 = sshll.u32 %s2283, 4
  %2285 = dma.done [#allocation5], %s2284
  %v2286 = vpack.c.bf16 %v2281, %v2281
  %v2287 = vld [vmem:[#allocation3] sm:$0xff]
  %v2288 = vld [vmem:[#allocation3 + $0x8] sm:$0xff]
  %v2289 = vld [vmem:[#allocation3 + $0x10] sm:$0xff]
  %v2290 = vld [vmem:[#allocation3 + $0x18] sm:$0xff]
  %v2291 = vld [vmem:[#allocation3 + $0x20] sm:$0xff]
  %v2292 = vld [vmem:[#allocation3 + $0x28] sm:$0xff]
  %v2293 = vld [vmem:[#allocation3 + $0x30] sm:$0xff]
  %v2294 = vld [vmem:[#allocation3 + $0x38] sm:$0xff]
  %v2295 = vld [vmem:[#allocation3 + $0x40] sm:$0xff]
  %v2296 = vld [vmem:[#allocation3 + $0x48] sm:$0xff]
  %v2297 = vld [vmem:[#allocation3 + $0x50] sm:$0xff]
  %v2298 = vld [vmem:[#allocation3 + $0x58] sm:$0xff]
  %v2299 = vld [vmem:[#allocation3 + $0x60] sm:$0xff]
  %v2300 = vld [vmem:[#allocation3 + $0x68] sm:$0xff]
  %v2301 = vld [vmem:[#allocation3 + $0x70] sm:$0xff]
  %v2302 = vld [vmem:[#allocation3 + $0x78] sm:$0xff]
  %v2303 = vld [vmem:[#allocation3 + $0x80] sm:$0xff]
  %v2304 = vld [vmem:[#allocation3 + $0x88] sm:$0xff]
  %v2305 = vld [vmem:[#allocation3 + $0x90] sm:$0xff]
  %v2306 = vld [vmem:[#allocation3 + $0x98] sm:$0xff]
  %v2307 = vld [vmem:[#allocation3 + $0xa0] sm:$0xff]
  %v2308 = vld [vmem:[#allocation3 + $0xa8] sm:$0xff]
  %v2309 = vld [vmem:[#allocation3 + $0xb0] sm:$0xff]
  %v2310 = vld [vmem:[#allocation3 + $0xb8] sm:$0xff]
  %v2311 = vld [vmem:[#allocation3 + $0xc0] sm:$0xff]
  %v2312 = vld [vmem:[#allocation3 + $0xc8] sm:$0xff]
  %v2313 = vld [vmem:[#allocation3 + $0xd0] sm:$0xff]
  %v2314 = vld [vmem:[#allocation3 + $0xd8] sm:$0xff]
  %v2315 = vld [vmem:[#allocation3 + $0xe0] sm:$0xff]
  %v2316 = vld [vmem:[#allocation3 + $0xe8] sm:$0xff]
  %v2317 = vld [vmem:[#allocation3 + $0xf0] sm:$0xff]
  %v2318 = vld [vmem:[#allocation3 + $0xf8] sm:$0xff]
  %v2319 = vld [vmem:[#allocation3 + $0x100] sm:$0xff]
  %v2320 = vld [vmem:[#allocation3 + $0x108] sm:$0xff]
  %v2321 = vld [vmem:[#allocation3 + $0x110] sm:$0xff]
  %v2322 = vld [vmem:[#allocation3 + $0x118] sm:$0xff]
  %v2323 = vld [vmem:[#allocation3 + $0x120] sm:$0xff]
  %v2324 = vld [vmem:[#allocation3 + $0x128] sm:$0xff]
  %v2325 = vld [vmem:[#allocation3 + $0x130] sm:$0xff]
  %v2326 = vld [vmem:[#allocation3 + $0x138] sm:$0xff]
  %v2327 = vld [vmem:[#allocation3 + $0x140] sm:$0xff]
  %v2328 = vld [vmem:[#allocation3 + $0x148] sm:$0xff]
  %v2329 = vld [vmem:[#allocation3 + $0x150] sm:$0xff]
  %v2330 = vld [vmem:[#allocation3 + $0x158] sm:$0xff]
  %v2331 = vld [vmem:[#allocation3 + $0x160] sm:$0xff]
  %v2332 = vld [vmem:[#allocation3 + $0x168] sm:$0xff]
  %v2333 = vld [vmem:[#allocation3 + $0x170] sm:$0xff]
  %v2334 = vld [vmem:[#allocation3 + $0x178] sm:$0xff]
  %v2335 = vld [vmem:[#allocation3 + $0x180] sm:$0xff]
  %v2336 = vld [vmem:[#allocation3 + $0x188] sm:$0xff]
  %v2337 = vld [vmem:[#allocation3 + $0x190] sm:$0xff]
  %v2338 = vld [vmem:[#allocation3 + $0x198] sm:$0xff]
  %v2339 = vld [vmem:[#allocation3 + $0x1a0] sm:$0xff]
  %v2340 = vld [vmem:[#allocation3 + $0x1a8] sm:$0xff]
  %v2341 = vld [vmem:[#allocation3 + $0x1b0] sm:$0xff]
  %v2342 = vld [vmem:[#allocation3 + $0x1b8] sm:$0xff]
  %v2343 = vld [vmem:[#allocation3 + $0x1c0] sm:$0xff]
  %v2344 = vld [vmem:[#allocation3 + $0x1c8] sm:$0xff]
  %v2345 = vld [vmem:[#allocation3 + $0x1d0] sm:$0xff]
  %v2346 = vld [vmem:[#allocation3 + $0x1d8] sm:$0xff]
  %v2347 = vld [vmem:[#allocation3 + $0x1e0] sm:$0xff]
  %v2348 = vld [vmem:[#allocation3 + $0x1e8] sm:$0xff]
  %v2349 = vld [vmem:[#allocation3 + $0x1f0] sm:$0xff]
  %v2350 = vld [vmem:[#allocation3 + $0x1f8] sm:$0xff]
  %2351 = vmatprep.subr.bf16.mxu0 %v2288
  %2352 = vmatpush1.bf16.msra.mxu0 %v2287
  %2353 = vmatprep.subr.bf16.mxu0 %v2292
  %2354 = vmatpush1.bf16.msra.mxu0 %v2291
  %2355 = vmatprep.subr.bf16.mxu0 %v2296
  %2356 = vmatpush1.bf16.msra.mxu0 %v2295
  %2357 = vmatprep.subr.bf16.mxu0 %v2300
  %2358 = vmatpush1.bf16.msra.mxu0 %v2299
  %2359 = vmatprep.subr.bf16.mxu0 %v2304
  %2360 = vmatpush1.bf16.msra.mxu0 %v2303
  %2361 = vmatprep.subr.bf16.mxu0 %v2308
  %2362 = vmatpush1.bf16.msra.mxu0 %v2307
  %2363 = vmatprep.subr.bf16.mxu0 %v2312
  %2364 = vmatpush1.bf16.msra.mxu0 %v2311
  %2365 = vmatprep.subr.bf16.mxu0 %v2316
  %2366 = vmatpush1.bf16.msra.mxu0 %v2315
  %2367 = vmatprep.subr.bf16.mxu0 %v2320
  %2368 = vmatpush1.bf16.msra.mxu0 %v2319
  %2369 = vmatprep.subr.bf16.mxu0 %v2324
  %2370 = vmatpush1.bf16.msra.mxu0 %v2323
  %2371 = vmatprep.subr.bf16.mxu0 %v2328
  %2372 = vmatpush1.bf16.msra.mxu0 %v2327
  %2373 = vmatprep.subr.bf16.mxu0 %v2332
  %2374 = vmatpush1.bf16.msra.mxu0 %v2331
  %2375 = vmatprep.subr.bf16.mxu0 %v2336
  %2376 = vmatpush1.bf16.msra.mxu0 %v2335
  %2377 = vmatprep.subr.bf16.mxu0 %v2340
  %2378 = vmatpush1.bf16.msra.mxu0 %v2339
  %2379 = vmatprep.subr.bf16.mxu0 %v2344
  %2380 = vmatpush1.bf16.msra.mxu0 %v2343
  %2381 = vmatprep.subr.bf16.mxu0 %v2348
  %2382 = vmatpush1.bf16.msra.mxu0 %v2347
  %2383 = vmatprep.mubr.bf16.mxu0 0
  %2384 = vmatmul.mubr.bf16.gmra.mrb[0].mxu0 %v2286
  %v2385 = vpop.f32.mrb[0].mxu0
  %v2386 = vadd.f32 %v1446, %v2385
  %v2387 = vpop.f32.mrb[0].mxu0
  %v2388 = vadd.f32 %v1450, %v2387
  %v2389 = vpop.f32.mrb[0].mxu0
  %v2390 = vpop.f32.mrb[0].mxu0
  %2391 = vdwg.mxu0
  %2392 = vmatprep.subr.bf16.mxu0 %v2290
  %2393 = vmatpush1.bf16.msra.mxu0 %v2289
  %2394 = vmatprep.subr.bf16.mxu0 %v2294
  %2395 = vmatpush1.bf16.msra.mxu0 %v2293
  %2396 = vmatprep.subr.bf16.mxu0 %v2298
  %2397 = vmatpush1.bf16.msra.mxu0 %v2297
  %2398 = vmatprep.subr.bf16.mxu0 %v2302
  %2399 = vmatpush1.bf16.msra.mxu0 %v2301
  %2400 = vmatprep.subr.bf16.mxu0 %v2306
  %2401 = vmatpush1.bf16.msra.mxu0 %v2305
  %2402 = vmatprep.subr.bf16.mxu0 %v2310
  %2403 = vmatpush1.bf16.msra.mxu0 %v2309
  %2404 = vmatprep.subr.bf16.mxu0 %v2314
  %2405 = vmatpush1.bf16.msra.mxu0 %v2313
  %2406 = vmatprep.subr.bf16.mxu0 %v2318
  %2407 = vmatpush1.bf16.msra.mxu0 %v2317
  %2408 = vmatprep.subr.bf16.mxu0 %v2322
  %2409 = vmatpush1.bf16.msra.mxu0 %v2321
  %2410 = vmatprep.subr.bf16.mxu0 %v2326
  %2411 = vmatpush1.bf16.msra.mxu0 %v2325
  %2412 = vmatprep.subr.bf16.mxu0 %v2330
  %2413 = vmatpush1.bf16.msra.mxu0 %v2329
  %2414 = vmatprep.subr.bf16.mxu0 %v2334
  %2415 = vmatpush1.bf16.msra.mxu0 %v2333
  %2416 = vmatprep.subr.bf16.mxu0 %v2338
  %2417 = vmatpush1.bf16.msra.mxu0 %v2337
  %2418 = vmatprep.subr.bf16.mxu0 %v2342
  %2419 = vmatpush1.bf16.msra.mxu0 %v2341
  %2420 = vmatprep.subr.bf16.mxu0 %v2346
  %2421 = vmatpush1.bf16.msra.mxu0 %v2345
  %2422 = vmatprep.subr.bf16.mxu0 %v2350
  %2423 = vmatpush1.bf16.msra.mxu0 %v2349
  %2424 = vmatprep.mubr.bf16.mxu0 0
  %2425 = vmatmul.mubr.bf16.gmra.mrb[0].mxu0 %v2286
  %v2426 = vpop.f32.mrb[0].mxu0
  %v2427 = vadd.f32 %v1454, %v2426
  %v2428 = vpop.f32.mrb[0].mxu0
  %v2429 = vadd.f32 %v1458, %v2428
  %v2430 = vpop.f32.mrb[0].mxu0
  %v2431 = vpop.f32.mrb[0].mxu0
  %2432 = vdwg.mxu0
  %v2433 = vxor.u32 %v2386, 2147483648
  %v2434 = vmul.f32 %v2433, 1.442695
  %v2435 = vpow.pop %v2434
  %v2436 = vadd.f32 %v2435, 1.0
  %v2437 = vrcp.pop %v2436
  %v2438 = vmul.f32 1.0, %v2437
  %v2439 = vxor.u32 %v2388, 2147483648
  %v2440 = vmul.f32 %v2439, 1.442695
  %v2441 = vpow.pop %v2440
  %v2442 = vadd.f32 %v2441, 1.0
  %v2443 = vrcp.pop %v2442
  %v2444 = vmul.f32 1.0, %v2443
  %v2445 = vtanh.pop %v2427
  %v2446 = vxor.u32 %v2429, 2147483648
  %v2447 = vmul.f32 %v2446, 1.442695
  %v2448 = vpow.pop %v2447
  %v2449 = vadd.f32 %v2448, 1.0
  %v2450 = vrcp.pop %v2449
  %v2451 = vmul.f32 1.0, %v2450
  %v2452 = vmul.f32 %v2444, 0.0
  %v2453 = vmul.f32 %v2438, %v2445
  %v2454 = vadd.f32 %v2452, %v2453
  %v2455 = vtanh.pop %v2454
  %v2456 = vmul.f32 %v2451, %v2455
  %s2457 = sshll.u32 %s2283, 4
  %2458 = dma.done %s592, %s2457
  %v2459 = vpack.c.bf16 %v2456, %v2456
  %v2460 = vld [vmem:[#allocation4] sm:$0xff]
  %v2461 = vld [vmem:[#allocation4 + $0x8] sm:$0xff]
  %v2462 = vld [vmem:[#allocation4 + $0x10] sm:$0xff]
  %v2463 = vld [vmem:[#allocation4 + $0x18] sm:$0xff]
  %v2464 = vld [vmem:[#allocation4 + $0x20] sm:$0xff]
  %v2465 = vld [vmem:[#allocation4 + $0x28] sm:$0xff]
  %v2466 = vld [vmem:[#allocation4 + $0x30] sm:$0xff]
  %v2467 = vld [vmem:[#allocation4 + $0x38] sm:$0xff]
  %v2468 = vld [vmem:[#allocation4 + $0x40] sm:$0xff]
  %v2469 = vld [vmem:[#allocation4 + $0x48] sm:$0xff]
  %v2470 = vld [vmem:[#allocation4 + $0x50] sm:$0xff]
  %v2471 = vld [vmem:[#allocation4 + $0x58] sm:$0xff]
  %v2472 = vld [vmem:[#allocation4 + $0x60] sm:$0xff]
  %v2473 = vld [vmem:[#allocation4 + $0x68] sm:$0xff]
  %v2474 = vld [vmem:[#allocation4 + $0x70] sm:$0xff]
  %v2475 = vld [vmem:[#allocation4 + $0x78] sm:$0xff]
  %v2476 = vld [vmem:[#allocation4 + $0x80] sm:$0xff]
  %v2477 = vld [vmem:[#allocation4 + $0x88] sm:$0xff]
  %v2478 = vld [vmem:[#allocation4 + $0x90] sm:$0xff]
  %v2479 = vld [vmem:[#allocation4 + $0x98] sm:$0xff]
  %v2480 = vld [vmem:[#allocation4 + $0xa0] sm:$0xff]
  %v2481 = vld [vmem:[#allocation4 + $0xa8] sm:$0xff]
  %v2482 = vld [vmem:[#allocation4 + $0xb0] sm:$0xff]
  %v2483 = vld [vmem:[#allocation4 + $0xb8] sm:$0xff]
  %v2484 = vld [vmem:[#allocation4 + $0xc0] sm:$0xff]
  %v2485 = vld [vmem:[#allocation4 + $0xc8] sm:$0xff]
  %v2486 = vld [vmem:[#allocation4 + $0xd0] sm:$0xff]
  %v2487 = vld [vmem:[#allocation4 + $0xd8] sm:$0xff]
  %v2488 = vld [vmem:[#allocation4 + $0xe0] sm:$0xff]
  %v2489 = vld [vmem:[#allocation4 + $0xe8] sm:$0xff]
  %v2490 = vld [vmem:[#allocation4 + $0xf0] sm:$0xff]
  %v2491 = vld [vmem:[#allocation4 + $0xf8] sm:$0xff]
  %v2492 = vld [vmem:[#allocation4 + $0x100] sm:$0xff]
  %v2493 = vld [vmem:[#allocation4 + $0x108] sm:$0xff]
  %v2494 = vld [vmem:[#allocation4 + $0x110] sm:$0xff]
  %v2495 = vld [vmem:[#allocation4 + $0x118] sm:$0xff]
  %v2496 = vld [vmem:[#allocation4 + $0x120] sm:$0xff]
  %v2497 = vld [vmem:[#allocation4 + $0x128] sm:$0xff]
  %v2498 = vld [vmem:[#allocation4 + $0x130] sm:$0xff]
  %v2499 = vld [vmem:[#allocation4 + $0x138] sm:$0xff]
  %v2500 = vld [vmem:[#allocation4 + $0x140] sm:$0xff]
  %v2501 = vld [vmem:[#allocation4 + $0x148] sm:$0xff]
  %v2502 = vld [vmem:[#allocation4 + $0x150] sm:$0xff]
  %v2503 = vld [vmem:[#allocation4 + $0x158] sm:$0xff]
  %v2504 = vld [vmem:[#allocation4 + $0x160] sm:$0xff]
  %v2505 = vld [vmem:[#allocation4 + $0x168] sm:$0xff]
  %v2506 = vld [vmem:[#allocation4 + $0x170] sm:$0xff]
  %v2507 = vld [vmem:[#allocation4 + $0x178] sm:$0xff]
  %v2508 = vld [vmem:[#allocation4 + $0x180] sm:$0xff]
  %v2509 = vld [vmem:[#allocation4 + $0x188] sm:$0xff]
  %v2510 = vld [vmem:[#allocation4 + $0x190] sm:$0xff]
  %v2511 = vld [vmem:[#allocation4 + $0x198] sm:$0xff]
  %v2512 = vld [vmem:[#allocation4 + $0x1a0] sm:$0xff]
  %v2513 = vld [vmem:[#allocation4 + $0x1a8] sm:$0xff]
  %v2514 = vld [vmem:[#allocation4 + $0x1b0] sm:$0xff]
  %v2515 = vld [vmem:[#allocation4 + $0x1b8] sm:$0xff]
  %v2516 = vld [vmem:[#allocation4 + $0x1c0] sm:$0xff]
  %v2517 = vld [vmem:[#allocation4 + $0x1c8] sm:$0xff]
  %v2518 = vld [vmem:[#allocation4 + $0x1d0] sm:$0xff]
  %v2519 = vld [vmem:[#allocation4 + $0x1d8] sm:$0xff]
  %v2520 = vld [vmem:[#allocation4 + $0x1e0] sm:$0xff]
  %v2521 = vld [vmem:[#allocation4 + $0x1e8] sm:$0xff]
  %v2522 = vld [vmem:[#allocation4 + $0x1f0] sm:$0xff]
  %v2523 = vld [vmem:[#allocation4 + $0x1f8] sm:$0xff]
  %2524 = vmatprep.subr.bf16.mxu0 %v2461
  %2525 = vmatpush1.bf16.msra.mxu0 %v2460
  %2526 = vmatprep.subr.bf16.mxu0 %v2465
  %2527 = vmatpush1.bf16.msra.mxu0 %v2464
  %2528 = vmatprep.subr.bf16.mxu0 %v2469
  %2529 = vmatpush1.bf16.msra.mxu0 %v2468
  %2530 = vmatprep.subr.bf16.mxu0 %v2473
  %2531 = vmatpush1.bf16.msra.mxu0 %v2472
  %2532 = vmatprep.subr.bf16.mxu0 %v2477
  %2533 = vmatpush1.bf16.msra.mxu0 %v2476
  %2534 = vmatprep.subr.bf16.mxu0 %v2481
  %2535 = vmatpush1.bf16.msra.mxu0 %v2480
  %2536 = vmatprep.subr.bf16.mxu0 %v2485
  %2537 = vmatpush1.bf16.msra.mxu0 %v2484
  %2538 = vmatprep.subr.bf16.mxu0 %v2489
  %2539 = vmatpush1.bf16.msra.mxu0 %v2488
  %2540 = vmatprep.subr.bf16.mxu0 %v2493
  %2541 = vmatpush1.bf16.msra.mxu0 %v2492
  %2542 = vmatprep.subr.bf16.mxu0 %v2497
  %2543 = vmatpush1.bf16.msra.mxu0 %v2496
  %2544 = vmatprep.subr.bf16.mxu0 %v2501
  %2545 = vmatpush1.bf16.msra.mxu0 %v2500
  %2546 = vmatprep.subr.bf16.mxu0 %v2505
  %2547 = vmatpush1.bf16.msra.mxu0 %v2504
  %2548 = vmatprep.subr.bf16.mxu0 %v2509
  %2549 = vmatpush1.bf16.msra.mxu0 %v2508
  %2550 = vmatprep.subr.bf16.mxu0 %v2513
  %2551 = vmatpush1.bf16.msra.mxu0 %v2512
  %2552 = vmatprep.subr.bf16.mxu0 %v2517
  %2553 = vmatpush1.bf16.msra.mxu0 %v2516
  %2554 = vmatprep.subr.bf16.mxu0 %v2521
  %2555 = vmatpush1.bf16.msra.mxu0 %v2520
  %2556 = vmatprep.mubr.bf16.mxu0 0
  %2557 = vmatmul.mubr.bf16.gmra.mrb[0].mxu0 %v2459
  %v2558 = vpop.f32.mrb[0].mxu0
  %v2559 = vadd.f32 %v1468, %v2558
  %v2560 = vpop.f32.mrb[0].mxu0
  %v2561 = vadd.f32 %v1472, %v2560
  %v2562 = vpop.f32.mrb[0].mxu0
  %v2563 = vpop.f32.mrb[0].mxu0
  %2564 = vdwg.mxu0
  %2565 = vmatprep.subr.bf16.mxu0 %v2463
  %2566 = vmatpush1.bf16.msra.mxu0 %v2462
  %2567 = vmatprep.subr.bf16.mxu0 %v2467
  %2568 = vmatpush1.bf16.msra.mxu0 %v2466
  %2569 = vmatprep.subr.bf16.mxu0 %v2471
  %2570 = vmatpush1.bf16.msra.mxu0 %v2470
  %2571 = vmatprep.subr.bf16.mxu0 %v2475
  %2572 = vmatpush1.bf16.msra.mxu0 %v2474
  %2573 = vmatprep.subr.bf16.mxu0 %v2479
  %2574 = vmatpush1.bf16.msra.mxu0 %v2478
  %2575 = vmatprep.subr.bf16.mxu0 %v2483
  %2576 = vmatpush1.bf16.msra.mxu0 %v2482
  %2577 = vmatprep.subr.bf16.mxu0 %v2487
  %2578 = vmatpush1.bf16.msra.mxu0 %v2486
  %2579 = vmatprep.subr.bf16.mxu0 %v2491
  %2580 = vmatpush1.bf16.msra.mxu0 %v2490
  %2581 = vmatprep.subr.bf16.mxu0 %v2495
  %2582 = vmatpush1.bf16.msra.mxu0 %v2494
  %2583 = vmatprep.subr.bf16.mxu0 %v2499
  %2584 = vmatpush1.bf16.msra.mxu0 %v2498
  %2585 = vmatprep.subr.bf16.mxu0 %v2503
  %2586 = vmatpush1.bf16.msra.mxu0 %v2502
  %2587 = vmatprep.subr.bf16.mxu0 %v2507
  %2588 = vmatpush1.bf16.msra.mxu0 %v2506
  %2589 = vmatprep.subr.bf16.mxu0 %v2511
  %2590 = vmatpush1.bf16.msra.mxu0 %v2510
  %2591 = vmatprep.subr.bf16.mxu0 %v2515
  %2592 = vmatpush1.bf16.msra.mxu0 %v2514
  %2593 = vmatprep.subr.bf16.mxu0 %v2519
  %2594 = vmatpush1.bf16.msra.mxu0 %v2518
  %2595 = vmatprep.subr.bf16.mxu0 %v2523
  %2596 = vmatpush1.bf16.msra.mxu0 %v2522
  %2597 = vmatprep.mubr.bf16.mxu0 0
  %2598 = vmatmul.mubr.bf16.gmra.mrb[0].mxu0 %v2459
  %v2599 = vpop.f32.mrb[0].mxu0
  %v2600 = vadd.f32 %v1476, %v2599
  %v2601 = vpop.f32.mrb[0].mxu0
  %v2602 = vadd.f32 %v1480, %v2601
  %v2603 = vpop.f32.mrb[0].mxu0
  %v2604 = vpop.f32.mrb[0].mxu0
  %2605 = vdwg.mxu0
  %v2606 = vxor.u32 %v2559, 2147483648
  %v2607 = vmul.f32 %v2606, 1.442695
  %v2608 = vpow.pop %v2607
  %v2609 = vadd.f32 %v2608, 1.0
  %v2610 = vrcp.pop %v2609
  %v2611 = vmul.f32 1.0, %v2610
  %v2612 = vxor.u32 %v2561, 2147483648
  %v2613 = vmul.f32 %v2612, 1.442695
  %v2614 = vpow.pop %v2613
  %v2615 = vadd.f32 %v2614, 1.0
  %v2616 = vrcp.pop %v2615
  %v2617 = vmul.f32 1.0, %v2616
  %v2618 = vtanh.pop %v2600
  %v2619 = vxor.u32 %v2602, 2147483648
  %v2620 = vmul.f32 %v2619, 1.442695
  %v2621 = vpow.pop %v2620
  %v2622 = vadd.f32 %v2621, 1.0
  %v2623 = vrcp.pop %v2622
  %v2624 = vmul.f32 1.0, %v2623
  %v2625 = vmul.f32 %v2617, 0.0
  %v2626 = vmul.f32 %v2611, %v2618
  %v2627 = vadd.f32 %v2625, %v2626
  %v2628 = vtanh.pop %v2627
  %v2629 = vmul.f32 %v2624, %v2628
  %2630 = vst [vmem:[%s10] sm:$0xff] %v2629
  %v2631 = vld [vmem:[#allocation2 + $0x20] sm:$0xff]
  %v2632 = vld [vmem:[#allocation2 + $0x28] sm:$0xff]
  %v2633 = vld [vmem:[#allocation2 + $0x30] sm:$0xff]
  %v2634 = vld [vmem:[#allocation2 + $0x38] sm:$0xff]
  %v2635 = vld [vmem:[%s3] sm:$0xff]
  %v2636 = vld [vmem:[%s3 + $0x8] sm:$0xff]
  %v2637 = vld [vmem:[%s3 + $0x10] sm:$0xff]
  %v2638 = vld [vmem:[%s3 + $0x18] sm:$0xff]
  %v2639 = vld [vmem:[%s3 + $0x20] sm:$0xff]
  %v2640 = vld [vmem:[%s3 + $0x28] sm:$0xff]
  %v2641 = vld [vmem:[%s3 + $0x30] sm:$0xff]
  %v2642 = vld [vmem:[%s3 + $0x38] sm:$0xff]
  %v2643 = vld [vmem:[%s3 + $0x40] sm:$0xff]
  %v2644 = vld [vmem:[%s3 + $0x48] sm:$0xff]
  %v2645 = vld [vmem:[%s3 + $0x50] sm:$0xff]
  %v2646 = vld [vmem:[%s3 + $0x58] sm:$0xff]
  %v2647 = vld [vmem:[%s3 + $0x60] sm:$0xff]
  %v2648 = vld [vmem:[%s3 + $0x68] sm:$0xff]
  %v2649 = vld [vmem:[%s3 + $0x70] sm:$0xff]
  %v2650 = vld [vmem:[%s3 + $0x78] sm:$0xff]
  %v2651 = vld [vmem:[%s3 + $0x80] sm:$0xff]
  %v2652 = vld [vmem:[%s3 + $0x88] sm:$0xff]
  %v2653 = vld [vmem:[%s3 + $0x90] sm:$0xff]
  %v2654 = vld [vmem:[%s3 + $0x98] sm:$0xff]
  %v2655 = vld [vmem:[%s3 + $0xa0] sm:$0xff]
  %v2656 = vld [vmem:[%s3 + $0xa8] sm:$0xff]
  %v2657 = vld [vmem:[%s3 + $0xb0] sm:$0xff]
  %v2658 = vld [vmem:[%s3 + $0xb8] sm:$0xff]
  %v2659 = vld [vmem:[%s3 + $0xc0] sm:$0xff]
  %v2660 = vld [vmem:[%s3 + $0xc8] sm:$0xff]
  %v2661 = vld [vmem:[%s3 + $0xd0] sm:$0xff]
  %v2662 = vld [vmem:[%s3 + $0xd8] sm:$0xff]
  %v2663 = vld [vmem:[%s3 + $0xe0] sm:$0xff]
  %v2664 = vld [vmem:[%s3 + $0xe8] sm:$0xff]
  %v2665 = vld [vmem:[%s3 + $0xf0] sm:$0xff]
  %v2666 = vld [vmem:[%s3 + $0xf8] sm:$0xff]
  %v2699 = vunpack.c.l.b16 %v2635
  %v2700 = vunpack.c.h.b16 %v2635
  %v2701 = vunpack.c.l.b16 %v2636
  %v2702 = vunpack.c.h.b16 %v2636
  %v2703 = vunpack.c.l.b16 %v2637
  %v2704 = vunpack.c.h.b16 %v2637
  %v2705 = vunpack.c.l.b16 %v2638
  %v2706 = vunpack.c.h.b16 %v2638
  %v2707 = vunpack.c.l.b16 %v2639
  %v2708 = vunpack.c.h.b16 %v2639
  %v2709 = vunpack.c.l.b16 %v2640
  %v2710 = vunpack.c.h.b16 %v2640
  %v2711 = vunpack.c.l.b16 %v2641
  %v2712 = vunpack.c.h.b16 %v2641
  %v2713 = vunpack.c.l.b16 %v2642
  %v2714 = vunpack.c.h.b16 %v2642
  %v2715 = vunpack.c.l.b16 %v2643
  %v2716 = vunpack.c.h.b16 %v2643
  %v2717 = vunpack.c.l.b16 %v2644
  %v2718 = vunpack.c.h.b16 %v2644
  %v2719 = vunpack.c.l.b16 %v2645
  %v2720 = vunpack.c.h.b16 %v2645
  %v2721 = vunpack.c.l.b16 %v2646
  %v2722 = vunpack.c.h.b16 %v2646
  %v2723 = vunpack.c.l.b16 %v2647
  %v2724 = vunpack.c.h.b16 %v2647
  %v2725 = vunpack.c.l.b16 %v2648
  %v2726 = vunpack.c.h.b16 %v2648
  %v2727 = vunpack.c.l.b16 %v2649
  %v2728 = vunpack.c.h.b16 %v2649
  %v2729 = vunpack.c.l.b16 %v2650
  %v2730 = vunpack.c.h.b16 %v2650
  %v2731 = vunpack.c.l.b16 %v2651
  %v2732 = vunpack.c.h.b16 %v2651
  %v2733 = vunpack.c.l.b16 %v2652
  %v2734 = vunpack.c.h.b16 %v2652
  %v2735 = vunpack.c.l.b16 %v2653
  %v2736 = vunpack.c.h.b16 %v2653
  %v2737 = vunpack.c.l.b16 %v2654
  %v2738 = vunpack.c.h.b16 %v2654
  %v2739 = vunpack.c.l.b16 %v2655
  %v2740 = vunpack.c.h.b16 %v2655
  %v2741 = vunpack.c.l.b16 %v2656
  %v2742 = vunpack.c.h.b16 %v2656
  %v2743 = vunpack.c.l.b16 %v2657
  %v2744 = vunpack.c.h.b16 %v2657
  %v2745 = vunpack.c.l.b16 %v2658
  %v2746 = vunpack.c.h.b16 %v2658
  %v2747 = vunpack.c.l.b16 %v2659
  %v2748 = vunpack.c.h.b16 %v2659
  %v2749 = vunpack.c.l.b16 %v2660
  %v2750 = vunpack.c.h.b16 %v2660
  %v2751 = vunpack.c.l.b16 %v2661
  %v2752 = vunpack.c.h.b16 %v2661
  %v2753 = vunpack.c.l.b16 %v2662
  %v2754 = vunpack.c.h.b16 %v2662
  %v2755 = vunpack.c.l.b16 %v2663
  %v2756 = vunpack.c.h.b16 %v2663
  %v2757 = vunpack.c.l.b16 %v2664
  %v2758 = vunpack.c.h.b16 %v2664
  %v2759 = vunpack.c.l.b16 %v2665
  %v2760 = vunpack.c.h.b16 %v2665
  %v2761 = vunpack.c.l.b16 %v2666
  %v2762 = vunpack.c.h.b16 %v2666
  %v2763 = vpack.c.b16 %v2703, %v2699
  %v2764 = vpack.c.b16 %v2704, %v2700
  %v2765 = vpack.c.b16 %v2705, %v2701
  %v2766 = vpack.c.b16 %v2706, %v2702
  %v2767 = vpack.c.b16 %v2711, %v2707
  %v2768 = vpack.c.b16 %v2712, %v2708
  %v2769 = vpack.c.b16 %v2713, %v2709
  %v2770 = vpack.c.b16 %v2714, %v2710
  %v2771 = vpack.c.b16 %v2719, %v2715
  %v2772 = vpack.c.b16 %v2720, %v2716
  %v2773 = vpack.c.b16 %v2721, %v2717
  %v2774 = vpack.c.b16 %v2722, %v2718
  %v2775 = vpack.c.b16 %v2727, %v2723
  %v2776 = vpack.c.b16 %v2728, %v2724
  %v2777 = vpack.c.b16 %v2729, %v2725
  %v2778 = vpack.c.b16 %v2730, %v2726
  %v2779 = vpack.c.b16 %v2735, %v2731
  %v2780 = vpack.c.b16 %v2736, %v2732
  %v2781 = vpack.c.b16 %v2737, %v2733
  %v2782 = vpack.c.b16 %v2738, %v2734
  %v2783 = vpack.c.b16 %v2743, %v2739
  %v2784 = vpack.c.b16 %v2744, %v2740
  %v2785 = vpack.c.b16 %v2745, %v2741
  %v2786 = vpack.c.b16 %v2746, %v2742
  %v2787 = vpack.c.b16 %v2751, %v2747
  %v2788 = vpack.c.b16 %v2752, %v2748
  %v2789 = vpack.c.b16 %v2753, %v2749
  %v2790 = vpack.c.b16 %v2754, %v2750
  %v2791 = vpack.c.b16 %v2759, %v2755
  %v2792 = vpack.c.b16 %v2760, %v2756
  %v2793 = vpack.c.b16 %v2761, %v2757
  %v2794 = vpack.c.b16 %v2762, %v2758
  %2827 = vmatprep.subr.bf16.mxu0 %v2764
  %2828 = vmatpush1.bf16.msra.mxu0 %v2763
  %2829 = vmatprep.subr.bf16.mxu0 %v2768
  %2830 = vmatpush1.bf16.msra.mxu0 %v2767
  %2831 = vmatprep.subr.bf16.mxu0 %v2772
  %2832 = vmatpush1.bf16.msra.mxu0 %v2771
  %2833 = vmatprep.subr.bf16.mxu0 %v2776
  %2834 = vmatpush1.bf16.msra.mxu0 %v2775
  %2835 = vmatprep.subr.bf16.mxu0 %v2780
  %2836 = vmatpush1.bf16.msra.mxu0 %v2779
  %2837 = vmatprep.subr.bf16.mxu0 %v2784
  %2838 = vmatpush1.bf16.msra.mxu0 %v2783
  %2839 = vmatprep.subr.bf16.mxu0 %v2788
  %2840 = vmatpush1.bf16.msra.mxu0 %v2787
  %2841 = vmatprep.subr.bf16.mxu0 %v2792
  %2842 = vmatpush1.bf16.msra.mxu0 %v2791
  %2843 = vmatprep.subr.bf16.mxu0 0
  %2844 = vmatpush1.bf16.msra.mxu0 0
  %2845 = vmatprep.subr.bf16.mxu0 0
  %2846 = vmatpush1.bf16.msra.mxu0 0
  %2847 = vmatprep.subr.bf16.mxu0 0
  %2848 = vmatpush1.bf16.msra.mxu0 0
  %2849 = vmatprep.subr.bf16.mxu0 0
  %2850 = vmatpush1.bf16.msra.mxu0 0
  %2851 = vmatprep.subr.bf16.mxu0 0
  %2852 = vmatpush1.bf16.msra.mxu0 0
  %2853 = vmatprep.subr.bf16.mxu0 0
  %2854 = vmatpush1.bf16.msra.mxu0 0
  %2855 = vmatprep.subr.bf16.mxu0 0
  %2856 = vmatpush1.bf16.msra.mxu0 0
  %2857 = vmatprep.subr.bf16.mxu0 0
  %2858 = vmatpush1.bf16.msra.mxu0 0
  %2859 = vmatprep.mubr.bf16.mxu0 0
  %2860 = vmatmul.mubr.bf16.gmra.mrb[0].mxu0 %v1791
  %v2861 = vpop.f32.mrb[0].mxu0
  %v2862 = vadd.f32 0.0, %v2861
  %v2863 = vpop.f32.mrb[0].mxu0
  %v2864 = vadd.f32 0.0, %v2863
  %v2865 = vpop.f32.mrb[0].mxu0
  %v2866 = vpop.f32.mrb[0].mxu0
  %2867 = vdwg.mxu0
  %2868 = vmatprep.subr.bf16.mxu0 %v2766
  %2869 = vmatpush1.bf16.msra.mxu0 %v2765
  %2870 = vmatprep.subr.bf16.mxu0 %v2770
  %2871 = vmatpush1.bf16.msra.mxu0 %v2769
  %2872 = vmatprep.subr.bf16.mxu0 %v2774
  %2873 = vmatpush1.bf16.msra.mxu0 %v2773
  %2874 = vmatprep.subr.bf16.mxu0 %v2778
  %2875 = vmatpush1.bf16.msra.mxu0 %v2777
  %2876 = vmatprep.subr.bf16.mxu0 %v2782
  %2877 = vmatpush1.bf16.msra.mxu0 %v2781
  %2878 = vmatprep.subr.bf16.mxu0 %v2786
  %2879 = vmatpush1.bf16.msra.mxu0 %v2785
  %2880 = vmatprep.subr.bf16.mxu0 %v2790
  %2881 = vmatpush1.bf16.msra.mxu0 %v2789
  %2882 = vmatprep.subr.bf16.mxu0 %v2794
  %2883 = vmatpush1.bf16.msra.mxu0 %v2793
  %2884 = vmatprep.subr.bf16.mxu0 0
  %2885 = vmatpush1.bf16.msra.mxu0 0
  %2886 = vmatprep.subr.bf16.mxu0 0
  %2887 = vmatpush1.bf16.msra.mxu0 0
  %2888 = vmatprep.subr.bf16.mxu0 0
  %2889 = vmatpush1.bf16.msra.mxu0 0
  %2890 = vmatprep.subr.bf16.mxu0 0
  %2891 = vmatpush1.bf16.msra.mxu0 0
  %2892 = vmatprep.subr.bf16.mxu0 0
  %2893 = vmatpush1.bf16.msra.mxu0 0
  %2894 = vmatprep.subr.bf16.mxu0 0
  %2895 = vmatpush1.bf16.msra.mxu0 0
  %2896 = vmatprep.subr.bf16.mxu0 0
  %2897 = vmatpush1.bf16.msra.mxu0 0
  %2898 = vmatprep.subr.bf16.mxu0 0
  %2899 = vmatpush1.bf16.msra.mxu0 0
  %2900 = vmatprep.mubr.bf16.mxu0 0
  %2901 = vmatmul.mubr.bf16.gmra.mrb[0].mxu0 %v1791
  %v2902 = vpop.f32.mrb[0].mxu0
  %v2903 = vadd.f32 0.0, %v2902
  %v2904 = vpop.f32.mrb[0].mxu0
  %v2905 = vadd.f32 0.0, %v2904
  %v2906 = vpop.f32.mrb[0].mxu0
  %v2907 = vpop.f32.mrb[0].mxu0
  %2908 = vdwg.mxu0
  %v2909 = vadd.f32 %v2631, %v2862
  %v2910 = vadd.f32 %v2632, %v2864
  %v2911 = vadd.f32 %v2633, %v2903
  %v2912 = vadd.f32 %v2634, %v2905
  %v2913 = vxor.u32 %v2909, 2147483648
  %v2914 = vmul.f32 %v2913, 1.442695
  %v2915 = vpow.pop %v2914
  %v2916 = vadd.f32 %v2915, 1.0
  %v2917 = vrcp.pop %v2916
  %v2918 = vmul.f32 1.0, %v2917
  %v2919 = vxor.u32 %v2910, 2147483648
  %v2920 = vmul.f32 %v2919, 1.442695
  %v2921 = vpow.pop %v2920
  %v2922 = vadd.f32 %v2921, 1.0
  %v2923 = vrcp.pop %v2922
  %v2924 = vmul.f32 1.0, %v2923
  %v2925 = vtanh.pop %v2911
  %v2926 = vxor.u32 %v2912, 2147483648
  %v2927 = vmul.f32 %v2926, 1.442695
  %v2928 = vpow.pop %v2927
  %v2929 = vadd.f32 %v2928, 1.0
  %v2930 = vrcp.pop %v2929
  %v2931 = vmul.f32 1.0, %v2930
  %v2932 = vmul.f32 %v2924, %v1788
  %v2933 = vmul.f32 %v2918, %v2925
  %v2934 = vadd.f32 %v2932, %v2933
  %v2935 = vtanh.pop %v2934
  %v2936 = vmul.f32 %v2931, %v2935
  %v2937 = vpack.c.bf16 %v2936, %v2936
  %v2938 = vld [vmem:[%s4] sm:$0xff]
  %v2939 = vld [vmem:[%s4 + $0x8] sm:$0xff]
  %v2940 = vld [vmem:[%s4 + $0x10] sm:$0xff]
  %v2941 = vld [vmem:[%s4 + $0x18] sm:$0xff]
  %v2942 = vld [vmem:[%s4 + $0x20] sm:$0xff]
  %v2943 = vld [vmem:[%s4 + $0x28] sm:$0xff]
  %v2944 = vld [vmem:[%s4 + $0x30] sm:$0xff]
  %v2945 = vld [vmem:[%s4 + $0x38] sm:$0xff]
  %v2946 = vld [vmem:[%s4 + $0x40] sm:$0xff]
  %v2947 = vld [vmem:[%s4 + $0x48] sm:$0xff]
  %v2948 = vld [vmem:[%s4 + $0x50] sm:$0xff]
  %v2949 = vld [vmem:[%s4 + $0x58] sm:$0xff]
  %v2950 = vld [vmem:[%s4 + $0x60] sm:$0xff]
  %v2951 = vld [vmem:[%s4 + $0x68] sm:$0xff]
  %v2952 = vld [vmem:[%s4 + $0x70] sm:$0xff]
  %v2953 = vld [vmem:[%s4 + $0x78] sm:$0xff]
  %v2954 = vld [vmem:[%s4 + $0x80] sm:$0xff]
  %v2955 = vld [vmem:[%s4 + $0x88] sm:$0xff]
  %v2956 = vld [vmem:[%s4 + $0x90] sm:$0xff]
  %v2957 = vld [vmem:[%s4 + $0x98] sm:$0xff]
  %v2958 = vld [vmem:[%s4 + $0xa0] sm:$0xff]
  %v2959 = vld [vmem:[%s4 + $0xa8] sm:$0xff]
  %v2960 = vld [vmem:[%s4 + $0xb0] sm:$0xff]
  %v2961 = vld [vmem:[%s4 + $0xb8] sm:$0xff]
  %v2962 = vld [vmem:[%s4 + $0xc0] sm:$0xff]
  %v2963 = vld [vmem:[%s4 + $0xc8] sm:$0xff]
  %v2964 = vld [vmem:[%s4 + $0xd0] sm:$0xff]
  %v2965 = vld [vmem:[%s4 + $0xd8] sm:$0xff]
  %v2966 = vld [vmem:[%s4 + $0xe0] sm:$0xff]
  %v2967 = vld [vmem:[%s4 + $0xe8] sm:$0xff]
  %v2968 = vld [vmem:[%s4 + $0xf0] sm:$0xff]
  %v2969 = vld [vmem:[%s4 + $0xf8] sm:$0xff]
  %v2970 = vld [vmem:[%s4 + $0x100] sm:$0xff]
  %v2971 = vld [vmem:[%s4 + $0x108] sm:$0xff]
  %v2972 = vld [vmem:[%s4 + $0x110] sm:$0xff]
  %v2973 = vld [vmem:[%s4 + $0x118] sm:$0xff]
  %v2974 = vld [vmem:[%s4 + $0x120] sm:$0xff]
  %v2975 = vld [vmem:[%s4 + $0x128] sm:$0xff]
  %v2976 = vld [vmem:[%s4 + $0x130] sm:$0xff]
  %v2977 = vld [vmem:[%s4 + $0x138] sm:$0xff]
  %v2978 = vld [vmem:[%s4 + $0x140] sm:$0xff]
  %v2979 = vld [vmem:[%s4 + $0x148] sm:$0xff]
  %v2980 = vld [vmem:[%s4 + $0x150] sm:$0xff]
  %v2981 = vld [vmem:[%s4 + $0x158] sm:$0xff]
  %v2982 = vld [vmem:[%s4 + $0x160] sm:$0xff]
  %v2983 = vld [vmem:[%s4 + $0x168] sm:$0xff]
  %v2984 = vld [vmem:[%s4 + $0x170] sm:$0xff]
  %v2985 = vld [vmem:[%s4 + $0x178] sm:$0xff]
  %v2986 = vld [vmem:[%s4 + $0x180] sm:$0xff]
  %v2987 = vld [vmem:[%s4 + $0x188] sm:$0xff]
  %v2988 = vld [vmem:[%s4 + $0x190] sm:$0xff]
  %v2989 = vld [vmem:[%s4 + $0x198] sm:$0xff]
  %v2990 = vld [vmem:[%s4 + $0x1a0] sm:$0xff]
  %v2991 = vld [vmem:[%s4 + $0x1a8] sm:$0xff]
  %v2992 = vld [vmem:[%s4 + $0x1b0] sm:$0xff]
  %v2993 = vld [vmem:[%s4 + $0x1b8] sm:$0xff]
  %v2994 = vld [vmem:[%s4 + $0x1c0] sm:$0xff]
  %v2995 = vld [vmem:[%s4 + $0x1c8] sm:$0xff]
  %v2996 = vld [vmem:[%s4 + $0x1d0] sm:$0xff]
  %v2997 = vld [vmem:[%s4 + $0x1d8] sm:$0xff]
  %v2998 = vld [vmem:[%s4 + $0x1e0] sm:$0xff]
  %v2999 = vld [vmem:[%s4 + $0x1e8] sm:$0xff]
  %v3000 = vld [vmem:[%s4 + $0x1f0] sm:$0xff]
  %v3001 = vld [vmem:[%s4 + $0x1f8] sm:$0xff]
  %v3066 = vunpack.c.l.b16 %v2938
  %v3067 = vunpack.c.h.b16 %v2938
  %v3068 = vunpack.c.l.b16 %v2939
  %v3069 = vunpack.c.h.b16 %v2939
  %v3070 = vunpack.c.l.b16 %v2940
  %v3071 = vunpack.c.h.b16 %v2940
  %v3072 = vunpack.c.l.b16 %v2941
  %v3073 = vunpack.c.h.b16 %v2941
  %v3074 = vunpack.c.l.b16 %v2942
  %v3075 = vunpack.c.h.b16 %v2942
  %v3076 = vunpack.c.l.b16 %v2943
  %v3077 = vunpack.c.h.b16 %v2943
  %v3078 = vunpack.c.l.b16 %v2944
  %v3079 = vunpack.c.h.b16 %v2944
  %v3080 = vunpack.c.l.b16 %v2945
  %v3081 = vunpack.c.h.b16 %v2945
  %v3082 = vunpack.c.l.b16 %v2946
  %v3083 = vunpack.c.h.b16 %v2946
  %v3084 = vunpack.c.l.b16 %v2947
  %v3085 = vunpack.c.h.b16 %v2947
  %v3086 = vunpack.c.l.b16 %v2948
  %v3087 = vunpack.c.h.b16 %v2948
  %v3088 = vunpack.c.l.b16 %v2949
  %v3089 = vunpack.c.h.b16 %v2949
  %v3090 = vunpack.c.l.b16 %v2950
  %v3091 = vunpack.c.h.b16 %v2950
  %v3092 = vunpack.c.l.b16 %v2951
  %v3093 = vunpack.c.h.b16 %v2951
  %v3094 = vunpack.c.l.b16 %v2952
  %v3095 = vunpack.c.h.b16 %v2952
  %v3096 = vunpack.c.l.b16 %v2953
  %v3097 = vunpack.c.h.b16 %v2953
  %v3098 = vunpack.c.l.b16 %v2954
  %v3099 = vunpack.c.h.b16 %v2954
  %v3100 = vunpack.c.l.b16 %v2955
  %v3101 = vunpack.c.h.b16 %v2955
  %v3102 = vunpack.c.l.b16 %v2956
  %v3103 = vunpack.c.h.b16 %v2956
  %v3104 = vunpack.c.l.b16 %v2957
  %v3105 = vunpack.c.h.b16 %v2957
  %v3106 = vunpack.c.l.b16 %v2958
  %v3107 = vunpack.c.h.b16 %v2958
  %v3108 = vunpack.c.l.b16 %v2959
  %v3109 = vunpack.c.h.b16 %v2959
  %v3110 = vunpack.c.l.b16 %v2960
  %v3111 = vunpack.c.h.b16 %v2960
  %v3112 = vunpack.c.l.b16 %v2961
  %v3113 = vunpack.c.h.b16 %v2961
  %v3114 = vunpack.c.l.b16 %v2962
  %v3115 = vunpack.c.h.b16 %v2962
  %v3116 = vunpack.c.l.b16 %v2963
  %v3117 = vunpack.c.h.b16 %v2963
  %v3118 = vunpack.c.l.b16 %v2964
  %v3119 = vunpack.c.h.b16 %v2964
  %v3120 = vunpack.c.l.b16 %v2965
  %v3121 = vunpack.c.h.b16 %v2965
  %v3122 = vunpack.c.l.b16 %v2966
  %v3123 = vunpack.c.h.b16 %v2966
  %v3124 = vunpack.c.l.b16 %v2967
  %v3125 = vunpack.c.h.b16 %v2967
  %v3126 = vunpack.c.l.b16 %v2968
  %v3127 = vunpack.c.h.b16 %v2968
  %v3128 = vunpack.c.l.b16 %v2969
  %v3129 = vunpack.c.h.b16 %v2969
  %v3130 = vunpack.c.l.b16 %v2970
  %v3131 = vunpack.c.h.b16 %v2970
  %v3132 = vunpack.c.l.b16 %v2971
  %v3133 = vunpack.c.h.b16 %v2971
  %v3134 = vunpack.c.l.b16 %v2972
  %v3135 = vunpack.c.h.b16 %v2972
  %v3136 = vunpack.c.l.b16 %v2973
  %v3137 = vunpack.c.h.b16 %v2973
  %v3138 = vunpack.c.l.b16 %v2974
  %v3139 = vunpack.c.h.b16 %v2974
  %v3140 = vunpack.c.l.b16 %v2975
  %v3141 = vunpack.c.h.b16 %v2975
  %v3142 = vunpack.c.l.b16 %v2976
  %v3143 = vunpack.c.h.b16 %v2976
  %v3144 = vunpack.c.l.b16 %v2977
  %v3145 = vunpack.c.h.b16 %v2977
  %v3146 = vunpack.c.l.b16 %v2978
  %v3147 = vunpack.c.h.b16 %v2978
  %v3148 = vunpack.c.l.b16 %v2979
  %v3149 = vunpack.c.h.b16 %v2979
  %v3150 = vunpack.c.l.b16 %v2980
  %v3151 = vunpack.c.h.b16 %v2980
  %v3152 = vunpack.c.l.b16 %v2981
  %v3153 = vunpack.c.h.b16 %v2981
  %v3154 = vunpack.c.l.b16 %v2982
  %v3155 = vunpack.c.h.b16 %v2982
  %v3156 = vunpack.c.l.b16 %v2983
  %v3157 = vunpack.c.h.b16 %v2983
  %v3158 = vunpack.c.l.b16 %v2984
  %v3159 = vunpack.c.h.b16 %v2984
  %v3160 = vunpack.c.l.b16 %v2985
  %v3161 = vunpack.c.h.b16 %v2985
  %v3162 = vunpack.c.l.b16 %v2986
  %v3163 = vunpack.c.h.b16 %v2986
  %v3164 = vunpack.c.l.b16 %v2987
  %v3165 = vunpack.c.h.b16 %v2987
  %v3166 = vunpack.c.l.b16 %v2988
  %v3167 = vunpack.c.h.b16 %v2988
  %v3168 = vunpack.c.l.b16 %v2989
  %v3169 = vunpack.c.h.b16 %v2989
  %v3170 = vunpack.c.l.b16 %v2990
  %v3171 = vunpack.c.h.b16 %v2990
  %v3172 = vunpack.c.l.b16 %v2991
  %v3173 = vunpack.c.h.b16 %v2991
  %v3174 = vunpack.c.l.b16 %v2992
  %v3175 = vunpack.c.h.b16 %v2992
  %v3176 = vunpack.c.l.b16 %v2993
  %v3177 = vunpack.c.h.b16 %v2993
  %v3178 = vunpack.c.l.b16 %v2994
  %v3179 = vunpack.c.h.b16 %v2994
  %v3180 = vunpack.c.l.b16 %v2995
  %v3181 = vunpack.c.h.b16 %v2995
  %v3182 = vunpack.c.l.b16 %v2996
  %v3183 = vunpack.c.h.b16 %v2996
  %v3184 = vunpack.c.l.b16 %v2997
  %v3185 = vunpack.c.h.b16 %v2997
  %v3186 = vunpack.c.l.b16 %v2998
  %v3187 = vunpack.c.h.b16 %v2998
  %v3188 = vunpack.c.l.b16 %v2999
  %v3189 = vunpack.c.h.b16 %v2999
  %v3190 = vunpack.c.l.b16 %v3000
  %v3191 = vunpack.c.h.b16 %v3000
  %v3192 = vunpack.c.l.b16 %v3001
  %v3193 = vunpack.c.h.b16 %v3001
  %v3194 = vpack.c.b16 %v3070, %v3066
  %v3195 = vpack.c.b16 %v3071, %v3067
  %v3196 = vpack.c.b16 %v3072, %v3068
  %v3197 = vpack.c.b16 %v3073, %v3069
  %v3198 = vpack.c.b16 %v3078, %v3074
  %v3199 = vpack.c.b16 %v3079, %v3075
  %v3200 = vpack.c.b16 %v3080, %v3076
  %v3201 = vpack.c.b16 %v3081, %v3077
  %v3202 = vpack.c.b16 %v3086, %v3082
  %v3203 = vpack.c.b16 %v3087, %v3083
  %v3204 = vpack.c.b16 %v3088, %v3084
  %v3205 = vpack.c.b16 %v3089, %v3085
  %v3206 = vpack.c.b16 %v3094, %v3090
  %v3207 = vpack.c.b16 %v3095, %v3091
  %v3208 = vpack.c.b16 %v3096, %v3092
  %v3209 = vpack.c.b16 %v3097, %v3093
  %v3210 = vpack.c.b16 %v3102, %v3098
  %v3211 = vpack.c.b16 %v3103, %v3099
  %v3212 = vpack.c.b16 %v3104, %v3100
  %v3213 = vpack.c.b16 %v3105, %v3101
  %v3214 = vpack.c.b16 %v3110, %v3106
  %v3215 = vpack.c.b16 %v3111, %v3107
  %v3216 = vpack.c.b16 %v3112, %v3108
  %v3217 = vpack.c.b16 %v3113, %v3109
  %v3218 = vpack.c.b16 %v3118, %v3114
  %v3219 = vpack.c.b16 %v3119, %v3115
  %v3220 = vpack.c.b16 %v3120, %v3116
  %v3221 = vpack.c.b16 %v3121, %v3117
  %v3222 = vpack.c.b16 %v3126, %v3122
  %v3223 = vpack.c.b16 %v3127, %v3123
  %v3224 = vpack.c.b16 %v3128, %v3124
  %v3225 = vpack.c.b16 %v3129, %v3125
  %v3226 = vpack.c.b16 %v3134, %v3130
  %v3227 = vpack.c.b16 %v3135, %v3131
  %v3228 = vpack.c.b16 %v3136, %v3132
  %v3229 = vpack.c.b16 %v3137, %v3133
  %v3230 = vpack.c.b16 %v3142, %v3138
  %v3231 = vpack.c.b16 %v3143, %v3139
  %v3232 = vpack.c.b16 %v3144, %v3140
  %v3233 = vpack.c.b16 %v3145, %v3141
  %v3234 = vpack.c.b16 %v3150, %v3146
  %v3235 = vpack.c.b16 %v3151, %v3147
  %v3236 = vpack.c.b16 %v3152, %v3148
  %v3237 = vpack.c.b16 %v3153, %v3149
  %v3238 = vpack.c.b16 %v3158, %v3154
  %v3239 = vpack.c.b16 %v3159, %v3155
  %v3240 = vpack.c.b16 %v3160, %v3156
  %v3241 = vpack.c.b16 %v3161, %v3157
  %v3242 = vpack.c.b16 %v3166, %v3162
  %v3243 = vpack.c.b16 %v3167, %v3163
  %v3244 = vpack.c.b16 %v3168, %v3164
  %v3245 = vpack.c.b16 %v3169, %v3165
  %v3246 = vpack.c.b16 %v3174, %v3170
  %v3247 = vpack.c.b16 %v3175, %v3171
  %v3248 = vpack.c.b16 %v3176, %v3172
  %v3249 = vpack.c.b16 %v3177, %v3173
  %v3250 = vpack.c.b16 %v3182, %v3178
  %v3251 = vpack.c.b16 %v3183, %v3179
  %v3252 = vpack.c.b16 %v3184, %v3180
  %v3253 = vpack.c.b16 %v3185, %v3181
  %v3254 = vpack.c.b16 %v3190, %v3186
  %v3255 = vpack.c.b16 %v3191, %v3187
  %v3256 = vpack.c.b16 %v3192, %v3188
  %v3257 = vpack.c.b16 %v3193, %v3189
  %3322 = vmatprep.subr.bf16.mxu0 %v3195
  %3323 = vmatpush1.bf16.msra.mxu0 %v3194
  %3324 = vmatprep.subr.bf16.mxu0 %v3199
  %3325 = vmatpush1.bf16.msra.mxu0 %v3198
  %3326 = vmatprep.subr.bf16.mxu0 %v3203
  %3327 = vmatpush1.bf16.msra.mxu0 %v3202
  %3328 = vmatprep.subr.bf16.mxu0 %v3207
  %3329 = vmatpush1.bf16.msra.mxu0 %v3206
  %3330 = vmatprep.subr.bf16.mxu0 %v3211
  %3331 = vmatpush1.bf16.msra.mxu0 %v3210
  %3332 = vmatprep.subr.bf16.mxu0 %v3215
  %3333 = vmatpush1.bf16.msra.mxu0 %v3214
  %3334 = vmatprep.subr.bf16.mxu0 %v3219
  %3335 = vmatpush1.bf16.msra.mxu0 %v3218
  %3336 = vmatprep.subr.bf16.mxu0 %v3223
  %3337 = vmatpush1.bf16.msra.mxu0 %v3222
  %3338 = vmatprep.subr.bf16.mxu0 %v3227
  %3339 = vmatpush1.bf16.msra.mxu0 %v3226
  %3340 = vmatprep.subr.bf16.mxu0 %v3231
  %3341 = vmatpush1.bf16.msra.mxu0 %v3230
  %3342 = vmatprep.subr.bf16.mxu0 %v3235
  %3343 = vmatpush1.bf16.msra.mxu0 %v3234
  %3344 = vmatprep.subr.bf16.mxu0 %v3239
  %3345 = vmatpush1.bf16.msra.mxu0 %v3238
  %3346 = vmatprep.subr.bf16.mxu0 %v3243
  %3347 = vmatpush1.bf16.msra.mxu0 %v3242
  %3348 = vmatprep.subr.bf16.mxu0 %v3247
  %3349 = vmatpush1.bf16.msra.mxu0 %v3246
  %3350 = vmatprep.subr.bf16.mxu0 %v3251
  %3351 = vmatpush1.bf16.msra.mxu0 %v3250
  %3352 = vmatprep.subr.bf16.mxu0 %v3255
  %3353 = vmatpush1.bf16.msra.mxu0 %v3254
  %3354 = vmatprep.mubr.bf16.mxu0 %v2286
  %3355 = vmatmul.mubr.bf16.gmra.mrb[0].mxu0 %v2937
  %v3356 = vpop.f32.mrb[0].mxu0
  %v3357 = vadd.f32 %v1424, %v3356
  %v3358 = vpop.f32.mrb[0].mxu0
  %v3359 = vadd.f32 %v1428, %v3358
  %v3360 = vpop.f32.mrb[0].mxu0
  %v3361 = vpop.f32.mrb[0].mxu0
  %3362 = vdwg.mxu0
  %3363 = vmatprep.subr.bf16.mxu0 %v3197
  %3364 = vmatpush1.bf16.msra.mxu0 %v3196
  %3365 = vmatprep.subr.bf16.mxu0 %v3201
  %3366 = vmatpush1.bf16.msra.mxu0 %v3200
  %3367 = vmatprep.subr.bf16.mxu0 %v3205
  %3368 = vmatpush1.bf16.msra.mxu0 %v3204
  %3369 = vmatprep.subr.bf16.mxu0 %v3209
  %3370 = vmatpush1.bf16.msra.mxu0 %v3208
  %3371 = vmatprep.subr.bf16.mxu0 %v3213
  %3372 = vmatpush1.bf16.msra.mxu0 %v3212
  %3373 = vmatprep.subr.bf16.mxu0 %v3217
  %3374 = vmatpush1.bf16.msra.mxu0 %v3216
  %3375 = vmatprep.subr.bf16.mxu0 %v3221
  %3376 = vmatpush1.bf16.msra.mxu0 %v3220
  %3377 = vmatprep.subr.bf16.mxu0 %v3225
  %3378 = vmatpush1.bf16.msra.mxu0 %v3224
  %3379 = vmatprep.subr.bf16.mxu0 %v3229
  %3380 = vmatpush1.bf16.msra.mxu0 %v3228
  %3381 = vmatprep.subr.bf16.mxu0 %v3233
  %3382 = vmatpush1.bf16.msra.mxu0 %v3232
  %3383 = vmatprep.subr.bf16.mxu0 %v3237
  %3384 = vmatpush1.bf16.msra.mxu0 %v3236
  %3385 = vmatprep.subr.bf16.mxu0 %v3241
  %3386 = vmatpush1.bf16.msra.mxu0 %v3240
  %3387 = vmatprep.subr.bf16.mxu0 %v3245
  %3388 = vmatpush1.bf16.msra.mxu0 %v3244
  %3389 = vmatprep.subr.bf16.mxu0 %v3249
  %3390 = vmatpush1.bf16.msra.mxu0 %v3248
  %3391 = vmatprep.subr.bf16.mxu0 %v3253
  %3392 = vmatpush1.bf16.msra.mxu0 %v3252
  %3393 = vmatprep.subr.bf16.mxu0 %v3257
  %3394 = vmatpush1.bf16.msra.mxu0 %v3256
  %3395 = vmatprep.mubr.bf16.mxu0 %v2286
  %3396 = vmatmul.mubr.bf16.gmra.mrb[0].mxu0 %v2937
  %v3397 = vpop.f32.mrb[0].mxu0
  %v3398 = vadd.f32 %v1432, %v3397
  %v3399 = vpop.f32.mrb[0].mxu0
  %v3400 = vadd.f32 %v1436, %v3399
  %v3401 = vpop.f32.mrb[0].mxu0
  %v3402 = vpop.f32.mrb[0].mxu0
  %3403 = vdwg.mxu0
  %v3404 = vxor.u32 %v3357, 2147483648
  %v3405 = vmul.f32 %v3404, 1.442695
  %v3406 = vpow.pop %v3405
  %v3407 = vadd.f32 %v3406, 1.0
  %v3408 = vrcp.pop %v3407
  %v3409 = vmul.f32 1.0, %v3408
  %v3410 = vxor.u32 %v3359, 2147483648
  %v3411 = vmul.f32 %v3410, 1.442695
  %v3412 = vpow.pop %v3411
  %v3413 = vadd.f32 %v3412, 1.0
  %v3414 = vrcp.pop %v3413
  %v3415 = vmul.f32 1.0, %v3414
  %v3416 = vtanh.pop %v3398
  %v3417 = vxor.u32 %v3400, 2147483648
  %v3418 = vmul.f32 %v3417, 1.442695
  %v3419 = vpow.pop %v3418
  %v3420 = vadd.f32 %v3419, 1.0
  %v3421 = vrcp.pop %v3420
  %v3422 = vmul.f32 1.0, %v3421
  %v3423 = vmul.f32 %v3415, %v2279
  %v3424 = vmul.f32 %v3409, %v3416
  %v3425 = vadd.f32 %v3423, %v3424
  %v3426 = vtanh.pop %v3425
  %v3427 = vmul.f32 %v3422, %v3426
  %v3428 = vpack.c.bf16 %v3427, %v3427
  %v3429 = vld [vmem:[#allocation3] sm:$0xff]
  %v3430 = vld [vmem:[#allocation3 + $0x8] sm:$0xff]
  %v3431 = vld [vmem:[#allocation3 + $0x10] sm:$0xff]
  %v3432 = vld [vmem:[#allocation3 + $0x18] sm:$0xff]
  %v3433 = vld [vmem:[#allocation3 + $0x20] sm:$0xff]
  %v3434 = vld [vmem:[#allocation3 + $0x28] sm:$0xff]
  %v3435 = vld [vmem:[#allocation3 + $0x30] sm:$0xff]
  %v3436 = vld [vmem:[#allocation3 + $0x38] sm:$0xff]
  %v3437 = vld [vmem:[#allocation3 + $0x40] sm:$0xff]
  %v3438 = vld [vmem:[#allocation3 + $0x48] sm:$0xff]
  %v3439 = vld [vmem:[#allocation3 + $0x50] sm:$0xff]
  %v3440 = vld [vmem:[#allocation3 + $0x58] sm:$0xff]
  %v3441 = vld [vmem:[#allocation3 + $0x60] sm:$0xff]
  %v3442 = vld [vmem:[#allocation3 + $0x68] sm:$0xff]
  %v3443 = vld [vmem:[#allocation3 + $0x70] sm:$0xff]
  %v3444 = vld [vmem:[#allocation3 + $0x78] sm:$0xff]
  %v3445 = vld [vmem:[#allocation3 + $0x80] sm:$0xff]
  %v3446 = vld [vmem:[#allocation3 + $0x88] sm:$0xff]
  %v3447 = vld [vmem:[#allocation3 + $0x90] sm:$0xff]
  %v3448 = vld [vmem:[#allocation3 + $0x98] sm:$0xff]
  %v3449 = vld [vmem:[#allocation3 + $0xa0] sm:$0xff]
  %v3450 = vld [vmem:[#allocation3 + $0xa8] sm:$0xff]
  %v3451 = vld [vmem:[#allocation3 + $0xb0] sm:$0xff]
  %v3452 = vld [vmem:[#allocation3 + $0xb8] sm:$0xff]
  %v3453 = vld [vmem:[#allocation3 + $0xc0] sm:$0xff]
  %v3454 = vld [vmem:[#allocation3 + $0xc8] sm:$0xff]
  %v3455 = vld [vmem:[#allocation3 + $0xd0] sm:$0xff]
  %v3456 = vld [vmem:[#allocation3 + $0xd8] sm:$0xff]
  %v3457 = vld [vmem:[#allocation3 + $0xe0] sm:$0xff]
  %v3458 = vld [vmem:[#allocation3 + $0xe8] sm:$0xff]
  %v3459 = vld [vmem:[#allocation3 + $0xf0] sm:$0xff]
  %v3460 = vld [vmem:[#allocation3 + $0xf8] sm:$0xff]
  %v3461 = vld [vmem:[#allocation3 + $0x100] sm:$0xff]
  %v3462 = vld [vmem:[#allocation3 + $0x108] sm:$0xff]
  %v3463 = vld [vmem:[#allocation3 + $0x110] sm:$0xff]
  %v3464 = vld [vmem:[#allocation3 + $0x118] sm:$0xff]
  %v3465 = vld [vmem:[#allocation3 + $0x120] sm:$0xff]
  %v3466 = vld [vmem:[#allocation3 + $0x128] sm:$0xff]
  %v3467 = vld [vmem:[#allocation3 + $0x130] sm:$0xff]
  %v3468 = vld [vmem:[#allocation3 + $0x138] sm:$0xff]
  %v3469 = vld [vmem:[#allocation3 + $0x140] sm:$0xff]
  %v3470 = vld [vmem:[#allocation3 + $0x148] sm:$0xff]
  %v3471 = vld [vmem:[#allocation3 + $0x150] sm:$0xff]
  %v3472 = vld [vmem:[#allocation3 + $0x158] sm:$0xff]
  %v3473 = vld [vmem:[#allocation3 + $0x160] sm:$0xff]
  %v3474 = vld [vmem:[#allocation3 + $0x168] sm:$0xff]
  %v3475 = vld [vmem:[#allocation3 + $0x170] sm:$0xff]
  %v3476 = vld [vmem:[#allocation3 + $0x178] sm:$0xff]
  %v3477 = vld [vmem:[#allocation3 + $0x180] sm:$0xff]
  %v3478 = vld [vmem:[#allocation3 + $0x188] sm:$0xff]
  %v3479 = vld [vmem:[#allocation3 + $0x190] sm:$0xff]
  %v3480 = vld [vmem:[#allocation3 + $0x198] sm:$0xff]
  %v3481 = vld [vmem:[#allocation3 + $0x1a0] sm:$0xff]
  %v3482 = vld [vmem:[#allocation3 + $0x1a8] sm:$0xff]
  %v3483 = vld [vmem:[#allocation3 + $0x1b0] sm:$0xff]
  %v3484 = vld [vmem:[#allocation3 + $0x1b8] sm:$0xff]
  %v3485 = vld [vmem:[#allocation3 + $0x1c0] sm:$0xff]
  %v3486 = vld [vmem:[#allocation3 + $0x1c8] sm:$0xff]
  %v3487 = vld [vmem:[#allocation3 + $0x1d0] sm:$0xff]
  %v3488 = vld [vmem:[#allocation3 + $0x1d8] sm:$0xff]
  %v3489 = vld [vmem:[#allocation3 + $0x1e0] sm:$0xff]
  %v3490 = vld [vmem:[#allocation3 + $0x1e8] sm:$0xff]
  %v3491 = vld [vmem:[#allocation3 + $0x1f0] sm:$0xff]
  %v3492 = vld [vmem:[#allocation3 + $0x1f8] sm:$0xff]
  %3493 = vmatprep.subr.bf16.mxu0 %v3430
  %3494 = vmatpush1.bf16.msra.mxu0 %v3429
  %3495 = vmatprep.subr.bf16.mxu0 %v3434
  %3496 = vmatpush1.bf16.msra.mxu0 %v3433
  %3497 = vmatprep.subr.bf16.mxu0 %v3438
  %3498 = vmatpush1.bf16.msra.mxu0 %v3437
  %3499 = vmatprep.subr.bf16.mxu0 %v3442
  %3500 = vmatpush1.bf16.msra.mxu0 %v3441
  %3501 = vmatprep.subr.bf16.mxu0 %v3446
  %3502 = vmatpush1.bf16.msra.mxu0 %v3445
  %3503 = vmatprep.subr.bf16.mxu0 %v3450
  %3504 = vmatpush1.bf16.msra.mxu0 %v3449
  %3505 = vmatprep.subr.bf16.mxu0 %v3454
  %3506 = vmatpush1.bf16.msra.mxu0 %v3453
  %3507 = vmatprep.subr.bf16.mxu0 %v3458
  %3508 = vmatpush1.bf16.msra.mxu0 %v3457
  %3509 = vmatprep.subr.bf16.mxu0 %v3462
  %3510 = vmatpush1.bf16.msra.mxu0 %v3461
  %3511 = vmatprep.subr.bf16.mxu0 %v3466
  %3512 = vmatpush1.bf16.msra.mxu0 %v3465
  %3513 = vmatprep.subr.bf16.mxu0 %v3470
  %3514 = vmatpush1.bf16.msra.mxu0 %v3469
  %3515 = vmatprep.subr.bf16.mxu0 %v3474
  %3516 = vmatpush1.bf16.msra.mxu0 %v3473
  %3517 = vmatprep.subr.bf16.mxu0 %v3478
  %3518 = vmatpush1.bf16.msra.mxu0 %v3477
  %3519 = vmatprep.subr.bf16.mxu0 %v3482
  %3520 = vmatpush1.bf16.msra.mxu0 %v3481
  %3521 = vmatprep.subr.bf16.mxu0 %v3486
  %3522 = vmatpush1.bf16.msra.mxu0 %v3485
  %3523 = vmatprep.subr.bf16.mxu0 %v3490
  %3524 = vmatpush1.bf16.msra.mxu0 %v3489
  %3525 = vmatprep.mubr.bf16.mxu0 %v2459
  %3526 = vmatmul.mubr.bf16.gmra.mrb[0].mxu0 %v3428
  %v3527 = vpop.f32.mrb[0].mxu0
  %v3528 = vadd.f32 %v1446, %v3527
  %v3529 = vpop.f32.mrb[0].mxu0
  %v3530 = vadd.f32 %v1450, %v3529
  %v3531 = vpop.f32.mrb[0].mxu0
  %v3532 = vpop.f32.mrb[0].mxu0
  %3533 = vdwg.mxu0
  %3534 = vmatprep.subr.bf16.mxu0 %v3432
  %3535 = vmatpush1.bf16.msra.mxu0 %v3431
  %3536 = vmatprep.subr.bf16.mxu0 %v3436
  %3537 = vmatpush1.bf16.msra.mxu0 %v3435
  %3538 = vmatprep.subr.bf16.mxu0 %v3440
  %3539 = vmatpush1.bf16.msra.mxu0 %v3439
  %3540 = vmatprep.subr.bf16.mxu0 %v3444
  %3541 = vmatpush1.bf16.msra.mxu0 %v3443
  %3542 = vmatprep.subr.bf16.mxu0 %v3448
  %3543 = vmatpush1.bf16.msra.mxu0 %v3447
  %3544 = vmatprep.subr.bf16.mxu0 %v3452
  %3545 = vmatpush1.bf16.msra.mxu0 %v3451
  %3546 = vmatprep.subr.bf16.mxu0 %v3456
  %3547 = vmatpush1.bf16.msra.mxu0 %v3455
  %3548 = vmatprep.subr.bf16.mxu0 %v3460
  %3549 = vmatpush1.bf16.msra.mxu0 %v3459
  %3550 = vmatprep.subr.bf16.mxu0 %v3464
  %3551 = vmatpush1.bf16.msra.mxu0 %v3463
  %3552 = vmatprep.subr.bf16.mxu0 %v3468
  %3553 = vmatpush1.bf16.msra.mxu0 %v3467
  %3554 = vmatprep.subr.bf16.mxu0 %v3472
  %3555 = vmatpush1.bf16.msra.mxu0 %v3471
  %3556 = vmatprep.subr.bf16.mxu0 %v3476
  %3557 = vmatpush1.bf16.msra.mxu0 %v3475
  %3558 = vmatprep.subr.bf16.mxu0 %v3480
  %3559 = vmatpush1.bf16.msra.mxu0 %v3479
  %3560 = vmatprep.subr.bf16.mxu0 %v3484
  %3561 = vmatpush1.bf16.msra.mxu0 %v3483
  %3562 = vmatprep.subr.bf16.mxu0 %v3488
  %3563 = vmatpush1.bf16.msra.mxu0 %v3487
  %3564 = vmatprep.subr.bf16.mxu0 %v3492
  %3565 = vmatpush1.bf16.msra.mxu0 %v3491
  %3566 = vmatprep.mubr.bf16.mxu0 %v2459
  %3567 = vmatmul.mubr.bf16.gmra.mrb[0].mxu0 %v3428
  %v3568 = vpop.f32.mrb[0].mxu0
  %v3569 = vadd.f32 %v1454, %v3568
  %v3570 = vpop.f32.mrb[0].mxu0
  %v3571 = vadd.f32 %v1458, %v3570
  %v3572 = vpop.f32.mrb[0].mxu0
  %v3573 = vpop.f32.mrb[0].mxu0
  %3574 = vdwg.mxu0
  %v3575 = vxor.u32 %v3528, 2147483648
  %v3576 = vmul.f32 %v3575, 1.442695
  %v3577 = vpow.pop %v3576
  %v3578 = vadd.f32 %v3577, 1.0
  %v3579 = vrcp.pop %v3578
  %v3580 = vmul.f32 1.0, %v3579
  %v3581 = vxor.u32 %v3530, 2147483648
  %v3582 = vmul.f32 %v3581, 1.442695
  %v3583 = vpow.pop %v3582
  %v3584 = vadd.f32 %v3583, 1.0
  %v3585 = vrcp.pop %v3584
  %v3586 = vmul.f32 1.0, %v3585
  %v3587 = vtanh.pop %v3569
  %v3588 = vxor.u32 %v3571, 2147483648
  %v3589 = vmul.f32 %v3588, 1.442695
  %v3590 = vpow.pop %v3589
  %v3591 = vadd.f32 %v3590, 1.0
  %v3592 = vrcp.pop %v3591
  %v3593 = vmul.f32 1.0, %v3592
  %v3594 = vmul.f32 %v3586, %v2454
  %v3595 = vmul.f32 %v3580, %v3587
  %v3596 = vadd.f32 %v3594, %v3595
  %v3597 = vtanh.pop %v3596
  %v3598 = vmul.f32 %v3593, %v3597
  %v3599 = vpack.c.bf16 %v3598, %v3598
  %v3600 = vpack.c.bf16 %v2629, %v2629
  %v3601 = vld [vmem:[#allocation4] sm:$0xff]
  %v3602 = vld [vmem:[#allocation4 + $0x8] sm:$0xff]
  %v3603 = vld [vmem:[#allocation4 + $0x10] sm:$0xff]
  %v3604 = vld [vmem:[#allocation4 + $0x18] sm:$0xff]
  %v3605 = vld [vmem:[#allocation4 + $0x20] sm:$0xff]
  %v3606 = vld [vmem:[#allocation4 + $0x28] sm:$0xff]
  %v3607 = vld [vmem:[#allocation4 + $0x30] sm:$0xff]
  %v3608 = vld [vmem:[#allocation4 + $0x38] sm:$0xff]
  %v3609 = vld [vmem:[#allocation4 + $0x40] sm:$0xff]
  %v3610 = vld [vmem:[#allocation4 + $0x48] sm:$0xff]
  %v3611 = vld [vmem:[#allocation4 + $0x50] sm:$0xff]
  %v3612 = vld [vmem:[#allocation4 + $0x58] sm:$0xff]
  %v3613 = vld [vmem:[#allocation4 + $0x60] sm:$0xff]
  %v3614 = vld [vmem:[#allocation4 + $0x68] sm:$0xff]
  %v3615 = vld [vmem:[#allocation4 + $0x70] sm:$0xff]
  %v3616 = vld [vmem:[#allocation4 + $0x78] sm:$0xff]
  %v3617 = vld [vmem:[#allocation4 + $0x80] sm:$0xff]
  %v3618 = vld [vmem:[#allocation4 + $0x88] sm:$0xff]
  %v3619 = vld [vmem:[#allocation4 + $0x90] sm:$0xff]
  %v3620 = vld [vmem:[#allocation4 + $0x98] sm:$0xff]
  %v3621 = vld [vmem:[#allocation4 + $0xa0] sm:$0xff]
  %v3622 = vld [vmem:[#allocation4 + $0xa8] sm:$0xff]
  %v3623 = vld [vmem:[#allocation4 + $0xb0] sm:$0xff]
  %v3624 = vld [vmem:[#allocation4 + $0xb8] sm:$0xff]
  %v3625 = vld [vmem:[#allocation4 + $0xc0] sm:$0xff]
  %v3626 = vld [vmem:[#allocation4 + $0xc8] sm:$0xff]
  %v3627 = vld [vmem:[#allocation4 + $0xd0] sm:$0xff]
  %v3628 = vld [vmem:[#allocation4 + $0xd8] sm:$0xff]
  %v3629 = vld [vmem:[#allocation4 + $0xe0] sm:$0xff]
  %v3630 = vld [vmem:[#allocation4 + $0xe8] sm:$0xff]
  %v3631 = vld [vmem:[#allocation4 + $0xf0] sm:$0xff]
  %v3632 = vld [vmem:[#allocation4 + $0xf8] sm:$0xff]
  %v3633 = vld [vmem:[#allocation4 + $0x100] sm:$0xff]
  %v3634 = vld [vmem:[#allocation4 + $0x108] sm:$0xff]
  %v3635 = vld [vmem:[#allocation4 + $0x110] sm:$0xff]
  %v3636 = vld [vmem:[#allocation4 + $0x118] sm:$0xff]
  %v3637 = vld [vmem:[#allocation4 + $0x120] sm:$0xff]
  %v3638 = vld [vmem:[#allocation4 + $0x128] sm:$0xff]
  %v3639 = vld [vmem:[#allocation4 + $0x130] sm:$0xff]
  %v3640 = vld [vmem:[#allocation4 + $0x138] sm:$0xff]
  %v3641 = vld [vmem:[#allocation4 + $0x140] sm:$0xff]
  %v3642 = vld [vmem:[#allocation4 + $0x148] sm:$0xff]
  %v3643 = vld [vmem:[#allocation4 + $0x150] sm:$0xff]
  %v3644 = vld [vmem:[#allocation4 + $0x158] sm:$0xff]
  %v3645 = vld [vmem:[#allocation4 + $0x160] sm:$0xff]
  %v3646 = vld [vmem:[#allocation4 + $0x168] sm:$0xff]
  %v3647 = vld [vmem:[#allocation4 + $0x170] sm:$0xff]
  %v3648 = vld [vmem:[#allocation4 + $0x178] sm:$0xff]
  %v3649 = vld [vmem:[#allocation4 + $0x180] sm:$0xff]
  %v3650 = vld [vmem:[#allocation4 + $0x188] sm:$0xff]
  %v3651 = vld [vmem:[#allocation4 + $0x190] sm:$0xff]
  %v3652 = vld [vmem:[#allocation4 + $0x198] sm:$0xff]
  %v3653 = vld [vmem:[#allocation4 + $0x1a0] sm:$0xff]
  %v3654 = vld [vmem:[#allocation4 + $0x1a8] sm:$0xff]
  %v3655 = vld [vmem:[#allocation4 + $0x1b0] sm:$0xff]
  %v3656 = vld [vmem:[#allocation4 + $0x1b8] sm:$0xff]
  %v3657 = vld [vmem:[#allocation4 + $0x1c0] sm:$0xff]
  %v3658 = vld [vmem:[#allocation4 + $0x1c8] sm:$0xff]
  %v3659 = vld [vmem:[#allocation4 + $0x1d0] sm:$0xff]
  %v3660 = vld [vmem:[#allocation4 + $0x1d8] sm:$0xff]
  %v3661 = vld [vmem:[#allocation4 + $0x1e0] sm:$0xff]
  %v3662 = vld [vmem:[#allocation4 + $0x1e8] sm:$0xff]
  %v3663 = vld [vmem:[#allocation4 + $0x1f0] sm:$0xff]
  %v3664 = vld [vmem:[#allocation4 + $0x1f8] sm:$0xff]
  %3665 = vmatprep.subr.bf16.mxu0 %v3602
  %3666 = vmatpush1.bf16.msra.mxu0 %v3601
  %3667 = vmatprep.subr.bf16.mxu0 %v3606
  %3668 = vmatpush1.bf16.msra.mxu0 %v3605
  %3669 = vmatprep.subr.bf16.mxu0 %v3610
  %3670 = vmatpush1.bf16.msra.mxu0 %v3609
  %3671 = vmatprep.subr.bf16.mxu0 %v3614
  %3672 = vmatpush1.bf16.msra.mxu0 %v3613
  %3673 = vmatprep.subr.bf16.mxu0 %v3618
  %3674 = vmatpush1.bf16.msra.mxu0 %v3617
  %3675 = vmatprep.subr.bf16.mxu0 %v3622
  %3676 = vmatpush1.bf16.msra.mxu0 %v3621
  %3677 = vmatprep.subr.bf16.mxu0 %v3626
  %3678 = vmatpush1.bf16.msra.mxu0 %v3625
  %3679 = vmatprep.subr.bf16.mxu0 %v3630
  %3680 = vmatpush1.bf16.msra.mxu0 %v3629
  %3681 = vmatprep.subr.bf16.mxu0 %v3634
  %3682 = vmatpush1.bf16.msra.mxu0 %v3633
  %3683 = vmatprep.subr.bf16.mxu0 %v3638
  %3684 = vmatpush1.bf16.msra.mxu0 %v3637
  %3685 = vmatprep.subr.bf16.mxu0 %v3642
  %3686 = vmatpush1.bf16.msra.mxu0 %v3641
  %3687 = vmatprep.subr.bf16.mxu0 %v3646
  %3688 = vmatpush1.bf16.msra.mxu0 %v3645
  %3689 = vmatprep.subr.bf16.mxu0 %v3650
  %3690 = vmatpush1.bf16.msra.mxu0 %v3649
  %3691 = vmatprep.subr.bf16.mxu0 %v3654
  %3692 = vmatpush1.bf16.msra.mxu0 %v3653
  %3693 = vmatprep.subr.bf16.mxu0 %v3658
  %3694 = vmatpush1.bf16.msra.mxu0 %v3657
  %3695 = vmatprep.subr.bf16.mxu0 %v3662
  %3696 = vmatpush1.bf16.msra.mxu0 %v3661
  %3697 = vmatprep.mubr.bf16.mxu0 %v3600
  %3698 = vmatmul.mubr.bf16.gmra.mrb[0].mxu0 %v3599
  %v3699 = vpop.f32.mrb[0].mxu0
  %v3700 = vadd.f32 %v1468, %v3699
  %v3701 = vpop.f32.mrb[0].mxu0
  %v3702 = vadd.f32 %v1472, %v3701
  %v3703 = vpop.f32.mrb[0].mxu0
  %v3704 = vpop.f32.mrb[0].mxu0
  %3705 = vdwg.mxu0
  %3706 = vmatprep.subr.bf16.mxu0 %v3604
  %3707 = vmatpush1.bf16.msra.mxu0 %v3603
  %3708 = vmatprep.subr.bf16.mxu0 %v3608
  %3709 = vmatpush1.bf16.msra.mxu0 %v3607
  %3710 = vmatprep.subr.bf16.mxu0 %v3612
  %3711 = vmatpush1.bf16.msra.mxu0 %v3611
  %3712 = vmatprep.subr.bf16.mxu0 %v3616
  %3713 = vmatpush1.bf16.msra.mxu0 %v3615
  %3714 = vmatprep.subr.bf16.mxu0 %v3620
  %3715 = vmatpush1.bf16.msra.mxu0 %v3619
  %3716 = vmatprep.subr.bf16.mxu0 %v3624
  %3717 = vmatpush1.bf16.msra.mxu0 %v3623
  %3718 = vmatprep.subr.bf16.mxu0 %v3628
  %3719 = vmatpush1.bf16.msra.mxu0 %v3627
  %3720 = vmatprep.subr.bf16.mxu0 %v3632
  %3721 = vmatpush1.bf16.msra.mxu0 %v3631
  %3722 = vmatprep.subr.bf16.mxu0 %v3636
  %3723 = vmatpush1.bf16.msra.mxu0 %v3635
  %3724 = vmatprep.subr.bf16.mxu0 %v3640
  %3725 = vmatpush1.bf16.msra.mxu0 %v3639
  %3726 = vmatprep.subr.bf16.mxu0 %v3644
  %3727 = vmatpush1.bf16.msra.mxu0 %v3643
  %3728 = vmatprep.subr.bf16.mxu0 %v3648
  %3729 = vmatpush1.bf16.msra.mxu0 %v3647
  %3730 = vmatprep.subr.bf16.mxu0 %v3652
  %3731 = vmatpush1.bf16.msra.mxu0 %v3651
  %3732 = vmatprep.subr.bf16.mxu0 %v3656
  %3733 = vmatpush1.bf16.msra.mxu0 %v3655
  %3734 = vmatprep.subr.bf16.mxu0 %v3660
  %3735 = vmatpush1.bf16.msra.mxu0 %v3659
  %3736 = vmatprep.subr.bf16.mxu0 %v3664
  %3737 = vmatpush1.bf16.msra.mxu0 %v3663
  %3738 = vmatprep.mubr.bf16.mxu0 %v3600
  %3739 = vmatmul.mubr.bf16.gmra.mrb[0].mxu0 %v3599
  %v3740 = vpop.f32.mrb[0].mxu0
  %v3741 = vadd.f32 %v1476, %v3740
  %v3742 = vpop.f32.mrb[0].mxu0
  %v3743 = vadd.f32 %v1480, %v3742
  %v3744 = vpop.f32.mrb[0].mxu0
  %v3745 = vpop.f32.mrb[0].mxu0
  %3746 = vdwg.mxu0
  %v3747 = vxor.u32 %v3700, 2147483648
  %v3748 = vmul.f32 %v3747, 1.442695
  %v3749 = vpow.pop %v3748
  %v3750 = vadd.f32 %v3749, 1.0
  %v3751 = vrcp.pop %v3750
  %v3752 = vmul.f32 1.0, %v3751
  %v3753 = vxor.u32 %v3702, 2147483648
  %v3754 = vmul.f32 %v3753, 1.442695
  %v3755 = vpow.pop %v3754
  %v3756 = vadd.f32 %v3755, 1.0
  %v3757 = vrcp.pop %v3756
  %v3758 = vmul.f32 1.0, %v3757
  %v3759 = vtanh.pop %v3741
  %v3760 = vxor.u32 %v3743, 2147483648
  %v3761 = vmul.f32 %v3760, 1.442695
  %v3762 = vpow.pop %v3761
  %v3763 = vadd.f32 %v3762, 1.0
  %v3764 = vrcp.pop %v3763
  %v3765 = vmul.f32 1.0, %v3764
  %v3766 = vmul.f32 %v3758, %v2627
  %v3767 = vmul.f32 %v3752, %v3759
  %v3768 = vadd.f32 %v3766, %v3767
  %v3769 = vtanh.pop %v3768
  %v3770 = vmul.f32 %v3765, %v3769
  %3771 = vst [vmem:[%s10 + $0x8] sm:$0xff] %v3770
  %v3772 = vld [vmem:[#allocation2 + $0x40] sm:$0xff]
  %v3773 = vld [vmem:[#allocation2 + $0x48] sm:$0xff]
  %v3774 = vld [vmem:[#allocation2 + $0x50] sm:$0xff]
  %v3775 = vld [vmem:[#allocation2 + $0x58] sm:$0xff]
  %v3776 = vld [vmem:[%s3] sm:$0xff]
  %v3777 = vld [vmem:[%s3 + $0x8] sm:$0xff]
  %v3778 = vld [vmem:[%s3 + $0x10] sm:$0xff]
  %v3779 = vld [vmem:[%s3 + $0x18] sm:$0xff]
  %v3780 = vld [vmem:[%s3 + $0x20] sm:$0xff]
  %v3781 = vld [vmem:[%s3 + $0x28] sm:$0xff]
  %v3782 = vld [vmem:[%s3 + $0x30] sm:$0xff]
  %v3783 = vld [vmem:[%s3 + $0x38] sm:$0xff]
  %v3784 = vld [vmem:[%s3 + $0x40] sm:$0xff]
  %v3785 = vld [vmem:[%s3 + $0x48] sm:$0xff]
  %v3786 = vld [vmem:[%s3 + $0x50] sm:$0xff]
  %v3787 = vld [vmem:[%s3 + $0x58] sm:$0xff]
  %v3788 = vld [vmem:[%s3 + $0x60] sm:$0xff]
  %v3789 = vld [vmem:[%s3 + $0x68] sm:$0xff]
  %v3790 = vld [vmem:[%s3 + $0x70] sm:$0xff]
  %v3791 = vld [vmem:[%s3 + $0x78] sm:$0xff]
  %v3792 = vld [vmem:[%s3 + $0x80] sm:$0xff]
  %v3793 = vld [vmem:[%s3 + $0x88] sm:$0xff]
  %v3794 = vld [vmem:[%s3 + $0x90] sm:$0xff]
  %v3795 = vld [vmem:[%s3 + $0x98] sm:$0xff]
  %v3796 = vld [vmem:[%s3 + $0xa0] sm:$0xff]
  %v3797 = vld [vmem:[%s3 + $0xa8] sm:$0xff]
  %v3798 = vld [vmem:[%s3 + $0xb0] sm:$0xff]
  %v3799 = vld [vmem:[%s3 + $0xb8] sm:$0xff]
  %v3800 = vld [vmem:[%s3 + $0xc0] sm:$0xff]
  %v3801 = vld [vmem:[%s3 + $0xc8] sm:$0xff]
  %v3802 = vld [vmem:[%s3 + $0xd0] sm:$0xff]
  %v3803 = vld [vmem:[%s3 + $0xd8] sm:$0xff]
  %v3804 = vld [vmem:[%s3 + $0xe0] sm:$0xff]
  %v3805 = vld [vmem:[%s3 + $0xe8] sm:$0xff]
  %v3806 = vld [vmem:[%s3 + $0xf0] sm:$0xff]
  %v3807 = vld [vmem:[%s3 + $0xf8] sm:$0xff]
  %v3840 = vunpack.c.l.b16 %v3776
  %v3841 = vunpack.c.h.b16 %v3776
  %v3842 = vunpack.c.l.b16 %v3777
  %v3843 = vunpack.c.h.b16 %v3777
  %v3844 = vunpack.c.l.b16 %v3778
  %v3845 = vunpack.c.h.b16 %v3778
  %v3846 = vunpack.c.l.b16 %v3779
  %v3847 = vunpack.c.h.b16 %v3779
  %v3848 = vunpack.c.l.b16 %v3780
  %v3849 = vunpack.c.h.b16 %v3780
  %v3850 = vunpack.c.l.b16 %v3781
  %v3851 = vunpack.c.h.b16 %v3781
  %v3852 = vunpack.c.l.b16 %v3782
  %v3853 = vunpack.c.h.b16 %v3782
  %v3854 = vunpack.c.l.b16 %v3783
  %v3855 = vunpack.c.h.b16 %v3783
  %v3856 = vunpack.c.l.b16 %v3784
  %v3857 = vunpack.c.h.b16 %v3784
  %v3858 = vunpack.c.l.b16 %v3785
  %v3859 = vunpack.c.h.b16 %v3785
  %v3860 = vunpack.c.l.b16 %v3786
  %v3861 = vunpack.c.h.b16 %v3786
  %v3862 = vunpack.c.l.b16 %v3787
  %v3863 = vunpack.c.h.b16 %v3787
  %v3864 = vunpack.c.l.b16 %v3788
  %v3865 = vunpack.c.h.b16 %v3788
  %v3866 = vunpack.c.l.b16 %v3789
  %v3867 = vunpack.c.h.b16 %v3789
  %v3868 = vunpack.c.l.b16 %v3790
  %v3869 = vunpack.c.h.b16 %v3790
  %v3870 = vunpack.c.l.b16 %v3791
  %v3871 = vunpack.c.h.b16 %v3791
  %v3872 = vunpack.c.l.b16 %v3792
  %v3873 = vunpack.c.h.b16 %v3792
  %v3874 = vunpack.c.l.b16 %v3793
  %v3875 = vunpack.c.h.b16 %v3793
  %v3876 = vunpack.c.l.b16 %v3794
  %v3877 = vunpack.c.h.b16 %v3794
  %v3878 = vunpack.c.l.b16 %v3795
  %v3879 = vunpack.c.h.b16 %v3795
  %v3880 = vunpack.c.l.b16 %v3796
  %v3881 = vunpack.c.h.b16 %v3796
  %v3882 = vunpack.c.l.b16 %v3797
  %v3883 = vunpack.c.h.b16 %v3797
  %v3884 = vunpack.c.l.b16 %v3798
  %v3885 = vunpack.c.h.b16 %v3798
  %v3886 = vunpack.c.l.b16 %v3799
  %v3887 = vunpack.c.h.b16 %v3799
  %v3888 = vunpack.c.l.b16 %v3800
  %v3889 = vunpack.c.h.b16 %v3800
  %v3890 = vunpack.c.l.b16 %v3801
  %v3891 = vunpack.c.h.b16 %v3801
  %v3892 = vunpack.c.l.b16 %v3802
  %v3893 = vunpack.c.h.b16 %v3802
  %v3894 = vunpack.c.l.b16 %v3803
  %v3895 = vunpack.c.h.b16 %v3803
  %v3896 = vunpack.c.l.b16 %v3804
  %v3897 = vunpack.c.h.b16 %v3804
  %v3898 = vunpack.c.l.b16 %v3805
  %v3899 = vunpack.c.h.b16 %v3805
  %v3900 = vunpack.c.l.b16 %v3806
  %v3901 = vunpack.c.h.b16 %v3806
  %v3902 = vunpack.c.l.b16 %v3807
  %v3903 = vunpack.c.h.b16 %v3807
  %v3904 = vpack.c.b16 %v3844, %v3840
  %v3905 = vpack.c.b16 %v3845, %v3841
  %v3906 = vpack.c.b16 %v3846, %v3842
  %v3907 = vpack.c.b16 %v3847, %v3843
  %v3908 = vpack.c.b16 %v3852, %v3848
  %v3909 = vpack.c.b16 %v3853, %v3849
  %v3910 = vpack.c.b16 %v3854, %v3850
  %v3911 = vpack.c.b16 %v3855, %v3851
  %v3912 = vpack.c.b16 %v3860, %v3856
  %v3913 = vpack.c.b16 %v3861, %v3857
  %v3914 = vpack.c.b16 %v3862, %v3858
  %v3915 = vpack.c.b16 %v3863, %v3859
  %v3916 = vpack.c.b16 %v3868, %v3864
  %v3917 = vpack.c.b16 %v3869, %v3865
  %v3918 = vpack.c.b16 %v3870, %v3866
  %v3919 = vpack.c.b16 %v3871, %v3867
  %v3920 = vpack.c.b16 %v3876, %v3872
  %v3921 = vpack.c.b16 %v3877, %v3873
  %v3922 = vpack.c.b16 %v3878, %v3874
  %v3923 = vpack.c.b16 %v3879, %v3875
  %v3924 = vpack.c.b16 %v3884, %v3880
  %v3925 = vpack.c.b16 %v3885, %v3881
  %v3926 = vpack.c.b16 %v3886, %v3882
  %v3927 = vpack.c.b16 %v3887, %v3883
  %v3928 = vpack.c.b16 %v3892, %v3888
  %v3929 = vpack.c.b16 %v3893, %v3889
  %v3930 = vpack.c.b16 %v3894, %v3890
  %v3931 = vpack.c.b16 %v3895, %v3891
  %v3932 = vpack.c.b16 %v3900, %v3896
  %v3933 = vpack.c.b16 %v3901, %v3897
  %v3934 = vpack.c.b16 %v3902, %v3898
  %v3935 = vpack.c.b16 %v3903, %v3899
  %3968 = vmatprep.subr.bf16.mxu0 %v3905
  %3969 = vmatpush1.bf16.msra.mxu0 %v3904
  %3970 = vmatprep.subr.bf16.mxu0 %v3909
  %3971 = vmatpush1.bf16.msra.mxu0 %v3908
  %3972 = vmatprep.subr.bf16.mxu0 %v3913
  %3973 = vmatpush1.bf16.msra.mxu0 %v3912
  %3974 = vmatprep.subr.bf16.mxu0 %v3917
  %3975 = vmatpush1.bf16.msra.mxu0 %v3916
  %3976 = vmatprep.subr.bf16.mxu0 %v3921
  %3977 = vmatpush1.bf16.msra.mxu0 %v3920
  %3978 = vmatprep.subr.bf16.mxu0 %v3925
  %3979 = vmatpush1.bf16.msra.mxu0 %v3924
  %3980 = vmatprep.subr.bf16.mxu0 %v3929
  %3981 = vmatpush1.bf16.msra.mxu0 %v3928
  %3982 = vmatprep.subr.bf16.mxu0 %v3933
  %3983 = vmatpush1.bf16.msra.mxu0 %v3932
  %3984 = vmatprep.subr.bf16.mxu0 0
  %3985 = vmatpush1.bf16.msra.mxu0 0
  %3986 = vmatprep.subr.bf16.mxu0 0
  %3987 = vmatpush1.bf16.msra.mxu0 0
  %3988 = vmatprep.subr.bf16.mxu0 0
  %3989 = vmatpush1.bf16.msra.mxu0 0
  %3990 = vmatprep.subr.bf16.mxu0 0
  %3991 = vmatpush1.bf16.msra.mxu0 0
  %3992 = vmatprep.subr.bf16.mxu0 0
  %3993 = vmatpush1.bf16.msra.mxu0 0
  %3994 = vmatprep.subr.bf16.mxu0 0
  %3995 = vmatpush1.bf16.msra.mxu0 0
  %3996 = vmatprep.subr.bf16.mxu0 0
  %3997 = vmatpush1.bf16.msra.mxu0 0
  %3998 = vmatprep.subr.bf16.mxu0 0
  %3999 = vmatpush1.bf16.msra.mxu0 0
  %4000 = vmatprep.mubr.bf16.mxu0 0
  %4001 = vmatmul.mubr.bf16.gmra.mrb[0].mxu0 %v2937
  %v4002 = vpop.f32.mrb[0].mxu0
  %v4003 = vadd.f32 0.0, %v4002
  %v4004 = vpop.f32.mrb[0].mxu0
  %v4005 = vadd.f32 0.0, %v4004
  %v4006 = vpop.f32.mrb[0].mxu0
  %v4007 = vpop.f32.mrb[0].mxu0
  %4008 = vdwg.mxu0
  %4009 = vmatprep.subr.bf16.mxu0 %v3907
  %4010 = vmatpush1.bf16.msra.mxu0 %v3906
  %4011 = vmatprep.subr.bf16.mxu0 %v3911
  %4012 = vmatpush1.bf16.msra.mxu0 %v3910
  %4013 = vmatprep.subr.bf16.mxu0 %v3915
  %4014 = vmatpush1.bf16.msra.mxu0 %v3914
  %4015 = vmatprep.subr.bf16.mxu0 %v3919
  %4016 = vmatpush1.bf16.msra.mxu0 %v3918
  %4017 = vmatprep.subr.bf16.mxu0 %v3923
  %4018 = vmatpush1.bf16.msra.mxu0 %v3922
  %4019 = vmatprep.subr.bf16.mxu0 %v3927
  %4020 = vmatpush1.bf16.msra.mxu0 %v3926
  %4021 = vmatprep.subr.bf16.mxu0 %v3931
  %4022 = vmatpush1.bf16.msra.mxu0 %v3930
  %4023 = vmatprep.subr.bf16.mxu0 %v3935
  %4024 = vmatpush1.bf16.msra.mxu0 %v3934
  %4025 = vmatprep.subr.bf16.mxu0 0
  %4026 = vmatpush1.bf16.msra.mxu0 0
  %4027 = vmatprep.subr.bf16.mxu0 0
  %4028 = vmatpush1.bf16.msra.mxu0 0
  %4029 = vmatprep.subr.bf16.mxu0 0
  %4030 = vmatpush1.bf16.msra.mxu0 0
  %4031 = vmatprep.subr.bf16.mxu0 0
  %4032 = vmatpush1.bf16.msra.mxu0 0
  %4033 = vmatprep.subr.bf16.mxu0 0
  %4034 = vmatpush1.bf16.msra.mxu0 0
  %4035 = vmatprep.subr.bf16.mxu0 0
  %4036 = vmatpush1.bf16.msra.mxu0 0
  %4037 = vmatprep.subr.bf16.mxu0 0
  %4038 = vmatpush1.bf16.msra.mxu0 0
  %4039 = vmatprep.subr.bf16.mxu0 0
  %4040 = vmatpush1.bf16.msra.mxu0 0
  %4041 = vmatprep.mubr.bf16.mxu0 0
  %4042 = vmatmul.mubr.bf16.gmra.mrb[0].mxu0 %v2937
  %v4043 = vpop.f32.mrb[0].mxu0
  %v4044 = vadd.f32 0.0, %v4043
  %v4045 = vpop.f32.mrb[0].mxu0
  %v4046 = vadd.f32 0.0, %v4045
  %v4047 = vpop.f32.mrb[0].mxu0
  %v4048 = vpop.f32.mrb[0].mxu0
  %4049 = vdwg.mxu0
  %v4050 = vadd.f32 %v3772, %v4003
  %v4051 = vadd.f32 %v3773, %v4005
  %v4052 = vadd.f32 %v3774, %v4044
  %v4053 = vadd.f32 %v3775, %v4046
  %v4054 = vxor.u32 %v4050, 2147483648
  %v4055 = vmul.f32 %v4054, 1.442695
  %v4056 = vpow.pop %v4055
  %v4057 = vadd.f32 %v4056, 1.0
  %v4058 = vrcp.pop %v4057
  %v4059 = vmul.f32 1.0, %v4058
  %v4060 = vxor.u32 %v4051, 2147483648
  %v4061 = vmul.f32 %v4060, 1.442695
  %v4062 = vpow.pop %v4061
  %v4063 = vadd.f32 %v4062, 1.0
  %v4064 = vrcp.pop %v4063
  %v4065 = vmul.f32 1.0, %v4064
  %v4066 = vtanh.pop %v4052
  %v4067 = vxor.u32 %v4053, 2147483648
  %v4068 = vmul.f32 %v4067, 1.442695
  %v4069 = vpow.pop %v4068
  %v4070 = vadd.f32 %v4069, 1.0
  %v4071 = vrcp.pop %v4070
  %v4072 = vmul.f32 1.0, %v4071
  %v4073 = vmul.f32 %v4065, %v2934
  %v4074 = vmul.f32 %v4059, %v4066
  %v4075 = vadd.f32 %v4073, %v4074
  %v4076 = vtanh.pop %v4075
  %v4077 = vmul.f32 %v4072, %v4076
  %v4078 = vpack.c.bf16 %v4077, %v4077
  %v4079 = vld [vmem:[%s4] sm:$0xff]
  %v4080 = vld [vmem:[%s4 + $0x8] sm:$0xff]
  %v4081 = vld [vmem:[%s4 + $0x10] sm:$0xff]
  %v4082 = vld [vmem:[%s4 + $0x18] sm:$0xff]
  %v4083 = vld [vmem:[%s4 + $0x20] sm:$0xff]
  %v4084 = vld [vmem:[%s4 + $0x28] sm:$0xff]
  %v4085 = vld [vmem:[%s4 + $0x30] sm:$0xff]
  %v4086 = vld [vmem:[%s4 + $0x38] sm:$0xff]
  %v4087 = vld [vmem:[%s4 + $0x40] sm:$0xff]
  %v4088 = vld [vmem:[%s4 + $0x48] sm:$0xff]
  %v4089 = vld [vmem:[%s4 + $0x50] sm:$0xff]
  %v4090 = vld [vmem:[%s4 + $0x58] sm:$0xff]
  %v4091 = vld [vmem:[%s4 + $0x60] sm:$0xff]
  %v4092 = vld [vmem:[%s4 + $0x68] sm:$0xff]
  %v4093 = vld [vmem:[%s4 + $0x70] sm:$0xff]
  %v4094 = vld [vmem:[%s4 + $0x78] sm:$0xff]
  %v4095 = vld [vmem:[%s4 + $0x80] sm:$0xff]
  %v4096 = vld [vmem:[%s4 + $0x88] sm:$0xff]
  %v4097 = vld [vmem:[%s4 + $0x90] sm:$0xff]
  %v4098 = vld [vmem:[%s4 + $0x98] sm:$0xff]
  %v4099 = vld [vmem:[%s4 + $0xa0] sm:$0xff]
  %v4100 = vld [vmem:[%s4 + $0xa8] sm:$0xff]
  %v4101 = vld [vmem:[%s4 + $0xb0] sm:$0xff]
  %v4102 = vld [vmem:[%s4 + $0xb8] sm:$0xff]
  %v4103 = vld [vmem:[%s4 + $0xc0] sm:$0xff]
  %v4104 = vld [vmem:[%s4 + $0xc8] sm:$0xff]
  %v4105 = vld [vmem:[%s4 + $0xd0] sm:$0xff]
  %v4106 = vld [vmem:[%s4 + $0xd8] sm:$0xff]
  %v4107 = vld [vmem:[%s4 + $0xe0] sm:$0xff]
  %v4108 = vld [vmem:[%s4 + $0xe8] sm:$0xff]
  %v4109 = vld [vmem:[%s4 + $0xf0] sm:$0xff]
  %v4110 = vld [vmem:[%s4 + $0xf8] sm:$0xff]
  %v4111 = vld [vmem:[%s4 + $0x100] sm:$0xff]
  %v4112 = vld [vmem:[%s4 + $0x108] sm:$0xff]
  %v4113 = vld [vmem:[%s4 + $0x110] sm:$0xff]
  %v4114 = vld [vmem:[%s4 + $0x118] sm:$0xff]
  %v4115 = vld [vmem:[%s4 + $0x120] sm:$0xff]
  %v4116 = vld [vmem:[%s4 + $0x128] sm:$0xff]
  %v4117 = vld [vmem:[%s4 + $0x130] sm:$0xff]
  %v4118 = vld [vmem:[%s4 + $0x138] sm:$0xff]
  %v4119 = vld [vmem:[%s4 + $0x140] sm:$0xff]
  %v4120 = vld [vmem:[%s4 + $0x148] sm:$0xff]
  %v4121 = vld [vmem:[%s4 + $0x150] sm:$0xff]
  %v4122 = vld [vmem:[%s4 + $0x158] sm:$0xff]
  %v4123 = vld [vmem:[%s4 + $0x160] sm:$0xff]
  %v4124 = vld [vmem:[%s4 + $0x168] sm:$0xff]
  %v4125 = vld [vmem:[%s4 + $0x170] sm:$0xff]
  %v4126 = vld [vmem:[%s4 + $0x178] sm:$0xff]
  %v4127 = vld [vmem:[%s4 + $0x180] sm:$0xff]
  %v4128 = vld [vmem:[%s4 + $0x188] sm:$0xff]
  %v4129 = vld [vmem:[%s4 + $0x190] sm:$0xff]
  %v4130 = vld [vmem:[%s4 + $0x198] sm:$0xff]
  %v4131 = vld [vmem:[%s4 + $0x1a0] sm:$0xff]
  %v4132 = vld [vmem:[%s4 + $0x1a8] sm:$0xff]
  %v4133 = vld [vmem:[%s4 + $0x1b0] sm:$0xff]
  %v4134 = vld [vmem:[%s4 + $0x1b8] sm:$0xff]
  %v4135 = vld [vmem:[%s4 + $0x1c0] sm:$0xff]
  %v4136 = vld [vmem:[%s4 + $0x1c8] sm:$0xff]
  %v4137 = vld [vmem:[%s4 + $0x1d0] sm:$0xff]
  %v4138 = vld [vmem:[%s4 + $0x1d8] sm:$0xff]
  %v4139 = vld [vmem:[%s4 + $0x1e0] sm:$0xff]
  %v4140 = vld [vmem:[%s4 + $0x1e8] sm:$0xff]
  %v4141 = vld [vmem:[%s4 + $0x1f0] sm:$0xff]
  %v4142 = vld [vmem:[%s4 + $0x1f8] sm:$0xff]
  %v4207 = vunpack.c.l.b16 %v4079
  %v4208 = vunpack.c.h.b16 %v4079
  %v4209 = vunpack.c.l.b16 %v4080
  %v4210 = vunpack.c.h.b16 %v4080
  %v4211 = vunpack.c.l.b16 %v4081
  %v4212 = vunpack.c.h.b16 %v4081
  %v4213 = vunpack.c.l.b16 %v4082
  %v4214 = vunpack.c.h.b16 %v4082
  %v4215 = vunpack.c.l.b16 %v4083
  %v4216 = vunpack.c.h.b16 %v4083
  %v4217 = vunpack.c.l.b16 %v4084
  %v4218 = vunpack.c.h.b16 %v4084
  %v4219 = vunpack.c.l.b16 %v4085
  %v4220 = vunpack.c.h.b16 %v4085
  %v4221 = vunpack.c.l.b16 %v4086
  %v4222 = vunpack.c.h.b16 %v4086
  %v4223 = vunpack.c.l.b16 %v4087
  %v4224 = vunpack.c.h.b16 %v4087
  %v4225 = vunpack.c.l.b16 %v4088
  %v4226 = vunpack.c.h.b16 %v4088
  %v4227 = vunpack.c.l.b16 %v4089
  %v4228 = vunpack.c.h.b16 %v4089
  %v4229 = vunpack.c.l.b16 %v4090
  %v4230 = vunpack.c.h.b16 %v4090
  %v4231 = vunpack.c.l.b16 %v4091
  %v4232 = vunpack.c.h.b16 %v4091
  %v4233 = vunpack.c.l.b16 %v4092
  %v4234 = vunpack.c.h.b16 %v4092
  %v4235 = vunpack.c.l.b16 %v4093
  %v4236 = vunpack.c.h.b16 %v4093
  %v4237 = vunpack.c.l.b16 %v4094
  %v4238 = vunpack.c.h.b16 %v4094
  %v4239 = vunpack.c.l.b16 %v4095
  %v4240 = vunpack.c.h.b16 %v4095
  %v4241 = vunpack.c.l.b16 %v4096
  %v4242 = vunpack.c.h.b16 %v4096
  %v4243 = vunpack.c.l.b16 %v4097
  %v4244 = vunpack.c.h.b16 %v4097
  %v4245 = vunpack.c.l.b16 %v4098
  %v4246 = vunpack.c.h.b16 %v4098
  %v4247 = vunpack.c.l.b16 %v4099
  %v4248 = vunpack.c.h.b16 %v4099
  %v4249 = vunpack.c.l.b16 %v4100
  %v4250 = vunpack.c.h.b16 %v4100
  %v4251 = vunpack.c.l.b16 %v4101
  %v4252 = vunpack.c.h.b16 %v4101
  %v4253 = vunpack.c.l.b16 %v4102
  %v4254 = vunpack.c.h.b16 %v4102
  %v4255 = vunpack.c.l.b16 %v4103
  %v4256 = vunpack.c.h.b16 %v4103
  %v4257 = vunpack.c.l.b16 %v4104
  %v4258 = vunpack.c.h.b16 %v4104
  %v4259 = vunpack.c.l.b16 %v4105
  %v4260 = vunpack.c.h.b16 %v4105
  %v4261 = vunpack.c.l.b16 %v4106
  %v4262 = vunpack.c.h.b16 %v4106
  %v4263 = vunpack.c.l.b16 %v4107
  %v4264 = vunpack.c.h.b16 %v4107
  %v4265 = vunpack.c.l.b16 %v4108
  %v4266 = vunpack.c.h.b16 %v4108
  %v4267 = vunpack.c.l.b16 %v4109
  %v4268 = vunpack.c.h.b16 %v4109
  %v4269 = vunpack.c.l.b16 %v4110
  %v4270 = vunpack.c.h.b16 %v4110
  %v4271 = vunpack.c.l.b16 %v4111
  %v4272 = vunpack.c.h.b16 %v4111
  %v4273 = vunpack.c.l.b16 %v4112
  %v4274 = vunpack.c.h.b16 %v4112
  %v4275 = vunpack.c.l.b16 %v4113
  %v4276 = vunpack.c.h.b16 %v4113
  %v4277 = vunpack.c.l.b16 %v4114
  %v4278 = vunpack.c.h.b16 %v4114
  %v4279 = vunpack.c.l.b16 %v4115
  %v4280 = vunpack.c.h.b16 %v4115
  %v4281 = vunpack.c.l.b16 %v4116
  %v4282 = vunpack.c.h.b16 %v4116
  %v4283 = vunpack.c.l.b16 %v4117
  %v4284 = vunpack.c.h.b16 %v4117
  %v4285 = vunpack.c.l.b16 %v4118
  %v4286 = vunpack.c.h.b16 %v4118
  %v4287 = vunpack.c.l.b16 %v4119
  %v4288 = vunpack.c.h.b16 %v4119
  %v4289 = vunpack.c.l.b16 %v4120
  %v4290 = vunpack.c.h.b16 %v4120
  %v4291 = vunpack.c.l.b16 %v4121
  %v4292 = vunpack.c.h.b16 %v4121
  %v4293 = vunpack.c.l.b16 %v4122
  %v4294 = vunpack.c.h.b16 %v4122
  %v4295 = vunpack.c.l.b16 %v4123
  %v4296 = vunpack.c.h.b16 %v4123
  %v4297 = vunpack.c.l.b16 %v4124
  %v4298 = vunpack.c.h.b16 %v4124
  %v4299 = vunpack.c.l.b16 %v4125
  %v4300 = vunpack.c.h.b16 %v4125
  %v4301 = vunpack.c.l.b16 %v4126
  %v4302 = vunpack.c.h.b16 %v4126
  %v4303 = vunpack.c.l.b16 %v4127
  %v4304 = vunpack.c.h.b16 %v4127
  %v4305 = vunpack.c.l.b16 %v4128
  %v4306 = vunpack.c.h.b16 %v4128
  %v4307 = vunpack.c.l.b16 %v4129
  %v4308 = vunpack.c.h.b16 %v4129
  %v4309 = vunpack.c.l.b16 %v4130
  %v4310 = vunpack.c.h.b16 %v4130
  %v4311 = vunpack.c.l.b16 %v4131
  %v4312 = vunpack.c.h.b16 %v4131
  %v4313 = vunpack.c.l.b16 %v4132
  %v4314 = vunpack.c.h.b16 %v4132
  %v4315 = vunpack.c.l.b16 %v4133
  %v4316 = vunpack.c.h.b16 %v4133
  %v4317 = vunpack.c.l.b16 %v4134
  %v4318 = vunpack.c.h.b16 %v4134
  %v4319 = vunpack.c.l.b16 %v4135
  %v4320 = vunpack.c.h.b16 %v4135
  %v4321 = vunpack.c.l.b16 %v4136
  %v4322 = vunpack.c.h.b16 %v4136
  %v4323 = vunpack.c.l.b16 %v4137
  %v4324 = vunpack.c.h.b16 %v4137
  %v4325 = vunpack.c.l.b16 %v4138
  %v4326 = vunpack.c.h.b16 %v4138
  %v4327 = vunpack.c.l.b16 %v4139
  %v4328 = vunpack.c.h.b16 %v4139
  %v4329 = vunpack.c.l.b16 %v4140
  %v4330 = vunpack.c.h.b16 %v4140
  %v4331 = vunpack.c.l.b16 %v4141
  %v4332 = vunpack.c.h.b16 %v4141
  %v4333 = vunpack.c.l.b16 %v4142
  %v4334 = vunpack.c.h.b16 %v4142
  %v4335 = vpack.c.b16 %v4211, %v4207
  %v4336 = vpack.c.b16 %v4212, %v4208
  %v4337 = vpack.c.b16 %v4213, %v4209
  %v4338 = vpack.c.b16 %v4214, %v4210
  %v4339 = vpack.c.b16 %v4219, %v4215
  %v4340 = vpack.c.b16 %v4220, %v4216
  %v4341 = vpack.c.b16 %v4221, %v4217
  %v4342 = vpack.c.b16 %v4222, %v4218
  %v4343 = vpack.c.b16 %v4227, %v4223
  %v4344 = vpack.c.b16 %v4228, %v4224
  %v4345 = vpack.c.b16 %v4229, %v4225
  %v4346 = vpack.c.b16 %v4230, %v4226
  %v4347 = vpack.c.b16 %v4235, %v4231
  %v4348 = vpack.c.b16 %v4236, %v4232
  %v4349 = vpack.c.b16 %v4237, %v4233
  %v4350 = vpack.c.b16 %v4238, %v4234
  %v4351 = vpack.c.b16 %v4243, %v4239
  %v4352 = vpack.c.b16 %v4244, %v4240
  %v4353 = vpack.c.b16 %v4245, %v4241
  %v4354 = vpack.c.b16 %v4246, %v4242
  %v4355 = vpack.c.b16 %v4251, %v4247
  %v4356 = vpack.c.b16 %v4252, %v4248
  %v4357 = vpack.c.b16 %v4253, %v4249
  %v4358 = vpack.c.b16 %v4254, %v4250
  %v4359 = vpack.c.b16 %v4259, %v4255
  %v4360 = vpack.c.b16 %v4260, %v4256
  %v4361 = vpack.c.b16 %v4261, %v4257
  %v4362 = vpack.c.b16 %v4262, %v4258
  %v4363 = vpack.c.b16 %v4267, %v4263
  %v4364 = vpack.c.b16 %v4268, %v4264
  %v4365 = vpack.c.b16 %v4269, %v4265
  %v4366 = vpack.c.b16 %v4270, %v4266
  %v4367 = vpack.c.b16 %v4275, %v4271
  %v4368 = vpack.c.b16 %v4276, %v4272
  %v4369 = vpack.c.b16 %v4277, %v4273
  %v4370 = vpack.c.b16 %v4278, %v4274
  %v4371 = vpack.c.b16 %v4283, %v4279
  %v4372 = vpack.c.b16 %v4284, %v4280
  %v4373 = vpack.c.b16 %v4285, %v4281
  %v4374 = vpack.c.b16 %v4286, %v4282
  %v4375 = vpack.c.b16 %v4291, %v4287
  %v4376 = vpack.c.b16 %v4292, %v4288
  %v4377 = vpack.c.b16 %v4293, %v4289
  %v4378 = vpack.c.b16 %v4294, %v4290
  %v4379 = vpack.c.b16 %v4299, %v4295
  %v4380 = vpack.c.b16 %v4300, %v4296
  %v4381 = vpack.c.b16 %v4301, %v4297
  %v4382 = vpack.c.b16 %v4302, %v4298
  %v4383 = vpack.c.b16 %v4307, %v4303
  %v4384 = vpack.c.b16 %v4308, %v4304
  %v4385 = vpack.c.b16 %v4309, %v4305
  %v4386 = vpack.c.b16 %v4310, %v4306
  %v4387 = vpack.c.b16 %v4315, %v4311
  %v4388 = vpack.c.b16 %v4316, %v4312
  %v4389 = vpack.c.b16 %v4317, %v4313
  %v4390 = vpack.c.b16 %v4318, %v4314
  %v4391 = vpack.c.b16 %v4323, %v4319
  %v4392 = vpack.c.b16 %v4324, %v4320
  %v4393 = vpack.c.b16 %v4325, %v4321
  %v4394 = vpack.c.b16 %v4326, %v4322
  %v4395 = vpack.c.b16 %v4331, %v4327
  %v4396 = vpack.c.b16 %v4332, %v4328
  %v4397 = vpack.c.b16 %v4333, %v4329
  %v4398 = vpack.c.b16 %v4334, %v4330
  %4463 = vmatprep.subr.bf16.mxu0 %v4336
  %4464 = vmatpush1.bf16.msra.mxu0 %v4335
  %4465 = vmatprep.subr.bf16.mxu0 %v4340
  %4466 = vmatpush1.bf16.msra.mxu0 %v4339
  %4467 = vmatprep.subr.bf16.mxu0 %v4344
  %4468 = vmatpush1.bf16.msra.mxu0 %v4343
  %4469 = vmatprep.subr.bf16.mxu0 %v4348
  %4470 = vmatpush1.bf16.msra.mxu0 %v4347
  %4471 = vmatprep.subr.bf16.mxu0 %v4352
  %4472 = vmatpush1.bf16.msra.mxu0 %v4351
  %4473 = vmatprep.subr.bf16.mxu0 %v4356
  %4474 = vmatpush1.bf16.msra.mxu0 %v4355
  %4475 = vmatprep.subr.bf16.mxu0 %v4360
  %4476 = vmatpush1.bf16.msra.mxu0 %v4359
  %4477 = vmatprep.subr.bf16.mxu0 %v4364
  %4478 = vmatpush1.bf16.msra.mxu0 %v4363
  %4479 = vmatprep.subr.bf16.mxu0 %v4368
  %4480 = vmatpush1.bf16.msra.mxu0 %v4367
  %4481 = vmatprep.subr.bf16.mxu0 %v4372
  %4482 = vmatpush1.bf16.msra.mxu0 %v4371
  %4483 = vmatprep.subr.bf16.mxu0 %v4376
  %4484 = vmatpush1.bf16.msra.mxu0 %v4375
  %4485 = vmatprep.subr.bf16.mxu0 %v4380
  %4486 = vmatpush1.bf16.msra.mxu0 %v4379
  %4487 = vmatprep.subr.bf16.mxu0 %v4384
  %4488 = vmatpush1.bf16.msra.mxu0 %v4383
  %4489 = vmatprep.subr.bf16.mxu0 %v4388
  %4490 = vmatpush1.bf16.msra.mxu0 %v4387
  %4491 = vmatprep.subr.bf16.mxu0 %v4392
  %4492 = vmatpush1.bf16.msra.mxu0 %v4391
  %4493 = vmatprep.subr.bf16.mxu0 %v4396
  %4494 = vmatpush1.bf16.msra.mxu0 %v4395
  %4495 = vmatprep.mubr.bf16.mxu0 %v3428
  %4496 = vmatmul.mubr.bf16.gmra.mrb[0].mxu0 %v4078
  %v4497 = vpop.f32.mrb[0].mxu0
  %v4498 = vadd.f32 %v1424, %v4497
  %v4499 = vpop.f32.mrb[0].mxu0
  %v4500 = vadd.f32 %v1428, %v4499
  %v4501 = vpop.f32.mrb[0].mxu0
  %v4502 = vpop.f32.mrb[0].mxu0
  %4503 = vdwg.mxu0
  %4504 = vmatprep.subr.bf16.mxu0 %v4338
  %4505 = vmatpush1.bf16.msra.mxu0 %v4337
  %4506 = vmatprep.subr.bf16.mxu0 %v4342
  %4507 = vmatpush1.bf16.msra.mxu0 %v4341
  %4508 = vmatprep.subr.bf16.mxu0 %v4346
  %4509 = vmatpush1.bf16.msra.mxu0 %v4345
  %4510 = vmatprep.subr.bf16.mxu0 %v4350
  %4511 = vmatpush1.bf16.msra.mxu0 %v4349
  %4512 = vmatprep.subr.bf16.mxu0 %v4354
  %4513 = vmatpush1.bf16.msra.mxu0 %v4353
  %4514 = vmatprep.subr.bf16.mxu0 %v4358
  %4515 = vmatpush1.bf16.msra.mxu0 %v4357
  %4516 = vmatprep.subr.bf16.mxu0 %v4362
  %4517 = vmatpush1.bf16.msra.mxu0 %v4361
  %4518 = vmatprep.subr.bf16.mxu0 %v4366
  %4519 = vmatpush1.bf16.msra.mxu0 %v4365
  %4520 = vmatprep.subr.bf16.mxu0 %v4370
  %4521 = vmatpush1.bf16.msra.mxu0 %v4369
  %4522 = vmatprep.subr.bf16.mxu0 %v4374
  %4523 = vmatpush1.bf16.msra.mxu0 %v4373
  %4524 = vmatprep.subr.bf16.mxu0 %v4378
  %4525 = vmatpush1.bf16.msra.mxu0 %v4377
  %4526 = vmatprep.subr.bf16.mxu0 %v4382
  %4527 = vmatpush1.bf16.msra.mxu0 %v4381
  %4528 = vmatprep.subr.bf16.mxu0 %v4386
  %4529 = vmatpush1.bf16.msra.mxu0 %v4385
  %4530 = vmatprep.subr.bf16.mxu0 %v4390
  %4531 = vmatpush1.bf16.msra.mxu0 %v4389
  %4532 = vmatprep.subr.bf16.mxu0 %v4394
  %4533 = vmatpush1.bf16.msra.mxu0 %v4393
  %4534 = vmatprep.subr.bf16.mxu0 %v4398
  %4535 = vmatpush1.bf16.msra.mxu0 %v4397
  %4536 = vmatprep.mubr.bf16.mxu0 %v3428
  %4537 = vmatmul.mubr.bf16.gmra.mrb[0].mxu0 %v4078
  %v4538 = vpop.f32.mrb[0].mxu0
  %v4539 = vadd.f32 %v1432, %v4538
  %v4540 = vpop.f32.mrb[0].mxu0
  %v4541 = vadd.f32 %v1436, %v4540
  %v4542 = vpop.f32.mrb[0].mxu0
  %v4543 = vpop.f32.mrb[0].mxu0
  %4544 = vdwg.mxu0
  %v4545 = vxor.u32 %v4498, 2147483648
  %v4546 = vmul.f32 %v4545, 1.442695
  %v4547 = vpow.pop %v4546
  %v4548 = vadd.f32 %v4547, 1.0
  %v4549 = vrcp.pop %v4548
  %v4550 = vmul.f32 1.0, %v4549
  %v4551 = vxor.u32 %v4500, 2147483648
  %v4552 = vmul.f32 %v4551, 1.442695
  %v4553 = vpow.pop %v4552
  %v4554 = vadd.f32 %v4553, 1.0
  %v4555 = vrcp.pop %v4554
  %v4556 = vmul.f32 1.0, %v4555
  %v4557 = vtanh.pop %v4539
  %v4558 = vxor.u32 %v4541, 2147483648
  %v4559 = vmul.f32 %v4558, 1.442695
  %v4560 = vpow.pop %v4559
  %v4561 = vadd.f32 %v4560, 1.0
  %v4562 = vrcp.pop %v4561
  %v4563 = vmul.f32 1.0, %v4562
  %v4564 = vmul.f32 %v4556, %v3425
  %v4565 = vmul.f32 %v4550, %v4557
  %v4566 = vadd.f32 %v4564, %v4565
  %v4567 = vtanh.pop %v4566
  %v4568 = vmul.f32 %v4563, %v4567
  %v4569 = vpack.c.bf16 %v4568, %v4568
  %v4570 = vld [vmem:[#allocation3] sm:$0xff]
  %v4571 = vld [vmem:[#allocation3 + $0x8] sm:$0xff]
  %v4572 = vld [vmem:[#allocation3 + $0x10] sm:$0xff]
  %v4573 = vld [vmem:[#allocation3 + $0x18] sm:$0xff]
  %v4574 = vld [vmem:[#allocation3 + $0x20] sm:$0xff]
  %v4575 = vld [vmem:[#allocation3 + $0x28] sm:$0xff]
  %v4576 = vld [vmem:[#allocation3 + $0x30] sm:$0xff]
  %v4577 = vld [vmem:[#allocation3 + $0x38] sm:$0xff]
  %v4578 = vld [vmem:[#allocation3 + $0x40] sm:$0xff]
  %v4579 = vld [vmem:[#allocation3 + $0x48] sm:$0xff]
  %v4580 = vld [vmem:[#allocation3 + $0x50] sm:$0xff]
  %v4581 = vld [vmem:[#allocation3 + $0x58] sm:$0xff]
  %v4582 = vld [vmem:[#allocation3 + $0x60] sm:$0xff]
  %v4583 = vld [vmem:[#allocation3 + $0x68] sm:$0xff]
  %v4584 = vld [vmem:[#allocation3 + $0x70] sm:$0xff]
  %v4585 = vld [vmem:[#allocation3 + $0x78] sm:$0xff]
  %v4586 = vld [vmem:[#allocation3 + $0x80] sm:$0xff]
  %v4587 = vld [vmem:[#allocation3 + $0x88] sm:$0xff]
  %v4588 = vld [vmem:[#allocation3 + $0x90] sm:$0xff]
  %v4589 = vld [vmem:[#allocation3 + $0x98] sm:$0xff]
  %v4590 = vld [vmem:[#allocation3 + $0xa0] sm:$0xff]
  %v4591 = vld [vmem:[#allocation3 + $0xa8] sm:$0xff]
  %v4592 = vld [vmem:[#allocation3 + $0xb0] sm:$0xff]
  %v4593 = vld [vmem:[#allocation3 + $0xb8] sm:$0xff]
  %v4594 = vld [vmem:[#allocation3 + $0xc0] sm:$0xff]
  %v4595 = vld [vmem:[#allocation3 + $0xc8] sm:$0xff]
  %v4596 = vld [vmem:[#allocation3 + $0xd0] sm:$0xff]
  %v4597 = vld [vmem:[#allocation3 + $0xd8] sm:$0xff]
  %v4598 = vld [vmem:[#allocation3 + $0xe0] sm:$0xff]
  %v4599 = vld [vmem:[#allocation3 + $0xe8] sm:$0xff]
  %v4600 = vld [vmem:[#allocation3 + $0xf0] sm:$0xff]
  %v4601 = vld [vmem:[#allocation3 + $0xf8] sm:$0xff]
  %v4602 = vld [vmem:[#allocation3 + $0x100] sm:$0xff]
  %v4603 = vld [vmem:[#allocation3 + $0x108] sm:$0xff]
  %v4604 = vld [vmem:[#allocation3 + $0x110] sm:$0xff]
  %v4605 = vld [vmem:[#allocation3 + $0x118] sm:$0xff]
  %v4606 = vld [vmem:[#allocation3 + $0x120] sm:$0xff]
  %v4607 = vld [vmem:[#allocation3 + $0x128] sm:$0xff]
  %v4608 = vld [vmem:[#allocation3 + $0x130] sm:$0xff]
  %v4609 = vld [vmem:[#allocation3 + $0x138] sm:$0xff]
  %v4610 = vld [vmem:[#allocation3 + $0x140] sm:$0xff]
  %v4611 = vld [vmem:[#allocation3 + $0x148] sm:$0xff]
  %v4612 = vld [vmem:[#allocation3 + $0x150] sm:$0xff]
  %v4613 = vld [vmem:[#allocation3 + $0x158] sm:$0xff]
  %v4614 = vld [vmem:[#allocation3 + $0x160] sm:$0xff]
  %v4615 = vld [vmem:[#allocation3 + $0x168] sm:$0xff]
  %v4616 = vld [vmem:[#allocation3 + $0x170] sm:$0xff]
  %v4617 = vld [vmem:[#allocation3 + $0x178] sm:$0xff]
  %v4618 = vld [vmem:[#allocation3 + $0x180] sm:$0xff]
  %v4619 = vld [vmem:[#allocation3 + $0x188] sm:$0xff]
  %v4620 = vld [vmem:[#allocation3 + $0x190] sm:$0xff]
  %v4621 = vld [vmem:[#allocation3 + $0x198] sm:$0xff]
  %v4622 = vld [vmem:[#allocation3 + $0x1a0] sm:$0xff]
  %v4623 = vld [vmem:[#allocation3 + $0x1a8] sm:$0xff]
  %v4624 = vld [vmem:[#allocation3 + $0x1b0] sm:$0xff]
  %v4625 = vld [vmem:[#allocation3 + $0x1b8] sm:$0xff]
  %v4626 = vld [vmem:[#allocation3 + $0x1c0] sm:$0xff]
  %v4627 = vld [vmem:[#allocation3 + $0x1c8] sm:$0xff]
  %v4628 = vld [vmem:[#allocation3 + $0x1d0] sm:$0xff]
  %v4629 = vld [vmem:[#allocation3 + $0x1d8] sm:$0xff]
  %v4630 = vld [vmem:[#allocation3 + $0x1e0] sm:$0xff]
  %v4631 = vld [vmem:[#allocation3 + $0x1e8] sm:$0xff]
  %v4632 = vld [vmem:[#allocation3 + $0x1f0] sm:$0xff]
  %v4633 = vld [vmem:[#allocation3 + $0x1f8] sm:$0xff]
  %4634 = vmatprep.subr.bf16.mxu0 %v4571
  %4635 = vmatpush1.bf16.msra.mxu0 %v4570
  %4636 = vmatprep.subr.bf16.mxu0 %v4575
  %4637 = vmatpush1.bf16.msra.mxu0 %v4574
  %4638 = vmatprep.subr.bf16.mxu0 %v4579
  %4639 = vmatpush1.bf16.msra.mxu0 %v4578
  %4640 = vmatprep.subr.bf16.mxu0 %v4583
  %4641 = vmatpush1.bf16.msra.mxu0 %v4582
  %4642 = vmatprep.subr.bf16.mxu0 %v4587
  %4643 = vmatpush1.bf16.msra.mxu0 %v4586
  %4644 = vmatprep.subr.bf16.mxu0 %v4591
  %4645 = vmatpush1.bf16.msra.mxu0 %v4590
  %4646 = vmatprep.subr.bf16.mxu0 %v4595
  %4647 = vmatpush1.bf16.msra.mxu0 %v4594
  %4648 = vmatprep.subr.bf16.mxu0 %v4599
  %4649 = vmatpush1.bf16.msra.mxu0 %v4598
  %4650 = vmatprep.subr.bf16.mxu0 %v4603
  %4651 = vmatpush1.bf16.msra.mxu0 %v4602
  %4652 = vmatprep.subr.bf16.mxu0 %v4607
  %4653 = vmatpush1.bf16.msra.mxu0 %v4606
  %4654 = vmatprep.subr.bf16.mxu0 %v4611
  %4655 = vmatpush1.bf16.msra.mxu0 %v4610
  %4656 = vmatprep.subr.bf16.mxu0 %v4615
  %4657 = vmatpush1.bf16.msra.mxu0 %v4614
  %4658 = vmatprep.subr.bf16.mxu0 %v4619
  %4659 = vmatpush1.bf16.msra.mxu0 %v4618
  %4660 = vmatprep.subr.bf16.mxu0 %v4623
  %4661 = vmatpush1.bf16.msra.mxu0 %v4622
  %4662 = vmatprep.subr.bf16.mxu0 %v4627
  %4663 = vmatpush1.bf16.msra.mxu0 %v4626
  %4664 = vmatprep.subr.bf16.mxu0 %v4631
  %4665 = vmatpush1.bf16.msra.mxu0 %v4630
  %4666 = vmatprep.mubr.bf16.mxu0 %v3599
  %4667 = vmatmul.mubr.bf16.gmra.mrb[0].mxu0 %v4569
  %v4668 = vpop.f32.mrb[0].mxu0
  %v4669 = vadd.f32 %v1446, %v4668
  %v4670 = vpop.f32.mrb[0].mxu0
  %v4671 = vadd.f32 %v1450, %v4670
  %v4672 = vpop.f32.mrb[0].mxu0
  %v4673 = vpop.f32.mrb[0].mxu0
  %4674 = vdwg.mxu0
  %4675 = vmatprep.subr.bf16.mxu0 %v4573
  %4676 = vmatpush1.bf16.msra.mxu0 %v4572
  %4677 = vmatprep.subr.bf16.mxu0 %v4577
  %4678 = vmatpush1.bf16.msra.mxu0 %v4576
  %4679 = vmatprep.subr.bf16.mxu0 %v4581
  %4680 = vmatpush1.bf16.msra.mxu0 %v4580
  %4681 = vmatprep.subr.bf16.mxu0 %v4585
  %4682 = vmatpush1.bf16.msra.mxu0 %v4584
  %4683 = vmatprep.subr.bf16.mxu0 %v4589
  %4684 = vmatpush1.bf16.msra.mxu0 %v4588
  %4685 = vmatprep.subr.bf16.mxu0 %v4593
  %4686 = vmatpush1.bf16.msra.mxu0 %v4592
  %4687 = vmatprep.subr.bf16.mxu0 %v4597
  %4688 = vmatpush1.bf16.msra.mxu0 %v4596
  %4689 = vmatprep.subr.bf16.mxu0 %v4601
  %4690 = vmatpush1.bf16.msra.mxu0 %v4600
  %4691 = vmatprep.subr.bf16.mxu0 %v4605
  %4692 = vmatpush1.bf16.msra.mxu0 %v4604
  %4693 = vmatprep.subr.bf16.mxu0 %v4609
  %4694 = vmatpush1.bf16.msra.mxu0 %v4608
  %4695 = vmatprep.subr.bf16.mxu0 %v4613
  %4696 = vmatpush1.bf16.msra.mxu0 %v4612
  %4697 = vmatprep.subr.bf16.mxu0 %v4617
  %4698 = vmatpush1.bf16.msra.mxu0 %v4616
  %4699 = vmatprep.subr.bf16.mxu0 %v4621
  %4700 = vmatpush1.bf16.msra.mxu0 %v4620
  %4701 = vmatprep.subr.bf16.mxu0 %v4625
  %4702 = vmatpush1.bf16.msra.mxu0 %v4624
  %4703 = vmatprep.subr.bf16.mxu0 %v4629
  %4704 = vmatpush1.bf16.msra.mxu0 %v4628
  %4705 = vmatprep.subr.bf16.mxu0 %v4633
  %4706 = vmatpush1.bf16.msra.mxu0 %v4632
  %4707 = vmatprep.mubr.bf16.mxu0 %v3599
  %4708 = vmatmul.mubr.bf16.gmra.mrb[0].mxu0 %v4569
  %v4709 = vpop.f32.mrb[0].mxu0
  %v4710 = vadd.f32 %v1454, %v4709
  %v4711 = vpop.f32.mrb[0].mxu0
  %v4712 = vadd.f32 %v1458, %v4711
  %v4713 = vpop.f32.mrb[0].mxu0
  %v4714 = vpop.f32.mrb[0].mxu0
  %4715 = vdwg.mxu0
  %v4716 = vxor.u32 %v4669, 2147483648
  %v4717 = vmul.f32 %v4716, 1.442695
  %v4718 = vpow.pop %v4717
  %v4719 = vadd.f32 %v4718, 1.0
  %v4720 = vrcp.pop %v4719
  %v4721 = vmul.f32 1.0, %v4720
  %v4722 = vxor.u32 %v4671, 2147483648
  %v4723 = vmul.f32 %v4722, 1.442695
  %v4724 = vpow.pop %v4723
  %v4725 = vadd.f32 %v4724, 1.0
  %v4726 = vrcp.pop %v4725
  %v4727 = vmul.f32 1.0, %v4726
  %v4728 = vtanh.pop %v4710
  %v4729 = vxor.u32 %v4712, 2147483648
  %v4730 = vmul.f32 %v4729, 1.442695
  %v4731 = vpow.pop %v4730
  %v4732 = vadd.f32 %v4731, 1.0
  %v4733 = vrcp.pop %v4732
  %v4734 = vmul.f32 1.0, %v4733
  %v4735 = vmul.f32 %v4727, %v3596
  %v4736 = vmul.f32 %v4721, %v4728
  %v4737 = vadd.f32 %v4735, %v4736
  %v4738 = vtanh.pop %v4737
  %v4739 = vmul.f32 %v4734, %v4738
  %v4740 = vpack.c.bf16 %v4739, %v4739
  %v4741 = vpack.c.bf16 %v3770, %v3770
  %v4742 = vld [vmem:[#allocation4] sm:$0xff]
  %v4743 = vld [vmem:[#allocation4 + $0x8] sm:$0xff]
  %v4744 = vld [vmem:[#allocation4 + $0x10] sm:$0xff]
  %v4745 = vld [vmem:[#allocation4 + $0x18] sm:$0xff]
  %v4746 = vld [vmem:[#allocation4 + $0x20] sm:$0xff]
  %v4747 = vld [vmem:[#allocation4 + $0x28] sm:$0xff]
  %v4748 = vld [vmem:[#allocation4 + $0x30] sm:$0xff]
  %v4749 = vld [vmem:[#allocation4 + $0x38] sm:$0xff]
  %v4750 = vld [vmem:[#allocation4 + $0x40] sm:$0xff]
  %v4751 = vld [vmem:[#allocation4 + $0x48] sm:$0xff]
  %v4752 = vld [vmem:[#allocation4 + $0x50] sm:$0xff]
  %v4753 = vld [vmem:[#allocation4 + $0x58] sm:$0xff]
  %v4754 = vld [vmem:[#allocation4 + $0x60] sm:$0xff]
  %v4755 = vld [vmem:[#allocation4 + $0x68] sm:$0xff]
  %v4756 = vld [vmem:[#allocation4 + $0x70] sm:$0xff]
  %v4757 = vld [vmem:[#allocation4 + $0x78] sm:$0xff]
  %v4758 = vld [vmem:[#allocation4 + $0x80] sm:$0xff]
  %v4759 = vld [vmem:[#allocation4 + $0x88] sm:$0xff]
  %v4760 = vld [vmem:[#allocation4 + $0x90] sm:$0xff]
  %v4761 = vld [vmem:[#allocation4 + $0x98] sm:$0xff]
  %v4762 = vld [vmem:[#allocation4 + $0xa0] sm:$0xff]
  %v4763 = vld [vmem:[#allocation4 + $0xa8] sm:$0xff]
  %v4764 = vld [vmem:[#allocation4 + $0xb0] sm:$0xff]
  %v4765 = vld [vmem:[#allocation4 + $0xb8] sm:$0xff]
  %v4766 = vld [vmem:[#allocation4 + $0xc0] sm:$0xff]
  %v4767 = vld [vmem:[#allocation4 + $0xc8] sm:$0xff]
  %v4768 = vld [vmem:[#allocation4 + $0xd0] sm:$0xff]
  %v4769 = vld [vmem:[#allocation4 + $0xd8] sm:$0xff]
  %v4770 = vld [vmem:[#allocation4 + $0xe0] sm:$0xff]
  %v4771 = vld [vmem:[#allocation4 + $0xe8] sm:$0xff]
  %v4772 = vld [vmem:[#allocation4 + $0xf0] sm:$0xff]
  %v4773 = vld [vmem:[#allocation4 + $0xf8] sm:$0xff]
  %v4774 = vld [vmem:[#allocation4 + $0x100] sm:$0xff]
  %v4775 = vld [vmem:[#allocation4 + $0x108] sm:$0xff]
  %v4776 = vld [vmem:[#allocation4 + $0x110] sm:$0xff]
  %v4777 = vld [vmem:[#allocation4 + $0x118] sm:$0xff]
  %v4778 = vld [vmem:[#allocation4 + $0x120] sm:$0xff]
  %v4779 = vld [vmem:[#allocation4 + $0x128] sm:$0xff]
  %v4780 = vld [vmem:[#allocation4 + $0x130] sm:$0xff]
  %v4781 = vld [vmem:[#allocation4 + $0x138] sm:$0xff]
  %v4782 = vld [vmem:[#allocation4 + $0x140] sm:$0xff]
  %v4783 = vld [vmem:[#allocation4 + $0x148] sm:$0xff]
  %v4784 = vld [vmem:[#allocation4 + $0x150] sm:$0xff]
  %v4785 = vld [vmem:[#allocation4 + $0x158] sm:$0xff]
  %v4786 = vld [vmem:[#allocation4 + $0x160] sm:$0xff]
  %v4787 = vld [vmem:[#allocation4 + $0x168] sm:$0xff]
  %v4788 = vld [vmem:[#allocation4 + $0x170] sm:$0xff]
  %v4789 = vld [vmem:[#allocation4 + $0x178] sm:$0xff]
  %v4790 = vld [vmem:[#allocation4 + $0x180] sm:$0xff]
  %v4791 = vld [vmem:[#allocation4 + $0x188] sm:$0xff]
  %v4792 = vld [vmem:[#allocation4 + $0x190] sm:$0xff]
  %v4793 = vld [vmem:[#allocation4 + $0x198] sm:$0xff]
  %v4794 = vld [vmem:[#allocation4 + $0x1a0] sm:$0xff]
  %v4795 = vld [vmem:[#allocation4 + $0x1a8] sm:$0xff]
  %v4796 = vld [vmem:[#allocation4 + $0x1b0] sm:$0xff]
  %v4797 = vld [vmem:[#allocation4 + $0x1b8] sm:$0xff]
  %v4798 = vld [vmem:[#allocation4 + $0x1c0] sm:$0xff]
  %v4799 = vld [vmem:[#allocation4 + $0x1c8] sm:$0xff]
  %v4800 = vld [vmem:[#allocation4 + $0x1d0] sm:$0xff]
  %v4801 = vld [vmem:[#allocation4 + $0x1d8] sm:$0xff]
  %v4802 = vld [vmem:[#allocation4 + $0x1e0] sm:$0xff]
  %v4803 = vld [vmem:[#allocation4 + $0x1e8] sm:$0xff]
  %v4804 = vld [vmem:[#allocation4 + $0x1f0] sm:$0xff]
  %v4805 = vld [vmem:[#allocation4 + $0x1f8] sm:$0xff]
  %4806 = vmatprep.subr.bf16.mxu0 %v4743
  %4807 = vmatpush1.bf16.msra.mxu0 %v4742
  %4808 = vmatprep.subr.bf16.mxu0 %v4747
  %4809 = vmatpush1.bf16.msra.mxu0 %v4746
  %4810 = vmatprep.subr.bf16.mxu0 %v4751
  %4811 = vmatpush1.bf16.msra.mxu0 %v4750
  %4812 = vmatprep.subr.bf16.mxu0 %v4755
  %4813 = vmatpush1.bf16.msra.mxu0 %v4754
  %4814 = vmatprep.subr.bf16.mxu0 %v4759
  %4815 = vmatpush1.bf16.msra.mxu0 %v4758
  %4816 = vmatprep.subr.bf16.mxu0 %v4763
  %4817 = vmatpush1.bf16.msra.mxu0 %v4762
  %4818 = vmatprep.subr.bf16.mxu0 %v4767
  %4819 = vmatpush1.bf16.msra.mxu0 %v4766
  %4820 = vmatprep.subr.bf16.mxu0 %v4771
  %4821 = vmatpush1.bf16.msra.mxu0 %v4770
  %4822 = vmatprep.subr.bf16.mxu0 %v4775
  %4823 = vmatpush1.bf16.msra.mxu0 %v4774
  %4824 = vmatprep.subr.bf16.mxu0 %v4779
  %4825 = vmatpush1.bf16.msra.mxu0 %v4778
  %4826 = vmatprep.subr.bf16.mxu0 %v4783
  %4827 = vmatpush1.bf16.msra.mxu0 %v4782
  %4828 = vmatprep.subr.bf16.mxu0 %v4787
  %4829 = vmatpush1.bf16.msra.mxu0 %v4786
  %4830 = vmatprep.subr.bf16.mxu0 %v4791
  %4831 = vmatpush1.bf16.msra.mxu0 %v4790
  %4832 = vmatprep.subr.bf16.mxu0 %v4795
  %4833 = vmatpush1.bf16.msra.mxu0 %v4794
  %4834 = vmatprep.subr.bf16.mxu0 %v4799
  %4835 = vmatpush1.bf16.msra.mxu0 %v4798
  %4836 = vmatprep.subr.bf16.mxu0 %v4803
  %4837 = vmatpush1.bf16.msra.mxu0 %v4802
  %4838 = vmatprep.mubr.bf16.mxu0 %v4741
  %4839 = vmatmul.mubr.bf16.gmra.mrb[0].mxu0 %v4740
  %v4840 = vpop.f32.mrb[0].mxu0
  %v4841 = vadd.f32 %v1468, %v4840
  %v4842 = vpop.f32.mrb[0].mxu0
  %v4843 = vadd.f32 %v1472, %v4842
  %v4844 = vpop.f32.mrb[0].mxu0
  %v4845 = vpop.f32.mrb[0].mxu0
  %4846 = vdwg.mxu0
  %4847 = vmatprep.subr.bf16.mxu0 %v4745
  %4848 = vmatpush1.bf16.msra.mxu0 %v4744
  %4849 = vmatprep.subr.bf16.mxu0 %v4749
  %4850 = vmatpush1.bf16.msra.mxu0 %v4748
  %4851 = vmatprep.subr.bf16.mxu0 %v4753
  %4852 = vmatpush1.bf16.msra.mxu0 %v4752
  %4853 = vmatprep.subr.bf16.mxu0 %v4757
  %4854 = vmatpush1.bf16.msra.mxu0 %v4756
  %4855 = vmatprep.subr.bf16.mxu0 %v4761
  %4856 = vmatpush1.bf16.msra.mxu0 %v4760
  %4857 = vmatprep.subr.bf16.mxu0 %v4765
  %4858 = vmatpush1.bf16.msra.mxu0 %v4764
  %4859 = vmatprep.subr.bf16.mxu0 %v4769
  %4860 = vmatpush1.bf16.msra.mxu0 %v4768
  %4861 = vmatprep.subr.bf16.mxu0 %v4773
  %4862 = vmatpush1.bf16.msra.mxu0 %v4772
  %4863 = vmatprep.subr.bf16.mxu0 %v4777
  %4864 = vmatpush1.bf16.msra.mxu0 %v4776
  %4865 = vmatprep.subr.bf16.mxu0 %v4781
  %4866 = vmatpush1.bf16.msra.mxu0 %v4780
  %4867 = vmatprep.subr.bf16.mxu0 %v4785
  %4868 = vmatpush1.bf16.msra.mxu0 %v4784
  %4869 = vmatprep.subr.bf16.mxu0 %v4789
  %4870 = vmatpush1.bf16.msra.mxu0 %v4788
  %4871 = vmatprep.subr.bf16.mxu0 %v4793
  %4872 = vmatpush1.bf16.msra.mxu0 %v4792
  %4873 = vmatprep.subr.bf16.mxu0 %v4797
  %4874 = vmatpush1.bf16.msra.mxu0 %v4796
  %4875 = vmatprep.subr.bf16.mxu0 %v4801
  %4876 = vmatpush1.bf16.msra.mxu0 %v4800
  %4877 = vmatprep.subr.bf16.mxu0 %v4805
  %4878 = vmatpush1.bf16.msra.mxu0 %v4804
  %4879 = vmatprep.mubr.bf16.mxu0 %v4741
  %4880 = vmatmul.mubr.bf16.gmra.mrb[0].mxu0 %v4740
  %v4881 = vpop.f32.mrb[0].mxu0
  %v4882 = vadd.f32 %v1476, %v4881
  %v4883 = vpop.f32.mrb[0].mxu0
  %v4884 = vadd.f32 %v1480, %v4883
  %v4885 = vpop.f32.mrb[0].mxu0
  %v4886 = vpop.f32.mrb[0].mxu0
  %4887 = vdwg.mxu0
  %v4888 = vxor.u32 %v4841, 2147483648
  %v4889 = vmul.f32 %v4888, 1.442695
  %v4890 = vpow.pop %v4889
  %v4891 = vadd.f32 %v4890, 1.0
  %v4892 = vrcp.pop %v4891
  %v4893 = vmul.f32 1.0, %v4892
  %v4894 = vxor.u32 %v4843, 2147483648
  %v4895 = vmul.f32 %v4894, 1.442695
  %v4896 = vpow.pop %v4895
  %v4897 = vadd.f32 %v4896, 1.0
  %v4898 = vrcp.pop %v4897
  %v4899 = vmul.f32 1.0, %v4898
  %v4900 = vtanh.pop %v4882
  %v4901 = vxor.u32 %v4884, 2147483648
  %v4902 = vmul.f32 %v4901, 1.442695
  %v4903 = vpow.pop %v4902
  %v4904 = vadd.f32 %v4903, 1.0
  %v4905 = vrcp.pop %v4904
  %v4906 = vmul.f32 1.0, %v4905
  %v4907 = vmul.f32 %v4899, %v3768
  %v4908 = vmul.f32 %v4893, %v4900
  %v4909 = vadd.f32 %v4907, %v4908
  %v4910 = vtanh.pop %v4909
  %v4911 = vmul.f32 %v4906, %v4910
  %4912 = vst [vmem:[%s10 + $0x10] sm:$0xff] %v4911
  %v4913 = vld [vmem:[#allocation2 + $0x60] sm:$0xff]
  %v4914 = vld [vmem:[#allocation2 + $0x68] sm:$0xff]
  %v4915 = vld [vmem:[#allocation2 + $0x70] sm:$0xff]
  %v4916 = vld [vmem:[#allocation2 + $0x78] sm:$0xff]
  %v4917 = vld [vmem:[%s3] sm:$0xff]
  %v4918 = vld [vmem:[%s3 + $0x8] sm:$0xff]
  %v4919 = vld [vmem:[%s3 + $0x10] sm:$0xff]
  %v4920 = vld [vmem:[%s3 + $0x18] sm:$0xff]
  %v4921 = vld [vmem:[%s3 + $0x20] sm:$0xff]
  %v4922 = vld [vmem:[%s3 + $0x28] sm:$0xff]
  %v4923 = vld [vmem:[%s3 + $0x30] sm:$0xff]
  %v4924 = vld [vmem:[%s3 + $0x38] sm:$0xff]
  %v4925 = vld [vmem:[%s3 + $0x40] sm:$0xff]
  %v4926 = vld [vmem:[%s3 + $0x48] sm:$0xff]
  %v4927 = vld [vmem:[%s3 + $0x50] sm:$0xff]
  %v4928 = vld [vmem:[%s3 + $0x58] sm:$0xff]
  %v4929 = vld [vmem:[%s3 + $0x60] sm:$0xff]
  %v4930 = vld [vmem:[%s3 + $0x68] sm:$0xff]
  %v4931 = vld [vmem:[%s3 + $0x70] sm:$0xff]
  %v4932 = vld [vmem:[%s3 + $0x78] sm:$0xff]
  %v4933 = vld [vmem:[%s3 + $0x80] sm:$0xff]
  %v4934 = vld [vmem:[%s3 + $0x88] sm:$0xff]
  %v4935 = vld [vmem:[%s3 + $0x90] sm:$0xff]
  %v4936 = vld [vmem:[%s3 + $0x98] sm:$0xff]
  %v4937 = vld [vmem:[%s3 + $0xa0] sm:$0xff]
  %v4938 = vld [vmem:[%s3 + $0xa8] sm:$0xff]
  %v4939 = vld [vmem:[%s3 + $0xb0] sm:$0xff]
  %v4940 = vld [vmem:[%s3 + $0xb8] sm:$0xff]
  %v4941 = vld [vmem:[%s3 + $0xc0] sm:$0xff]
  %v4942 = vld [vmem:[%s3 + $0xc8] sm:$0xff]
  %v4943 = vld [vmem:[%s3 + $0xd0] sm:$0xff]
  %v4944 = vld [vmem:[%s3 + $0xd8] sm:$0xff]
  %v4945 = vld [vmem:[%s3 + $0xe0] sm:$0xff]
  %v4946 = vld [vmem:[%s3 + $0xe8] sm:$0xff]
  %v4947 = vld [vmem:[%s3 + $0xf0] sm:$0xff]
  %v4948 = vld [vmem:[%s3 + $0xf8] sm:$0xff]
  %v4981 = vunpack.c.l.b16 %v4917
  %v4982 = vunpack.c.h.b16 %v4917
  %v4983 = vunpack.c.l.b16 %v4918
  %v4984 = vunpack.c.h.b16 %v4918
  %v4985 = vunpack.c.l.b16 %v4919
  %v4986 = vunpack.c.h.b16 %v4919
  %v4987 = vunpack.c.l.b16 %v4920
  %v4988 = vunpack.c.h.b16 %v4920
  %v4989 = vunpack.c.l.b16 %v4921
  %v4990 = vunpack.c.h.b16 %v4921
  %v4991 = vunpack.c.l.b16 %v4922
  %v4992 = vunpack.c.h.b16 %v4922
  %v4993 = vunpack.c.l.b16 %v4923
  %v4994 = vunpack.c.h.b16 %v4923
  %v4995 = vunpack.c.l.b16 %v4924
  %v4996 = vunpack.c.h.b16 %v4924
  %v4997 = vunpack.c.l.b16 %v4925
  %v4998 = vunpack.c.h.b16 %v4925
  %v4999 = vunpack.c.l.b16 %v4926
  %v5000 = vunpack.c.h.b16 %v4926
  %v5001 = vunpack.c.l.b16 %v4927
  %v5002 = vunpack.c.h.b16 %v4927
  %v5003 = vunpack.c.l.b16 %v4928
  %v5004 = vunpack.c.h.b16 %v4928
  %v5005 = vunpack.c.l.b16 %v4929
  %v5006 = vunpack.c.h.b16 %v4929
  %v5007 = vunpack.c.l.b16 %v4930
  %v5008 = vunpack.c.h.b16 %v4930
  %v5009 = vunpack.c.l.b16 %v4931
  %v5010 = vunpack.c.h.b16 %v4931
  %v5011 = vunpack.c.l.b16 %v4932
  %v5012 = vunpack.c.h.b16 %v4932
  %v5013 = vunpack.c.l.b16 %v4933
  %v5014 = vunpack.c.h.b16 %v4933
  %v5015 = vunpack.c.l.b16 %v4934
  %v5016 = vunpack.c.h.b16 %v4934
  %v5017 = vunpack.c.l.b16 %v4935
  %v5018 = vunpack.c.h.b16 %v4935
  %v5019 = vunpack.c.l.b16 %v4936
  %v5020 = vunpack.c.h.b16 %v4936
  %v5021 = vunpack.c.l.b16 %v4937
  %v5022 = vunpack.c.h.b16 %v4937
  %v5023 = vunpack.c.l.b16 %v4938
  %v5024 = vunpack.c.h.b16 %v4938
  %v5025 = vunpack.c.l.b16 %v4939
  %v5026 = vunpack.c.h.b16 %v4939
  %v5027 = vunpack.c.l.b16 %v4940
  %v5028 = vunpack.c.h.b16 %v4940
  %v5029 = vunpack.c.l.b16 %v4941
  %v5030 = vunpack.c.h.b16 %v4941
  %v5031 = vunpack.c.l.b16 %v4942
  %v5032 = vunpack.c.h.b16 %v4942
  %v5033 = vunpack.c.l.b16 %v4943
  %v5034 = vunpack.c.h.b16 %v4943
  %v5035 = vunpack.c.l.b16 %v4944
  %v5036 = vunpack.c.h.b16 %v4944
  %v5037 = vunpack.c.l.b16 %v4945
  %v5038 = vunpack.c.h.b16 %v4945
  %v5039 = vunpack.c.l.b16 %v4946
  %v5040 = vunpack.c.h.b16 %v4946
  %v5041 = vunpack.c.l.b16 %v4947
  %v5042 = vunpack.c.h.b16 %v4947
  %v5043 = vunpack.c.l.b16 %v4948
  %v5044 = vunpack.c.h.b16 %v4948
  %v5045 = vpack.c.b16 %v4985, %v4981
  %v5046 = vpack.c.b16 %v4986, %v4982
  %v5047 = vpack.c.b16 %v4987, %v4983
  %v5048 = vpack.c.b16 %v4988, %v4984
  %v5049 = vpack.c.b16 %v4993, %v4989
  %v5050 = vpack.c.b16 %v4994, %v4990
  %v5051 = vpack.c.b16 %v4995, %v4991
  %v5052 = vpack.c.b16 %v4996, %v4992
  %v5053 = vpack.c.b16 %v5001, %v4997
  %v5054 = vpack.c.b16 %v5002, %v4998
  %v5055 = vpack.c.b16 %v5003, %v4999
  %v5056 = vpack.c.b16 %v5004, %v5000
  %v5057 = vpack.c.b16 %v5009, %v5005
  %v5058 = vpack.c.b16 %v5010, %v5006
  %v5059 = vpack.c.b16 %v5011, %v5007
  %v5060 = vpack.c.b16 %v5012, %v5008
  %v5061 = vpack.c.b16 %v5017, %v5013
  %v5062 = vpack.c.b16 %v5018, %v5014
  %v5063 = vpack.c.b16 %v5019, %v5015
  %v5064 = vpack.c.b16 %v5020, %v5016
  %v5065 = vpack.c.b16 %v5025, %v5021
  %v5066 = vpack.c.b16 %v5026, %v5022
  %v5067 = vpack.c.b16 %v5027, %v5023
  %v5068 = vpack.c.b16 %v5028, %v5024
  %v5069 = vpack.c.b16 %v5033, %v5029
  %v5070 = vpack.c.b16 %v5034, %v5030
  %v5071 = vpack.c.b16 %v5035, %v5031
  %v5072 = vpack.c.b16 %v5036, %v5032
  %v5073 = vpack.c.b16 %v5041, %v5037
  %v5074 = vpack.c.b16 %v5042, %v5038
  %v5075 = vpack.c.b16 %v5043, %v5039
  %v5076 = vpack.c.b16 %v5044, %v5040
  %5109 = vmatprep.subr.bf16.mxu0 %v5046
  %5110 = vmatpush1.bf16.msra.mxu0 %v5045
  %5111 = vmatprep.subr.bf16.mxu0 %v5050
  %5112 = vmatpush1.bf16.msra.mxu0 %v5049
  %5113 = vmatprep.subr.bf16.mxu0 %v5054
  %5114 = vmatpush1.bf16.msra.mxu0 %v5053
  %5115 = vmatprep.subr.bf16.mxu0 %v5058
  %5116 = vmatpush1.bf16.msra.mxu0 %v5057
  %5117 = vmatprep.subr.bf16.mxu0 %v5062
  %5118 = vmatpush1.bf16.msra.mxu0 %v5061
  %5119 = vmatprep.subr.bf16.mxu0 %v5066
  %5120 = vmatpush1.bf16.msra.mxu0 %v5065
  %5121 = vmatprep.subr.bf16.mxu0 %v5070
  %5122 = vmatpush1.bf16.msra.mxu0 %v5069
  %5123 = vmatprep.subr.bf16.mxu0 %v5074
  %5124 = vmatpush1.bf16.msra.mxu0 %v5073
  %5125 = vmatprep.subr.bf16.mxu0 0
  %5126 = vmatpush1.bf16.msra.mxu0 0
  %5127 = vmatprep.subr.bf16.mxu0 0
  %5128 = vmatpush1.bf16.msra.mxu0 0
  %5129 = vmatprep.subr.bf16.mxu0 0
  %5130 = vmatpush1.bf16.msra.mxu0 0
  %5131 = vmatprep.subr.bf16.mxu0 0
  %5132 = vmatpush1.bf16.msra.mxu0 0
  %5133 = vmatprep.subr.bf16.mxu0 0
  %5134 = vmatpush1.bf16.msra.mxu0 0
  %5135 = vmatprep.subr.bf16.mxu0 0
  %5136 = vmatpush1.bf16.msra.mxu0 0
  %5137 = vmatprep.subr.bf16.mxu0 0
  %5138 = vmatpush1.bf16.msra.mxu0 0
  %5139 = vmatprep.subr.bf16.mxu0 0
  %5140 = vmatpush1.bf16.msra.mxu0 0
  %5141 = vmatprep.mubr.bf16.mxu0 0
  %5142 = vmatmul.mubr.bf16.gmra.mrb[0].mxu0 %v4078
  %v5143 = vpop.f32.mrb[0].mxu0
  %v5144 = vadd.f32 0.0, %v5143
  %v5145 = vpop.f32.mrb[0].mxu0
  %v5146 = vadd.f32 0.0, %v5145
  %v5147 = vpop.f32.mrb[0].mxu0
  %v5148 = vpop.f32.mrb[0].mxu0
  %5149 = vdwg.mxu0
  %5150 = vmatprep.subr.bf16.mxu0 %v5048
  %5151 = vmatpush1.bf16.msra.mxu0 %v5047
  %5152 = vmatprep.subr.bf16.mxu0 %v5052
  %5153 = vmatpush1.bf16.msra.mxu0 %v5051
  %5154 = vmatprep.subr.bf16.mxu0 %v5056
  %5155 = vmatpush1.bf16.msra.mxu0 %v5055
  %5156 = vmatprep.subr.bf16.mxu0 %v5060
  %5157 = vmatpush1.bf16.msra.mxu0 %v5059
  %5158 = vmatprep.subr.bf16.mxu0 %v5064
  %5159 = vmatpush1.bf16.msra.mxu0 %v5063
  %5160 = vmatprep.subr.bf16.mxu0 %v5068
  %5161 = vmatpush1.bf16.msra.mxu0 %v5067
  %5162 = vmatprep.subr.bf16.mxu0 %v5072
  %5163 = vmatpush1.bf16.msra.mxu0 %v5071
  %5164 = vmatprep.subr.bf16.mxu0 %v5076
  %5165 = vmatpush1.bf16.msra.mxu0 %v5075
  %5166 = vmatprep.subr.bf16.mxu0 0
  %5167 = vmatpush1.bf16.msra.mxu0 0
  %5168 = vmatprep.subr.bf16.mxu0 0
  %5169 = vmatpush1.bf16.msra.mxu0 0
  %5170 = vmatprep.subr.bf16.mxu0 0
  %5171 = vmatpush1.bf16.msra.mxu0 0
  %5172 = vmatprep.subr.bf16.mxu0 0
  %5173 = vmatpush1.bf16.msra.mxu0 0
  %5174 = vmatprep.subr.bf16.mxu0 0
  %5175 = vmatpush1.bf16.msra.mxu0 0
  %5176 = vmatprep.subr.bf16.mxu0 0
  %5177 = vmatpush1.bf16.msra.mxu0 0
  %5178 = vmatprep.subr.bf16.mxu0 0
  %5179 = vmatpush1.bf16.msra.mxu0 0
  %5180 = vmatprep.subr.bf16.mxu0 0
  %5181 = vmatpush1.bf16.msra.mxu0 0
  %5182 = vmatprep.mubr.bf16.mxu0 0
  %5183 = vmatmul.mubr.bf16.gmra.mrb[0].mxu0 %v4078
  %v5184 = vpop.f32.mrb[0].mxu0
  %v5185 = vadd.f32 0.0, %v5184
  %v5186 = vpop.f32.mrb[0].mxu0
  %v5187 = vadd.f32 0.0, %v5186
  %v5188 = vpop.f32.mrb[0].mxu0
  %v5189 = vpop.f32.mrb[0].mxu0
  %5190 = vdwg.mxu0
  %v5191 = vadd.f32 %v4913, %v5144
  %v5192 = vadd.f32 %v4914, %v5146
  %v5193 = vadd.f32 %v4915, %v5185
  %v5194 = vadd.f32 %v4916, %v5187
  %v5195 = vxor.u32 %v5191, 2147483648
  %v5196 = vmul.f32 %v5195, 1.442695
  %v5197 = vpow.pop %v5196
  %v5198 = vadd.f32 %v5197, 1.0
  %v5199 = vrcp.pop %v5198
  %v5200 = vmul.f32 1.0, %v5199
  %v5201 = vxor.u32 %v5192, 2147483648
  %v5202 = vmul.f32 %v5201, 1.442695
  %v5203 = vpow.pop %v5202
  %v5204 = vadd.f32 %v5203, 1.0
  %v5205 = vrcp.pop %v5204
  %v5206 = vmul.f32 1.0, %v5205
  %v5207 = vtanh.pop %v5193
  %v5208 = vxor.u32 %v5194, 2147483648
  %v5209 = vmul.f32 %v5208, 1.442695
  %v5210 = vpow.pop %v5209
  %v5211 = vadd.f32 %v5210, 1.0
  %v5212 = vrcp.pop %v5211
  %v5213 = vmul.f32 1.0, %v5212
  %v5214 = vmul.f32 %v5206, %v4075
  %v5215 = vmul.f32 %v5200, %v5207
  %v5216 = vadd.f32 %v5214, %v5215
  %v5217 = vtanh.pop %v5216
  %v5218 = vmul.f32 %v5213, %v5217
  %v5219 = vpack.c.bf16 %v5218, %v5218
  %v5220 = vld [vmem:[%s4] sm:$0xff]
  %v5221 = vld [vmem:[%s4 + $0x8] sm:$0xff]
  %v5222 = vld [vmem:[%s4 + $0x10] sm:$0xff]
  %v5223 = vld [vmem:[%s4 + $0x18] sm:$0xff]
  %v5224 = vld [vmem:[%s4 + $0x20] sm:$0xff]
  %v5225 = vld [vmem:[%s4 + $0x28] sm:$0xff]
  %v5226 = vld [vmem:[%s4 + $0x30] sm:$0xff]
  %v5227 = vld [vmem:[%s4 + $0x38] sm:$0xff]
  %v5228 = vld [vmem:[%s4 + $0x40] sm:$0xff]
  %v5229 = vld [vmem:[%s4 + $0x48] sm:$0xff]
  %v5230 = vld [vmem:[%s4 + $0x50] sm:$0xff]
  %v5231 = vld [vmem:[%s4 + $0x58] sm:$0xff]
  %v5232 = vld [vmem:[%s4 + $0x60] sm:$0xff]
  %v5233 = vld [vmem:[%s4 + $0x68] sm:$0xff]
  %v5234 = vld [vmem:[%s4 + $0x70] sm:$0xff]
  %v5235 = vld [vmem:[%s4 + $0x78] sm:$0xff]
  %v5236 = vld [vmem:[%s4 + $0x80] sm:$0xff]
  %v5237 = vld [vmem:[%s4 + $0x88] sm:$0xff]
  %v5238 = vld [vmem:[%s4 + $0x90] sm:$0xff]
  %v5239 = vld [vmem:[%s4 + $0x98] sm:$0xff]
  %v5240 = vld [vmem:[%s4 + $0xa0] sm:$0xff]
  %v5241 = vld [vmem:[%s4 + $0xa8] sm:$0xff]
  %v5242 = vld [vmem:[%s4 + $0xb0] sm:$0xff]
  %v5243 = vld [vmem:[%s4 + $0xb8] sm:$0xff]
  %v5244 = vld [vmem:[%s4 + $0xc0] sm:$0xff]
  %v5245 = vld [vmem:[%s4 + $0xc8] sm:$0xff]
  %v5246 = vld [vmem:[%s4 + $0xd0] sm:$0xff]
  %v5247 = vld [vmem:[%s4 + $0xd8] sm:$0xff]
  %v5248 = vld [vmem:[%s4 + $0xe0] sm:$0xff]
  %v5249 = vld [vmem:[%s4 + $0xe8] sm:$0xff]
  %v5250 = vld [vmem:[%s4 + $0xf0] sm:$0xff]
  %v5251 = vld [vmem:[%s4 + $0xf8] sm:$0xff]
  %v5252 = vld [vmem:[%s4 + $0x100] sm:$0xff]
  %v5253 = vld [vmem:[%s4 + $0x108] sm:$0xff]
  %v5254 = vld [vmem:[%s4 + $0x110] sm:$0xff]
  %v5255 = vld [vmem:[%s4 + $0x118] sm:$0xff]
  %v5256 = vld [vmem:[%s4 + $0x120] sm:$0xff]
  %v5257 = vld [vmem:[%s4 + $0x128] sm:$0xff]
  %v5258 = vld [vmem:[%s4 + $0x130] sm:$0xff]
  %v5259 = vld [vmem:[%s4 + $0x138] sm:$0xff]
  %v5260 = vld [vmem:[%s4 + $0x140] sm:$0xff]
  %v5261 = vld [vmem:[%s4 + $0x148] sm:$0xff]
  %v5262 = vld [vmem:[%s4 + $0x150] sm:$0xff]
  %v5263 = vld [vmem:[%s4 + $0x158] sm:$0xff]
  %v5264 = vld [vmem:[%s4 + $0x160] sm:$0xff]
  %v5265 = vld [vmem:[%s4 + $0x168] sm:$0xff]
  %v5266 = vld [vmem:[%s4 + $0x170] sm:$0xff]
  %v5267 = vld [vmem:[%s4 + $0x178] sm:$0xff]
  %v5268 = vld [vmem:[%s4 + $0x180] sm:$0xff]
  %v5269 = vld [vmem:[%s4 + $0x188] sm:$0xff]
  %v5270 = vld [vmem:[%s4 + $0x190] sm:$0xff]
  %v5271 = vld [vmem:[%s4 + $0x198] sm:$0xff]
  %v5272 = vld [vmem:[%s4 + $0x1a0] sm:$0xff]
  %v5273 = vld [vmem:[%s4 + $0x1a8] sm:$0xff]
  %v5274 = vld [vmem:[%s4 + $0x1b0] sm:$0xff]
  %v5275 = vld [vmem:[%s4 + $0x1b8] sm:$0xff]
  %v5276 = vld [vmem:[%s4 + $0x1c0] sm:$0xff]
  %v5277 = vld [vmem:[%s4 + $0x1c8] sm:$0xff]
  %v5278 = vld [vmem:[%s4 + $0x1d0] sm:$0xff]
  %v5279 = vld [vmem:[%s4 + $0x1d8] sm:$0xff]
  %v5280 = vld [vmem:[%s4 + $0x1e0] sm:$0xff]
  %v5281 = vld [vmem:[%s4 + $0x1e8] sm:$0xff]
  %v5282 = vld [vmem:[%s4 + $0x1f0] sm:$0xff]
  %v5283 = vld [vmem:[%s4 + $0x1f8] sm:$0xff]
  %v5348 = vunpack.c.l.b16 %v5220
  %v5349 = vunpack.c.h.b16 %v5220
  %v5350 = vunpack.c.l.b16 %v5221
  %v5351 = vunpack.c.h.b16 %v5221
  %v5352 = vunpack.c.l.b16 %v5222
  %v5353 = vunpack.c.h.b16 %v5222
  %v5354 = vunpack.c.l.b16 %v5223
  %v5355 = vunpack.c.h.b16 %v5223
  %v5356 = vunpack.c.l.b16 %v5224
  %v5357 = vunpack.c.h.b16 %v5224
  %v5358 = vunpack.c.l.b16 %v5225
  %v5359 = vunpack.c.h.b16 %v5225
  %v5360 = vunpack.c.l.b16 %v5226
  %v5361 = vunpack.c.h.b16 %v5226
  %v5362 = vunpack.c.l.b16 %v5227
  %v5363 = vunpack.c.h.b16 %v5227
  %v5364 = vunpack.c.l.b16 %v5228
  %v5365 = vunpack.c.h.b16 %v5228
  %v5366 = vunpack.c.l.b16 %v5229
  %v5367 = vunpack.c.h.b16 %v5229
  %v5368 = vunpack.c.l.b16 %v5230
  %v5369 = vunpack.c.h.b16 %v5230
  %v5370 = vunpack.c.l.b16 %v5231
  %v5371 = vunpack.c.h.b16 %v5231
  %v5372 = vunpack.c.l.b16 %v5232
  %v5373 = vunpack.c.h.b16 %v5232
  %v5374 = vunpack.c.l.b16 %v5233
  %v5375 = vunpack.c.h.b16 %v5233
  %v5376 = vunpack.c.l.b16 %v5234
  %v5377 = vunpack.c.h.b16 %v5234
  %v5378 = vunpack.c.l.b16 %v5235
  %v5379 = vunpack.c.h.b16 %v5235
  %v5380 = vunpack.c.l.b16 %v5236
  %v5381 = vunpack.c.h.b16 %v5236
  %v5382 = vunpack.c.l.b16 %v5237
  %v5383 = vunpack.c.h.b16 %v5237
  %v5384 = vunpack.c.l.b16 %v5238
  %v5385 = vunpack.c.h.b16 %v5238
  %v5386 = vunpack.c.l.b16 %v5239
  %v5387 = vunpack.c.h.b16 %v5239
  %v5388 = vunpack.c.l.b16 %v5240
  %v5389 = vunpack.c.h.b16 %v5240
  %v5390 = vunpack.c.l.b16 %v5241
  %v5391 = vunpack.c.h.b16 %v5241
  %v5392 = vunpack.c.l.b16 %v5242
  %v5393 = vunpack.c.h.b16 %v5242
  %v5394 = vunpack.c.l.b16 %v5243
  %v5395 = vunpack.c.h.b16 %v5243
  %v5396 = vunpack.c.l.b16 %v5244
  %v5397 = vunpack.c.h.b16 %v5244
  %v5398 = vunpack.c.l.b16 %v5245
  %v5399 = vunpack.c.h.b16 %v5245
  %v5400 = vunpack.c.l.b16 %v5246
  %v5401 = vunpack.c.h.b16 %v5246
  %v5402 = vunpack.c.l.b16 %v5247
  %v5403 = vunpack.c.h.b16 %v5247
  %v5404 = vunpack.c.l.b16 %v5248
  %v5405 = vunpack.c.h.b16 %v5248
  %v5406 = vunpack.c.l.b16 %v5249
  %v5407 = vunpack.c.h.b16 %v5249
  %v5408 = vunpack.c.l.b16 %v5250
  %v5409 = vunpack.c.h.b16 %v5250
  %v5410 = vunpack.c.l.b16 %v5251
  %v5411 = vunpack.c.h.b16 %v5251
  %v5412 = vunpack.c.l.b16 %v5252
  %v5413 = vunpack.c.h.b16 %v5252
  %v5414 = vunpack.c.l.b16 %v5253
  %v5415 = vunpack.c.h.b16 %v5253
  %v5416 = vunpack.c.l.b16 %v5254
  %v5417 = vunpack.c.h.b16 %v5254
  %v5418 = vunpack.c.l.b16 %v5255
  %v5419 = vunpack.c.h.b16 %v5255
  %v5420 = vunpack.c.l.b16 %v5256
  %v5421 = vunpack.c.h.b16 %v5256
  %v5422 = vunpack.c.l.b16 %v5257
  %v5423 = vunpack.c.h.b16 %v5257
  %v5424 = vunpack.c.l.b16 %v5258
  %v5425 = vunpack.c.h.b16 %v5258
  %v5426 = vunpack.c.l.b16 %v5259
  %v5427 = vunpack.c.h.b16 %v5259
  %v5428 = vunpack.c.l.b16 %v5260
  %v5429 = vunpack.c.h.b16 %v5260
  %v5430 = vunpack.c.l.b16 %v5261
  %v5431 = vunpack.c.h.b16 %v5261
  %v5432 = vunpack.c.l.b16 %v5262
  %v5433 = vunpack.c.h.b16 %v5262
  %v5434 = vunpack.c.l.b16 %v5263
  %v5435 = vunpack.c.h.b16 %v5263
  %v5436 = vunpack.c.l.b16 %v5264
  %v5437 = vunpack.c.h.b16 %v5264
  %v5438 = vunpack.c.l.b16 %v5265
  %v5439 = vunpack.c.h.b16 %v5265
  %v5440 = vunpack.c.l.b16 %v5266
  %v5441 = vunpack.c.h.b16 %v5266
  %v5442 = vunpack.c.l.b16 %v5267
  %v5443 = vunpack.c.h.b16 %v5267
  %v5444 = vunpack.c.l.b16 %v5268
  %v5445 = vunpack.c.h.b16 %v5268
  %v5446 = vunpack.c.l.b16 %v5269
  %v5447 = vunpack.c.h.b16 %v5269
  %v5448 = vunpack.c.l.b16 %v5270
  %v5449 = vunpack.c.h.b16 %v5270
  %v5450 = vunpack.c.l.b16 %v5271
  %v5451 = vunpack.c.h.b16 %v5271
  %v5452 = vunpack.c.l.b16 %v5272
  %v5453 = vunpack.c.h.b16 %v5272
  %v5454 = vunpack.c.l.b16 %v5273
  %v5455 = vunpack.c.h.b16 %v5273
  %v5456 = vunpack.c.l.b16 %v5274
  %v5457 = vunpack.c.h.b16 %v5274
  %v5458 = vunpack.c.l.b16 %v5275
  %v5459 = vunpack.c.h.b16 %v5275
  %v5460 = vunpack.c.l.b16 %v5276
  %v5461 = vunpack.c.h.b16 %v5276
  %v5462 = vunpack.c.l.b16 %v5277
  %v5463 = vunpack.c.h.b16 %v5277
  %v5464 = vunpack.c.l.b16 %v5278
  %v5465 = vunpack.c.h.b16 %v5278
  %v5466 = vunpack.c.l.b16 %v5279
  %v5467 = vunpack.c.h.b16 %v5279
  %v5468 = vunpack.c.l.b16 %v5280
  %v5469 = vunpack.c.h.b16 %v5280
  %v5470 = vunpack.c.l.b16 %v5281
  %v5471 = vunpack.c.h.b16 %v5281
  %v5472 = vunpack.c.l.b16 %v5282
  %v5473 = vunpack.c.h.b16 %v5282
  %v5474 = vunpack.c.l.b16 %v5283
  %v5475 = vunpack.c.h.b16 %v5283
  %v5476 = vpack.c.b16 %v5352, %v5348
  %v5477 = vpack.c.b16 %v5353, %v5349
  %v5478 = vpack.c.b16 %v5354, %v5350
  %v5479 = vpack.c.b16 %v5355, %v5351
  %v5480 = vpack.c.b16 %v5360, %v5356
  %v5481 = vpack.c.b16 %v5361, %v5357
  %v5482 = vpack.c.b16 %v5362, %v5358
  %v5483 = vpack.c.b16 %v5363, %v5359
  %v5484 = vpack.c.b16 %v5368, %v5364
  %v5485 = vpack.c.b16 %v5369, %v5365
  %v5486 = vpack.c.b16 %v5370, %v5366
  %v5487 = vpack.c.b16 %v5371, %v5367
  %v5488 = vpack.c.b16 %v5376, %v5372
  %v5489 = vpack.c.b16 %v5377, %v5373
  %v5490 = vpack.c.b16 %v5378, %v5374
  %v5491 = vpack.c.b16 %v5379, %v5375
  %v5492 = vpack.c.b16 %v5384, %v5380
  %v5493 = vpack.c.b16 %v5385, %v5381
  %v5494 = vpack.c.b16 %v5386, %v5382
  %v5495 = vpack.c.b16 %v5387, %v5383
  %v5496 = vpack.c.b16 %v5392, %v5388
  %v5497 = vpack.c.b16 %v5393, %v5389
  %v5498 = vpack.c.b16 %v5394, %v5390
  %v5499 = vpack.c.b16 %v5395, %v5391
  %v5500 = vpack.c.b16 %v5400, %v5396
  %v5501 = vpack.c.b16 %v5401, %v5397
  %v5502 = vpack.c.b16 %v5402, %v5398
  %v5503 = vpack.c.b16 %v5403, %v5399
  %v5504 = vpack.c.b16 %v5408, %v5404
  %v5505 = vpack.c.b16 %v5409, %v5405
  %v5506 = vpack.c.b16 %v5410, %v5406
  %v5507 = vpack.c.b16 %v5411, %v5407
  %v5508 = vpack.c.b16 %v5416, %v5412
  %v5509 = vpack.c.b16 %v5417, %v5413
  %v5510 = vpack.c.b16 %v5418, %v5414
  %v5511 = vpack.c.b16 %v5419, %v5415
  %v5512 = vpack.c.b16 %v5424, %v5420
  %v5513 = vpack.c.b16 %v5425, %v5421
  %v5514 = vpack.c.b16 %v5426, %v5422
  %v5515 = vpack.c.b16 %v5427, %v5423
  %v5516 = vpack.c.b16 %v5432, %v5428
  %v5517 = vpack.c.b16 %v5433, %v5429
  %v5518 = vpack.c.b16 %v5434, %v5430
  %v5519 = vpack.c.b16 %v5435, %v5431
  %v5520 = vpack.c.b16 %v5440, %v5436
  %v5521 = vpack.c.b16 %v5441, %v5437
  %v5522 = vpack.c.b16 %v5442, %v5438
  %v5523 = vpack.c.b16 %v5443, %v5439
  %v5524 = vpack.c.b16 %v5448, %v5444
  %v5525 = vpack.c.b16 %v5449, %v5445
  %v5526 = vpack.c.b16 %v5450, %v5446
  %v5527 = vpack.c.b16 %v5451, %v5447
  %v5528 = vpack.c.b16 %v5456, %v5452
  %v5529 = vpack.c.b16 %v5457, %v5453
  %v5530 = vpack.c.b16 %v5458, %v5454
  %v5531 = vpack.c.b16 %v5459, %v5455
  %v5532 = vpack.c.b16 %v5464, %v5460
  %v5533 = vpack.c.b16 %v5465, %v5461
  %v5534 = vpack.c.b16 %v5466, %v5462
  %v5535 = vpack.c.b16 %v5467, %v5463
  %v5536 = vpack.c.b16 %v5472, %v5468
  %v5537 = vpack.c.b16 %v5473, %v5469
  %v5538 = vpack.c.b16 %v5474, %v5470
  %v5539 = vpack.c.b16 %v5475, %v5471
  %5604 = vmatprep.subr.bf16.mxu0 %v5477
  %5605 = vmatpush1.bf16.msra.mxu0 %v5476
  %5606 = vmatprep.subr.bf16.mxu0 %v5481
  %5607 = vmatpush1.bf16.msra.mxu0 %v5480
  %5608 = vmatprep.subr.bf16.mxu0 %v5485
  %5609 = vmatpush1.bf16.msra.mxu0 %v5484
  %5610 = vmatprep.subr.bf16.mxu0 %v5489
  %5611 = vmatpush1.bf16.msra.mxu0 %v5488
  %5612 = vmatprep.subr.bf16.mxu0 %v5493
  %5613 = vmatpush1.bf16.msra.mxu0 %v5492
  %5614 = vmatprep.subr.bf16.mxu0 %v5497
  %5615 = vmatpush1.bf16.msra.mxu0 %v5496
  %5616 = vmatprep.subr.bf16.mxu0 %v5501
  %5617 = vmatpush1.bf16.msra.mxu0 %v5500
  %5618 = vmatprep.subr.bf16.mxu0 %v5505
  %5619 = vmatpush1.bf16.msra.mxu0 %v5504
  %5620 = vmatprep.subr.bf16.mxu0 %v5509
  %5621 = vmatpush1.bf16.msra.mxu0 %v5508
  %5622 = vmatprep.subr.bf16.mxu0 %v5513
  %5623 = vmatpush1.bf16.msra.mxu0 %v5512
  %5624 = vmatprep.subr.bf16.mxu0 %v5517
  %5625 = vmatpush1.bf16.msra.mxu0 %v5516
  %5626 = vmatprep.subr.bf16.mxu0 %v5521
  %5627 = vmatpush1.bf16.msra.mxu0 %v5520
  %5628 = vmatprep.subr.bf16.mxu0 %v5525
  %5629 = vmatpush1.bf16.msra.mxu0 %v5524
  %5630 = vmatprep.subr.bf16.mxu0 %v5529
  %5631 = vmatpush1.bf16.msra.mxu0 %v5528
  %5632 = vmatprep.subr.bf16.mxu0 %v5533
  %5633 = vmatpush1.bf16.msra.mxu0 %v5532
  %5634 = vmatprep.subr.bf16.mxu0 %v5537
  %5635 = vmatpush1.bf16.msra.mxu0 %v5536
  %5636 = vmatprep.mubr.bf16.mxu0 %v4569
  %5637 = vmatmul.mubr.bf16.gmra.mrb[0].mxu0 %v5219
  %v5638 = vpop.f32.mrb[0].mxu0
  %v5639 = vadd.f32 %v1424, %v5638
  %v5640 = vpop.f32.mrb[0].mxu0
  %v5641 = vadd.f32 %v1428, %v5640
  %v5642 = vpop.f32.mrb[0].mxu0
  %v5643 = vpop.f32.mrb[0].mxu0
  %5644 = vdwg.mxu0
  %5645 = vmatprep.subr.bf16.mxu0 %v5479
  %5646 = vmatpush1.bf16.msra.mxu0 %v5478
  %5647 = vmatprep.subr.bf16.mxu0 %v5483
  %5648 = vmatpush1.bf16.msra.mxu0 %v5482
  %5649 = vmatprep.subr.bf16.mxu0 %v5487
  %5650 = vmatpush1.bf16.msra.mxu0 %v5486
  %5651 = vmatprep.subr.bf16.mxu0 %v5491
  %5652 = vmatpush1.bf16.msra.mxu0 %v5490
  %5653 = vmatprep.subr.bf16.mxu0 %v5495
  %5654 = vmatpush1.bf16.msra.mxu0 %v5494
  %5655 = vmatprep.subr.bf16.mxu0 %v5499
  %5656 = vmatpush1.bf16.msra.mxu0 %v5498
  %5657 = vmatprep.subr.bf16.mxu0 %v5503
  %5658 = vmatpush1.bf16.msra.mxu0 %v5502
  %5659 = vmatprep.subr.bf16.mxu0 %v5507
  %5660 = vmatpush1.bf16.msra.mxu0 %v5506
  %5661 = vmatprep.subr.bf16.mxu0 %v5511
  %5662 = vmatpush1.bf16.msra.mxu0 %v5510
  %5663 = vmatprep.subr.bf16.mxu0 %v5515
  %5664 = vmatpush1.bf16.msra.mxu0 %v5514
  %5665 = vmatprep.subr.bf16.mxu0 %v5519
  %5666 = vmatpush1.bf16.msra.mxu0 %v5518
  %5667 = vmatprep.subr.bf16.mxu0 %v5523
  %5668 = vmatpush1.bf16.msra.mxu0 %v5522
  %5669 = vmatprep.subr.bf16.mxu0 %v5527
  %5670 = vmatpush1.bf16.msra.mxu0 %v5526
  %5671 = vmatprep.subr.bf16.mxu0 %v5531
  %5672 = vmatpush1.bf16.msra.mxu0 %v5530
  %5673 = vmatprep.subr.bf16.mxu0 %v5535
  %5674 = vmatpush1.bf16.msra.mxu0 %v5534
  %5675 = vmatprep.subr.bf16.mxu0 %v5539
  %5676 = vmatpush1.bf16.msra.mxu0 %v5538
  %5677 = vmatprep.mubr.bf16.mxu0 %v4569
  %5678 = vmatmul.mubr.bf16.gmra.mrb[0].mxu0 %v5219
  %v5679 = vpop.f32.mrb[0].mxu0
  %v5680 = vadd.f32 %v1432, %v5679
  %v5681 = vpop.f32.mrb[0].mxu0
  %v5682 = vadd.f32 %v1436, %v5681
  %v5683 = vpop.f32.mrb[0].mxu0
  %v5684 = vpop.f32.mrb[0].mxu0
  %5685 = vdwg.mxu0
  %v5686 = vxor.u32 %v5639, 2147483648
  %v5687 = vmul.f32 %v5686, 1.442695
  %v5688 = vpow.pop %v5687
  %v5689 = vadd.f32 %v5688, 1.0
  %v5690 = vrcp.pop %v5689
  %v5691 = vmul.f32 1.0, %v5690
  %v5692 = vxor.u32 %v5641, 2147483648
  %v5693 = vmul.f32 %v5692, 1.442695
  %v5694 = vpow.pop %v5693
  %v5695 = vadd.f32 %v5694, 1.0
  %v5696 = vrcp.pop %v5695
  %v5697 = vmul.f32 1.0, %v5696
  %v5698 = vtanh.pop %v5680
  %v5699 = vxor.u32 %v5682, 2147483648
  %v5700 = vmul.f32 %v5699, 1.442695
  %v5701 = vpow.pop %v5700
  %v5702 = vadd.f32 %v5701, 1.0
  %v5703 = vrcp.pop %v5702
  %v5704 = vmul.f32 1.0, %v5703
  %v5705 = vmul.f32 %v5697, %v4566
  %v5706 = vmul.f32 %v5691, %v5698
  %v5707 = vadd.f32 %v5705, %v5706
  %v5708 = vtanh.pop %v5707
  %v5709 = vmul.f32 %v5704, %v5708
  %v5710 = vpack.c.bf16 %v5709, %v5709
  %v5711 = vld [vmem:[#allocation3] sm:$0xff]
  %v5712 = vld [vmem:[#allocation3 + $0x8] sm:$0xff]
  %v5713 = vld [vmem:[#allocation3 + $0x10] sm:$0xff]
  %v5714 = vld [vmem:[#allocation3 + $0x18] sm:$0xff]
  %v5715 = vld [vmem:[#allocation3 + $0x20] sm:$0xff]
  %v5716 = vld [vmem:[#allocation3 + $0x28] sm:$0xff]
  %v5717 = vld [vmem:[#allocation3 + $0x30] sm:$0xff]
  %v5718 = vld [vmem:[#allocation3 + $0x38] sm:$0xff]
  %v5719 = vld [vmem:[#allocation3 + $0x40] sm:$0xff]
  %v5720 = vld [vmem:[#allocation3 + $0x48] sm:$0xff]
  %v5721 = vld [vmem:[#allocation3 + $0x50] sm:$0xff]
  %v5722 = vld [vmem:[#allocation3 + $0x58] sm:$0xff]
  %v5723 = vld [vmem:[#allocation3 + $0x60] sm:$0xff]
  %v5724 = vld [vmem:[#allocation3 + $0x68] sm:$0xff]
  %v5725 = vld [vmem:[#allocation3 + $0x70] sm:$0xff]
  %v5726 = vld [vmem:[#allocation3 + $0x78] sm:$0xff]
  %v5727 = vld [vmem:[#allocation3 + $0x80] sm:$0xff]
  %v5728 = vld [vmem:[#allocation3 + $0x88] sm:$0xff]
  %v5729 = vld [vmem:[#allocation3 + $0x90] sm:$0xff]
  %v5730 = vld [vmem:[#allocation3 + $0x98] sm:$0xff]
  %v5731 = vld [vmem:[#allocation3 + $0xa0] sm:$0xff]
  %v5732 = vld [vmem:[#allocation3 + $0xa8] sm:$0xff]
  %v5733 = vld [vmem:[#allocation3 + $0xb0] sm:$0xff]
  %v5734 = vld [vmem:[#allocation3 + $0xb8] sm:$0xff]
  %v5735 = vld [vmem:[#allocation3 + $0xc0] sm:$0xff]
  %v5736 = vld [vmem:[#allocation3 + $0xc8] sm:$0xff]
  %v5737 = vld [vmem:[#allocation3 + $0xd0] sm:$0xff]
  %v5738 = vld [vmem:[#allocation3 + $0xd8] sm:$0xff]
  %v5739 = vld [vmem:[#allocation3 + $0xe0] sm:$0xff]
  %v5740 = vld [vmem:[#allocation3 + $0xe8] sm:$0xff]
  %v5741 = vld [vmem:[#allocation3 + $0xf0] sm:$0xff]
  %v5742 = vld [vmem:[#allocation3 + $0xf8] sm:$0xff]
  %v5743 = vld [vmem:[#allocation3 + $0x100] sm:$0xff]
  %v5744 = vld [vmem:[#allocation3 + $0x108] sm:$0xff]
  %v5745 = vld [vmem:[#allocation3 + $0x110] sm:$0xff]
  %v5746 = vld [vmem:[#allocation3 + $0x118] sm:$0xff]
  %v5747 = vld [vmem:[#allocation3 + $0x120] sm:$0xff]
  %v5748 = vld [vmem:[#allocation3 + $0x128] sm:$0xff]
  %v5749 = vld [vmem:[#allocation3 + $0x130] sm:$0xff]
  %v5750 = vld [vmem:[#allocation3 + $0x138] sm:$0xff]
  %v5751 = vld [vmem:[#allocation3 + $0x140] sm:$0xff]
  %v5752 = vld [vmem:[#allocation3 + $0x148] sm:$0xff]
  %v5753 = vld [vmem:[#allocation3 + $0x150] sm:$0xff]
  %v5754 = vld [vmem:[#allocation3 + $0x158] sm:$0xff]
  %v5755 = vld [vmem:[#allocation3 + $0x160] sm:$0xff]
  %v5756 = vld [vmem:[#allocation3 + $0x168] sm:$0xff]
  %v5757 = vld [vmem:[#allocation3 + $0x170] sm:$0xff]
  %v5758 = vld [vmem:[#allocation3 + $0x178] sm:$0xff]
  %v5759 = vld [vmem:[#allocation3 + $0x180] sm:$0xff]
  %v5760 = vld [vmem:[#allocation3 + $0x188] sm:$0xff]
  %v5761 = vld [vmem:[#allocation3 + $0x190] sm:$0xff]
  %v5762 = vld [vmem:[#allocation3 + $0x198] sm:$0xff]
  %v5763 = vld [vmem:[#allocation3 + $0x1a0] sm:$0xff]
  %v5764 = vld [vmem:[#allocation3 + $0x1a8] sm:$0xff]
  %v5765 = vld [vmem:[#allocation3 + $0x1b0] sm:$0xff]
  %v5766 = vld [vmem:[#allocation3 + $0x1b8] sm:$0xff]
  %v5767 = vld [vmem:[#allocation3 + $0x1c0] sm:$0xff]
  %v5768 = vld [vmem:[#allocation3 + $0x1c8] sm:$0xff]
  %v5769 = vld [vmem:[#allocation3 + $0x1d0] sm:$0xff]
  %v5770 = vld [vmem:[#allocation3 + $0x1d8] sm:$0xff]
  %v5771 = vld [vmem:[#allocation3 + $0x1e0] sm:$0xff]
  %v5772 = vld [vmem:[#allocation3 + $0x1e8] sm:$0xff]
  %v5773 = vld [vmem:[#allocation3 + $0x1f0] sm:$0xff]
  %v5774 = vld [vmem:[#allocation3 + $0x1f8] sm:$0xff]
  %5775 = vmatprep.subr.bf16.mxu0 %v5712
  %5776 = vmatpush1.bf16.msra.mxu0 %v5711
  %5777 = vmatprep.subr.bf16.mxu0 %v5716
  %5778 = vmatpush1.bf16.msra.mxu0 %v5715
  %5779 = vmatprep.subr.bf16.mxu0 %v5720
  %5780 = vmatpush1.bf16.msra.mxu0 %v5719
  %5781 = vmatprep.subr.bf16.mxu0 %v5724
  %5782 = vmatpush1.bf16.msra.mxu0 %v5723
  %5783 = vmatprep.subr.bf16.mxu0 %v5728
  %5784 = vmatpush1.bf16.msra.mxu0 %v5727
  %5785 = vmatprep.subr.bf16.mxu0 %v5732
  %5786 = vmatpush1.bf16.msra.mxu0 %v5731
  %5787 = vmatprep.subr.bf16.mxu0 %v5736
  %5788 = vmatpush1.bf16.msra.mxu0 %v5735
  %5789 = vmatprep.subr.bf16.mxu0 %v5740
  %5790 = vmatpush1.bf16.msra.mxu0 %v5739
  %5791 = vmatprep.subr.bf16.mxu0 %v5744
  %5792 = vmatpush1.bf16.msra.mxu0 %v5743
  %5793 = vmatprep.subr.bf16.mxu0 %v5748
  %5794 = vmatpush1.bf16.msra.mxu0 %v5747
  %5795 = vmatprep.subr.bf16.mxu0 %v5752
  %5796 = vmatpush1.bf16.msra.mxu0 %v5751
  %5797 = vmatprep.subr.bf16.mxu0 %v5756
  %5798 = vmatpush1.bf16.msra.mxu0 %v5755
  %5799 = vmatprep.subr.bf16.mxu0 %v5760
  %5800 = vmatpush1.bf16.msra.mxu0 %v5759
  %5801 = vmatprep.subr.bf16.mxu0 %v5764
  %5802 = vmatpush1.bf16.msra.mxu0 %v5763
  %5803 = vmatprep.subr.bf16.mxu0 %v5768
  %5804 = vmatpush1.bf16.msra.mxu0 %v5767
  %5805 = vmatprep.subr.bf16.mxu0 %v5772
  %5806 = vmatpush1.bf16.msra.mxu0 %v5771
  %5807 = vmatprep.mubr.bf16.mxu0 %v4740
  %5808 = vmatmul.mubr.bf16.gmra.mrb[0].mxu0 %v5710
  %v5809 = vpop.f32.mrb[0].mxu0
  %v5810 = vadd.f32 %v1446, %v5809
  %v5811 = vpop.f32.mrb[0].mxu0
  %v5812 = vadd.f32 %v1450, %v5811
  %v5813 = vpop.f32.mrb[0].mxu0
  %v5814 = vpop.f32.mrb[0].mxu0
  %5815 = vdwg.mxu0
  %5816 = vmatprep.subr.bf16.mxu0 %v5714
  %5817 = vmatpush1.bf16.msra.mxu0 %v5713
  %5818 = vmatprep.subr.bf16.mxu0 %v5718
  %5819 = vmatpush1.bf16.msra.mxu0 %v5717
  %5820 = vmatprep.subr.bf16.mxu0 %v5722
  %5821 = vmatpush1.bf16.msra.mxu0 %v5721
  %5822 = vmatprep.subr.bf16.mxu0 %v5726
  %5823 = vmatpush1.bf16.msra.mxu0 %v5725
  %5824 = vmatprep.subr.bf16.mxu0 %v5730
  %5825 = vmatpush1.bf16.msra.mxu0 %v5729
  %5826 = vmatprep.subr.bf16.mxu0 %v5734
  %5827 = vmatpush1.bf16.msra.mxu0 %v5733
  %5828 = vmatprep.subr.bf16.mxu0 %v5738
  %5829 = vmatpush1.bf16.msra.mxu0 %v5737
  %5830 = vmatprep.subr.bf16.mxu0 %v5742
  %5831 = vmatpush1.bf16.msra.mxu0 %v5741
  %5832 = vmatprep.subr.bf16.mxu0 %v5746
  %5833 = vmatpush1.bf16.msra.mxu0 %v5745
  %5834 = vmatprep.subr.bf16.mxu0 %v5750
  %5835 = vmatpush1.bf16.msra.mxu0 %v5749
  %5836 = vmatprep.subr.bf16.mxu0 %v5754
  %5837 = vmatpush1.bf16.msra.mxu0 %v5753
  %5838 = vmatprep.subr.bf16.mxu0 %v5758
  %5839 = vmatpush1.bf16.msra.mxu0 %v5757
  %5840 = vmatprep.subr.bf16.mxu0 %v5762
  %5841 = vmatpush1.bf16.msra.mxu0 %v5761
  %5842 = vmatprep.subr.bf16.mxu0 %v5766
  %5843 = vmatpush1.bf16.msra.mxu0 %v5765
  %5844 = vmatprep.subr.bf16.mxu0 %v5770
  %5845 = vmatpush1.bf16.msra.mxu0 %v5769
  %5846 = vmatprep.subr.bf16.mxu0 %v5774
  %5847 = vmatpush1.bf16.msra.mxu0 %v5773
  %5848 = vmatprep.mubr.bf16.mxu0 %v4740
  %5849 = vmatmul.mubr.bf16.gmra.mrb[0].mxu0 %v5710
  %v5850 = vpop.f32.mrb[0].mxu0
  %v5851 = vadd.f32 %v1454, %v5850
  %v5852 = vpop.f32.mrb[0].mxu0
  %v5853 = vadd.f32 %v1458, %v5852
  %v5854 = vpop.f32.mrb[0].mxu0
  %v5855 = vpop.f32.mrb[0].mxu0
  %5856 = vdwg.mxu0
  %v5857 = vxor.u32 %v5810, 2147483648
  %v5858 = vmul.f32 %v5857, 1.442695
  %v5859 = vpow.pop %v5858
  %v5860 = vadd.f32 %v5859, 1.0
  %v5861 = vrcp.pop %v5860
  %v5862 = vmul.f32 1.0, %v5861
  %v5863 = vxor.u32 %v5812, 2147483648
  %v5864 = vmul.f32 %v5863, 1.442695
  %v5865 = vpow.pop %v5864
  %v5866 = vadd.f32 %v5865, 1.0
  %v5867 = vrcp.pop %v5866
  %v5868 = vmul.f32 1.0, %v5867
  %v5869 = vtanh.pop %v5851
  %v5870 = vxor.u32 %v5853, 2147483648
  %v5871 = vmul.f32 %v5870, 1.442695
  %v5872 = vpow.pop %v5871
  %v5873 = vadd.f32 %v5872, 1.0
  %v5874 = vrcp.pop %v5873
  %v5875 = vmul.f32 1.0, %v5874
  %v5876 = vmul.f32 %v5868, %v4737
  %v5877 = vmul.f32 %v5862, %v5869
  %v5878 = vadd.f32 %v5876, %v5877
  %v5879 = vtanh.pop %v5878
  %v5880 = vmul.f32 %v5875, %v5879
  %v5881 = vpack.c.bf16 %v5880, %v5880
  %v5882 = vpack.c.bf16 %v4911, %v4911
  %v5883 = vld [vmem:[#allocation4] sm:$0xff]
  %v5884 = vld [vmem:[#allocation4 + $0x8] sm:$0xff]
  %v5885 = vld [vmem:[#allocation4 + $0x10] sm:$0xff]
  %v5886 = vld [vmem:[#allocation4 + $0x18] sm:$0xff]
  %v5887 = vld [vmem:[#allocation4 + $0x20] sm:$0xff]
  %v5888 = vld [vmem:[#allocation4 + $0x28] sm:$0xff]
  %v5889 = vld [vmem:[#allocation4 + $0x30] sm:$0xff]
  %v5890 = vld [vmem:[#allocation4 + $0x38] sm:$0xff]
  %v5891 = vld [vmem:[#allocation4 + $0x40] sm:$0xff]
  %v5892 = vld [vmem:[#allocation4 + $0x48] sm:$0xff]
  %v5893 = vld [vmem:[#allocation4 + $0x50] sm:$0xff]
  %v5894 = vld [vmem:[#allocation4 + $0x58] sm:$0xff]
  %v5895 = vld [vmem:[#allocation4 + $0x60] sm:$0xff]
  %v5896 = vld [vmem:[#allocation4 + $0x68] sm:$0xff]
  %v5897 = vld [vmem:[#allocation4 + $0x70] sm:$0xff]
  %v5898 = vld [vmem:[#allocation4 + $0x78] sm:$0xff]
  %v5899 = vld [vmem:[#allocation4 + $0x80] sm:$0xff]
  %v5900 = vld [vmem:[#allocation4 + $0x88] sm:$0xff]
  %v5901 = vld [vmem:[#allocation4 + $0x90] sm:$0xff]
  %v5902 = vld [vmem:[#allocation4 + $0x98] sm:$0xff]
  %v5903 = vld [vmem:[#allocation4 + $0xa0] sm:$0xff]
  %v5904 = vld [vmem:[#allocation4 + $0xa8] sm:$0xff]
  %v5905 = vld [vmem:[#allocation4 + $0xb0] sm:$0xff]
  %v5906 = vld [vmem:[#allocation4 + $0xb8] sm:$0xff]
  %v5907 = vld [vmem:[#allocation4 + $0xc0] sm:$0xff]
  %v5908 = vld [vmem:[#allocation4 + $0xc8] sm:$0xff]
  %v5909 = vld [vmem:[#allocation4 + $0xd0] sm:$0xff]
  %v5910 = vld [vmem:[#allocation4 + $0xd8] sm:$0xff]
  %v5911 = vld [vmem:[#allocation4 + $0xe0] sm:$0xff]
  %v5912 = vld [vmem:[#allocation4 + $0xe8] sm:$0xff]
  %v5913 = vld [vmem:[#allocation4 + $0xf0] sm:$0xff]
  %v5914 = vld [vmem:[#allocation4 + $0xf8] sm:$0xff]
  %v5915 = vld [vmem:[#allocation4 + $0x100] sm:$0xff]
  %v5916 = vld [vmem:[#allocation4 + $0x108] sm:$0xff]
  %v5917 = vld [vmem:[#allocation4 + $0x110] sm:$0xff]
  %v5918 = vld [vmem:[#allocation4 + $0x118] sm:$0xff]
  %v5919 = vld [vmem:[#allocation4 + $0x120] sm:$0xff]
  %v5920 = vld [vmem:[#allocation4 + $0x128] sm:$0xff]
  %v5921 = vld [vmem:[#allocation4 + $0x130] sm:$0xff]
  %v5922 = vld [vmem:[#allocation4 + $0x138] sm:$0xff]
  %v5923 = vld [vmem:[#allocation4 + $0x140] sm:$0xff]
  %v5924 = vld [vmem:[#allocation4 + $0x148] sm:$0xff]
  %v5925 = vld [vmem:[#allocation4 + $0x150] sm:$0xff]
  %v5926 = vld [vmem:[#allocation4 + $0x158] sm:$0xff]
  %v5927 = vld [vmem:[#allocation4 + $0x160] sm:$0xff]
  %v5928 = vld [vmem:[#allocation4 + $0x168] sm:$0xff]
  %v5929 = vld [vmem:[#allocation4 + $0x170] sm:$0xff]
  %v5930 = vld [vmem:[#allocation4 + $0x178] sm:$0xff]
  %v5931 = vld [vmem:[#allocation4 + $0x180] sm:$0xff]
  %v5932 = vld [vmem:[#allocation4 + $0x188] sm:$0xff]
  %v5933 = vld [vmem:[#allocation4 + $0x190] sm:$0xff]
  %v5934 = vld [vmem:[#allocation4 + $0x198] sm:$0xff]
  %v5935 = vld [vmem:[#allocation4 + $0x1a0] sm:$0xff]
  %v5936 = vld [vmem:[#allocation4 + $0x1a8] sm:$0xff]
  %v5937 = vld [vmem:[#allocation4 + $0x1b0] sm:$0xff]
  %v5938 = vld [vmem:[#allocation4 + $0x1b8] sm:$0xff]
  %v5939 = vld [vmem:[#allocation4 + $0x1c0] sm:$0xff]
  %v5940 = vld [vmem:[#allocation4 + $0x1c8] sm:$0xff]
  %v5941 = vld [vmem:[#allocation4 + $0x1d0] sm:$0xff]
  %v5942 = vld [vmem:[#allocation4 + $0x1d8] sm:$0xff]
  %v5943 = vld [vmem:[#allocation4 + $0x1e0] sm:$0xff]
  %v5944 = vld [vmem:[#allocation4 + $0x1e8] sm:$0xff]
  %v5945 = vld [vmem:[#allocation4 + $0x1f0] sm:$0xff]
  %v5946 = vld [vmem:[#allocation4 + $0x1f8] sm:$0xff]
  %5947 = vmatprep.subr.bf16.mxu0 %v5884
  %5948 = vmatpush1.bf16.msra.mxu0 %v5883
  %5949 = vmatprep.subr.bf16.mxu0 %v5888
  %5950 = vmatpush1.bf16.msra.mxu0 %v5887
  %5951 = vmatprep.subr.bf16.mxu0 %v5892
  %5952 = vmatpush1.bf16.msra.mxu0 %v5891
  %5953 = vmatprep.subr.bf16.mxu0 %v5896
  %5954 = vmatpush1.bf16.msra.mxu0 %v5895
  %5955 = vmatprep.subr.bf16.mxu0 %v5900
  %5956 = vmatpush1.bf16.msra.mxu0 %v5899
  %5957 = vmatprep.subr.bf16.mxu0 %v5904
  %5958 = vmatpush1.bf16.msra.mxu0 %v5903
  %5959 = vmatprep.subr.bf16.mxu0 %v5908
  %5960 = vmatpush1.bf16.msra.mxu0 %v5907
  %5961 = vmatprep.subr.bf16.mxu0 %v5912
  %5962 = vmatpush1.bf16.msra.mxu0 %v5911
  %5963 = vmatprep.subr.bf16.mxu0 %v5916
  %5964 = vmatpush1.bf16.msra.mxu0 %v5915
  %5965 = vmatprep.subr.bf16.mxu0 %v5920
  %5966 = vmatpush1.bf16.msra.mxu0 %v5919
  %5967 = vmatprep.subr.bf16.mxu0 %v5924
  %5968 = vmatpush1.bf16.msra.mxu0 %v5923
  %5969 = vmatprep.subr.bf16.mxu0 %v5928
  %5970 = vmatpush1.bf16.msra.mxu0 %v5927
  %5971 = vmatprep.subr.bf16.mxu0 %v5932
  %5972 = vmatpush1.bf16.msra.mxu0 %v5931
  %5973 = vmatprep.subr.bf16.mxu0 %v5936
  %5974 = vmatpush1.bf16.msra.mxu0 %v5935
  %5975 = vmatprep.subr.bf16.mxu0 %v5940
  %5976 = vmatpush1.bf16.msra.mxu0 %v5939
  %5977 = vmatprep.subr.bf16.mxu0 %v5944
  %5978 = vmatpush1.bf16.msra.mxu0 %v5943
  %5979 = vmatprep.mubr.bf16.mxu0 %v5882
  %5980 = vmatmul.mubr.bf16.gmra.mrb[0].mxu0 %v5881
  %v5981 = vpop.f32.mrb[0].mxu0
  %v5982 = vadd.f32 %v1468, %v5981
  %v5983 = vpop.f32.mrb[0].mxu0
  %v5984 = vadd.f32 %v1472, %v5983
  %v5985 = vpop.f32.mrb[0].mxu0
  %v5986 = vpop.f32.mrb[0].mxu0
  %5987 = vdwg.mxu0
  %5988 = vmatprep.subr.bf16.mxu0 %v5886
  %5989 = vmatpush1.bf16.msra.mxu0 %v5885
  %5990 = vmatprep.subr.bf16.mxu0 %v5890
  %5991 = vmatpush1.bf16.msra.mxu0 %v5889
  %5992 = vmatprep.subr.bf16.mxu0 %v5894
  %5993 = vmatpush1.bf16.msra.mxu0 %v5893
  %5994 = vmatprep.subr.bf16.mxu0 %v5898
  %5995 = vmatpush1.bf16.msra.mxu0 %v5897
  %5996 = vmatprep.subr.bf16.mxu0 %v5902
  %5997 = vmatpush1.bf16.msra.mxu0 %v5901
  %5998 = vmatprep.subr.bf16.mxu0 %v5906
  %5999 = vmatpush1.bf16.msra.mxu0 %v5905
  %6000 = vmatprep.subr.bf16.mxu0 %v5910
  %6001 = vmatpush1.bf16.msra.mxu0 %v5909
  %6002 = vmatprep.subr.bf16.mxu0 %v5914
  %6003 = vmatpush1.bf16.msra.mxu0 %v5913
  %6004 = vmatprep.subr.bf16.mxu0 %v5918
  %6005 = vmatpush1.bf16.msra.mxu0 %v5917
  %6006 = vmatprep.subr.bf16.mxu0 %v5922
  %6007 = vmatpush1.bf16.msra.mxu0 %v5921
  %6008 = vmatprep.subr.bf16.mxu0 %v5926
  %6009 = vmatpush1.bf16.msra.mxu0 %v5925
  %6010 = vmatprep.subr.bf16.mxu0 %v5930
  %6011 = vmatpush1.bf16.msra.mxu0 %v5929
  %6012 = vmatprep.subr.bf16.mxu0 %v5934
  %6013 = vmatpush1.bf16.msra.mxu0 %v5933
  %6014 = vmatprep.subr.bf16.mxu0 %v5938
  %6015 = vmatpush1.bf16.msra.mxu0 %v5937
  %6016 = vmatprep.subr.bf16.mxu0 %v5942
  %6017 = vmatpush1.bf16.msra.mxu0 %v5941
  %6018 = vmatprep.subr.bf16.mxu0 %v5946
  %6019 = vmatpush1.bf16.msra.mxu0 %v5945
  %6020 = vmatprep.mubr.bf16.mxu0 %v5882
  %6021 = vmatmul.mubr.bf16.gmra.mrb[0].mxu0 %v5881
  %v6022 = vpop.f32.mrb[0].mxu0
  %v6023 = vadd.f32 %v1476, %v6022
  %v6024 = vpop.f32.mrb[0].mxu0
  %v6025 = vadd.f32 %v1480, %v6024
  %v6026 = vpop.f32.mrb[0].mxu0
  %v6027 = vpop.f32.mrb[0].mxu0
  %6028 = vdwg.mxu0
  %v6029 = vxor.u32 %v5982, 2147483648
  %v6030 = vmul.f32 %v6029, 1.442695
  %v6031 = vpow.pop %v6030
  %v6032 = vadd.f32 %v6031, 1.0
  %v6033 = vrcp.pop %v6032
  %v6034 = vmul.f32 1.0, %v6033
  %v6035 = vxor.u32 %v5984, 2147483648
  %v6036 = vmul.f32 %v6035, 1.442695
  %v6037 = vpow.pop %v6036
  %v6038 = vadd.f32 %v6037, 1.0
  %v6039 = vrcp.pop %v6038
  %v6040 = vmul.f32 1.0, %v6039
  %v6041 = vtanh.pop %v6023
  %v6042 = vxor.u32 %v6025, 2147483648
  %v6043 = vmul.f32 %v6042, 1.442695
  %v6044 = vpow.pop %v6043
  %v6045 = vadd.f32 %v6044, 1.0
  %v6046 = vrcp.pop %v6045
  %v6047 = vmul.f32 1.0, %v6046
  %v6048 = vmul.f32 %v6040, %v4909
  %v6049 = vmul.f32 %v6034, %v6041
  %v6050 = vadd.f32 %v6048, %v6049
  %v6051 = vtanh.pop %v6050
  %v6052 = vmul.f32 %v6047, %v6051
  %6053 = vst [vmem:[%s10 + $0x18] sm:$0xff] %v6052
  %v6054 = vld [vmem:[#allocation2 + $0x80] sm:$0xff]
  %v6055 = vld [vmem:[#allocation2 + $0x88] sm:$0xff]
  %v6056 = vld [vmem:[#allocation2 + $0x90] sm:$0xff]
  %v6057 = vld [vmem:[#allocation2 + $0x98] sm:$0xff]
  %v6058 = vld [vmem:[%s3] sm:$0xff]
  %v6059 = vld [vmem:[%s3 + $0x8] sm:$0xff]
  %v6060 = vld [vmem:[%s3 + $0x10] sm:$0xff]
  %v6061 = vld [vmem:[%s3 + $0x18] sm:$0xff]
  %v6062 = vld [vmem:[%s3 + $0x20] sm:$0xff]
  %v6063 = vld [vmem:[%s3 + $0x28] sm:$0xff]
  %v6064 = vld [vmem:[%s3 + $0x30] sm:$0xff]
  %v6065 = vld [vmem:[%s3 + $0x38] sm:$0xff]
  %v6066 = vld [vmem:[%s3 + $0x40] sm:$0xff]
  %v6067 = vld [vmem:[%s3 + $0x48] sm:$0xff]
  %v6068 = vld [vmem:[%s3 + $0x50] sm:$0xff]
  %v6069 = vld [vmem:[%s3 + $0x58] sm:$0xff]
  %v6070 = vld [vmem:[%s3 + $0x60] sm:$0xff]
  %v6071 = vld [vmem:[%s3 + $0x68] sm:$0xff]
  %v6072 = vld [vmem:[%s3 + $0x70] sm:$0xff]
  %v6073 = vld [vmem:[%s3 + $0x78] sm:$0xff]
  %v6074 = vld [vmem:[%s3 + $0x80] sm:$0xff]
  %v6075 = vld [vmem:[%s3 + $0x88] sm:$0xff]
  %v6076 = vld [vmem:[%s3 + $0x90] sm:$0xff]
  %v6077 = vld [vmem:[%s3 + $0x98] sm:$0xff]
  %v6078 = vld [vmem:[%s3 + $0xa0] sm:$0xff]
  %v6079 = vld [vmem:[%s3 + $0xa8] sm:$0xff]
  %v6080 = vld [vmem:[%s3 + $0xb0] sm:$0xff]
  %v6081 = vld [vmem:[%s3 + $0xb8] sm:$0xff]
  %v6082 = vld [vmem:[%s3 + $0xc0] sm:$0xff]
  %v6083 = vld [vmem:[%s3 + $0xc8] sm:$0xff]
  %v6084 = vld [vmem:[%s3 + $0xd0] sm:$0xff]
  %v6085 = vld [vmem:[%s3 + $0xd8] sm:$0xff]
  %v6086 = vld [vmem:[%s3 + $0xe0] sm:$0xff]
  %v6087 = vld [vmem:[%s3 + $0xe8] sm:$0xff]
  %v6088 = vld [vmem:[%s3 + $0xf0] sm:$0xff]
  %v6089 = vld [vmem:[%s3 + $0xf8] sm:$0xff]
  %v6122 = vunpack.c.l.b16 %v6058
  %v6123 = vunpack.c.h.b16 %v6058
  %v6124 = vunpack.c.l.b16 %v6059
  %v6125 = vunpack.c.h.b16 %v6059
  %v6126 = vunpack.c.l.b16 %v6060
  %v6127 = vunpack.c.h.b16 %v6060
  %v6128 = vunpack.c.l.b16 %v6061
  %v6129 = vunpack.c.h.b16 %v6061
  %v6130 = vunpack.c.l.b16 %v6062
  %v6131 = vunpack.c.h.b16 %v6062
  %v6132 = vunpack.c.l.b16 %v6063
  %v6133 = vunpack.c.h.b16 %v6063
  %v6134 = vunpack.c.l.b16 %v6064
  %v6135 = vunpack.c.h.b16 %v6064
  %v6136 = vunpack.c.l.b16 %v6065
  %v6137 = vunpack.c.h.b16 %v6065
  %v6138 = vunpack.c.l.b16 %v6066
  %v6139 = vunpack.c.h.b16 %v6066
  %v6140 = vunpack.c.l.b16 %v6067
  %v6141 = vunpack.c.h.b16 %v6067
  %v6142 = vunpack.c.l.b16 %v6068
  %v6143 = vunpack.c.h.b16 %v6068
  %v6144 = vunpack.c.l.b16 %v6069
  %v6145 = vunpack.c.h.b16 %v6069
  %v6146 = vunpack.c.l.b16 %v6070
  %v6147 = vunpack.c.h.b16 %v6070
  %v6148 = vunpack.c.l.b16 %v6071
  %v6149 = vunpack.c.h.b16 %v6071
  %v6150 = vunpack.c.l.b16 %v6072
  %v6151 = vunpack.c.h.b16 %v6072
  %v6152 = vunpack.c.l.b16 %v6073
  %v6153 = vunpack.c.h.b16 %v6073
  %v6154 = vunpack.c.l.b16 %v6074
  %v6155 = vunpack.c.h.b16 %v6074
  %v6156 = vunpack.c.l.b16 %v6075
  %v6157 = vunpack.c.h.b16 %v6075
  %v6158 = vunpack.c.l.b16 %v6076
  %v6159 = vunpack.c.h.b16 %v6076
  %v6160 = vunpack.c.l.b16 %v6077
  %v6161 = vunpack.c.h.b16 %v6077
  %v6162 = vunpack.c.l.b16 %v6078
  %v6163 = vunpack.c.h.b16 %v6078
  %v6164 = vunpack.c.l.b16 %v6079
  %v6165 = vunpack.c.h.b16 %v6079
  %v6166 = vunpack.c.l.b16 %v6080
  %v6167 = vunpack.c.h.b16 %v6080
  %v6168 = vunpack.c.l.b16 %v6081
  %v6169 = vunpack.c.h.b16 %v6081
  %v6170 = vunpack.c.l.b16 %v6082
  %v6171 = vunpack.c.h.b16 %v6082
  %v6172 = vunpack.c.l.b16 %v6083
  %v6173 = vunpack.c.h.b16 %v6083
  %v6174 = vunpack.c.l.b16 %v6084
  %v6175 = vunpack.c.h.b16 %v6084
  %v6176 = vunpack.c.l.b16 %v6085
  %v6177 = vunpack.c.h.b16 %v6085
  %v6178 = vunpack.c.l.b16 %v6086
  %v6179 = vunpack.c.h.b16 %v6086
  %v6180 = vunpack.c.l.b16 %v6087
  %v6181 = vunpack.c.h.b16 %v6087
  %v6182 = vunpack.c.l.b16 %v6088
  %v6183 = vunpack.c.h.b16 %v6088
  %v6184 = vunpack.c.l.b16 %v6089
  %v6185 = vunpack.c.h.b16 %v6089
  %v6186 = vpack.c.b16 %v6126, %v6122
  %v6187 = vpack.c.b16 %v6127, %v6123
  %v6188 = vpack.c.b16 %v6128, %v6124
  %v6189 = vpack.c.b16 %v6129, %v6125
  %v6190 = vpack.c.b16 %v6134, %v6130
  %v6191 = vpack.c.b16 %v6135, %v6131
  %v6192 = vpack.c.b16 %v6136, %v6132
  %v6193 = vpack.c.b16 %v6137, %v6133
  %v6194 = vpack.c.b16 %v6142, %v6138
  %v6195 = vpack.c.b16 %v6143, %v6139
  %v6196 = vpack.c.b16 %v6144, %v6140
  %v6197 = vpack.c.b16 %v6145, %v6141
  %v6198 = vpack.c.b16 %v6150, %v6146
  %v6199 = vpack.c.b16 %v6151, %v6147
  %v6200 = vpack.c.b16 %v6152, %v6148
  %v6201 = vpack.c.b16 %v6153, %v6149
  %v6202 = vpack.c.b16 %v6158, %v6154
  %v6203 = vpack.c.b16 %v6159, %v6155
  %v6204 = vpack.c.b16 %v6160, %v6156
  %v6205 = vpack.c.b16 %v6161, %v6157
  %v6206 = vpack.c.b16 %v6166, %v6162
  %v6207 = vpack.c.b16 %v6167, %v6163
  %v6208 = vpack.c.b16 %v6168, %v6164
  %v6209 = vpack.c.b16 %v6169, %v6165
  %v6210 = vpack.c.b16 %v6174, %v6170
  %v6211 = vpack.c.b16 %v6175, %v6171
  %v6212 = vpack.c.b16 %v6176, %v6172
  %v6213 = vpack.c.b16 %v6177, %v6173
  %v6214 = vpack.c.b16 %v6182, %v6178
  %v6215 = vpack.c.b16 %v6183, %v6179
  %v6216 = vpack.c.b16 %v6184, %v6180
  %v6217 = vpack.c.b16 %v6185, %v6181
  %6250 = vmatprep.subr.bf16.mxu0 %v6187
  %6251 = vmatpush1.bf16.msra.mxu0 %v6186
  %6252 = vmatprep.subr.bf16.mxu0 %v6191
  %6253 = vmatpush1.bf16.msra.mxu0 %v6190
  %6254 = vmatprep.subr.bf16.mxu0 %v6195
  %6255 = vmatpush1.bf16.msra.mxu0 %v6194
  %6256 = vmatprep.subr.bf16.mxu0 %v6199
  %6257 = vmatpush1.bf16.msra.mxu0 %v6198
  %6258 = vmatprep.subr.bf16.mxu0 %v6203
  %6259 = vmatpush1.bf16.msra.mxu0 %v6202
  %6260 = vmatprep.subr.bf16.mxu0 %v6207
  %6261 = vmatpush1.bf16.msra.mxu0 %v6206
  %6262 = vmatprep.subr.bf16.mxu0 %v6211
  %6263 = vmatpush1.bf16.msra.mxu0 %v6210
  %6264 = vmatprep.subr.bf16.mxu0 %v6215
  %6265 = vmatpush1.bf16.msra.mxu0 %v6214
  %6266 = vmatprep.subr.bf16.mxu0 0
  %6267 = vmatpush1.bf16.msra.mxu0 0
  %6268 = vmatprep.subr.bf16.mxu0 0
  %6269 = vmatpush1.bf16.msra.mxu0 0
  %6270 = vmatprep.subr.bf16.mxu0 0
  %6271 = vmatpush1.bf16.msra.mxu0 0
  %6272 = vmatprep.subr.bf16.mxu0 0
  %6273 = vmatpush1.bf16.msra.mxu0 0
  %6274 = vmatprep.subr.bf16.mxu0 0
  %6275 = vmatpush1.bf16.msra.mxu0 0
  %6276 = vmatprep.subr.bf16.mxu0 0
  %6277 = vmatpush1.bf16.msra.mxu0 0
  %6278 = vmatprep.subr.bf16.mxu0 0
  %6279 = vmatpush1.bf16.msra.mxu0 0
  %6280 = vmatprep.subr.bf16.mxu0 0
  %6281 = vmatpush1.bf16.msra.mxu0 0
  %6282 = vmatprep.mubr.bf16.mxu0 0
  %6283 = vmatmul.mubr.bf16.gmra.mrb[0].mxu0 %v5219
  %v6284 = vpop.f32.mrb[0].mxu0
  %v6285 = vadd.f32 0.0, %v6284
  %v6286 = vpop.f32.mrb[0].mxu0
  %v6287 = vadd.f32 0.0, %v6286
  %v6288 = vpop.f32.mrb[0].mxu0
  %v6289 = vpop.f32.mrb[0].mxu0
  %6290 = vdwg.mxu0
  %6291 = vmatprep.subr.bf16.mxu0 %v6189
  %6292 = vmatpush1.bf16.msra.mxu0 %v6188
  %6293 = vmatprep.subr.bf16.mxu0 %v6193
  %6294 = vmatpush1.bf16.msra.mxu0 %v6192
  %6295 = vmatprep.subr.bf16.mxu0 %v6197
  %6296 = vmatpush1.bf16.msra.mxu0 %v6196
  %6297 = vmatprep.subr.bf16.mxu0 %v6201
  %6298 = vmatpush1.bf16.msra.mxu0 %v6200
  %6299 = vmatprep.subr.bf16.mxu0 %v6205
  %6300 = vmatpush1.bf16.msra.mxu0 %v6204
  %6301 = vmatprep.subr.bf16.mxu0 %v6209
  %6302 = vmatpush1.bf16.msra.mxu0 %v6208
  %6303 = vmatprep.subr.bf16.mxu0 %v6213
  %6304 = vmatpush1.bf16.msra.mxu0 %v6212
  %6305 = vmatprep.subr.bf16.mxu0 %v6217
  %6306 = vmatpush1.bf16.msra.mxu0 %v6216
  %6307 = vmatprep.subr.bf16.mxu0 0
  %6308 = vmatpush1.bf16.msra.mxu0 0
  %6309 = vmatprep.subr.bf16.mxu0 0
  %6310 = vmatpush1.bf16.msra.mxu0 0
  %6311 = vmatprep.subr.bf16.mxu0 0
  %6312 = vmatpush1.bf16.msra.mxu0 0
  %6313 = vmatprep.subr.bf16.mxu0 0
  %6314 = vmatpush1.bf16.msra.mxu0 0
  %6315 = vmatprep.subr.bf16.mxu0 0
  %6316 = vmatpush1.bf16.msra.mxu0 0
  %6317 = vmatprep.subr.bf16.mxu0 0
  %6318 = vmatpush1.bf16.msra.mxu0 0
  %6319 = vmatprep.subr.bf16.mxu0 0
  %6320 = vmatpush1.bf16.msra.mxu0 0
  %6321 = vmatprep.subr.bf16.mxu0 0
  %6322 = vmatpush1.bf16.msra.mxu0 0
  %6323 = vmatprep.mubr.bf16.mxu0 0
  %6324 = vmatmul.mubr.bf16.gmra.mrb[0].mxu0 %v5219
  %v6325 = vpop.f32.mrb[0].mxu0
  %v6326 = vadd.f32 0.0, %v6325
  %v6327 = vpop.f32.mrb[0].mxu0
  %v6328 = vadd.f32 0.0, %v6327
  %v6329 = vpop.f32.mrb[0].mxu0
  %v6330 = vpop.f32.mrb[0].mxu0
  %6331 = vdwg.mxu0
  %v6332 = vadd.f32 %v6054, %v6285
  %v6333 = vadd.f32 %v6055, %v6287
  %v6334 = vadd.f32 %v6056, %v6326
  %v6335 = vadd.f32 %v6057, %v6328
  %v6336 = vxor.u32 %v6332, 2147483648
  %v6337 = vmul.f32 %v6336, 1.442695
  %v6338 = vpow.pop %v6337
  %v6339 = vadd.f32 %v6338, 1.0
  %v6340 = vrcp.pop %v6339
  %v6341 = vmul.f32 1.0, %v6340
  %v6342 = vxor.u32 %v6333, 2147483648
  %v6343 = vmul.f32 %v6342, 1.442695
  %v6344 = vpow.pop %v6343
  %v6345 = vadd.f32 %v6344, 1.0
  %v6346 = vrcp.pop %v6345
  %v6347 = vmul.f32 1.0, %v6346
  %v6348 = vtanh.pop %v6334
  %v6349 = vxor.u32 %v6335, 2147483648
  %v6350 = vmul.f32 %v6349, 1.442695
  %v6351 = vpow.pop %v6350
  %v6352 = vadd.f32 %v6351, 1.0
  %v6353 = vrcp.pop %v6352
  %v6354 = vmul.f32 1.0, %v6353
  %v6355 = vmul.f32 %v6347, %v5216
  %v6356 = vmul.f32 %v6341, %v6348
  %v6357 = vadd.f32 %v6355, %v6356
  %v6358 = vtanh.pop %v6357
  %v6359 = vmul.f32 %v6354, %v6358
  %v6360 = vpack.c.bf16 %v6359, %v6359
  %v6361 = vld [vmem:[%s4] sm:$0xff]
  %v6362 = vld [vmem:[%s4 + $0x8] sm:$0xff]
  %v6363 = vld [vmem:[%s4 + $0x10] sm:$0xff]
  %v6364 = vld [vmem:[%s4 + $0x18] sm:$0xff]
  %v6365 = vld [vmem:[%s4 + $0x20] sm:$0xff]
  %v6366 = vld [vmem:[%s4 + $0x28] sm:$0xff]
  %v6367 = vld [vmem:[%s4 + $0x30] sm:$0xff]
  %v6368 = vld [vmem:[%s4 + $0x38] sm:$0xff]
  %v6369 = vld [vmem:[%s4 + $0x40] sm:$0xff]
  %v6370 = vld [vmem:[%s4 + $0x48] sm:$0xff]
  %v6371 = vld [vmem:[%s4 + $0x50] sm:$0xff]
  %v6372 = vld [vmem:[%s4 + $0x58] sm:$0xff]
  %v6373 = vld [vmem:[%s4 + $0x60] sm:$0xff]
  %v6374 = vld [vmem:[%s4 + $0x68] sm:$0xff]
  %v6375 = vld [vmem:[%s4 + $0x70] sm:$0xff]
  %v6376 = vld [vmem:[%s4 + $0x78] sm:$0xff]
  %v6377 = vld [vmem:[%s4 + $0x80] sm:$0xff]
  %v6378 = vld [vmem:[%s4 + $0x88] sm:$0xff]
  %v6379 = vld [vmem:[%s4 + $0x90] sm:$0xff]
  %v6380 = vld [vmem:[%s4 + $0x98] sm:$0xff]
  %v6381 = vld [vmem:[%s4 + $0xa0] sm:$0xff]
  %v6382 = vld [vmem:[%s4 + $0xa8] sm:$0xff]
  %v6383 = vld [vmem:[%s4 + $0xb0] sm:$0xff]
  %v6384 = vld [vmem:[%s4 + $0xb8] sm:$0xff]
  %v6385 = vld [vmem:[%s4 + $0xc0] sm:$0xff]
  %v6386 = vld [vmem:[%s4 + $0xc8] sm:$0xff]
  %v6387 = vld [vmem:[%s4 + $0xd0] sm:$0xff]
  %v6388 = vld [vmem:[%s4 + $0xd8] sm:$0xff]
  %v6389 = vld [vmem:[%s4 + $0xe0] sm:$0xff]
  %v6390 = vld [vmem:[%s4 + $0xe8] sm:$0xff]
  %v6391 = vld [vmem:[%s4 + $0xf0] sm:$0xff]
  %v6392 = vld [vmem:[%s4 + $0xf8] sm:$0xff]
  %v6393 = vld [vmem:[%s4 + $0x100] sm:$0xff]
  %v6394 = vld [vmem:[%s4 + $0x108] sm:$0xff]
  %v6395 = vld [vmem:[%s4 + $0x110] sm:$0xff]
  %v6396 = vld [vmem:[%s4 + $0x118] sm:$0xff]
  %v6397 = vld [vmem:[%s4 + $0x120] sm:$0xff]
  %v6398 = vld [vmem:[%s4 + $0x128] sm:$0xff]
  %v6399 = vld [vmem:[%s4 + $0x130] sm:$0xff]
  %v6400 = vld [vmem:[%s4 + $0x138] sm:$0xff]
  %v6401 = vld [vmem:[%s4 + $0x140] sm:$0xff]
  %v6402 = vld [vmem:[%s4 + $0x148] sm:$0xff]
  %v6403 = vld [vmem:[%s4 + $0x150] sm:$0xff]
  %v6404 = vld [vmem:[%s4 + $0x158] sm:$0xff]
  %v6405 = vld [vmem:[%s4 + $0x160] sm:$0xff]
  %v6406 = vld [vmem:[%s4 + $0x168] sm:$0xff]
  %v6407 = vld [vmem:[%s4 + $0x170] sm:$0xff]
  %v6408 = vld [vmem:[%s4 + $0x178] sm:$0xff]
  %v6409 = vld [vmem:[%s4 + $0x180] sm:$0xff]
  %v6410 = vld [vmem:[%s4 + $0x188] sm:$0xff]
  %v6411 = vld [vmem:[%s4 + $0x190] sm:$0xff]
  %v6412 = vld [vmem:[%s4 + $0x198] sm:$0xff]
  %v6413 = vld [vmem:[%s4 + $0x1a0] sm:$0xff]
  %v6414 = vld [vmem:[%s4 + $0x1a8] sm:$0xff]
  %v6415 = vld [vmem:[%s4 + $0x1b0] sm:$0xff]
  %v6416 = vld [vmem:[%s4 + $0x1b8] sm:$0xff]
  %v6417 = vld [vmem:[%s4 + $0x1c0] sm:$0xff]
  %v6418 = vld [vmem:[%s4 + $0x1c8] sm:$0xff]
  %v6419 = vld [vmem:[%s4 + $0x1d0] sm:$0xff]
  %v6420 = vld [vmem:[%s4 + $0x1d8] sm:$0xff]
  %v6421 = vld [vmem:[%s4 + $0x1e0] sm:$0xff]
  %v6422 = vld [vmem:[%s4 + $0x1e8] sm:$0xff]
  %v6423 = vld [vmem:[%s4 + $0x1f0] sm:$0xff]
  %v6424 = vld [vmem:[%s4 + $0x1f8] sm:$0xff]
  %v6489 = vunpack.c.l.b16 %v6361
  %v6490 = vunpack.c.h.b16 %v6361
  %v6491 = vunpack.c.l.b16 %v6362
  %v6492 = vunpack.c.h.b16 %v6362
  %v6493 = vunpack.c.l.b16 %v6363
  %v6494 = vunpack.c.h.b16 %v6363
  %v6495 = vunpack.c.l.b16 %v6364
  %v6496 = vunpack.c.h.b16 %v6364
  %v6497 = vunpack.c.l.b16 %v6365
  %v6498 = vunpack.c.h.b16 %v6365
  %v6499 = vunpack.c.l.b16 %v6366
  %v6500 = vunpack.c.h.b16 %v6366
  %v6501 = vunpack.c.l.b16 %v6367
  %v6502 = vunpack.c.h.b16 %v6367
  %v6503 = vunpack.c.l.b16 %v6368
  %v6504 = vunpack.c.h.b16 %v6368
  %v6505 = vunpack.c.l.b16 %v6369
  %v6506 = vunpack.c.h.b16 %v6369
  %v6507 = vunpack.c.l.b16 %v6370
  %v6508 = vunpack.c.h.b16 %v6370
  %v6509 = vunpack.c.l.b16 %v6371
  %v6510 = vunpack.c.h.b16 %v6371
  %v6511 = vunpack.c.l.b16 %v6372
  %v6512 = vunpack.c.h.b16 %v6372
  %v6513 = vunpack.c.l.b16 %v6373
  %v6514 = vunpack.c.h.b16 %v6373
  %v6515 = vunpack.c.l.b16 %v6374
  %v6516 = vunpack.c.h.b16 %v6374
  %v6517 = vunpack.c.l.b16 %v6375
  %v6518 = vunpack.c.h.b16 %v6375
  %v6519 = vunpack.c.l.b16 %v6376
  %v6520 = vunpack.c.h.b16 %v6376
  %v6521 = vunpack.c.l.b16 %v6377
  %v6522 = vunpack.c.h.b16 %v6377
  %v6523 = vunpack.c.l.b16 %v6378
  %v6524 = vunpack.c.h.b16 %v6378
  %v6525 = vunpack.c.l.b16 %v6379
  %v6526 = vunpack.c.h.b16 %v6379
  %v6527 = vunpack.c.l.b16 %v6380
  %v6528 = vunpack.c.h.b16 %v6380
  %v6529 = vunpack.c.l.b16 %v6381
  %v6530 = vunpack.c.h.b16 %v6381
  %v6531 = vunpack.c.l.b16 %v6382
  %v6532 = vunpack.c.h.b16 %v6382
  %v6533 = vunpack.c.l.b16 %v6383
  %v6534 = vunpack.c.h.b16 %v6383
  %v6535 = vunpack.c.l.b16 %v6384
  %v6536 = vunpack.c.h.b16 %v6384
  %v6537 = vunpack.c.l.b16 %v6385
  %v6538 = vunpack.c.h.b16 %v6385
  %v6539 = vunpack.c.l.b16 %v6386
  %v6540 = vunpack.c.h.b16 %v6386
  %v6541 = vunpack.c.l.b16 %v6387
  %v6542 = vunpack.c.h.b16 %v6387
  %v6543 = vunpack.c.l.b16 %v6388
  %v6544 = vunpack.c.h.b16 %v6388
  %v6545 = vunpack.c.l.b16 %v6389
  %v6546 = vunpack.c.h.b16 %v6389
  %v6547 = vunpack.c.l.b16 %v6390
  %v6548 = vunpack.c.h.b16 %v6390
  %v6549 = vunpack.c.l.b16 %v6391
  %v6550 = vunpack.c.h.b16 %v6391
  %v6551 = vunpack.c.l.b16 %v6392
  %v6552 = vunpack.c.h.b16 %v6392
  %v6553 = vunpack.c.l.b16 %v6393
  %v6554 = vunpack.c.h.b16 %v6393
  %v6555 = vunpack.c.l.b16 %v6394
  %v6556 = vunpack.c.h.b16 %v6394
  %v6557 = vunpack.c.l.b16 %v6395
  %v6558 = vunpack.c.h.b16 %v6395
  %v6559 = vunpack.c.l.b16 %v6396
  %v6560 = vunpack.c.h.b16 %v6396
  %v6561 = vunpack.c.l.b16 %v6397
  %v6562 = vunpack.c.h.b16 %v6397
  %v6563 = vunpack.c.l.b16 %v6398
  %v6564 = vunpack.c.h.b16 %v6398
  %v6565 = vunpack.c.l.b16 %v6399
  %v6566 = vunpack.c.h.b16 %v6399
  %v6567 = vunpack.c.l.b16 %v6400
  %v6568 = vunpack.c.h.b16 %v6400
  %v6569 = vunpack.c.l.b16 %v6401
  %v6570 = vunpack.c.h.b16 %v6401
  %v6571 = vunpack.c.l.b16 %v6402
  %v6572 = vunpack.c.h.b16 %v6402
  %v6573 = vunpack.c.l.b16 %v6403
  %v6574 = vunpack.c.h.b16 %v6403
  %v6575 = vunpack.c.l.b16 %v6404
  %v6576 = vunpack.c.h.b16 %v6404
  %v6577 = vunpack.c.l.b16 %v6405
  %v6578 = vunpack.c.h.b16 %v6405
  %v6579 = vunpack.c.l.b16 %v6406
  %v6580 = vunpack.c.h.b16 %v6406
  %v6581 = vunpack.c.l.b16 %v6407
  %v6582 = vunpack.c.h.b16 %v6407
  %v6583 = vunpack.c.l.b16 %v6408
  %v6584 = vunpack.c.h.b16 %v6408
  %v6585 = vunpack.c.l.b16 %v6409
  %v6586 = vunpack.c.h.b16 %v6409
  %v6587 = vunpack.c.l.b16 %v6410
  %v6588 = vunpack.c.h.b16 %v6410
  %v6589 = vunpack.c.l.b16 %v6411
  %v6590 = vunpack.c.h.b16 %v6411
  %v6591 = vunpack.c.l.b16 %v6412
  %v6592 = vunpack.c.h.b16 %v6412
  %v6593 = vunpack.c.l.b16 %v6413
  %v6594 = vunpack.c.h.b16 %v6413
  %v6595 = vunpack.c.l.b16 %v6414
  %v6596 = vunpack.c.h.b16 %v6414
  %v6597 = vunpack.c.l.b16 %v6415
  %v6598 = vunpack.c.h.b16 %v6415
  %v6599 = vunpack.c.l.b16 %v6416
  %v6600 = vunpack.c.h.b16 %v6416
  %v6601 = vunpack.c.l.b16 %v6417
  %v6602 = vunpack.c.h.b16 %v6417
  %v6603 = vunpack.c.l.b16 %v6418
  %v6604 = vunpack.c.h.b16 %v6418
  %v6605 = vunpack.c.l.b16 %v6419
  %v6606 = vunpack.c.h.b16 %v6419
  %v6607 = vunpack.c.l.b16 %v6420
  %v6608 = vunpack.c.h.b16 %v6420
  %v6609 = vunpack.c.l.b16 %v6421
  %v6610 = vunpack.c.h.b16 %v6421
  %v6611 = vunpack.c.l.b16 %v6422
  %v6612 = vunpack.c.h.b16 %v6422
  %v6613 = vunpack.c.l.b16 %v6423
  %v6614 = vunpack.c.h.b16 %v6423
  %v6615 = vunpack.c.l.b16 %v6424
  %v6616 = vunpack.c.h.b16 %v6424
  %v6617 = vpack.c.b16 %v6493, %v6489
  %v6618 = vpack.c.b16 %v6494, %v6490
  %v6619 = vpack.c.b16 %v6495, %v6491
  %v6620 = vpack.c.b16 %v6496, %v6492
  %v6621 = vpack.c.b16 %v6501, %v6497
  %v6622 = vpack.c.b16 %v6502, %v6498
  %v6623 = vpack.c.b16 %v6503, %v6499
  %v6624 = vpack.c.b16 %v6504, %v6500
  %v6625 = vpack.c.b16 %v6509, %v6505
  %v6626 = vpack.c.b16 %v6510, %v6506
  %v6627 = vpack.c.b16 %v6511, %v6507
  %v6628 = vpack.c.b16 %v6512, %v6508
  %v6629 = vpack.c.b16 %v6517, %v6513
  %v6630 = vpack.c.b16 %v6518, %v6514
  %v6631 = vpack.c.b16 %v6519, %v6515
  %v6632 = vpack.c.b16 %v6520, %v6516
  %v6633 = vpack.c.b16 %v6525, %v6521
  %v6634 = vpack.c.b16 %v6526, %v6522
  %v6635 = vpack.c.b16 %v6527, %v6523
  %v6636 = vpack.c.b16 %v6528, %v6524
  %v6637 = vpack.c.b16 %v6533, %v6529
  %v6638 = vpack.c.b16 %v6534, %v6530
  %v6639 = vpack.c.b16 %v6535, %v6531
  %v6640 = vpack.c.b16 %v6536, %v6532
  %v6641 = vpack.c.b16 %v6541, %v6537
  %v6642 = vpack.c.b16 %v6542, %v6538
  %v6643 = vpack.c.b16 %v6543, %v6539
  %v6644 = vpack.c.b16 %v6544, %v6540
  %v6645 = vpack.c.b16 %v6549, %v6545
  %v6646 = vpack.c.b16 %v6550, %v6546
  %v6647 = vpack.c.b16 %v6551, %v6547
  %v6648 = vpack.c.b16 %v6552, %v6548
  %v6649 = vpack.c.b16 %v6557, %v6553
  %v6650 = vpack.c.b16 %v6558, %v6554
  %v6651 = vpack.c.b16 %v6559, %v6555
  %v6652 = vpack.c.b16 %v6560, %v6556
  %v6653 = vpack.c.b16 %v6565, %v6561
  %v6654 = vpack.c.b16 %v6566, %v6562
  %v6655 = vpack.c.b16 %v6567, %v6563
  %v6656 = vpack.c.b16 %v6568, %v6564
  %v6657 = vpack.c.b16 %v6573, %v6569
  %v6658 = vpack.c.b16 %v6574, %v6570
  %v6659 = vpack.c.b16 %v6575, %v6571
  %v6660 = vpack.c.b16 %v6576, %v6572
  %v6661 = vpack.c.b16 %v6581, %v6577
  %v6662 = vpack.c.b16 %v6582, %v6578
  %v6663 = vpack.c.b16 %v6583, %v6579
  %v6664 = vpack.c.b16 %v6584, %v6580
  %v6665 = vpack.c.b16 %v6589, %v6585
  %v6666 = vpack.c.b16 %v6590, %v6586
  %v6667 = vpack.c.b16 %v6591, %v6587
  %v6668 = vpack.c.b16 %v6592, %v6588
  %v6669 = vpack.c.b16 %v6597, %v6593
  %v6670 = vpack.c.b16 %v6598, %v6594
  %v6671 = vpack.c.b16 %v6599, %v6595
  %v6672 = vpack.c.b16 %v6600, %v6596
  %v6673 = vpack.c.b16 %v6605, %v6601
  %v6674 = vpack.c.b16 %v6606, %v6602
  %v6675 = vpack.c.b16 %v6607, %v6603
  %v6676 = vpack.c.b16 %v6608, %v6604
  %v6677 = vpack.c.b16 %v6613, %v6609
  %v6678 = vpack.c.b16 %v6614, %v6610
  %v6679 = vpack.c.b16 %v6615, %v6611
  %v6680 = vpack.c.b16 %v6616, %v6612
  %6745 = vmatprep.subr.bf16.mxu0 %v6618
  %6746 = vmatpush1.bf16.msra.mxu0 %v6617
  %6747 = vmatprep.subr.bf16.mxu0 %v6622
  %6748 = vmatpush1.bf16.msra.mxu0 %v6621
  %6749 = vmatprep.subr.bf16.mxu0 %v6626
  %6750 = vmatpush1.bf16.msra.mxu0 %v6625
  %6751 = vmatprep.subr.bf16.mxu0 %v6630
  %6752 = vmatpush1.bf16.msra.mxu0 %v6629
  %6753 = vmatprep.subr.bf16.mxu0 %v6634
  %6754 = vmatpush1.bf16.msra.mxu0 %v6633
  %6755 = vmatprep.subr.bf16.mxu0 %v6638
  %6756 = vmatpush1.bf16.msra.mxu0 %v6637
  %6757 = vmatprep.subr.bf16.mxu0 %v6642
  %6758 = vmatpush1.bf16.msra.mxu0 %v6641
  %6759 = vmatprep.subr.bf16.mxu0 %v6646
  %6760 = vmatpush1.bf16.msra.mxu0 %v6645
  %6761 = vmatprep.subr.bf16.mxu0 %v6650
  %6762 = vmatpush1.bf16.msra.mxu0 %v6649
  %6763 = vmatprep.subr.bf16.mxu0 %v6654
  %6764 = vmatpush1.bf16.msra.mxu0 %v6653
  %6765 = vmatprep.subr.bf16.mxu0 %v6658
  %6766 = vmatpush1.bf16.msra.mxu0 %v6657
  %6767 = vmatprep.subr.bf16.mxu0 %v6662
  %6768 = vmatpush1.bf16.msra.mxu0 %v6661
  %6769 = vmatprep.subr.bf16.mxu0 %v6666
  %6770 = vmatpush1.bf16.msra.mxu0 %v6665
  %6771 = vmatprep.subr.bf16.mxu0 %v6670
  %6772 = vmatpush1.bf16.msra.mxu0 %v6669
  %6773 = vmatprep.subr.bf16.mxu0 %v6674
  %6774 = vmatpush1.bf16.msra.mxu0 %v6673
  %6775 = vmatprep.subr.bf16.mxu0 %v6678
  %6776 = vmatpush1.bf16.msra.mxu0 %v6677
  %6777 = vmatprep.mubr.bf16.mxu0 %v5710
  %6778 = vmatmul.mubr.bf16.gmra.mrb[0].mxu0 %v6360
  %v6779 = vpop.f32.mrb[0].mxu0
  %v6780 = vadd.f32 %v1424, %v6779
  %v6781 = vpop.f32.mrb[0].mxu0
  %v6782 = vadd.f32 %v1428, %v6781
  %v6783 = vpop.f32.mrb[0].mxu0
  %v6784 = vpop.f32.mrb[0].mxu0
  %6785 = vdwg.mxu0
  %6786 = vmatprep.subr.bf16.mxu0 %v6620
  %6787 = vmatpush1.bf16.msra.mxu0 %v6619
  %6788 = vmatprep.subr.bf16.mxu0 %v6624
  %6789 = vmatpush1.bf16.msra.mxu0 %v6623
  %6790 = vmatprep.subr.bf16.mxu0 %v6628
  %6791 = vmatpush1.bf16.msra.mxu0 %v6627
  %6792 = vmatprep.subr.bf16.mxu0 %v6632
  %6793 = vmatpush1.bf16.msra.mxu0 %v6631
  %6794 = vmatprep.subr.bf16.mxu0 %v6636
  %6795 = vmatpush1.bf16.msra.mxu0 %v6635
  %6796 = vmatprep.subr.bf16.mxu0 %v6640
  %6797 = vmatpush1.bf16.msra.mxu0 %v6639
  %6798 = vmatprep.subr.bf16.mxu0 %v6644
  %6799 = vmatpush1.bf16.msra.mxu0 %v6643
  %6800 = vmatprep.subr.bf16.mxu0 %v6648
  %6801 = vmatpush1.bf16.msra.mxu0 %v6647
  %6802 = vmatprep.subr.bf16.mxu0 %v6652
  %6803 = vmatpush1.bf16.msra.mxu0 %v6651
  %6804 = vmatprep.subr.bf16.mxu0 %v6656
  %6805 = vmatpush1.bf16.msra.mxu0 %v6655
  %6806 = vmatprep.subr.bf16.mxu0 %v6660
  %6807 = vmatpush1.bf16.msra.mxu0 %v6659
  %6808 = vmatprep.subr.bf16.mxu0 %v6664
  %6809 = vmatpush1.bf16.msra.mxu0 %v6663
  %6810 = vmatprep.subr.bf16.mxu0 %v6668
  %6811 = vmatpush1.bf16.msra.mxu0 %v6667
  %6812 = vmatprep.subr.bf16.mxu0 %v6672
  %6813 = vmatpush1.bf16.msra.mxu0 %v6671
  %6814 = vmatprep.subr.bf16.mxu0 %v6676
  %6815 = vmatpush1.bf16.msra.mxu0 %v6675
  %6816 = vmatprep.subr.bf16.mxu0 %v6680
  %6817 = vmatpush1.bf16.msra.mxu0 %v6679
  %6818 = vmatprep.mubr.bf16.mxu0 %v5710
  %6819 = vmatmul.mubr.bf16.gmra.mrb[0].mxu0 %v6360
  %v6820 = vpop.f32.mrb[0].mxu0
  %v6821 = vadd.f32 %v1432, %v6820
  %v6822 = vpop.f32.mrb[0].mxu0
  %v6823 = vadd.f32 %v1436, %v6822
  %v6824 = vpop.f32.mrb[0].mxu0
  %v6825 = vpop.f32.mrb[0].mxu0
  %6826 = vdwg.mxu0
  %v6827 = vxor.u32 %v6780, 2147483648
  %v6828 = vmul.f32 %v6827, 1.442695
  %v6829 = vpow.pop %v6828
  %v6830 = vadd.f32 %v6829, 1.0
  %v6831 = vrcp.pop %v6830
  %v6832 = vmul.f32 1.0, %v6831
  %v6833 = vxor.u32 %v6782, 2147483648
  %v6834 = vmul.f32 %v6833, 1.442695
  %v6835 = vpow.pop %v6834
  %v6836 = vadd.f32 %v6835, 1.0
  %v6837 = vrcp.pop %v6836
  %v6838 = vmul.f32 1.0, %v6837
  %v6839 = vtanh.pop %v6821
  %v6840 = vxor.u32 %v6823, 2147483648
  %v6841 = vmul.f32 %v6840, 1.442695
  %v6842 = vpow.pop %v6841
  %v6843 = vadd.f32 %v6842, 1.0
  %v6844 = vrcp.pop %v6843
  %v6845 = vmul.f32 1.0, %v6844
  %v6846 = vmul.f32 %v6838, %v5707
  %v6847 = vmul.f32 %v6832, %v6839
  %v6848 = vadd.f32 %v6846, %v6847
  %v6849 = vtanh.pop %v6848
  %v6850 = vmul.f32 %v6845, %v6849
  %v6851 = vpack.c.bf16 %v6850, %v6850
  %v6852 = vld [vmem:[#allocation3] sm:$0xff]
  %v6853 = vld [vmem:[#allocation3 + $0x8] sm:$0xff]
  %v6854 = vld [vmem:[#allocation3 + $0x10] sm:$0xff]
  %v6855 = vld [vmem:[#allocation3 + $0x18] sm:$0xff]
  %v6856 = vld [vmem:[#allocation3 + $0x20] sm:$0xff]
  %v6857 = vld [vmem:[#allocation3 + $0x28] sm:$0xff]
  %v6858 = vld [vmem:[#allocation3 + $0x30] sm:$0xff]
  %v6859 = vld [vmem:[#allocation3 + $0x38] sm:$0xff]
  %v6860 = vld [vmem:[#allocation3 + $0x40] sm:$0xff]
  %v6861 = vld [vmem:[#allocation3 + $0x48] sm:$0xff]
  %v6862 = vld [vmem:[#allocation3 + $0x50] sm:$0xff]
  %v6863 = vld [vmem:[#allocation3 + $0x58] sm:$0xff]
  %v6864 = vld [vmem:[#allocation3 + $0x60] sm:$0xff]
  %v6865 = vld [vmem:[#allocation3 + $0x68] sm:$0xff]
  %v6866 = vld [vmem:[#allocation3 + $0x70] sm:$0xff]
  %v6867 = vld [vmem:[#allocation3 + $0x78] sm:$0xff]
  %v6868 = vld [vmem:[#allocation3 + $0x80] sm:$0xff]
  %v6869 = vld [vmem:[#allocation3 + $0x88] sm:$0xff]
  %v6870 = vld [vmem:[#allocation3 + $0x90] sm:$0xff]
  %v6871 = vld [vmem:[#allocation3 + $0x98] sm:$0xff]
  %v6872 = vld [vmem:[#allocation3 + $0xa0] sm:$0xff]
  %v6873 = vld [vmem:[#allocation3 + $0xa8] sm:$0xff]
  %v6874 = vld [vmem:[#allocation3 + $0xb0] sm:$0xff]
  %v6875 = vld [vmem:[#allocation3 + $0xb8] sm:$0xff]
  %v6876 = vld [vmem:[#allocation3 + $0xc0] sm:$0xff]
  %v6877 = vld [vmem:[#allocation3 + $0xc8] sm:$0xff]
  %v6878 = vld [vmem:[#allocation3 + $0xd0] sm:$0xff]
  %v6879 = vld [vmem:[#allocation3 + $0xd8] sm:$0xff]
  %v6880 = vld [vmem:[#allocation3 + $0xe0] sm:$0xff]
  %v6881 = vld [vmem:[#allocation3 + $0xe8] sm:$0xff]
  %v6882 = vld [vmem:[#allocation3 + $0xf0] sm:$0xff]
  %v6883 = vld [vmem:[#allocation3 + $0xf8] sm:$0xff]
  %v6884 = vld [vmem:[#allocation3 + $0x100] sm:$0xff]
  %v6885 = vld [vmem:[#allocation3 + $0x108] sm:$0xff]
  %v6886 = vld [vmem:[#allocation3 + $0x110] sm:$0xff]
  %v6887 = vld [vmem:[#allocation3 + $0x118] sm:$0xff]
  %v6888 = vld [vmem:[#allocation3 + $0x120] sm:$0xff]
  %v6889 = vld [vmem:[#allocation3 + $0x128] sm:$0xff]
  %v6890 = vld [vmem:[#allocation3 + $0x130] sm:$0xff]
  %v6891 = vld [vmem:[#allocation3 + $0x138] sm:$0xff]
  %v6892 = vld [vmem:[#allocation3 + $0x140] sm:$0xff]
  %v6893 = vld [vmem:[#allocation3 + $0x148] sm:$0xff]
  %v6894 = vld [vmem:[#allocation3 + $0x150] sm:$0xff]
  %v6895 = vld [vmem:[#allocation3 + $0x158] sm:$0xff]
  %v6896 = vld [vmem:[#allocation3 + $0x160] sm:$0xff]
  %v6897 = vld [vmem:[#allocation3 + $0x168] sm:$0xff]
  %v6898 = vld [vmem:[#allocation3 + $0x170] sm:$0xff]
  %v6899 = vld [vmem:[#allocation3 + $0x178] sm:$0xff]
  %v6900 = vld [vmem:[#allocation3 + $0x180] sm:$0xff]
  %v6901 = vld [vmem:[#allocation3 + $0x188] sm:$0xff]
  %v6902 = vld [vmem:[#allocation3 + $0x190] sm:$0xff]
  %v6903 = vld [vmem:[#allocation3 + $0x198] sm:$0xff]
  %v6904 = vld [vmem:[#allocation3 + $0x1a0] sm:$0xff]
  %v6905 = vld [vmem:[#allocation3 + $0x1a8] sm:$0xff]
  %v6906 = vld [vmem:[#allocation3 + $0x1b0] sm:$0xff]
  %v6907 = vld [vmem:[#allocation3 + $0x1b8] sm:$0xff]
  %v6908 = vld [vmem:[#allocation3 + $0x1c0] sm:$0xff]
  %v6909 = vld [vmem:[#allocation3 + $0x1c8] sm:$0xff]
  %v6910 = vld [vmem:[#allocation3 + $0x1d0] sm:$0xff]
  %v6911 = vld [vmem:[#allocation3 + $0x1d8] sm:$0xff]
  %v6912 = vld [vmem:[#allocation3 + $0x1e0] sm:$0xff]
  %v6913 = vld [vmem:[#allocation3 + $0x1e8] sm:$0xff]
  %v6914 = vld [vmem:[#allocation3 + $0x1f0] sm:$0xff]
  %v6915 = vld [vmem:[#allocation3 + $0x1f8] sm:$0xff]
  %6916 = vmatprep.subr.bf16.mxu0 %v6853
  %6917 = vmatpush1.bf16.msra.mxu0 %v6852
  %6918 = vmatprep.subr.bf16.mxu0 %v6857
  %6919 = vmatpush1.bf16.msra.mxu0 %v6856
  %6920 = vmatprep.subr.bf16.mxu0 %v6861
  %6921 = vmatpush1.bf16.msra.mxu0 %v6860
  %6922 = vmatprep.subr.bf16.mxu0 %v6865
  %6923 = vmatpush1.bf16.msra.mxu0 %v6864
  %6924 = vmatprep.subr.bf16.mxu0 %v6869
  %6925 = vmatpush1.bf16.msra.mxu0 %v6868
  %6926 = vmatprep.subr.bf16.mxu0 %v6873
  %6927 = vmatpush1.bf16.msra.mxu0 %v6872
  %6928 = vmatprep.subr.bf16.mxu0 %v6877
  %6929 = vmatpush1.bf16.msra.mxu0 %v6876
  %6930 = vmatprep.subr.bf16.mxu0 %v6881
  %6931 = vmatpush1.bf16.msra.mxu0 %v6880
  %6932 = vmatprep.subr.bf16.mxu0 %v6885
  %6933 = vmatpush1.bf16.msra.mxu0 %v6884
  %6934 = vmatprep.subr.bf16.mxu0 %v6889
  %6935 = vmatpush1.bf16.msra.mxu0 %v6888
  %6936 = vmatprep.subr.bf16.mxu0 %v6893
  %6937 = vmatpush1.bf16.msra.mxu0 %v6892
  %6938 = vmatprep.subr.bf16.mxu0 %v6897
  %6939 = vmatpush1.bf16.msra.mxu0 %v6896
  %6940 = vmatprep.subr.bf16.mxu0 %v6901
  %6941 = vmatpush1.bf16.msra.mxu0 %v6900
  %6942 = vmatprep.subr.bf16.mxu0 %v6905
  %6943 = vmatpush1.bf16.msra.mxu0 %v6904
  %6944 = vmatprep.subr.bf16.mxu0 %v6909
  %6945 = vmatpush1.bf16.msra.mxu0 %v6908
  %6946 = vmatprep.subr.bf16.mxu0 %v6913
  %6947 = vmatpush1.bf16.msra.mxu0 %v6912
  %6948 = vmatprep.mubr.bf16.mxu0 %v5881
  %6949 = vmatmul.mubr.bf16.gmra.mrb[0].mxu0 %v6851
  %v6950 = vpop.f32.mrb[0].mxu0
  %v6951 = vadd.f32 %v1446, %v6950
  %v6952 = vpop.f32.mrb[0].mxu0
  %v6953 = vadd.f32 %v1450, %v6952
  %v6954 = vpop.f32.mrb[0].mxu0
  %v6955 = vpop.f32.mrb[0].mxu0
  %6956 = vdwg.mxu0
  %6957 = vmatprep.subr.bf16.mxu0 %v6855
  %6958 = vmatpush1.bf16.msra.mxu0 %v6854
  %6959 = vmatprep.subr.bf16.mxu0 %v6859
  %6960 = vmatpush1.bf16.msra.mxu0 %v6858
  %6961 = vmatprep.subr.bf16.mxu0 %v6863
  %6962 = vmatpush1.bf16.msra.mxu0 %v6862
  %6963 = vmatprep.subr.bf16.mxu0 %v6867
  %6964 = vmatpush1.bf16.msra.mxu0 %v6866
  %6965 = vmatprep.subr.bf16.mxu0 %v6871
  %6966 = vmatpush1.bf16.msra.mxu0 %v6870
  %6967 = vmatprep.subr.bf16.mxu0 %v6875
  %6968 = vmatpush1.bf16.msra.mxu0 %v6874
  %6969 = vmatprep.subr.bf16.mxu0 %v6879
  %6970 = vmatpush1.bf16.msra.mxu0 %v6878
  %6971 = vmatprep.subr.bf16.mxu0 %v6883
  %6972 = vmatpush1.bf16.msra.mxu0 %v6882
  %6973 = vmatprep.subr.bf16.mxu0 %v6887
  %6974 = vmatpush1.bf16.msra.mxu0 %v6886
  %6975 = vmatprep.subr.bf16.mxu0 %v6891
  %6976 = vmatpush1.bf16.msra.mxu0 %v6890
  %6977 = vmatprep.subr.bf16.mxu0 %v6895
  %6978 = vmatpush1.bf16.msra.mxu0 %v6894
  %6979 = vmatprep.subr.bf16.mxu0 %v6899
  %6980 = vmatpush1.bf16.msra.mxu0 %v6898
  %6981 = vmatprep.subr.bf16.mxu0 %v6903
  %6982 = vmatpush1.bf16.msra.mxu0 %v6902
  %6983 = vmatprep.subr.bf16.mxu0 %v6907
  %6984 = vmatpush1.bf16.msra.mxu0 %v6906
  %6985 = vmatprep.subr.bf16.mxu0 %v6911
  %6986 = vmatpush1.bf16.msra.mxu0 %v6910
  %6987 = vmatprep.subr.bf16.mxu0 %v6915
  %6988 = vmatpush1.bf16.msra.mxu0 %v6914
  %6989 = vmatprep.mubr.bf16.mxu0 %v5881
  %6990 = vmatmul.mubr.bf16.gmra.mrb[0].mxu0 %v6851
  %v6991 = vpop.f32.mrb[0].mxu0
  %v6992 = vadd.f32 %v1454, %v6991
  %v6993 = vpop.f32.mrb[0].mxu0
  %v6994 = vadd.f32 %v1458, %v6993
  %v6995 = vpop.f32.mrb[0].mxu0
  %v6996 = vpop.f32.mrb[0].mxu0
  %6997 = vdwg.mxu0
  %v6998 = vxor.u32 %v6951, 2147483648
  %v6999 = vmul.f32 %v6998, 1.442695
  %v7000 = vpow.pop %v6999
  %v7001 = vadd.f32 %v7000, 1.0
  %v7002 = vrcp.pop %v7001
  %v7003 = vmul.f32 1.0, %v7002
  %v7004 = vxor.u32 %v6953, 2147483648
  %v7005 = vmul.f32 %v7004, 1.442695
  %v7006 = vpow.pop %v7005
  %v7007 = vadd.f32 %v7006, 1.0
  %v7008 = vrcp.pop %v7007
  %v7009 = vmul.f32 1.0, %v7008
  %v7010 = vtanh.pop %v6992
  %v7011 = vxor.u32 %v6994, 2147483648
  %v7012 = vmul.f32 %v7011, 1.442695
  %v7013 = vpow.pop %v7012
  %v7014 = vadd.f32 %v7013, 1.0
  %v7015 = vrcp.pop %v7014
  %v7016 = vmul.f32 1.0, %v7015
  %v7017 = vmul.f32 %v7009, %v5878
  %v7018 = vmul.f32 %v7003, %v7010
  %v7019 = vadd.f32 %v7017, %v7018
  %v7020 = vtanh.pop %v7019
  %v7021 = vmul.f32 %v7016, %v7020
  %v7022 = vpack.c.bf16 %v7021, %v7021
  %v7023 = vpack.c.bf16 %v6052, %v6052
  %v7024 = vld [vmem:[#allocation4] sm:$0xff]
  %v7025 = vld [vmem:[#allocation4 + $0x8] sm:$0xff]
  %v7026 = vld [vmem:[#allocation4 + $0x10] sm:$0xff]
  %v7027 = vld [vmem:[#allocation4 + $0x18] sm:$0xff]
  %v7028 = vld [vmem:[#allocation4 + $0x20] sm:$0xff]
  %v7029 = vld [vmem:[#allocation4 + $0x28] sm:$0xff]
  %v7030 = vld [vmem:[#allocation4 + $0x30] sm:$0xff]
  %v7031 = vld [vmem:[#allocation4 + $0x38] sm:$0xff]
  %v7032 = vld [vmem:[#allocation4 + $0x40] sm:$0xff]
  %v7033 = vld [vmem:[#allocation4 + $0x48] sm:$0xff]
  %v7034 = vld [vmem:[#allocation4 + $0x50] sm:$0xff]
  %v7035 = vld [vmem:[#allocation4 + $0x58] sm:$0xff]
  %v7036 = vld [vmem:[#allocation4 + $0x60] sm:$0xff]
  %v7037 = vld [vmem:[#allocation4 + $0x68] sm:$0xff]
  %v7038 = vld [vmem:[#allocation4 + $0x70] sm:$0xff]
  %v7039 = vld [vmem:[#allocation4 + $0x78] sm:$0xff]
  %v7040 = vld [vmem:[#allocation4 + $0x80] sm:$0xff]
  %v7041 = vld [vmem:[#allocation4 + $0x88] sm:$0xff]
  %v7042 = vld [vmem:[#allocation4 + $0x90] sm:$0xff]
  %v7043 = vld [vmem:[#allocation4 + $0x98] sm:$0xff]
  %v7044 = vld [vmem:[#allocation4 + $0xa0] sm:$0xff]
  %v7045 = vld [vmem:[#allocation4 + $0xa8] sm:$0xff]
  %v7046 = vld [vmem:[#allocation4 + $0xb0] sm:$0xff]
  %v7047 = vld [vmem:[#allocation4 + $0xb8] sm:$0xff]
  %v7048 = vld [vmem:[#allocation4 + $0xc0] sm:$0xff]
  %v7049 = vld [vmem:[#allocation4 + $0xc8] sm:$0xff]
  %v7050 = vld [vmem:[#allocation4 + $0xd0] sm:$0xff]
  %v7051 = vld [vmem:[#allocation4 + $0xd8] sm:$0xff]
  %v7052 = vld [vmem:[#allocation4 + $0xe0] sm:$0xff]
  %v7053 = vld [vmem:[#allocation4 + $0xe8] sm:$0xff]
  %v7054 = vld [vmem:[#allocation4 + $0xf0] sm:$0xff]
  %v7055 = vld [vmem:[#allocation4 + $0xf8] sm:$0xff]
  %v7056 = vld [vmem:[#allocation4 + $0x100] sm:$0xff]
  %v7057 = vld [vmem:[#allocation4 + $0x108] sm:$0xff]
  %v7058 = vld [vmem:[#allocation4 + $0x110] sm:$0xff]
  %v7059 = vld [vmem:[#allocation4 + $0x118] sm:$0xff]
  %v7060 = vld [vmem:[#allocation4 + $0x120] sm:$0xff]
  %v7061 = vld [vmem:[#allocation4 + $0x128] sm:$0xff]
  %v7062 = vld [vmem:[#allocation4 + $0x130] sm:$0xff]
  %v7063 = vld [vmem:[#allocation4 + $0x138] sm:$0xff]
  %v7064 = vld [vmem:[#allocation4 + $0x140] sm:$0xff]
  %v7065 = vld [vmem:[#allocation4 + $0x148] sm:$0xff]
  %v7066 = vld [vmem:[#allocation4 + $0x150] sm:$0xff]
  %v7067 = vld [vmem:[#allocation4 + $0x158] sm:$0xff]
  %v7068 = vld [vmem:[#allocation4 + $0x160] sm:$0xff]
  %v7069 = vld [vmem:[#allocation4 + $0x168] sm:$0xff]
  %v7070 = vld [vmem:[#allocation4 + $0x170] sm:$0xff]
  %v7071 = vld [vmem:[#allocation4 + $0x178] sm:$0xff]
  %v7072 = vld [vmem:[#allocation4 + $0x180] sm:$0xff]
  %v7073 = vld [vmem:[#allocation4 + $0x188] sm:$0xff]
  %v7074 = vld [vmem:[#allocation4 + $0x190] sm:$0xff]
  %v7075 = vld [vmem:[#allocation4 + $0x198] sm:$0xff]
  %v7076 = vld [vmem:[#allocation4 + $0x1a0] sm:$0xff]
  %v7077 = vld [vmem:[#allocation4 + $0x1a8] sm:$0xff]
  %v7078 = vld [vmem:[#allocation4 + $0x1b0] sm:$0xff]
  %v7079 = vld [vmem:[#allocation4 + $0x1b8] sm:$0xff]
  %v7080 = vld [vmem:[#allocation4 + $0x1c0] sm:$0xff]
  %v7081 = vld [vmem:[#allocation4 + $0x1c8] sm:$0xff]
  %v7082 = vld [vmem:[#allocation4 + $0x1d0] sm:$0xff]
  %v7083 = vld [vmem:[#allocation4 + $0x1d8] sm:$0xff]
  %v7084 = vld [vmem:[#allocation4 + $0x1e0] sm:$0xff]
  %v7085 = vld [vmem:[#allocation4 + $0x1e8] sm:$0xff]
  %v7086 = vld [vmem:[#allocation4 + $0x1f0] sm:$0xff]
  %v7087 = vld [vmem:[#allocation4 + $0x1f8] sm:$0xff]
  %7088 = vmatprep.subr.bf16.mxu0 %v7025
  %7089 = vmatpush1.bf16.msra.mxu0 %v7024
  %7090 = vmatprep.subr.bf16.mxu0 %v7029
  %7091 = vmatpush1.bf16.msra.mxu0 %v7028
  %7092 = vmatprep.subr.bf16.mxu0 %v7033
  %7093 = vmatpush1.bf16.msra.mxu0 %v7032
  %7094 = vmatprep.subr.bf16.mxu0 %v7037
  %7095 = vmatpush1.bf16.msra.mxu0 %v7036
  %7096 = vmatprep.subr.bf16.mxu0 %v7041
  %7097 = vmatpush1.bf16.msra.mxu0 %v7040
  %7098 = vmatprep.subr.bf16.mxu0 %v7045
  %7099 = vmatpush1.bf16.msra.mxu0 %v7044
  %7100 = vmatprep.subr.bf16.mxu0 %v7049
  %7101 = vmatpush1.bf16.msra.mxu0 %v7048
  %7102 = vmatprep.subr.bf16.mxu0 %v7053
  %7103 = vmatpush1.bf16.msra.mxu0 %v7052
  %7104 = vmatprep.subr.bf16.mxu0 %v7057
  %7105 = vmatpush1.bf16.msra.mxu0 %v7056
  %7106 = vmatprep.subr.bf16.mxu0 %v7061
  %7107 = vmatpush1.bf16.msra.mxu0 %v7060
  %7108 = vmatprep.subr.bf16.mxu0 %v7065
  %7109 = vmatpush1.bf16.msra.mxu0 %v7064
  %7110 = vmatprep.subr.bf16.mxu0 %v7069
  %7111 = vmatpush1.bf16.msra.mxu0 %v7068
  %7112 = vmatprep.subr.bf16.mxu0 %v7073
  %7113 = vmatpush1.bf16.msra.mxu0 %v7072
  %7114 = vmatprep.subr.bf16.mxu0 %v7077
  %7115 = vmatpush1.bf16.msra.mxu0 %v7076
  %7116 = vmatprep.subr.bf16.mxu0 %v7081
  %7117 = vmatpush1.bf16.msra.mxu0 %v7080
  %7118 = vmatprep.subr.bf16.mxu0 %v7085
  %7119 = vmatpush1.bf16.msra.mxu0 %v7084
  %7120 = vmatprep.mubr.bf16.mxu0 %v7023
  %7121 = vmatmul.mubr.bf16.gmra.mrb[0].mxu0 %v7022
  %v7122 = vpop.f32.mrb[0].mxu0
  %v7123 = vadd.f32 %v1468, %v7122
  %v7124 = vpop.f32.mrb[0].mxu0
  %v7125 = vadd.f32 %v1472, %v7124
  %v7126 = vpop.f32.mrb[0].mxu0
  %v7127 = vpop.f32.mrb[0].mxu0
  %7128 = vdwg.mxu0
  %7129 = vmatprep.subr.bf16.mxu0 %v7027
  %7130 = vmatpush1.bf16.msra.mxu0 %v7026
  %7131 = vmatprep.subr.bf16.mxu0 %v7031
  %7132 = vmatpush1.bf16.msra.mxu0 %v7030
  %7133 = vmatprep.subr.bf16.mxu0 %v7035
  %7134 = vmatpush1.bf16.msra.mxu0 %v7034
  %7135 = vmatprep.subr.bf16.mxu0 %v7039
  %7136 = vmatpush1.bf16.msra.mxu0 %v7038
  %7137 = vmatprep.subr.bf16.mxu0 %v7043
  %7138 = vmatpush1.bf16.msra.mxu0 %v7042
  %7139 = vmatprep.subr.bf16.mxu0 %v7047
  %7140 = vmatpush1.bf16.msra.mxu0 %v7046
  %7141 = vmatprep.subr.bf16.mxu0 %v7051
  %7142 = vmatpush1.bf16.msra.mxu0 %v7050
  %7143 = vmatprep.subr.bf16.mxu0 %v7055
  %7144 = vmatpush1.bf16.msra.mxu0 %v7054
  %7145 = vmatprep.subr.bf16.mxu0 %v7059
  %7146 = vmatpush1.bf16.msra.mxu0 %v7058
  %7147 = vmatprep.subr.bf16.mxu0 %v7063
  %7148 = vmatpush1.bf16.msra.mxu0 %v7062
  %7149 = vmatprep.subr.bf16.mxu0 %v7067
  %7150 = vmatpush1.bf16.msra.mxu0 %v7066
  %7151 = vmatprep.subr.bf16.mxu0 %v7071
  %7152 = vmatpush1.bf16.msra.mxu0 %v7070
  %7153 = vmatprep.subr.bf16.mxu0 %v7075
  %7154 = vmatpush1.bf16.msra.mxu0 %v7074
  %7155 = vmatprep.subr.bf16.mxu0 %v7079
  %7156 = vmatpush1.bf16.msra.mxu0 %v7078
  %7157 = vmatprep.subr.bf16.mxu0 %v7083
  %7158 = vmatpush1.bf16.msra.mxu0 %v7082
  %7159 = vmatprep.subr.bf16.mxu0 %v7087
  %7160 = vmatpush1.bf16.msra.mxu0 %v7086
  %7161 = vmatprep.mubr.bf16.mxu0 %v7023
  %7162 = vmatmul.mubr.bf16.gmra.mrb[0].mxu0 %v7022
  %v7163 = vpop.f32.mrb[0].mxu0
  %v7164 = vadd.f32 %v1476, %v7163
  %v7165 = vpop.f32.mrb[0].mxu0
  %v7166 = vadd.f32 %v1480, %v7165
  %v7167 = vpop.f32.mrb[0].mxu0
  %v7168 = vpop.f32.mrb[0].mxu0
  %7169 = vdwg.mxu0
  %v7170 = vxor.u32 %v7123, 2147483648
  %v7171 = vmul.f32 %v7170, 1.442695
  %v7172 = vpow.pop %v7171
  %v7173 = vadd.f32 %v7172, 1.0
  %v7174 = vrcp.pop %v7173
  %v7175 = vmul.f32 1.0, %v7174
  %v7176 = vxor.u32 %v7125, 2147483648
  %v7177 = vmul.f32 %v7176, 1.442695
  %v7178 = vpow.pop %v7177
  %v7179 = vadd.f32 %v7178, 1.0
  %v7180 = vrcp.pop %v7179
  %v7181 = vmul.f32 1.0, %v7180
  %v7182 = vtanh.pop %v7164
  %v7183 = vxor.u32 %v7166, 2147483648
  %v7184 = vmul.f32 %v7183, 1.442695
  %v7185 = vpow.pop %v7184
  %v7186 = vadd.f32 %v7185, 1.0
  %v7187 = vrcp.pop %v7186
  %v7188 = vmul.f32 1.0, %v7187
  %v7189 = vmul.f32 %v7181, %v6050
  %v7190 = vmul.f32 %v7175, %v7182
  %v7191 = vadd.f32 %v7189, %v7190
  %v7192 = vtanh.pop %v7191
  %v7193 = vmul.f32 %v7188, %v7192
  %7194 = vst [vmem:[%s10 + $0x20] sm:$0xff] %v7193
  %v7195 = vld [vmem:[#allocation2 + $0xa0] sm:$0xff]
  %v7196 = vld [vmem:[#allocation2 + $0xa8] sm:$0xff]
  %v7197 = vld [vmem:[#allocation2 + $0xb0] sm:$0xff]
  %v7198 = vld [vmem:[#allocation2 + $0xb8] sm:$0xff]
  %v7199 = vld [vmem:[%s3] sm:$0xff]
  %v7200 = vld [vmem:[%s3 + $0x8] sm:$0xff]
  %v7201 = vld [vmem:[%s3 + $0x10] sm:$0xff]
  %v7202 = vld [vmem:[%s3 + $0x18] sm:$0xff]
  %v7203 = vld [vmem:[%s3 + $0x20] sm:$0xff]
  %v7204 = vld [vmem:[%s3 + $0x28] sm:$0xff]
  %v7205 = vld [vmem:[%s3 + $0x30] sm:$0xff]
  %v7206 = vld [vmem:[%s3 + $0x38] sm:$0xff]
  %v7207 = vld [vmem:[%s3 + $0x40] sm:$0xff]
  %v7208 = vld [vmem:[%s3 + $0x48] sm:$0xff]
  %v7209 = vld [vmem:[%s3 + $0x50] sm:$0xff]
  %v7210 = vld [vmem:[%s3 + $0x58] sm:$0xff]
  %v7211 = vld [vmem:[%s3 + $0x60] sm:$0xff]
  %v7212 = vld [vmem:[%s3 + $0x68] sm:$0xff]
  %v7213 = vld [vmem:[%s3 + $0x70] sm:$0xff]
  %v7214 = vld [vmem:[%s3 + $0x78] sm:$0xff]
  %v7215 = vld [vmem:[%s3 + $0x80] sm:$0xff]
  %v7216 = vld [vmem:[%s3 + $0x88] sm:$0xff]
  %v7217 = vld [vmem:[%s3 + $0x90] sm:$0xff]
  %v7218 = vld [vmem:[%s3 + $0x98] sm:$0xff]
  %v7219 = vld [vmem:[%s3 + $0xa0] sm:$0xff]
  %v7220 = vld [vmem:[%s3 + $0xa8] sm:$0xff]
  %v7221 = vld [vmem:[%s3 + $0xb0] sm:$0xff]
  %v7222 = vld [vmem:[%s3 + $0xb8] sm:$0xff]
  %v7223 = vld [vmem:[%s3 + $0xc0] sm:$0xff]
  %v7224 = vld [vmem:[%s3 + $0xc8] sm:$0xff]
  %v7225 = vld [vmem:[%s3 + $0xd0] sm:$0xff]
  %v7226 = vld [vmem:[%s3 + $0xd8] sm:$0xff]
  %v7227 = vld [vmem:[%s3 + $0xe0] sm:$0xff]
  %v7228 = vld [vmem:[%s3 + $0xe8] sm:$0xff]
  %v7229 = vld [vmem:[%s3 + $0xf0] sm:$0xff]
  %v7230 = vld [vmem:[%s3 + $0xf8] sm:$0xff]
  %v7263 = vunpack.c.l.b16 %v7199
  %v7264 = vunpack.c.h.b16 %v7199
  %v7265 = vunpack.c.l.b16 %v7200
  %v7266 = vunpack.c.h.b16 %v7200
  %v7267 = vunpack.c.l.b16 %v7201
  %v7268 = vunpack.c.h.b16 %v7201
  %v7269 = vunpack.c.l.b16 %v7202
  %v7270 = vunpack.c.h.b16 %v7202
  %v7271 = vunpack.c.l.b16 %v7203
  %v7272 = vunpack.c.h.b16 %v7203
  %v7273 = vunpack.c.l.b16 %v7204
  %v7274 = vunpack.c.h.b16 %v7204
  %v7275 = vunpack.c.l.b16 %v7205
  %v7276 = vunpack.c.h.b16 %v7205
  %v7277 = vunpack.c.l.b16 %v7206
  %v7278 = vunpack.c.h.b16 %v7206
  %v7279 = vunpack.c.l.b16 %v7207
  %v7280 = vunpack.c.h.b16 %v7207
  %v7281 = vunpack.c.l.b16 %v7208
  %v7282 = vunpack.c.h.b16 %v7208
  %v7283 = vunpack.c.l.b16 %v7209
  %v7284 = vunpack.c.h.b16 %v7209
  %v7285 = vunpack.c.l.b16 %v7210
  %v7286 = vunpack.c.h.b16 %v7210
  %v7287 = vunpack.c.l.b16 %v7211
  %v7288 = vunpack.c.h.b16 %v7211
  %v7289 = vunpack.c.l.b16 %v7212
  %v7290 = vunpack.c.h.b16 %v7212
  %v7291 = vunpack.c.l.b16 %v7213
  %v7292 = vunpack.c.h.b16 %v7213
  %v7293 = vunpack.c.l.b16 %v7214
  %v7294 = vunpack.c.h.b16 %v7214
  %v7295 = vunpack.c.l.b16 %v7215
  %v7296 = vunpack.c.h.b16 %v7215
  %v7297 = vunpack.c.l.b16 %v7216
  %v7298 = vunpack.c.h.b16 %v7216
  %v7299 = vunpack.c.l.b16 %v7217
  %v7300 = vunpack.c.h.b16 %v7217
  %v7301 = vunpack.c.l.b16 %v7218
  %v7302 = vunpack.c.h.b16 %v7218
  %v7303 = vunpack.c.l.b16 %v7219
  %v7304 = vunpack.c.h.b16 %v7219
  %v7305 = vunpack.c.l.b16 %v7220
  %v7306 = vunpack.c.h.b16 %v7220
  %v7307 = vunpack.c.l.b16 %v7221
  %v7308 = vunpack.c.h.b16 %v7221
  %v7309 = vunpack.c.l.b16 %v7222
  %v7310 = vunpack.c.h.b16 %v7222
  %v7311 = vunpack.c.l.b16 %v7223
  %v7312 = vunpack.c.h.b16 %v7223
  %v7313 = vunpack.c.l.b16 %v7224
  %v7314 = vunpack.c.h.b16 %v7224
  %v7315 = vunpack.c.l.b16 %v7225
  %v7316 = vunpack.c.h.b16 %v7225
  %v7317 = vunpack.c.l.b16 %v7226
  %v7318 = vunpack.c.h.b16 %v7226
  %v7319 = vunpack.c.l.b16 %v7227
  %v7320 = vunpack.c.h.b16 %v7227
  %v7321 = vunpack.c.l.b16 %v7228
  %v7322 = vunpack.c.h.b16 %v7228
  %v7323 = vunpack.c.l.b16 %v7229
  %v7324 = vunpack.c.h.b16 %v7229
  %v7325 = vunpack.c.l.b16 %v7230
  %v7326 = vunpack.c.h.b16 %v7230
  %v7327 = vpack.c.b16 %v7267, %v7263
  %v7328 = vpack.c.b16 %v7268, %v7264
  %v7329 = vpack.c.b16 %v7269, %v7265
  %v7330 = vpack.c.b16 %v7270, %v7266
  %v7331 = vpack.c.b16 %v7275, %v7271
  %v7332 = vpack.c.b16 %v7276, %v7272
  %v7333 = vpack.c.b16 %v7277, %v7273
  %v7334 = vpack.c.b16 %v7278, %v7274
  %v7335 = vpack.c.b16 %v7283, %v7279
  %v7336 = vpack.c.b16 %v7284, %v7280
  %v7337 = vpack.c.b16 %v7285, %v7281
  %v7338 = vpack.c.b16 %v7286, %v7282
  %v7339 = vpack.c.b16 %v7291, %v7287
  %v7340 = vpack.c.b16 %v7292, %v7288
  %v7341 = vpack.c.b16 %v7293, %v7289
  %v7342 = vpack.c.b16 %v7294, %v7290
  %v7343 = vpack.c.b16 %v7299, %v7295
  %v7344 = vpack.c.b16 %v7300, %v7296
  %v7345 = vpack.c.b16 %v7301, %v7297
  %v7346 = vpack.c.b16 %v7302, %v7298
  %v7347 = vpack.c.b16 %v7307, %v7303
  %v7348 = vpack.c.b16 %v7308, %v7304
  %v7349 = vpack.c.b16 %v7309, %v7305
  %v7350 = vpack.c.b16 %v7310, %v7306
  %v7351 = vpack.c.b16 %v7315, %v7311
  %v7352 = vpack.c.b16 %v7316, %v7312
  %v7353 = vpack.c.b16 %v7317, %v7313
  %v7354 = vpack.c.b16 %v7318, %v7314
  %v7355 = vpack.c.b16 %v7323, %v7319
  %v7356 = vpack.c.b16 %v7324, %v7320
  %v7357 = vpack.c.b16 %v7325, %v7321
  %v7358 = vpack.c.b16 %v7326, %v7322
  %7391 = vmatprep.subr.bf16.mxu0 %v7328
  %7392 = vmatpush1.bf16.msra.mxu0 %v7327
  %7393 = vmatprep.subr.bf16.mxu0 %v7332
  %7394 = vmatpush1.bf16.msra.mxu0 %v7331
  %7395 = vmatprep.subr.bf16.mxu0 %v7336
  %7396 = vmatpush1.bf16.msra.mxu0 %v7335
  %7397 = vmatprep.subr.bf16.mxu0 %v7340
  %7398 = vmatpush1.bf16.msra.mxu0 %v7339
  %7399 = vmatprep.subr.bf16.mxu0 %v7344
  %7400 = vmatpush1.bf16.msra.mxu0 %v7343
  %7401 = vmatprep.subr.bf16.mxu0 %v7348
  %7402 = vmatpush1.bf16.msra.mxu0 %v7347
  %7403 = vmatprep.subr.bf16.mxu0 %v7352
  %7404 = vmatpush1.bf16.msra.mxu0 %v7351
  %7405 = vmatprep.subr.bf16.mxu0 %v7356
  %7406 = vmatpush1.bf16.msra.mxu0 %v7355
  %7407 = vmatprep.subr.bf16.mxu0 0
  %7408 = vmatpush1.bf16.msra.mxu0 0
  %7409 = vmatprep.subr.bf16.mxu0 0
  %7410 = vmatpush1.bf16.msra.mxu0 0
  %7411 = vmatprep.subr.bf16.mxu0 0
  %7412 = vmatpush1.bf16.msra.mxu0 0
  %7413 = vmatprep.subr.bf16.mxu0 0
  %7414 = vmatpush1.bf16.msra.mxu0 0
  %7415 = vmatprep.subr.bf16.mxu0 0
  %7416 = vmatpush1.bf16.msra.mxu0 0
  %7417 = vmatprep.subr.bf16.mxu0 0
  %7418 = vmatpush1.bf16.msra.mxu0 0
  %7419 = vmatprep.subr.bf16.mxu0 0
  %7420 = vmatpush1.bf16.msra.mxu0 0
  %7421 = vmatprep.subr.bf16.mxu0 0
  %7422 = vmatpush1.bf16.msra.mxu0 0
  %7423 = vmatprep.mubr.bf16.mxu0 0
  %7424 = vmatmul.mubr.bf16.gmra.mrb[0].mxu0 %v6360
  %v7425 = vpop.f32.mrb[0].mxu0
  %v7426 = vadd.f32 0.0, %v7425
  %v7427 = vpop.f32.mrb[0].mxu0
  %v7428 = vadd.f32 0.0, %v7427
  %v7429 = vpop.f32.mrb[0].mxu0
  %v7430 = vpop.f32.mrb[0].mxu0
  %7431 = vdwg.mxu0
  %7432 = vmatprep.subr.bf16.mxu0 %v7330
  %7433 = vmatpush1.bf16.msra.mxu0 %v7329
  %7434 = vmatprep.subr.bf16.mxu0 %v7334
  %7435 = vmatpush1.bf16.msra.mxu0 %v7333
  %7436 = vmatprep.subr.bf16.mxu0 %v7338
  %7437 = vmatpush1.bf16.msra.mxu0 %v7337
  %7438 = vmatprep.subr.bf16.mxu0 %v7342
  %7439 = vmatpush1.bf16.msra.mxu0 %v7341
  %7440 = vmatprep.subr.bf16.mxu0 %v7346
  %7441 = vmatpush1.bf16.msra.mxu0 %v7345
  %7442 = vmatprep.subr.bf16.mxu0 %v7350
  %7443 = vmatpush1.bf16.msra.mxu0 %v7349
  %7444 = vmatprep.subr.bf16.mxu0 %v7354
  %7445 = vmatpush1.bf16.msra.mxu0 %v7353
  %7446 = vmatprep.subr.bf16.mxu0 %v7358
  %7447 = vmatpush1.bf16.msra.mxu0 %v7357
  %7448 = vmatprep.subr.bf16.mxu0 0
  %7449 = vmatpush1.bf16.msra.mxu0 0
  %7450 = vmatprep.subr.bf16.mxu0 0
  %7451 = vmatpush1.bf16.msra.mxu0 0
  %7452 = vmatprep.subr.bf16.mxu0 0
  %7453 = vmatpush1.bf16.msra.mxu0 0
  %7454 = vmatprep.subr.bf16.mxu0 0
  %7455 = vmatpush1.bf16.msra.mxu0 0
  %7456 = vmatprep.subr.bf16.mxu0 0
  %7457 = vmatpush1.bf16.msra.mxu0 0
  %7458 = vmatprep.subr.bf16.mxu0 0
  %7459 = vmatpush1.bf16.msra.mxu0 0
  %7460 = vmatprep.subr.bf16.mxu0 0
  %7461 = vmatpush1.bf16.msra.mxu0 0
  %7462 = vmatprep.subr.bf16.mxu0 0
  %7463 = vmatpush1.bf16.msra.mxu0 0
  %7464 = vmatprep.mubr.bf16.mxu0 0
  %7465 = vmatmul.mubr.bf16.gmra.mrb[0].mxu0 %v6360
  %v7466 = vpop.f32.mrb[0].mxu0
  %v7467 = vadd.f32 0.0, %v7466
  %v7468 = vpop.f32.mrb[0].mxu0
  %v7469 = vadd.f32 0.0, %v7468
  %v7470 = vpop.f32.mrb[0].mxu0
  %v7471 = vpop.f32.mrb[0].mxu0
  %7472 = vdwg.mxu0
  %v7473 = vadd.f32 %v7195, %v7426
  %v7474 = vadd.f32 %v7196, %v7428
  %v7475 = vadd.f32 %v7197, %v7467
  %v7476 = vadd.f32 %v7198, %v7469
  %v7477 = vxor.u32 %v7473, 2147483648
  %v7478 = vmul.f32 %v7477, 1.442695
  %v7479 = vpow.pop %v7478
  %v7480 = vadd.f32 %v7479, 1.0
  %v7481 = vrcp.pop %v7480
  %v7482 = vmul.f32 1.0, %v7481
  %v7483 = vxor.u32 %v7474, 2147483648
  %v7484 = vmul.f32 %v7483, 1.442695
  %v7485 = vpow.pop %v7484
  %v7486 = vadd.f32 %v7485, 1.0
  %v7487 = vrcp.pop %v7486
  %v7488 = vmul.f32 1.0, %v7487
  %v7489 = vtanh.pop %v7475
  %v7490 = vxor.u32 %v7476, 2147483648
  %v7491 = vmul.f32 %v7490, 1.442695
  %v7492 = vpow.pop %v7491
  %v7493 = vadd.f32 %v7492, 1.0
  %v7494 = vrcp.pop %v7493
  %v7495 = vmul.f32 1.0, %v7494
  %v7496 = vmul.f32 %v7488, %v6357
  %v7497 = vmul.f32 %v7482, %v7489
  %v7498 = vadd.f32 %v7496, %v7497
  %v7499 = vtanh.pop %v7498
  %v7500 = vmul.f32 %v7495, %v7499
  %v7501 = vpack.c.bf16 %v7500, %v7500
  %v7502 = vld [vmem:[%s4] sm:$0xff]
  %v7503 = vld [vmem:[%s4 + $0x8] sm:$0xff]
  %v7504 = vld [vmem:[%s4 + $0x10] sm:$0xff]
  %v7505 = vld [vmem:[%s4 + $0x18] sm:$0xff]
  %v7506 = vld [vmem:[%s4 + $0x20] sm:$0xff]
  %v7507 = vld [vmem:[%s4 + $0x28] sm:$0xff]
  %v7508 = vld [vmem:[%s4 + $0x30] sm:$0xff]
  %v7509 = vld [vmem:[%s4 + $0x38] sm:$0xff]
  %v7510 = vld [vmem:[%s4 + $0x40] sm:$0xff]
  %v7511 = vld [vmem:[%s4 + $0x48] sm:$0xff]
  %v7512 = vld [vmem:[%s4 + $0x50] sm:$0xff]
  %v7513 = vld [vmem:[%s4 + $0x58] sm:$0xff]
  %v7514 = vld [vmem:[%s4 + $0x60] sm:$0xff]
  %v7515 = vld [vmem:[%s4 + $0x68] sm:$0xff]
  %v7516 = vld [vmem:[%s4 + $0x70] sm:$0xff]
  %v7517 = vld [vmem:[%s4 + $0x78] sm:$0xff]
  %v7518 = vld [vmem:[%s4 + $0x80] sm:$0xff]
  %v7519 = vld [vmem:[%s4 + $0x88] sm:$0xff]
  %v7520 = vld [vmem:[%s4 + $0x90] sm:$0xff]
  %v7521 = vld [vmem:[%s4 + $0x98] sm:$0xff]
  %v7522 = vld [vmem:[%s4 + $0xa0] sm:$0xff]
  %v7523 = vld [vmem:[%s4 + $0xa8] sm:$0xff]
  %v7524 = vld [vmem:[%s4 + $0xb0] sm:$0xff]
  %v7525 = vld [vmem:[%s4 + $0xb8] sm:$0xff]
  %v7526 = vld [vmem:[%s4 + $0xc0] sm:$0xff]
  %v7527 = vld [vmem:[%s4 + $0xc8] sm:$0xff]
  %v7528 = vld [vmem:[%s4 + $0xd0] sm:$0xff]
  %v7529 = vld [vmem:[%s4 + $0xd8] sm:$0xff]
  %v7530 = vld [vmem:[%s4 + $0xe0] sm:$0xff]
  %v7531 = vld [vmem:[%s4 + $0xe8] sm:$0xff]
  %v7532 = vld [vmem:[%s4 + $0xf0] sm:$0xff]
  %v7533 = vld [vmem:[%s4 + $0xf8] sm:$0xff]
  %v7534 = vld [vmem:[%s4 + $0x100] sm:$0xff]
  %v7535 = vld [vmem:[%s4 + $0x108] sm:$0xff]
  %v7536 = vld [vmem:[%s4 + $0x110] sm:$0xff]
  %v7537 = vld [vmem:[%s4 + $0x118] sm:$0xff]
  %v7538 = vld [vmem:[%s4 + $0x120] sm:$0xff]
  %v7539 = vld [vmem:[%s4 + $0x128] sm:$0xff]
  %v7540 = vld [vmem:[%s4 + $0x130] sm:$0xff]
  %v7541 = vld [vmem:[%s4 + $0x138] sm:$0xff]
  %v7542 = vld [vmem:[%s4 + $0x140] sm:$0xff]
  %v7543 = vld [vmem:[%s4 + $0x148] sm:$0xff]
  %v7544 = vld [vmem:[%s4 + $0x150] sm:$0xff]
  %v7545 = vld [vmem:[%s4 + $0x158] sm:$0xff]
  %v7546 = vld [vmem:[%s4 + $0x160] sm:$0xff]
  %v7547 = vld [vmem:[%s4 + $0x168] sm:$0xff]
  %v7548 = vld [vmem:[%s4 + $0x170] sm:$0xff]
  %v7549 = vld [vmem:[%s4 + $0x178] sm:$0xff]
  %v7550 = vld [vmem:[%s4 + $0x180] sm:$0xff]
  %v7551 = vld [vmem:[%s4 + $0x188] sm:$0xff]
  %v7552 = vld [vmem:[%s4 + $0x190] sm:$0xff]
  %v7553 = vld [vmem:[%s4 + $0x198] sm:$0xff]
  %v7554 = vld [vmem:[%s4 + $0x1a0] sm:$0xff]
  %v7555 = vld [vmem:[%s4 + $0x1a8] sm:$0xff]
  %v7556 = vld [vmem:[%s4 + $0x1b0] sm:$0xff]
  %v7557 = vld [vmem:[%s4 + $0x1b8] sm:$0xff]
  %v7558 = vld [vmem:[%s4 + $0x1c0] sm:$0xff]
  %v7559 = vld [vmem:[%s4 + $0x1c8] sm:$0xff]
  %v7560 = vld [vmem:[%s4 + $0x1d0] sm:$0xff]
  %v7561 = vld [vmem:[%s4 + $0x1d8] sm:$0xff]
  %v7562 = vld [vmem:[%s4 + $0x1e0] sm:$0xff]
  %v7563 = vld [vmem:[%s4 + $0x1e8] sm:$0xff]
  %v7564 = vld [vmem:[%s4 + $0x1f0] sm:$0xff]
  %v7565 = vld [vmem:[%s4 + $0x1f8] sm:$0xff]
  %v7630 = vunpack.c.l.b16 %v7502
  %v7631 = vunpack.c.h.b16 %v7502
  %v7632 = vunpack.c.l.b16 %v7503
  %v7633 = vunpack.c.h.b16 %v7503
  %v7634 = vunpack.c.l.b16 %v7504
  %v7635 = vunpack.c.h.b16 %v7504
  %v7636 = vunpack.c.l.b16 %v7505
  %v7637 = vunpack.c.h.b16 %v7505
  %v7638 = vunpack.c.l.b16 %v7506
  %v7639 = vunpack.c.h.b16 %v7506
  %v7640 = vunpack.c.l.b16 %v7507
  %v7641 = vunpack.c.h.b16 %v7507
  %v7642 = vunpack.c.l.b16 %v7508
  %v7643 = vunpack.c.h.b16 %v7508
  %v7644 = vunpack.c.l.b16 %v7509
  %v7645 = vunpack.c.h.b16 %v7509
  %v7646 = vunpack.c.l.b16 %v7510
  %v7647 = vunpack.c.h.b16 %v7510
  %v7648 = vunpack.c.l.b16 %v7511
  %v7649 = vunpack.c.h.b16 %v7511
  %v7650 = vunpack.c.l.b16 %v7512
  %v7651 = vunpack.c.h.b16 %v7512
  %v7652 = vunpack.c.l.b16 %v7513
  %v7653 = vunpack.c.h.b16 %v7513
  %v7654 = vunpack.c.l.b16 %v7514
  %v7655 = vunpack.c.h.b16 %v7514
  %v7656 = vunpack.c.l.b16 %v7515
  %v7657 = vunpack.c.h.b16 %v7515
  %v7658 = vunpack.c.l.b16 %v7516
  %v7659 = vunpack.c.h.b16 %v7516
  %v7660 = vunpack.c.l.b16 %v7517
  %v7661 = vunpack.c.h.b16 %v7517
  %v7662 = vunpack.c.l.b16 %v7518
  %v7663 = vunpack.c.h.b16 %v7518
  %v7664 = vunpack.c.l.b16 %v7519
  %v7665 = vunpack.c.h.b16 %v7519
  %v7666 = vunpack.c.l.b16 %v7520
  %v7667 = vunpack.c.h.b16 %v7520
  %v7668 = vunpack.c.l.b16 %v7521
  %v7669 = vunpack.c.h.b16 %v7521
  %v7670 = vunpack.c.l.b16 %v7522
  %v7671 = vunpack.c.h.b16 %v7522
  %v7672 = vunpack.c.l.b16 %v7523
  %v7673 = vunpack.c.h.b16 %v7523
  %v7674 = vunpack.c.l.b16 %v7524
  %v7675 = vunpack.c.h.b16 %v7524
  %v7676 = vunpack.c.l.b16 %v7525
  %v7677 = vunpack.c.h.b16 %v7525
  %v7678 = vunpack.c.l.b16 %v7526
  %v7679 = vunpack.c.h.b16 %v7526
  %v7680 = vunpack.c.l.b16 %v7527
  %v7681 = vunpack.c.h.b16 %v7527
  %v7682 = vunpack.c.l.b16 %v7528
  %v7683 = vunpack.c.h.b16 %v7528
  %v7684 = vunpack.c.l.b16 %v7529
  %v7685 = vunpack.c.h.b16 %v7529
  %v7686 = vunpack.c.l.b16 %v7530
  %v7687 = vunpack.c.h.b16 %v7530
  %v7688 = vunpack.c.l.b16 %v7531
  %v7689 = vunpack.c.h.b16 %v7531
  %v7690 = vunpack.c.l.b16 %v7532
  %v7691 = vunpack.c.h.b16 %v7532
  %v7692 = vunpack.c.l.b16 %v7533
  %v7693 = vunpack.c.h.b16 %v7533
  %v7694 = vunpack.c.l.b16 %v7534
  %v7695 = vunpack.c.h.b16 %v7534
  %v7696 = vunpack.c.l.b16 %v7535
  %v7697 = vunpack.c.h.b16 %v7535
  %v7698 = vunpack.c.l.b16 %v7536
  %v7699 = vunpack.c.h.b16 %v7536
  %v7700 = vunpack.c.l.b16 %v7537
  %v7701 = vunpack.c.h.b16 %v7537
  %v7702 = vunpack.c.l.b16 %v7538
  %v7703 = vunpack.c.h.b16 %v7538
  %v7704 = vunpack.c.l.b16 %v7539
  %v7705 = vunpack.c.h.b16 %v7539
  %v7706 = vunpack.c.l.b16 %v7540
  %v7707 = vunpack.c.h.b16 %v7540
  %v7708 = vunpack.c.l.b16 %v7541
  %v7709 = vunpack.c.h.b16 %v7541
  %v7710 = vunpack.c.l.b16 %v7542
  %v7711 = vunpack.c.h.b16 %v7542
  %v7712 = vunpack.c.l.b16 %v7543
  %v7713 = vunpack.c.h.b16 %v7543
  %v7714 = vunpack.c.l.b16 %v7544
  %v7715 = vunpack.c.h.b16 %v7544
  %v7716 = vunpack.c.l.b16 %v7545
  %v7717 = vunpack.c.h.b16 %v7545
  %v7718 = vunpack.c.l.b16 %v7546
  %v7719 = vunpack.c.h.b16 %v7546
  %v7720 = vunpack.c.l.b16 %v7547
  %v7721 = vunpack.c.h.b16 %v7547
  %v7722 = vunpack.c.l.b16 %v7548
  %v7723 = vunpack.c.h.b16 %v7548
  %v7724 = vunpack.c.l.b16 %v7549
  %v7725 = vunpack.c.h.b16 %v7549
  %v7726 = vunpack.c.l.b16 %v7550
  %v7727 = vunpack.c.h.b16 %v7550
  %v7728 = vunpack.c.l.b16 %v7551
  %v7729 = vunpack.c.h.b16 %v7551
  %v7730 = vunpack.c.l.b16 %v7552
  %v7731 = vunpack.c.h.b16 %v7552
  %v7732 = vunpack.c.l.b16 %v7553
  %v7733 = vunpack.c.h.b16 %v7553
  %v7734 = vunpack.c.l.b16 %v7554
  %v7735 = vunpack.c.h.b16 %v7554
  %v7736 = vunpack.c.l.b16 %v7555
  %v7737 = vunpack.c.h.b16 %v7555
  %v7738 = vunpack.c.l.b16 %v7556
  %v7739 = vunpack.c.h.b16 %v7556
  %v7740 = vunpack.c.l.b16 %v7557
  %v7741 = vunpack.c.h.b16 %v7557
  %v7742 = vunpack.c.l.b16 %v7558
  %v7743 = vunpack.c.h.b16 %v7558
  %v7744 = vunpack.c.l.b16 %v7559
  %v7745 = vunpack.c.h.b16 %v7559
  %v7746 = vunpack.c.l.b16 %v7560
  %v7747 = vunpack.c.h.b16 %v7560
  %v7748 = vunpack.c.l.b16 %v7561
  %v7749 = vunpack.c.h.b16 %v7561
  %v7750 = vunpack.c.l.b16 %v7562
  %v7751 = vunpack.c.h.b16 %v7562
  %v7752 = vunpack.c.l.b16 %v7563
  %v7753 = vunpack.c.h.b16 %v7563
  %v7754 = vunpack.c.l.b16 %v7564
  %v7755 = vunpack.c.h.b16 %v7564
  %v7756 = vunpack.c.l.b16 %v7565
  %v7757 = vunpack.c.h.b16 %v7565
  %v7758 = vpack.c.b16 %v7634, %v7630
  %v7759 = vpack.c.b16 %v7635, %v7631
  %v7760 = vpack.c.b16 %v7636, %v7632
  %v7761 = vpack.c.b16 %v7637, %v7633
  %v7762 = vpack.c.b16 %v7642, %v7638
  %v7763 = vpack.c.b16 %v7643, %v7639
  %v7764 = vpack.c.b16 %v7644, %v7640
  %v7765 = vpack.c.b16 %v7645, %v7641
  %v7766 = vpack.c.b16 %v7650, %v7646
  %v7767 = vpack.c.b16 %v7651, %v7647
  %v7768 = vpack.c.b16 %v7652, %v7648
  %v7769 = vpack.c.b16 %v7653, %v7649
  %v7770 = vpack.c.b16 %v7658, %v7654
  %v7771 = vpack.c.b16 %v7659, %v7655
  %v7772 = vpack.c.b16 %v7660, %v7656
  %v7773 = vpack.c.b16 %v7661, %v7657
  %v7774 = vpack.c.b16 %v7666, %v7662
  %v7775 = vpack.c.b16 %v7667, %v7663
  %v7776 = vpack.c.b16 %v7668, %v7664
  %v7777 = vpack.c.b16 %v7669, %v7665
  %v7778 = vpack.c.b16 %v7674, %v7670
  %v7779 = vpack.c.b16 %v7675, %v7671
  %v7780 = vpack.c.b16 %v7676, %v7672
  %v7781 = vpack.c.b16 %v7677, %v7673
  %v7782 = vpack.c.b16 %v7682, %v7678
  %v7783 = vpack.c.b16 %v7683, %v7679
  %v7784 = vpack.c.b16 %v7684, %v7680
  %v7785 = vpack.c.b16 %v7685, %v7681
  %v7786 = vpack.c.b16 %v7690, %v7686
  %v7787 = vpack.c.b16 %v7691, %v7687
  %v7788 = vpack.c.b16 %v7692, %v7688
  %v7789 = vpack.c.b16 %v7693, %v7689
  %v7790 = vpack.c.b16 %v7698, %v7694
  %v7791 = vpack.c.b16 %v7699, %v7695
  %v7792 = vpack.c.b16 %v7700, %v7696
  %v7793 = vpack.c.b16 %v7701, %v7697
  %v7794 = vpack.c.b16 %v7706, %v7702
  %v7795 = vpack.c.b16 %v7707, %v7703
  %v7796 = vpack.c.b16 %v7708, %v7704
  %v7797 = vpack.c.b16 %v7709, %v7705
  %v7798 = vpack.c.b16 %v7714, %v7710
  %v7799 = vpack.c.b16 %v7715, %v7711
  %v7800 = vpack.c.b16 %v7716, %v7712
  %v7801 = vpack.c.b16 %v7717, %v7713
  %v7802 = vpack.c.b16 %v7722, %v7718
  %v7803 = vpack.c.b16 %v7723, %v7719
  %v7804 = vpack.c.b16 %v7724, %v7720
  %v7805 = vpack.c.b16 %v7725, %v7721
  %v7806 = vpack.c.b16 %v7730, %v7726
  %v7807 = vpack.c.b16 %v7731, %v7727
  %v7808 = vpack.c.b16 %v7732, %v7728
  %v7809 = vpack.c.b16 %v7733, %v7729
  %v7810 = vpack.c.b16 %v7738, %v7734
  %v7811 = vpack.c.b16 %v7739, %v7735
  %v7812 = vpack.c.b16 %v7740, %v7736
  %v7813 = vpack.c.b16 %v7741, %v7737
  %v7814 = vpack.c.b16 %v7746, %v7742
  %v7815 = vpack.c.b16 %v7747, %v7743
  %v7816 = vpack.c.b16 %v7748, %v7744
  %v7817 = vpack.c.b16 %v7749, %v7745
  %v7818 = vpack.c.b16 %v7754, %v7750
  %v7819 = vpack.c.b16 %v7755, %v7751
  %v7820 = vpack.c.b16 %v7756, %v7752
  %v7821 = vpack.c.b16 %v7757, %v7753
  %7886 = vmatprep.subr.bf16.mxu0 %v7759
  %7887 = vmatpush1.bf16.msra.mxu0 %v7758
  %7888 = vmatprep.subr.bf16.mxu0 %v7763
  %7889 = vmatpush1.bf16.msra.mxu0 %v7762
  %7890 = vmatprep.subr.bf16.mxu0 %v7767
  %7891 = vmatpush1.bf16.msra.mxu0 %v7766
  %7892 = vmatprep.subr.bf16.mxu0 %v7771
  %7893 = vmatpush1.bf16.msra.mxu0 %v7770
  %7894 = vmatprep.subr.bf16.mxu0 %v7775
  %7895 = vmatpush1.bf16.msra.mxu0 %v7774
  %7896 = vmatprep.subr.bf16.mxu0 %v7779
  %7897 = vmatpush1.bf16.msra.mxu0 %v7778
  %7898 = vmatprep.subr.bf16.mxu0 %v7783
  %7899 = vmatpush1.bf16.msra.mxu0 %v7782
  %7900 = vmatprep.subr.bf16.mxu0 %v7787
  %7901 = vmatpush1.bf16.msra.mxu0 %v7786
  %7902 = vmatprep.subr.bf16.mxu0 %v7791
  %7903 = vmatpush1.bf16.msra.mxu0 %v7790
  %7904 = vmatprep.subr.bf16.mxu0 %v7795
  %7905 = vmatpush1.bf16.msra.mxu0 %v7794
  %7906 = vmatprep.subr.bf16.mxu0 %v7799
  %7907 = vmatpush1.bf16.msra.mxu0 %v7798
  %7908 = vmatprep.subr.bf16.mxu0 %v7803
  %7909 = vmatpush1.bf16.msra.mxu0 %v7802
  %7910 = vmatprep.subr.bf16.mxu0 %v7807
  %7911 = vmatpush1.bf16.msra.mxu0 %v7806
  %7912 = vmatprep.subr.bf16.mxu0 %v7811
  %7913 = vmatpush1.bf16.msra.mxu0 %v7810
  %7914 = vmatprep.subr.bf16.mxu0 %v7815
  %7915 = vmatpush1.bf16.msra.mxu0 %v7814
  %7916 = vmatprep.subr.bf16.mxu0 %v7819
  %7917 = vmatpush1.bf16.msra.mxu0 %v7818
  %7918 = vmatprep.mubr.bf16.mxu0 %v6851
  %7919 = vmatmul.mubr.bf16.gmra.mrb[0].mxu0 %v7501
  %v7920 = vpop.f32.mrb[0].mxu0
  %v7921 = vadd.f32 %v1424, %v7920
  %v7922 = vpop.f32.mrb[0].mxu0
  %v7923 = vadd.f32 %v1428, %v7922
  %v7924 = vpop.f32.mrb[0].mxu0
  %v7925 = vpop.f32.mrb[0].mxu0
  %7926 = vdwg.mxu0
  %7927 = vmatprep.subr.bf16.mxu0 %v7761
  %7928 = vmatpush1.bf16.msra.mxu0 %v7760
  %7929 = vmatprep.subr.bf16.mxu0 %v7765
  %7930 = vmatpush1.bf16.msra.mxu0 %v7764
  %7931 = vmatprep.subr.bf16.mxu0 %v7769
  %7932 = vmatpush1.bf16.msra.mxu0 %v7768
  %7933 = vmatprep.subr.bf16.mxu0 %v7773
  %7934 = vmatpush1.bf16.msra.mxu0 %v7772
  %7935 = vmatprep.subr.bf16.mxu0 %v7777
  %7936 = vmatpush1.bf16.msra.mxu0 %v7776
  %7937 = vmatprep.subr.bf16.mxu0 %v7781
  %7938 = vmatpush1.bf16.msra.mxu0 %v7780
  %7939 = vmatprep.subr.bf16.mxu0 %v7785
  %7940 = vmatpush1.bf16.msra.mxu0 %v7784
  %7941 = vmatprep.subr.bf16.mxu0 %v7789
  %7942 = vmatpush1.bf16.msra.mxu0 %v7788
  %7943 = vmatprep.subr.bf16.mxu0 %v7793
  %7944 = vmatpush1.bf16.msra.mxu0 %v7792
  %7945 = vmatprep.subr.bf16.mxu0 %v7797
  %7946 = vmatpush1.bf16.msra.mxu0 %v7796
  %7947 = vmatprep.subr.bf16.mxu0 %v7801
  %7948 = vmatpush1.bf16.msra.mxu0 %v7800
  %7949 = vmatprep.subr.bf16.mxu0 %v7805
  %7950 = vmatpush1.bf16.msra.mxu0 %v7804
  %7951 = vmatprep.subr.bf16.mxu0 %v7809
  %7952 = vmatpush1.bf16.msra.mxu0 %v7808
  %7953 = vmatprep.subr.bf16.mxu0 %v7813
  %7954 = vmatpush1.bf16.msra.mxu0 %v7812
  %7955 = vmatprep.subr.bf16.mxu0 %v7817
  %7956 = vmatpush1.bf16.msra.mxu0 %v7816
  %7957 = vmatprep.subr.bf16.mxu0 %v7821
  %7958 = vmatpush1.bf16.msra.mxu0 %v7820
  %7959 = vmatprep.mubr.bf16.mxu0 %v6851
  %7960 = vmatmul.mubr.bf16.gmra.mrb[0].mxu0 %v7501
  %v7961 = vpop.f32.mrb[0].mxu0
  %v7962 = vadd.f32 %v1432, %v7961
  %v7963 = vpop.f32.mrb[0].mxu0
  %v7964 = vadd.f32 %v1436, %v7963
  %v7965 = vpop.f32.mrb[0].mxu0
  %v7966 = vpop.f32.mrb[0].mxu0
  %7967 = vdwg.mxu0
  %v7968 = vxor.u32 %v7921, 2147483648
  %v7969 = vmul.f32 %v7968, 1.442695
  %v7970 = vpow.pop %v7969
  %v7971 = vadd.f32 %v7970, 1.0
  %v7972 = vrcp.pop %v7971
  %v7973 = vmul.f32 1.0, %v7972
  %v7974 = vxor.u32 %v7923, 2147483648
  %v7975 = vmul.f32 %v7974, 1.442695
  %v7976 = vpow.pop %v7975
  %v7977 = vadd.f32 %v7976, 1.0
  %v7978 = vrcp.pop %v7977
  %v7979 = vmul.f32 1.0, %v7978
  %v7980 = vtanh.pop %v7962
  %v7981 = vxor.u32 %v7964, 2147483648
  %v7982 = vmul.f32 %v7981, 1.442695
  %v7983 = vpow.pop %v7982
  %v7984 = vadd.f32 %v7983, 1.0
  %v7985 = vrcp.pop %v7984
  %v7986 = vmul.f32 1.0, %v7985
  %v7987 = vmul.f32 %v7979, %v6848
  %v7988 = vmul.f32 %v7973, %v7980
  %v7989 = vadd.f32 %v7987, %v7988
  %v7990 = vtanh.pop %v7989
  %v7991 = vmul.f32 %v7986, %v7990
  %v7992 = vpack.c.bf16 %v7991, %v7991
  %v7993 = vld [vmem:[#allocation3] sm:$0xff]
  %v7994 = vld [vmem:[#allocation3 + $0x8] sm:$0xff]
  %v7995 = vld [vmem:[#allocation3 + $0x10] sm:$0xff]
  %v7996 = vld [vmem:[#allocation3 + $0x18] sm:$0xff]
  %v7997 = vld [vmem:[#allocation3 + $0x20] sm:$0xff]
  %v7998 = vld [vmem:[#allocation3 + $0x28] sm:$0xff]
  %v7999 = vld [vmem:[#allocation3 + $0x30] sm:$0xff]
  %v8000 = vld [vmem:[#allocation3 + $0x38] sm:$0xff]
  %v8001 = vld [vmem:[#allocation3 + $0x40] sm:$0xff]
  %v8002 = vld [vmem:[#allocation3 + $0x48] sm:$0xff]
  %v8003 = vld [vmem:[#allocation3 + $0x50] sm:$0xff]
  %v8004 = vld [vmem:[#allocation3 + $0x58] sm:$0xff]
  %v8005 = vld [vmem:[#allocation3 + $0x60] sm:$0xff]
  %v8006 = vld [vmem:[#allocation3 + $0x68] sm:$0xff]
  %v8007 = vld [vmem:[#allocation3 + $0x70] sm:$0xff]
  %v8008 = vld [vmem:[#allocation3 + $0x78] sm:$0xff]
  %v8009 = vld [vmem:[#allocation3 + $0x80] sm:$0xff]
  %v8010 = vld [vmem:[#allocation3 + $0x88] sm:$0xff]
  %v8011 = vld [vmem:[#allocation3 + $0x90] sm:$0xff]
  %v8012 = vld [vmem:[#allocation3 + $0x98] sm:$0xff]
  %v8013 = vld [vmem:[#allocation3 + $0xa0] sm:$0xff]
  %v8014 = vld [vmem:[#allocation3 + $0xa8] sm:$0xff]
  %v8015 = vld [vmem:[#allocation3 + $0xb0] sm:$0xff]
  %v8016 = vld [vmem:[#allocation3 + $0xb8] sm:$0xff]
  %v8017 = vld [vmem:[#allocation3 + $0xc0] sm:$0xff]
  %v8018 = vld [vmem:[#allocation3 + $0xc8] sm:$0xff]
  %v8019 = vld [vmem:[#allocation3 + $0xd0] sm:$0xff]
  %v8020 = vld [vmem:[#allocation3 + $0xd8] sm:$0xff]
  %v8021 = vld [vmem:[#allocation3 + $0xe0] sm:$0xff]
  %v8022 = vld [vmem:[#allocation3 + $0xe8] sm:$0xff]
  %v8023 = vld [vmem:[#allocation3 + $0xf0] sm:$0xff]
  %v8024 = vld [vmem:[#allocation3 + $0xf8] sm:$0xff]
  %v8025 = vld [vmem:[#allocation3 + $0x100] sm:$0xff]
  %v8026 = vld [vmem:[#allocation3 + $0x108] sm:$0xff]
  %v8027 = vld [vmem:[#allocation3 + $0x110] sm:$0xff]
  %v8028 = vld [vmem:[#allocation3 + $0x118] sm:$0xff]
  %v8029 = vld [vmem:[#allocation3 + $0x120] sm:$0xff]
  %v8030 = vld [vmem:[#allocation3 + $0x128] sm:$0xff]
  %v8031 = vld [vmem:[#allocation3 + $0x130] sm:$0xff]
  %v8032 = vld [vmem:[#allocation3 + $0x138] sm:$0xff]
  %v8033 = vld [vmem:[#allocation3 + $0x140] sm:$0xff]
  %v8034 = vld [vmem:[#allocation3 + $0x148] sm:$0xff]
  %v8035 = vld [vmem:[#allocation3 + $0x150] sm:$0xff]
  %v8036 = vld [vmem:[#allocation3 + $0x158] sm:$0xff]
  %v8037 = vld [vmem:[#allocation3 + $0x160] sm:$0xff]
  %v8038 = vld [vmem:[#allocation3 + $0x168] sm:$0xff]
  %v8039 = vld [vmem:[#allocation3 + $0x170] sm:$0xff]
  %v8040 = vld [vmem:[#allocation3 + $0x178] sm:$0xff]
  %v8041 = vld [vmem:[#allocation3 + $0x180] sm:$0xff]
  %v8042 = vld [vmem:[#allocation3 + $0x188] sm:$0xff]
  %v8043 = vld [vmem:[#allocation3 + $0x190] sm:$0xff]
  %v8044 = vld [vmem:[#allocation3 + $0x198] sm:$0xff]
  %v8045 = vld [vmem:[#allocation3 + $0x1a0] sm:$0xff]
  %v8046 = vld [vmem:[#allocation3 + $0x1a8] sm:$0xff]
  %v8047 = vld [vmem:[#allocation3 + $0x1b0] sm:$0xff]
  %v8048 = vld [vmem:[#allocation3 + $0x1b8] sm:$0xff]
  %v8049 = vld [vmem:[#allocation3 + $0x1c0] sm:$0xff]
  %v8050 = vld [vmem:[#allocation3 + $0x1c8] sm:$0xff]
  %v8051 = vld [vmem:[#allocation3 + $0x1d0] sm:$0xff]
  %v8052 = vld [vmem:[#allocation3 + $0x1d8] sm:$0xff]
  %v8053 = vld [vmem:[#allocation3 + $0x1e0] sm:$0xff]
  %v8054 = vld [vmem:[#allocation3 + $0x1e8] sm:$0xff]
  %v8055 = vld [vmem:[#allocation3 + $0x1f0] sm:$0xff]
  %v8056 = vld [vmem:[#allocation3 + $0x1f8] sm:$0xff]
  %8057 = vmatprep.subr.bf16.mxu0 %v7994
  %8058 = vmatpush1.bf16.msra.mxu0 %v7993
  %8059 = vmatprep.subr.bf16.mxu0 %v7998
  %8060 = vmatpush1.bf16.msra.mxu0 %v7997
  %8061 = vmatprep.subr.bf16.mxu0 %v8002
  %8062 = vmatpush1.bf16.msra.mxu0 %v8001
  %8063 = vmatprep.subr.bf16.mxu0 %v8006
  %8064 = vmatpush1.bf16.msra.mxu0 %v8005
  %8065 = vmatprep.subr.bf16.mxu0 %v8010
  %8066 = vmatpush1.bf16.msra.mxu0 %v8009
  %8067 = vmatprep.subr.bf16.mxu0 %v8014
  %8068 = vmatpush1.bf16.msra.mxu0 %v8013
  %8069 = vmatprep.subr.bf16.mxu0 %v8018
  %8070 = vmatpush1.bf16.msra.mxu0 %v8017
  %8071 = vmatprep.subr.bf16.mxu0 %v8022
  %8072 = vmatpush1.bf16.msra.mxu0 %v8021
  %8073 = vmatprep.subr.bf16.mxu0 %v8026
  %8074 = vmatpush1.bf16.msra.mxu0 %v8025
  %8075 = vmatprep.subr.bf16.mxu0 %v8030
  %8076 = vmatpush1.bf16.msra.mxu0 %v8029
  %8077 = vmatprep.subr.bf16.mxu0 %v8034
  %8078 = vmatpush1.bf16.msra.mxu0 %v8033
  %8079 = vmatprep.subr.bf16.mxu0 %v8038
  %8080 = vmatpush1.bf16.msra.mxu0 %v8037
  %8081 = vmatprep.subr.bf16.mxu0 %v8042
  %8082 = vmatpush1.bf16.msra.mxu0 %v8041
  %8083 = vmatprep.subr.bf16.mxu0 %v8046
  %8084 = vmatpush1.bf16.msra.mxu0 %v8045
  %8085 = vmatprep.subr.bf16.mxu0 %v8050
  %8086 = vmatpush1.bf16.msra.mxu0 %v8049
  %8087 = vmatprep.subr.bf16.mxu0 %v8054
  %8088 = vmatpush1.bf16.msra.mxu0 %v8053
  %8089 = vmatprep.mubr.bf16.mxu0 %v7022
  %8090 = vmatmul.mubr.bf16.gmra.mrb[0].mxu0 %v7992
  %v8091 = vpop.f32.mrb[0].mxu0
  %v8092 = vadd.f32 %v1446, %v8091
  %v8093 = vpop.f32.mrb[0].mxu0
  %v8094 = vadd.f32 %v1450, %v8093
  %v8095 = vpop.f32.mrb[0].mxu0
  %v8096 = vpop.f32.mrb[0].mxu0
  %8097 = vdwg.mxu0
  %8098 = vmatprep.subr.bf16.mxu0 %v7996
  %8099 = vmatpush1.bf16.msra.mxu0 %v7995
  %8100 = vmatprep.subr.bf16.mxu0 %v8000
  %8101 = vmatpush1.bf16.msra.mxu0 %v7999
  %8102 = vmatprep.subr.bf16.mxu0 %v8004
  %8103 = vmatpush1.bf16.msra.mxu0 %v8003
  %8104 = vmatprep.subr.bf16.mxu0 %v8008
  %8105 = vmatpush1.bf16.msra.mxu0 %v8007
  %8106 = vmatprep.subr.bf16.mxu0 %v8012
  %8107 = vmatpush1.bf16.msra.mxu0 %v8011
  %8108 = vmatprep.subr.bf16.mxu0 %v8016
  %8109 = vmatpush1.bf16.msra.mxu0 %v8015
  %8110 = vmatprep.subr.bf16.mxu0 %v8020
  %8111 = vmatpush1.bf16.msra.mxu0 %v8019
  %8112 = vmatprep.subr.bf16.mxu0 %v8024
  %8113 = vmatpush1.bf16.msra.mxu0 %v8023
  %8114 = vmatprep.subr.bf16.mxu0 %v8028
  %8115 = vmatpush1.bf16.msra.mxu0 %v8027
  %8116 = vmatprep.subr.bf16.mxu0 %v8032
  %8117 = vmatpush1.bf16.msra.mxu0 %v8031
  %8118 = vmatprep.subr.bf16.mxu0 %v8036
  %8119 = vmatpush1.bf16.msra.mxu0 %v8035
  %8120 = vmatprep.subr.bf16.mxu0 %v8040
  %8121 = vmatpush1.bf16.msra.mxu0 %v8039
  %8122 = vmatprep.subr.bf16.mxu0 %v8044
  %8123 = vmatpush1.bf16.msra.mxu0 %v8043
  %8124 = vmatprep.subr.bf16.mxu0 %v8048
  %8125 = vmatpush1.bf16.msra.mxu0 %v8047
  %8126 = vmatprep.subr.bf16.mxu0 %v8052
  %8127 = vmatpush1.bf16.msra.mxu0 %v8051
  %8128 = vmatprep.subr.bf16.mxu0 %v8056
  %8129 = vmatpush1.bf16.msra.mxu0 %v8055
  %8130 = vmatprep.mubr.bf16.mxu0 %v7022
  %8131 = vmatmul.mubr.bf16.gmra.mrb[0].mxu0 %v7992
  %v8132 = vpop.f32.mrb[0].mxu0
  %v8133 = vadd.f32 %v1454, %v8132
  %v8134 = vpop.f32.mrb[0].mxu0
  %v8135 = vadd.f32 %v1458, %v8134
  %v8136 = vpop.f32.mrb[0].mxu0
  %v8137 = vpop.f32.mrb[0].mxu0
  %8138 = vdwg.mxu0
  %v8139 = vxor.u32 %v8092, 2147483648
  %v8140 = vmul.f32 %v8139, 1.442695
  %v8141 = vpow.pop %v8140
  %v8142 = vadd.f32 %v8141, 1.0
  %v8143 = vrcp.pop %v8142
  %v8144 = vmul.f32 1.0, %v8143
  %v8145 = vxor.u32 %v8094, 2147483648
  %v8146 = vmul.f32 %v8145, 1.442695
  %v8147 = vpow.pop %v8146
  %v8148 = vadd.f32 %v8147, 1.0
  %v8149 = vrcp.pop %v8148
  %v8150 = vmul.f32 1.0, %v8149
  %v8151 = vtanh.pop %v8133
  %v8152 = vxor.u32 %v8135, 2147483648
  %v8153 = vmul.f32 %v8152, 1.442695
  %v8154 = vpow.pop %v8153
  %v8155 = vadd.f32 %v8154, 1.0
  %v8156 = vrcp.pop %v8155
  %v8157 = vmul.f32 1.0, %v8156
  %v8158 = vmul.f32 %v8150, %v7019
  %v8159 = vmul.f32 %v8144, %v8151
  %v8160 = vadd.f32 %v8158, %v8159
  %v8161 = vtanh.pop %v8160
  %v8162 = vmul.f32 %v8157, %v8161
  %v8163 = vpack.c.bf16 %v8162, %v8162
  %v8164 = vpack.c.bf16 %v7193, %v7193
  %v8165 = vld [vmem:[#allocation4] sm:$0xff]
  %v8166 = vld [vmem:[#allocation4 + $0x8] sm:$0xff]
  %v8167 = vld [vmem:[#allocation4 + $0x10] sm:$0xff]
  %v8168 = vld [vmem:[#allocation4 + $0x18] sm:$0xff]
  %v8169 = vld [vmem:[#allocation4 + $0x20] sm:$0xff]
  %v8170 = vld [vmem:[#allocation4 + $0x28] sm:$0xff]
  %v8171 = vld [vmem:[#allocation4 + $0x30] sm:$0xff]
  %v8172 = vld [vmem:[#allocation4 + $0x38] sm:$0xff]
  %v8173 = vld [vmem:[#allocation4 + $0x40] sm:$0xff]
  %v8174 = vld [vmem:[#allocation4 + $0x48] sm:$0xff]
  %v8175 = vld [vmem:[#allocation4 + $0x50] sm:$0xff]
  %v8176 = vld [vmem:[#allocation4 + $0x58] sm:$0xff]
  %v8177 = vld [vmem:[#allocation4 + $0x60] sm:$0xff]
  %v8178 = vld [vmem:[#allocation4 + $0x68] sm:$0xff]
  %v8179 = vld [vmem:[#allocation4 + $0x70] sm:$0xff]
  %v8180 = vld [vmem:[#allocation4 + $0x78] sm:$0xff]
  %v8181 = vld [vmem:[#allocation4 + $0x80] sm:$0xff]
  %v8182 = vld [vmem:[#allocation4 + $0x88] sm:$0xff]
  %v8183 = vld [vmem:[#allocation4 + $0x90] sm:$0xff]
  %v8184 = vld [vmem:[#allocation4 + $0x98] sm:$0xff]
  %v8185 = vld [vmem:[#allocation4 + $0xa0] sm:$0xff]
  %v8186 = vld [vmem:[#allocation4 + $0xa8] sm:$0xff]
  %v8187 = vld [vmem:[#allocation4 + $0xb0] sm:$0xff]
  %v8188 = vld [vmem:[#allocation4 + $0xb8] sm:$0xff]
  %v8189 = vld [vmem:[#allocation4 + $0xc0] sm:$0xff]
  %v8190 = vld [vmem:[#allocation4 + $0xc8] sm:$0xff]
  %v8191 = vld [vmem:[#allocation4 + $0xd0] sm:$0xff]
  %v8192 = vld [vmem:[#allocation4 + $0xd8] sm:$0xff]
  %v8193 = vld [vmem:[#allocation4 + $0xe0] sm:$0xff]
  %v8194 = vld [vmem:[#allocation4 + $0xe8] sm:$0xff]
  %v8195 = vld [vmem:[#allocation4 + $0xf0] sm:$0xff]
  %v8196 = vld [vmem:[#allocation4 + $0xf8] sm:$0xff]
  %v8197 = vld [vmem:[#allocation4 + $0x100] sm:$0xff]
  %v8198 = vld [vmem:[#allocation4 + $0x108] sm:$0xff]
  %v8199 = vld [vmem:[#allocation4 + $0x110] sm:$0xff]
  %v8200 = vld [vmem:[#allocation4 + $0x118] sm:$0xff]
  %v8201 = vld [vmem:[#allocation4 + $0x120] sm:$0xff]
  %v8202 = vld [vmem:[#allocation4 + $0x128] sm:$0xff]
  %v8203 = vld [vmem:[#allocation4 + $0x130] sm:$0xff]
  %v8204 = vld [vmem:[#allocation4 + $0x138] sm:$0xff]
  %v8205 = vld [vmem:[#allocation4 + $0x140] sm:$0xff]
  %v8206 = vld [vmem:[#allocation4 + $0x148] sm:$0xff]
  %v8207 = vld [vmem:[#allocation4 + $0x150] sm:$0xff]
  %v8208 = vld [vmem:[#allocation4 + $0x158] sm:$0xff]
  %v8209 = vld [vmem:[#allocation4 + $0x160] sm:$0xff]
  %v8210 = vld [vmem:[#allocation4 + $0x168] sm:$0xff]
  %v8211 = vld [vmem:[#allocation4 + $0x170] sm:$0xff]
  %v8212 = vld [vmem:[#allocation4 + $0x178] sm:$0xff]
  %v8213 = vld [vmem:[#allocation4 + $0x180] sm:$0xff]
  %v8214 = vld [vmem:[#allocation4 + $0x188] sm:$0xff]
  %v8215 = vld [vmem:[#allocation4 + $0x190] sm:$0xff]
  %v8216 = vld [vmem:[#allocation4 + $0x198] sm:$0xff]
  %v8217 = vld [vmem:[#allocation4 + $0x1a0] sm:$0xff]
  %v8218 = vld [vmem:[#allocation4 + $0x1a8] sm:$0xff]
  %v8219 = vld [vmem:[#allocation4 + $0x1b0] sm:$0xff]
  %v8220 = vld [vmem:[#allocation4 + $0x1b8] sm:$0xff]
  %v8221 = vld [vmem:[#allocation4 + $0x1c0] sm:$0xff]
  %v8222 = vld [vmem:[#allocation4 + $0x1c8] sm:$0xff]
  %v8223 = vld [vmem:[#allocation4 + $0x1d0] sm:$0xff]
  %v8224 = vld [vmem:[#allocation4 + $0x1d8] sm:$0xff]
  %v8225 = vld [vmem:[#allocation4 + $0x1e0] sm:$0xff]
  %v8226 = vld [vmem:[#allocation4 + $0x1e8] sm:$0xff]
  %v8227 = vld [vmem:[#allocation4 + $0x1f0] sm:$0xff]
  %v8228 = vld [vmem:[#allocation4 + $0x1f8] sm:$0xff]
  %8229 = vmatprep.subr.bf16.mxu0 %v8166
  %8230 = vmatpush1.bf16.msra.mxu0 %v8165
  %8231 = vmatprep.subr.bf16.mxu0 %v8170
  %8232 = vmatpush1.bf16.msra.mxu0 %v8169
  %8233 = vmatprep.subr.bf16.mxu0 %v8174
  %8234 = vmatpush1.bf16.msra.mxu0 %v8173
  %8235 = vmatprep.subr.bf16.mxu0 %v8178
  %8236 = vmatpush1.bf16.msra.mxu0 %v8177
  %8237 = vmatprep.subr.bf16.mxu0 %v8182
  %8238 = vmatpush1.bf16.msra.mxu0 %v8181
  %8239 = vmatprep.subr.bf16.mxu0 %v8186
  %8240 = vmatpush1.bf16.msra.mxu0 %v8185
  %8241 = vmatprep.subr.bf16.mxu0 %v8190
  %8242 = vmatpush1.bf16.msra.mxu0 %v8189
  %8243 = vmatprep.subr.bf16.mxu0 %v8194
  %8244 = vmatpush1.bf16.msra.mxu0 %v8193
  %8245 = vmatprep.subr.bf16.mxu0 %v8198
  %8246 = vmatpush1.bf16.msra.mxu0 %v8197
  %8247 = vmatprep.subr.bf16.mxu0 %v8202
  %8248 = vmatpush1.bf16.msra.mxu0 %v8201
  %8249 = vmatprep.subr.bf16.mxu0 %v8206
  %8250 = vmatpush1.bf16.msra.mxu0 %v8205
  %8251 = vmatprep.subr.bf16.mxu0 %v8210
  %8252 = vmatpush1.bf16.msra.mxu0 %v8209
  %8253 = vmatprep.subr.bf16.mxu0 %v8214
  %8254 = vmatpush1.bf16.msra.mxu0 %v8213
  %8255 = vmatprep.subr.bf16.mxu0 %v8218
  %8256 = vmatpush1.bf16.msra.mxu0 %v8217
  %8257 = vmatprep.subr.bf16.mxu0 %v8222
  %8258 = vmatpush1.bf16.msra.mxu0 %v8221
  %8259 = vmatprep.subr.bf16.mxu0 %v8226
  %8260 = vmatpush1.bf16.msra.mxu0 %v8225
  %8261 = vmatprep.mubr.bf16.mxu0 %v8164
  %8262 = vmatmul.mubr.bf16.gmra.mrb[0].mxu0 %v8163
  %v8263 = vpop.f32.mrb[0].mxu0
  %v8264 = vadd.f32 %v1468, %v8263
  %v8265 = vpop.f32.mrb[0].mxu0
  %v8266 = vadd.f32 %v1472, %v8265
  %v8267 = vpop.f32.mrb[0].mxu0
  %v8268 = vpop.f32.mrb[0].mxu0
  %8269 = vdwg.mxu0
  %8270 = vmatprep.subr.bf16.mxu0 %v8168
  %8271 = vmatpush1.bf16.msra.mxu0 %v8167
  %8272 = vmatprep.subr.bf16.mxu0 %v8172
  %8273 = vmatpush1.bf16.msra.mxu0 %v8171
  %8274 = vmatprep.subr.bf16.mxu0 %v8176
  %8275 = vmatpush1.bf16.msra.mxu0 %v8175
  %8276 = vmatprep.subr.bf16.mxu0 %v8180
  %8277 = vmatpush1.bf16.msra.mxu0 %v8179
  %8278 = vmatprep.subr.bf16.mxu0 %v8184
  %8279 = vmatpush1.bf16.msra.mxu0 %v8183
  %8280 = vmatprep.subr.bf16.mxu0 %v8188
  %8281 = vmatpush1.bf16.msra.mxu0 %v8187
  %8282 = vmatprep.subr.bf16.mxu0 %v8192
  %8283 = vmatpush1.bf16.msra.mxu0 %v8191
  %8284 = vmatprep.subr.bf16.mxu0 %v8196
  %8285 = vmatpush1.bf16.msra.mxu0 %v8195
  %8286 = vmatprep.subr.bf16.mxu0 %v8200
  %8287 = vmatpush1.bf16.msra.mxu0 %v8199
  %8288 = vmatprep.subr.bf16.mxu0 %v8204
  %8289 = vmatpush1.bf16.msra.mxu0 %v8203
  %8290 = vmatprep.subr.bf16.mxu0 %v8208
  %8291 = vmatpush1.bf16.msra.mxu0 %v8207
  %8292 = vmatprep.subr.bf16.mxu0 %v8212
  %8293 = vmatpush1.bf16.msra.mxu0 %v8211
  %8294 = vmatprep.subr.bf16.mxu0 %v8216
  %8295 = vmatpush1.bf16.msra.mxu0 %v8215
  %8296 = vmatprep.subr.bf16.mxu0 %v8220
  %8297 = vmatpush1.bf16.msra.mxu0 %v8219
  %8298 = vmatprep.subr.bf16.mxu0 %v8224
  %8299 = vmatpush1.bf16.msra.mxu0 %v8223
  %8300 = vmatprep.subr.bf16.mxu0 %v8228
  %8301 = vmatpush1.bf16.msra.mxu0 %v8227
  %8302 = vmatprep.mubr.bf16.mxu0 %v8164
  %8303 = vmatmul.mubr.bf16.gmra.mrb[0].mxu0 %v8163
  %v8304 = vpop.f32.mrb[0].mxu0
  %v8305 = vadd.f32 %v1476, %v8304
  %v8306 = vpop.f32.mrb[0].mxu0
  %v8307 = vadd.f32 %v1480, %v8306
  %v8308 = vpop.f32.mrb[0].mxu0
  %v8309 = vpop.f32.mrb[0].mxu0
  %8310 = vdwg.mxu0
  %v8311 = vxor.u32 %v8264, 2147483648
  %v8312 = vmul.f32 %v8311, 1.442695
  %v8313 = vpow.pop %v8312
  %v8314 = vadd.f32 %v8313, 1.0
  %v8315 = vrcp.pop %v8314
  %v8316 = vmul.f32 1.0, %v8315
  %v8317 = vxor.u32 %v8266, 2147483648
  %v8318 = vmul.f32 %v8317, 1.442695
  %v8319 = vpow.pop %v8318
  %v8320 = vadd.f32 %v8319, 1.0
  %v8321 = vrcp.pop %v8320
  %v8322 = vmul.f32 1.0, %v8321
  %v8323 = vtanh.pop %v8305
  %v8324 = vxor.u32 %v8307, 2147483648
  %v8325 = vmul.f32 %v8324, 1.442695
  %v8326 = vpow.pop %v8325
  %v8327 = vadd.f32 %v8326, 1.0
  %v8328 = vrcp.pop %v8327
  %v8329 = vmul.f32 1.0, %v8328
  %v8330 = vmul.f32 %v8322, %v7191
  %v8331 = vmul.f32 %v8316, %v8323
  %v8332 = vadd.f32 %v8330, %v8331
  %v8333 = vtanh.pop %v8332
  %v8334 = vmul.f32 %v8329, %v8333
  %8335 = vst [vmem:[%s10 + $0x28] sm:$0xff] %v8334
  %v8336 = vld [vmem:[#allocation2 + $0xc0] sm:$0xff]
  %v8337 = vld [vmem:[#allocation2 + $0xc8] sm:$0xff]
  %v8338 = vld [vmem:[#allocation2 + $0xd0] sm:$0xff]
  %v8339 = vld [vmem:[#allocation2 + $0xd8] sm:$0xff]
  %v8340 = vld [vmem:[%s3] sm:$0xff]
  %v8341 = vld [vmem:[%s3 + $0x8] sm:$0xff]
  %v8342 = vld [vmem:[%s3 + $0x10] sm:$0xff]
  %v8343 = vld [vmem:[%s3 + $0x18] sm:$0xff]
  %v8344 = vld [vmem:[%s3 + $0x20] sm:$0xff]
  %v8345 = vld [vmem:[%s3 + $0x28] sm:$0xff]
  %v8346 = vld [vmem:[%s3 + $0x30] sm:$0xff]
  %v8347 = vld [vmem:[%s3 + $0x38] sm:$0xff]
  %v8348 = vld [vmem:[%s3 + $0x40] sm:$0xff]
  %v8349 = vld [vmem:[%s3 + $0x48] sm:$0xff]
  %v8350 = vld [vmem:[%s3 + $0x50] sm:$0xff]
  %v8351 = vld [vmem:[%s3 + $0x58] sm:$0xff]
  %v8352 = vld [vmem:[%s3 + $0x60] sm:$0xff]
  %v8353 = vld [vmem:[%s3 + $0x68] sm:$0xff]
  %v8354 = vld [vmem:[%s3 + $0x70] sm:$0xff]
  %v8355 = vld [vmem:[%s3 + $0x78] sm:$0xff]
  %v8356 = vld [vmem:[%s3 + $0x80] sm:$0xff]
  %v8357 = vld [vmem:[%s3 + $0x88] sm:$0xff]
  %v8358 = vld [vmem:[%s3 + $0x90] sm:$0xff]
  %v8359 = vld [vmem:[%s3 + $0x98] sm:$0xff]
  %v8360 = vld [vmem:[%s3 + $0xa0] sm:$0xff]
  %v8361 = vld [vmem:[%s3 + $0xa8] sm:$0xff]
  %v8362 = vld [vmem:[%s3 + $0xb0] sm:$0xff]
  %v8363 = vld [vmem:[%s3 + $0xb8] sm:$0xff]
  %v8364 = vld [vmem:[%s3 + $0xc0] sm:$0xff]
  %v8365 = vld [vmem:[%s3 + $0xc8] sm:$0xff]
  %v8366 = vld [vmem:[%s3 + $0xd0] sm:$0xff]
  %v8367 = vld [vmem:[%s3 + $0xd8] sm:$0xff]
  %v8368 = vld [vmem:[%s3 + $0xe0] sm:$0xff]
  %v8369 = vld [vmem:[%s3 + $0xe8] sm:$0xff]
  %v8370 = vld [vmem:[%s3 + $0xf0] sm:$0xff]
  %v8371 = vld [vmem:[%s3 + $0xf8] sm:$0xff]
  %v8404 = vunpack.c.l.b16 %v8340
  %v8405 = vunpack.c.h.b16 %v8340
  %v8406 = vunpack.c.l.b16 %v8341
  %v8407 = vunpack.c.h.b16 %v8341
  %v8408 = vunpack.c.l.b16 %v8342
  %v8409 = vunpack.c.h.b16 %v8342
  %v8410 = vunpack.c.l.b16 %v8343
  %v8411 = vunpack.c.h.b16 %v8343
  %v8412 = vunpack.c.l.b16 %v8344
  %v8413 = vunpack.c.h.b16 %v8344
  %v8414 = vunpack.c.l.b16 %v8345
  %v8415 = vunpack.c.h.b16 %v8345
  %v8416 = vunpack.c.l.b16 %v8346
  %v8417 = vunpack.c.h.b16 %v8346
  %v8418 = vunpack.c.l.b16 %v8347
  %v8419 = vunpack.c.h.b16 %v8347
  %v8420 = vunpack.c.l.b16 %v8348
  %v8421 = vunpack.c.h.b16 %v8348
  %v8422 = vunpack.c.l.b16 %v8349
  %v8423 = vunpack.c.h.b16 %v8349
  %v8424 = vunpack.c.l.b16 %v8350
  %v8425 = vunpack.c.h.b16 %v8350
  %v8426 = vunpack.c.l.b16 %v8351
  %v8427 = vunpack.c.h.b16 %v8351
  %v8428 = vunpack.c.l.b16 %v8352
  %v8429 = vunpack.c.h.b16 %v8352
  %v8430 = vunpack.c.l.b16 %v8353
  %v8431 = vunpack.c.h.b16 %v8353
  %v8432 = vunpack.c.l.b16 %v8354
  %v8433 = vunpack.c.h.b16 %v8354
  %v8434 = vunpack.c.l.b16 %v8355
  %v8435 = vunpack.c.h.b16 %v8355
  %v8436 = vunpack.c.l.b16 %v8356
  %v8437 = vunpack.c.h.b16 %v8356
  %v8438 = vunpack.c.l.b16 %v8357
  %v8439 = vunpack.c.h.b16 %v8357
  %v8440 = vunpack.c.l.b16 %v8358
  %v8441 = vunpack.c.h.b16 %v8358
  %v8442 = vunpack.c.l.b16 %v8359
  %v8443 = vunpack.c.h.b16 %v8359
  %v8444 = vunpack.c.l.b16 %v8360
  %v8445 = vunpack.c.h.b16 %v8360
  %v8446 = vunpack.c.l.b16 %v8361
  %v8447 = vunpack.c.h.b16 %v8361
  %v8448 = vunpack.c.l.b16 %v8362
  %v8449 = vunpack.c.h.b16 %v8362
  %v8450 = vunpack.c.l.b16 %v8363
  %v8451 = vunpack.c.h.b16 %v8363
  %v8452 = vunpack.c.l.b16 %v8364
  %v8453 = vunpack.c.h.b16 %v8364
  %v8454 = vunpack.c.l.b16 %v8365
  %v8455 = vunpack.c.h.b16 %v8365
  %v8456 = vunpack.c.l.b16 %v8366
  %v8457 = vunpack.c.h.b16 %v8366
  %v8458 = vunpack.c.l.b16 %v8367
  %v8459 = vunpack.c.h.b16 %v8367
  %v8460 = vunpack.c.l.b16 %v8368
  %v8461 = vunpack.c.h.b16 %v8368
  %v8462 = vunpack.c.l.b16 %v8369
  %v8463 = vunpack.c.h.b16 %v8369
  %v8464 = vunpack.c.l.b16 %v8370
  %v8465 = vunpack.c.h.b16 %v8370
  %v8466 = vunpack.c.l.b16 %v8371
  %v8467 = vunpack.c.h.b16 %v8371
  %v8468 = vpack.c.b16 %v8408, %v8404
  %v8469 = vpack.c.b16 %v8409, %v8405
  %v8470 = vpack.c.b16 %v8410, %v8406
  %v8471 = vpack.c.b16 %v8411, %v8407
  %v8472 = vpack.c.b16 %v8416, %v8412
  %v8473 = vpack.c.b16 %v8417, %v8413
  %v8474 = vpack.c.b16 %v8418, %v8414
  %v8475 = vpack.c.b16 %v8419, %v8415
  %v8476 = vpack.c.b16 %v8424, %v8420
  %v8477 = vpack.c.b16 %v8425, %v8421
  %v8478 = vpack.c.b16 %v8426, %v8422
  %v8479 = vpack.c.b16 %v8427, %v8423
  %v8480 = vpack.c.b16 %v8432, %v8428
  %v8481 = vpack.c.b16 %v8433, %v8429
  %v8482 = vpack.c.b16 %v8434, %v8430
  %v8483 = vpack.c.b16 %v8435, %v8431
  %v8484 = vpack.c.b16 %v8440, %v8436
  %v8485 = vpack.c.b16 %v8441, %v8437
  %v8486 = vpack.c.b16 %v8442, %v8438
  %v8487 = vpack.c.b16 %v8443, %v8439
  %v8488 = vpack.c.b16 %v8448, %v8444
  %v8489 = vpack.c.b16 %v8449, %v8445
  %v8490 = vpack.c.b16 %v8450, %v8446
  %v8491 = vpack.c.b16 %v8451, %v8447
  %v8492 = vpack.c.b16 %v8456, %v8452
  %v8493 = vpack.c.b16 %v8457, %v8453
  %v8494 = vpack.c.b16 %v8458, %v8454
  %v8495 = vpack.c.b16 %v8459, %v8455
  %v8496 = vpack.c.b16 %v8464, %v8460
  %v8497 = vpack.c.b16 %v8465, %v8461
  %v8498 = vpack.c.b16 %v8466, %v8462
  %v8499 = vpack.c.b16 %v8467, %v8463
  %8532 = vmatprep.subr.bf16.mxu0 %v8469
  %8533 = vmatpush1.bf16.msra.mxu0 %v8468
  %8534 = vmatprep.subr.bf16.mxu0 %v8473
  %8535 = vmatpush1.bf16.msra.mxu0 %v8472
  %8536 = vmatprep.subr.bf16.mxu0 %v8477
  %8537 = vmatpush1.bf16.msra.mxu0 %v8476
  %8538 = vmatprep.subr.bf16.mxu0 %v8481
  %8539 = vmatpush1.bf16.msra.mxu0 %v8480
  %8540 = vmatprep.subr.bf16.mxu0 %v8485
  %8541 = vmatpush1.bf16.msra.mxu0 %v8484
  %8542 = vmatprep.subr.bf16.mxu0 %v8489
  %8543 = vmatpush1.bf16.msra.mxu0 %v8488
  %8544 = vmatprep.subr.bf16.mxu0 %v8493
  %8545 = vmatpush1.bf16.msra.mxu0 %v8492
  %8546 = vmatprep.subr.bf16.mxu0 %v8497
  %8547 = vmatpush1.bf16.msra.mxu0 %v8496
  %8548 = vmatprep.subr.bf16.mxu0 0
  %8549 = vmatpush1.bf16.msra.mxu0 0
  %8550 = vmatprep.subr.bf16.mxu0 0
  %8551 = vmatpush1.bf16.msra.mxu0 0
  %8552 = vmatprep.subr.bf16.mxu0 0
  %8553 = vmatpush1.bf16.msra.mxu0 0
  %8554 = vmatprep.subr.bf16.mxu0 0
  %8555 = vmatpush1.bf16.msra.mxu0 0
  %8556 = vmatprep.subr.bf16.mxu0 0
  %8557 = vmatpush1.bf16.msra.mxu0 0
  %8558 = vmatprep.subr.bf16.mxu0 0
  %8559 = vmatpush1.bf16.msra.mxu0 0
  %8560 = vmatprep.subr.bf16.mxu0 0
  %8561 = vmatpush1.bf16.msra.mxu0 0
  %8562 = vmatprep.subr.bf16.mxu0 0
  %8563 = vmatpush1.bf16.msra.mxu0 0
  %8564 = vmatprep.mubr.bf16.mxu0 0
  %8565 = vmatmul.mubr.bf16.gmra.mrb[0].mxu0 %v7501
  %v8566 = vpop.f32.mrb[0].mxu0
  %v8567 = vadd.f32 0.0, %v8566
  %v8568 = vpop.f32.mrb[0].mxu0
  %v8569 = vadd.f32 0.0, %v8568
  %v8570 = vpop.f32.mrb[0].mxu0
  %v8571 = vpop.f32.mrb[0].mxu0
  %8572 = vdwg.mxu0
  %8573 = vmatprep.subr.bf16.mxu0 %v8471
  %8574 = vmatpush1.bf16.msra.mxu0 %v8470
  %8575 = vmatprep.subr.bf16.mxu0 %v8475
  %8576 = vmatpush1.bf16.msra.mxu0 %v8474
  %8577 = vmatprep.subr.bf16.mxu0 %v8479
  %8578 = vmatpush1.bf16.msra.mxu0 %v8478
  %8579 = vmatprep.subr.bf16.mxu0 %v8483
  %8580 = vmatpush1.bf16.msra.mxu0 %v8482
  %8581 = vmatprep.subr.bf16.mxu0 %v8487
  %8582 = vmatpush1.bf16.msra.mxu0 %v8486
  %8583 = vmatprep.subr.bf16.mxu0 %v8491
  %8584 = vmatpush1.bf16.msra.mxu0 %v8490
  %8585 = vmatprep.subr.bf16.mxu0 %v8495
  %8586 = vmatpush1.bf16.msra.mxu0 %v8494
  %8587 = vmatprep.subr.bf16.mxu0 %v8499
  %8588 = vmatpush1.bf16.msra.mxu0 %v8498
  %8589 = vmatprep.subr.bf16.mxu0 0
  %8590 = vmatpush1.bf16.msra.mxu0 0
  %8591 = vmatprep.subr.bf16.mxu0 0
  %8592 = vmatpush1.bf16.msra.mxu0 0
  %8593 = vmatprep.subr.bf16.mxu0 0
  %8594 = vmatpush1.bf16.msra.mxu0 0
  %8595 = vmatprep.subr.bf16.mxu0 0
  %8596 = vmatpush1.bf16.msra.mxu0 0
  %8597 = vmatprep.subr.bf16.mxu0 0
  %8598 = vmatpush1.bf16.msra.mxu0 0
  %8599 = vmatprep.subr.bf16.mxu0 0
  %8600 = vmatpush1.bf16.msra.mxu0 0
  %8601 = vmatprep.subr.bf16.mxu0 0
  %8602 = vmatpush1.bf16.msra.mxu0 0
  %8603 = vmatprep.subr.bf16.mxu0 0
  %8604 = vmatpush1.bf16.msra.mxu0 0
  %8605 = vmatprep.mubr.bf16.mxu0 0
  %8606 = vmatmul.mubr.bf16.gmra.mrb[0].mxu0 %v7501
  %v8607 = vpop.f32.mrb[0].mxu0
  %v8608 = vadd.f32 0.0, %v8607
  %v8609 = vpop.f32.mrb[0].mxu0
  %v8610 = vadd.f32 0.0, %v8609
  %v8611 = vpop.f32.mrb[0].mxu0
  %v8612 = vpop.f32.mrb[0].mxu0
  %8613 = vdwg.mxu0
  %v8614 = vadd.f32 %v8336, %v8567
  %v8615 = vadd.f32 %v8337, %v8569
  %v8616 = vadd.f32 %v8338, %v8608
  %v8617 = vadd.f32 %v8339, %v8610
  %v8618 = vxor.u32 %v8614, 2147483648
  %v8619 = vmul.f32 %v8618, 1.442695
  %v8620 = vpow.pop %v8619
  %v8621 = vadd.f32 %v8620, 1.0
  %v8622 = vrcp.pop %v8621
  %v8623 = vmul.f32 1.0, %v8622
  %v8624 = vxor.u32 %v8615, 2147483648
  %v8625 = vmul.f32 %v8624, 1.442695
  %v8626 = vpow.pop %v8625
  %v8627 = vadd.f32 %v8626, 1.0
  %v8628 = vrcp.pop %v8627
  %v8629 = vmul.f32 1.0, %v8628
  %v8630 = vtanh.pop %v8616
  %v8631 = vxor.u32 %v8617, 2147483648
  %v8632 = vmul.f32 %v8631, 1.442695
  %v8633 = vpow.pop %v8632
  %v8634 = vadd.f32 %v8633, 1.0
  %v8635 = vrcp.pop %v8634
  %v8636 = vmul.f32 1.0, %v8635
  %v8637 = vmul.f32 %v8629, %v7498
  %v8638 = vmul.f32 %v8623, %v8630
  %v8639 = vadd.f32 %v8637, %v8638
  %v8640 = vtanh.pop %v8639
  %v8641 = vmul.f32 %v8636, %v8640
  %v8642 = vpack.c.bf16 %v8641, %v8641
  %v8643 = vld [vmem:[%s4] sm:$0xff]
  %v8644 = vld [vmem:[%s4 + $0x8] sm:$0xff]
  %v8645 = vld [vmem:[%s4 + $0x10] sm:$0xff]
  %v8646 = vld [vmem:[%s4 + $0x18] sm:$0xff]
  %v8647 = vld [vmem:[%s4 + $0x20] sm:$0xff]
  %v8648 = vld [vmem:[%s4 + $0x28] sm:$0xff]
  %v8649 = vld [vmem:[%s4 + $0x30] sm:$0xff]
  %v8650 = vld [vmem:[%s4 + $0x38] sm:$0xff]
  %v8651 = vld [vmem:[%s4 + $0x40] sm:$0xff]
  %v8652 = vld [vmem:[%s4 + $0x48] sm:$0xff]
  %v8653 = vld [vmem:[%s4 + $0x50] sm:$0xff]
  %v8654 = vld [vmem:[%s4 + $0x58] sm:$0xff]
  %v8655 = vld [vmem:[%s4 + $0x60] sm:$0xff]
  %v8656 = vld [vmem:[%s4 + $0x68] sm:$0xff]
  %v8657 = vld [vmem:[%s4 + $0x70] sm:$0xff]
  %v8658 = vld [vmem:[%s4 + $0x78] sm:$0xff]
  %v8659 = vld [vmem:[%s4 + $0x80] sm:$0xff]
  %v8660 = vld [vmem:[%s4 + $0x88] sm:$0xff]
  %v8661 = vld [vmem:[%s4 + $0x90] sm:$0xff]
  %v8662 = vld [vmem:[%s4 + $0x98] sm:$0xff]
  %v8663 = vld [vmem:[%s4 + $0xa0] sm:$0xff]
  %v8664 = vld [vmem:[%s4 + $0xa8] sm:$0xff]
  %v8665 = vld [vmem:[%s4 + $0xb0] sm:$0xff]
  %v8666 = vld [vmem:[%s4 + $0xb8] sm:$0xff]
  %v8667 = vld [vmem:[%s4 + $0xc0] sm:$0xff]
  %v8668 = vld [vmem:[%s4 + $0xc8] sm:$0xff]
  %v8669 = vld [vmem:[%s4 + $0xd0] sm:$0xff]
  %v8670 = vld [vmem:[%s4 + $0xd8] sm:$0xff]
  %v8671 = vld [vmem:[%s4 + $0xe0] sm:$0xff]
  %v8672 = vld [vmem:[%s4 + $0xe8] sm:$0xff]
  %v8673 = vld [vmem:[%s4 + $0xf0] sm:$0xff]
  %v8674 = vld [vmem:[%s4 + $0xf8] sm:$0xff]
  %v8675 = vld [vmem:[%s4 + $0x100] sm:$0xff]
  %v8676 = vld [vmem:[%s4 + $0x108] sm:$0xff]
  %v8677 = vld [vmem:[%s4 + $0x110] sm:$0xff]
  %v8678 = vld [vmem:[%s4 + $0x118] sm:$0xff]
  %v8679 = vld [vmem:[%s4 + $0x120] sm:$0xff]
  %v8680 = vld [vmem:[%s4 + $0x128] sm:$0xff]
  %v8681 = vld [vmem:[%s4 + $0x130] sm:$0xff]
  %v8682 = vld [vmem:[%s4 + $0x138] sm:$0xff]
  %v8683 = vld [vmem:[%s4 + $0x140] sm:$0xff]
  %v8684 = vld [vmem:[%s4 + $0x148] sm:$0xff]
  %v8685 = vld [vmem:[%s4 + $0x150] sm:$0xff]
  %v8686 = vld [vmem:[%s4 + $0x158] sm:$0xff]
  %v8687 = vld [vmem:[%s4 + $0x160] sm:$0xff]
  %v8688 = vld [vmem:[%s4 + $0x168] sm:$0xff]
  %v8689 = vld [vmem:[%s4 + $0x170] sm:$0xff]
  %v8690 = vld [vmem:[%s4 + $0x178] sm:$0xff]
  %v8691 = vld [vmem:[%s4 + $0x180] sm:$0xff]
  %v8692 = vld [vmem:[%s4 + $0x188] sm:$0xff]
  %v8693 = vld [vmem:[%s4 + $0x190] sm:$0xff]
  %v8694 = vld [vmem:[%s4 + $0x198] sm:$0xff]
  %v8695 = vld [vmem:[%s4 + $0x1a0] sm:$0xff]
  %v8696 = vld [vmem:[%s4 + $0x1a8] sm:$0xff]
  %v8697 = vld [vmem:[%s4 + $0x1b0] sm:$0xff]
  %v8698 = vld [vmem:[%s4 + $0x1b8] sm:$0xff]
  %v8699 = vld [vmem:[%s4 + $0x1c0] sm:$0xff]
  %v8700 = vld [vmem:[%s4 + $0x1c8] sm:$0xff]
  %v8701 = vld [vmem:[%s4 + $0x1d0] sm:$0xff]
  %v8702 = vld [vmem:[%s4 + $0x1d8] sm:$0xff]
  %v8703 = vld [vmem:[%s4 + $0x1e0] sm:$0xff]
  %v8704 = vld [vmem:[%s4 + $0x1e8] sm:$0xff]
  %v8705 = vld [vmem:[%s4 + $0x1f0] sm:$0xff]
  %v8706 = vld [vmem:[%s4 + $0x1f8] sm:$0xff]
  %v8771 = vunpack.c.l.b16 %v8643
  %v8772 = vunpack.c.h.b16 %v8643
  %v8773 = vunpack.c.l.b16 %v8644
  %v8774 = vunpack.c.h.b16 %v8644
  %v8775 = vunpack.c.l.b16 %v8645
  %v8776 = vunpack.c.h.b16 %v8645
  %v8777 = vunpack.c.l.b16 %v8646
  %v8778 = vunpack.c.h.b16 %v8646
  %v8779 = vunpack.c.l.b16 %v8647
  %v8780 = vunpack.c.h.b16 %v8647
  %v8781 = vunpack.c.l.b16 %v8648
  %v8782 = vunpack.c.h.b16 %v8648
  %v8783 = vunpack.c.l.b16 %v8649
  %v8784 = vunpack.c.h.b16 %v8649
  %v8785 = vunpack.c.l.b16 %v8650
  %v8786 = vunpack.c.h.b16 %v8650
  %v8787 = vunpack.c.l.b16 %v8651
  %v8788 = vunpack.c.h.b16 %v8651
  %v8789 = vunpack.c.l.b16 %v8652
  %v8790 = vunpack.c.h.b16 %v8652
  %v8791 = vunpack.c.l.b16 %v8653
  %v8792 = vunpack.c.h.b16 %v8653
  %v8793 = vunpack.c.l.b16 %v8654
  %v8794 = vunpack.c.h.b16 %v8654
  %v8795 = vunpack.c.l.b16 %v8655
  %v8796 = vunpack.c.h.b16 %v8655
  %v8797 = vunpack.c.l.b16 %v8656
  %v8798 = vunpack.c.h.b16 %v8656
  %v8799 = vunpack.c.l.b16 %v8657
  %v8800 = vunpack.c.h.b16 %v8657
  %v8801 = vunpack.c.l.b16 %v8658
  %v8802 = vunpack.c.h.b16 %v8658
  %v8803 = vunpack.c.l.b16 %v8659
  %v8804 = vunpack.c.h.b16 %v8659
  %v8805 = vunpack.c.l.b16 %v8660
  %v8806 = vunpack.c.h.b16 %v8660
  %v8807 = vunpack.c.l.b16 %v8661
  %v8808 = vunpack.c.h.b16 %v8661
  %v8809 = vunpack.c.l.b16 %v8662
  %v8810 = vunpack.c.h.b16 %v8662
  %v8811 = vunpack.c.l.b16 %v8663
  %v8812 = vunpack.c.h.b16 %v8663
  %v8813 = vunpack.c.l.b16 %v8664
  %v8814 = vunpack.c.h.b16 %v8664
  %v8815 = vunpack.c.l.b16 %v8665
  %v8816 = vunpack.c.h.b16 %v8665
  %v8817 = vunpack.c.l.b16 %v8666
  %v8818 = vunpack.c.h.b16 %v8666
  %v8819 = vunpack.c.l.b16 %v8667
  %v8820 = vunpack.c.h.b16 %v8667
  %v8821 = vunpack.c.l.b16 %v8668
  %v8822 = vunpack.c.h.b16 %v8668
  %v8823 = vunpack.c.l.b16 %v8669
  %v8824 = vunpack.c.h.b16 %v8669
  %v8825 = vunpack.c.l.b16 %v8670
  %v8826 = vunpack.c.h.b16 %v8670
  %v8827 = vunpack.c.l.b16 %v8671
  %v8828 = vunpack.c.h.b16 %v8671
  %v8829 = vunpack.c.l.b16 %v8672
  %v8830 = vunpack.c.h.b16 %v8672
  %v8831 = vunpack.c.l.b16 %v8673
  %v8832 = vunpack.c.h.b16 %v8673
  %v8833 = vunpack.c.l.b16 %v8674
  %v8834 = vunpack.c.h.b16 %v8674
  %v8835 = vunpack.c.l.b16 %v8675
  %v8836 = vunpack.c.h.b16 %v8675
  %v8837 = vunpack.c.l.b16 %v8676
  %v8838 = vunpack.c.h.b16 %v8676
  %v8839 = vunpack.c.l.b16 %v8677
  %v8840 = vunpack.c.h.b16 %v8677
  %v8841 = vunpack.c.l.b16 %v8678
  %v8842 = vunpack.c.h.b16 %v8678
  %v8843 = vunpack.c.l.b16 %v8679
  %v8844 = vunpack.c.h.b16 %v8679
  %v8845 = vunpack.c.l.b16 %v8680
  %v8846 = vunpack.c.h.b16 %v8680
  %v8847 = vunpack.c.l.b16 %v8681
  %v8848 = vunpack.c.h.b16 %v8681
  %v8849 = vunpack.c.l.b16 %v8682
  %v8850 = vunpack.c.h.b16 %v8682
  %v8851 = vunpack.c.l.b16 %v8683
  %v8852 = vunpack.c.h.b16 %v8683
  %v8853 = vunpack.c.l.b16 %v8684
  %v8854 = vunpack.c.h.b16 %v8684
  %v8855 = vunpack.c.l.b16 %v8685
  %v8856 = vunpack.c.h.b16 %v8685
  %v8857 = vunpack.c.l.b16 %v8686
  %v8858 = vunpack.c.h.b16 %v8686
  %v8859 = vunpack.c.l.b16 %v8687
  %v8860 = vunpack.c.h.b16 %v8687
  %v8861 = vunpack.c.l.b16 %v8688
  %v8862 = vunpack.c.h.b16 %v8688
  %v8863 = vunpack.c.l.b16 %v8689
  %v8864 = vunpack.c.h.b16 %v8689
  %v8865 = vunpack.c.l.b16 %v8690
  %v8866 = vunpack.c.h.b16 %v8690
  %v8867 = vunpack.c.l.b16 %v8691
  %v8868 = vunpack.c.h.b16 %v8691
  %v8869 = vunpack.c.l.b16 %v8692
  %v8870 = vunpack.c.h.b16 %v8692
  %v8871 = vunpack.c.l.b16 %v8693
  %v8872 = vunpack.c.h.b16 %v8693
  %v8873 = vunpack.c.l.b16 %v8694
  %v8874 = vunpack.c.h.b16 %v8694
  %v8875 = vunpack.c.l.b16 %v8695
  %v8876 = vunpack.c.h.b16 %v8695
  %v8877 = vunpack.c.l.b16 %v8696
  %v8878 = vunpack.c.h.b16 %v8696
  %v8879 = vunpack.c.l.b16 %v8697
  %v8880 = vunpack.c.h.b16 %v8697
  %v8881 = vunpack.c.l.b16 %v8698
  %v8882 = vunpack.c.h.b16 %v8698
  %v8883 = vunpack.c.l.b16 %v8699
  %v8884 = vunpack.c.h.b16 %v8699
  %v8885 = vunpack.c.l.b16 %v8700
  %v8886 = vunpack.c.h.b16 %v8700
  %v8887 = vunpack.c.l.b16 %v8701
  %v8888 = vunpack.c.h.b16 %v8701
  %v8889 = vunpack.c.l.b16 %v8702
  %v8890 = vunpack.c.h.b16 %v8702
  %v8891 = vunpack.c.l.b16 %v8703
  %v8892 = vunpack.c.h.b16 %v8703
  %v8893 = vunpack.c.l.b16 %v8704
  %v8894 = vunpack.c.h.b16 %v8704
  %v8895 = vunpack.c.l.b16 %v8705
  %v8896 = vunpack.c.h.b16 %v8705
  %v8897 = vunpack.c.l.b16 %v8706
  %v8898 = vunpack.c.h.b16 %v8706
  %v8899 = vpack.c.b16 %v8775, %v8771
  %v8900 = vpack.c.b16 %v8776, %v8772
  %v8901 = vpack.c.b16 %v8777, %v8773
  %v8902 = vpack.c.b16 %v8778, %v8774
  %v8903 = vpack.c.b16 %v8783, %v8779
  %v8904 = vpack.c.b16 %v8784, %v8780
  %v8905 = vpack.c.b16 %v8785, %v8781
  %v8906 = vpack.c.b16 %v8786, %v8782
  %v8907 = vpack.c.b16 %v8791, %v8787
  %v8908 = vpack.c.b16 %v8792, %v8788
  %v8909 = vpack.c.b16 %v8793, %v8789
  %v8910 = vpack.c.b16 %v8794, %v8790
  %v8911 = vpack.c.b16 %v8799, %v8795
  %v8912 = vpack.c.b16 %v8800, %v8796
  %v8913 = vpack.c.b16 %v8801, %v8797
  %v8914 = vpack.c.b16 %v8802, %v8798
  %v8915 = vpack.c.b16 %v8807, %v8803
  %v8916 = vpack.c.b16 %v8808, %v8804
  %v8917 = vpack.c.b16 %v8809, %v8805
  %v8918 = vpack.c.b16 %v8810, %v8806
  %v8919 = vpack.c.b16 %v8815, %v8811
  %v8920 = vpack.c.b16 %v8816, %v8812
  %v8921 = vpack.c.b16 %v8817, %v8813
  %v8922 = vpack.c.b16 %v8818, %v8814
  %v8923 = vpack.c.b16 %v8823, %v8819
  %v8924 = vpack.c.b16 %v8824, %v8820
  %v8925 = vpack.c.b16 %v8825, %v8821
  %v8926 = vpack.c.b16 %v8826, %v8822
  %v8927 = vpack.c.b16 %v8831, %v8827
  %v8928 = vpack.c.b16 %v8832, %v8828
  %v8929 = vpack.c.b16 %v8833, %v8829
  %v8930 = vpack.c.b16 %v8834, %v8830
  %v8931 = vpack.c.b16 %v8839, %v8835
  %v8932 = vpack.c.b16 %v8840, %v8836
  %v8933 = vpack.c.b16 %v8841, %v8837
  %v8934 = vpack.c.b16 %v8842, %v8838
  %v8935 = vpack.c.b16 %v8847, %v8843
  %v8936 = vpack.c.b16 %v8848, %v8844
  %v8937 = vpack.c.b16 %v8849, %v8845
  %v8938 = vpack.c.b16 %v8850, %v8846
  %v8939 = vpack.c.b16 %v8855, %v8851
  %v8940 = vpack.c.b16 %v8856, %v8852
  %v8941 = vpack.c.b16 %v8857, %v8853
  %v8942 = vpack.c.b16 %v8858, %v8854
  %v8943 = vpack.c.b16 %v8863, %v8859
  %v8944 = vpack.c.b16 %v8864, %v8860
  %v8945 = vpack.c.b16 %v8865, %v8861
  %v8946 = vpack.c.b16 %v8866, %v8862
  %v8947 = vpack.c.b16 %v8871, %v8867
  %v8948 = vpack.c.b16 %v8872, %v8868
  %v8949 = vpack.c.b16 %v8873, %v8869
  %v8950 = vpack.c.b16 %v8874, %v8870
  %v8951 = vpack.c.b16 %v8879, %v8875
  %v8952 = vpack.c.b16 %v8880, %v8876
  %v8953 = vpack.c.b16 %v8881, %v8877
  %v8954 = vpack.c.b16 %v8882, %v8878
  %v8955 = vpack.c.b16 %v8887, %v8883
  %v8956 = vpack.c.b16 %v8888, %v8884
  %v8957 = vpack.c.b16 %v8889, %v8885
  %v8958 = vpack.c.b16 %v8890, %v8886
  %v8959 = vpack.c.b16 %v8895, %v8891
  %v8960 = vpack.c.b16 %v8896, %v8892
  %v8961 = vpack.c.b16 %v8897, %v8893
  %v8962 = vpack.c.b16 %v8898, %v8894
  %9027 = vmatprep.subr.bf16.mxu0 %v8900
  %9028 = vmatpush1.bf16.msra.mxu0 %v8899
  %9029 = vmatprep.subr.bf16.mxu0 %v8904
  %9030 = vmatpush1.bf16.msra.mxu0 %v8903
  %9031 = vmatprep.subr.bf16.mxu0 %v8908
  %9032 = vmatpush1.bf16.msra.mxu0 %v8907
  %9033 = vmatprep.subr.bf16.mxu0 %v8912
  %9034 = vmatpush1.bf16.msra.mxu0 %v8911
  %9035 = vmatprep.subr.bf16.mxu0 %v8916
  %9036 = vmatpush1.bf16.msra.mxu0 %v8915
  %9037 = vmatprep.subr.bf16.mxu0 %v8920
  %9038 = vmatpush1.bf16.msra.mxu0 %v8919
  %9039 = vmatprep.subr.bf16.mxu0 %v8924
  %9040 = vmatpush1.bf16.msra.mxu0 %v8923
  %9041 = vmatprep.subr.bf16.mxu0 %v8928
  %9042 = vmatpush1.bf16.msra.mxu0 %v8927
  %9043 = vmatprep.subr.bf16.mxu0 %v8932
  %9044 = vmatpush1.bf16.msra.mxu0 %v8931
  %9045 = vmatprep.subr.bf16.mxu0 %v8936
  %9046 = vmatpush1.bf16.msra.mxu0 %v8935
  %9047 = vmatprep.subr.bf16.mxu0 %v8940
  %9048 = vmatpush1.bf16.msra.mxu0 %v8939
  %9049 = vmatprep.subr.bf16.mxu0 %v8944
  %9050 = vmatpush1.bf16.msra.mxu0 %v8943
  %9051 = vmatprep.subr.bf16.mxu0 %v8948
  %9052 = vmatpush1.bf16.msra.mxu0 %v8947
  %9053 = vmatprep.subr.bf16.mxu0 %v8952
  %9054 = vmatpush1.bf16.msra.mxu0 %v8951
  %9055 = vmatprep.subr.bf16.mxu0 %v8956
  %9056 = vmatpush1.bf16.msra.mxu0 %v8955
  %9057 = vmatprep.subr.bf16.mxu0 %v8960
  %9058 = vmatpush1.bf16.msra.mxu0 %v8959
  %9059 = vmatprep.mubr.bf16.mxu0 %v7992
  %9060 = vmatmul.mubr.bf16.gmra.mrb[0].mxu0 %v8642
  %v9061 = vpop.f32.mrb[0].mxu0
  %v9062 = vadd.f32 %v1424, %v9061
  %v9063 = vpop.f32.mrb[0].mxu0
  %v9064 = vadd.f32 %v1428, %v9063
  %v9065 = vpop.f32.mrb[0].mxu0
  %v9066 = vpop.f32.mrb[0].mxu0
  %9067 = vdwg.mxu0
  %9068 = vmatprep.subr.bf16.mxu0 %v8902
  %9069 = vmatpush1.bf16.msra.mxu0 %v8901
  %9070 = vmatprep.subr.bf16.mxu0 %v8906
  %9071 = vmatpush1.bf16.msra.mxu0 %v8905
  %9072 = vmatprep.subr.bf16.mxu0 %v8910
  %9073 = vmatpush1.bf16.msra.mxu0 %v8909
  %9074 = vmatprep.subr.bf16.mxu0 %v8914
  %9075 = vmatpush1.bf16.msra.mxu0 %v8913
  %9076 = vmatprep.subr.bf16.mxu0 %v8918
  %9077 = vmatpush1.bf16.msra.mxu0 %v8917
  %9078 = vmatprep.subr.bf16.mxu0 %v8922
  %9079 = vmatpush1.bf16.msra.mxu0 %v8921
  %9080 = vmatprep.subr.bf16.mxu0 %v8926
  %9081 = vmatpush1.bf16.msra.mxu0 %v8925
  %9082 = vmatprep.subr.bf16.mxu0 %v8930
  %9083 = vmatpush1.bf16.msra.mxu0 %v8929
  %9084 = vmatprep.subr.bf16.mxu0 %v8934
  %9085 = vmatpush1.bf16.msra.mxu0 %v8933
  %9086 = vmatprep.subr.bf16.mxu0 %v8938
  %9087 = vmatpush1.bf16.msra.mxu0 %v8937
  %9088 = vmatprep.subr.bf16.mxu0 %v8942
  %9089 = vmatpush1.bf16.msra.mxu0 %v8941
  %9090 = vmatprep.subr.bf16.mxu0 %v8946
  %9091 = vmatpush1.bf16.msra.mxu0 %v8945
  %9092 = vmatprep.subr.bf16.mxu0 %v8950
  %9093 = vmatpush1.bf16.msra.mxu0 %v8949
  %9094 = vmatprep.subr.bf16.mxu0 %v8954
  %9095 = vmatpush1.bf16.msra.mxu0 %v8953
  %9096 = vmatprep.subr.bf16.mxu0 %v8958
  %9097 = vmatpush1.bf16.msra.mxu0 %v8957
  %9098 = vmatprep.subr.bf16.mxu0 %v8962
  %9099 = vmatpush1.bf16.msra.mxu0 %v8961
  %9100 = vmatprep.mubr.bf16.mxu0 %v7992
  %9101 = vmatmul.mubr.bf16.gmra.mrb[0].mxu0 %v8642
  %v9102 = vpop.f32.mrb[0].mxu0
  %v9103 = vadd.f32 %v1432, %v9102
  %v9104 = vpop.f32.mrb[0].mxu0
  %v9105 = vadd.f32 %v1436, %v9104
  %v9106 = vpop.f32.mrb[0].mxu0
  %v9107 = vpop.f32.mrb[0].mxu0
  %9108 = vdwg.mxu0
  %v9109 = vxor.u32 %v9062, 2147483648
  %v9110 = vmul.f32 %v9109, 1.442695
  %v9111 = vpow.pop %v9110
  %v9112 = vadd.f32 %v9111, 1.0
  %v9113 = vrcp.pop %v9112
  %v9114 = vmul.f32 1.0, %v9113
  %v9115 = vxor.u32 %v9064, 2147483648
  %v9116 = vmul.f32 %v9115, 1.442695
  %v9117 = vpow.pop %v9116
  %v9118 = vadd.f32 %v9117, 1.0
  %v9119 = vrcp.pop %v9118
  %v9120 = vmul.f32 1.0, %v9119
  %v9121 = vtanh.pop %v9103
  %v9122 = vxor.u32 %v9105, 2147483648
  %v9123 = vmul.f32 %v9122, 1.442695
  %v9124 = vpow.pop %v9123
  %v9125 = vadd.f32 %v9124, 1.0
  %v9126 = vrcp.pop %v9125
  %v9127 = vmul.f32 1.0, %v9126
  %v9128 = vmul.f32 %v9120, %v7989
  %v9129 = vmul.f32 %v9114, %v9121
  %v9130 = vadd.f32 %v9128, %v9129
  %v9131 = vtanh.pop %v9130
  %v9132 = vmul.f32 %v9127, %v9131
  %v9133 = vpack.c.bf16 %v9132, %v9132
  %v9134 = vld [vmem:[#allocation3] sm:$0xff]
  %v9135 = vld [vmem:[#allocation3 + $0x8] sm:$0xff]
  %v9136 = vld [vmem:[#allocation3 + $0x10] sm:$0xff]
  %v9137 = vld [vmem:[#allocation3 + $0x18] sm:$0xff]
  %v9138 = vld [vmem:[#allocation3 + $0x20] sm:$0xff]
  %v9139 = vld [vmem:[#allocation3 + $0x28] sm:$0xff]
  %v9140 = vld [vmem:[#allocation3 + $0x30] sm:$0xff]
  %v9141 = vld [vmem:[#allocation3 + $0x38] sm:$0xff]
  %v9142 = vld [vmem:[#allocation3 + $0x40] sm:$0xff]
  %v9143 = vld [vmem:[#allocation3 + $0x48] sm:$0xff]
  %v9144 = vld [vmem:[#allocation3 + $0x50] sm:$0xff]
  %v9145 = vld [vmem:[#allocation3 + $0x58] sm:$0xff]
  %v9146 = vld [vmem:[#allocation3 + $0x60] sm:$0xff]
  %v9147 = vld [vmem:[#allocation3 + $0x68] sm:$0xff]
  %v9148 = vld [vmem:[#allocation3 + $0x70] sm:$0xff]
  %v9149 = vld [vmem:[#allocation3 + $0x78] sm:$0xff]
  %v9150 = vld [vmem:[#allocation3 + $0x80] sm:$0xff]
  %v9151 = vld [vmem:[#allocation3 + $0x88] sm:$0xff]
  %v9152 = vld [vmem:[#allocation3 + $0x90] sm:$0xff]
  %v9153 = vld [vmem:[#allocation3 + $0x98] sm:$0xff]
  %v9154 = vld [vmem:[#allocation3 + $0xa0] sm:$0xff]
  %v9155 = vld [vmem:[#allocation3 + $0xa8] sm:$0xff]
  %v9156 = vld [vmem:[#allocation3 + $0xb0] sm:$0xff]
  %v9157 = vld [vmem:[#allocation3 + $0xb8] sm:$0xff]
  %v9158 = vld [vmem:[#allocation3 + $0xc0] sm:$0xff]
  %v9159 = vld [vmem:[#allocation3 + $0xc8] sm:$0xff]
  %v9160 = vld [vmem:[#allocation3 + $0xd0] sm:$0xff]
  %v9161 = vld [vmem:[#allocation3 + $0xd8] sm:$0xff]
  %v9162 = vld [vmem:[#allocation3 + $0xe0] sm:$0xff]
  %v9163 = vld [vmem:[#allocation3 + $0xe8] sm:$0xff]
  %v9164 = vld [vmem:[#allocation3 + $0xf0] sm:$0xff]
  %v9165 = vld [vmem:[#allocation3 + $0xf8] sm:$0xff]
  %v9166 = vld [vmem:[#allocation3 + $0x100] sm:$0xff]
  %v9167 = vld [vmem:[#allocation3 + $0x108] sm:$0xff]
  %v9168 = vld [vmem:[#allocation3 + $0x110] sm:$0xff]
  %v9169 = vld [vmem:[#allocation3 + $0x118] sm:$0xff]
  %v9170 = vld [vmem:[#allocation3 + $0x120] sm:$0xff]
  %v9171 = vld [vmem:[#allocation3 + $0x128] sm:$0xff]
  %v9172 = vld [vmem:[#allocation3 + $0x130] sm:$0xff]
  %v9173 = vld [vmem:[#allocation3 + $0x138] sm:$0xff]
  %v9174 = vld [vmem:[#allocation3 + $0x140] sm:$0xff]
  %v9175 = vld [vmem:[#allocation3 + $0x148] sm:$0xff]
  %v9176 = vld [vmem:[#allocation3 + $0x150] sm:$0xff]
  %v9177 = vld [vmem:[#allocation3 + $0x158] sm:$0xff]
  %v9178 = vld [vmem:[#allocation3 + $0x160] sm:$0xff]
  %v9179 = vld [vmem:[#allocation3 + $0x168] sm:$0xff]
  %v9180 = vld [vmem:[#allocation3 + $0x170] sm:$0xff]
  %v9181 = vld [vmem:[#allocation3 + $0x178] sm:$0xff]
  %v9182 = vld [vmem:[#allocation3 + $0x180] sm:$0xff]
  %v9183 = vld [vmem:[#allocation3 + $0x188] sm:$0xff]
  %v9184 = vld [vmem:[#allocation3 + $0x190] sm:$0xff]
  %v9185 = vld [vmem:[#allocation3 + $0x198] sm:$0xff]
  %v9186 = vld [vmem:[#allocation3 + $0x1a0] sm:$0xff]
  %v9187 = vld [vmem:[#allocation3 + $0x1a8] sm:$0xff]
  %v9188 = vld [vmem:[#allocation3 + $0x1b0] sm:$0xff]
  %v9189 = vld [vmem:[#allocation3 + $0x1b8] sm:$0xff]
  %v9190 = vld [vmem:[#allocation3 + $0x1c0] sm:$0xff]
  %v9191 = vld [vmem:[#allocation3 + $0x1c8] sm:$0xff]
  %v9192 = vld [vmem:[#allocation3 + $0x1d0] sm:$0xff]
  %v9193 = vld [vmem:[#allocation3 + $0x1d8] sm:$0xff]
  %v9194 = vld [vmem:[#allocation3 + $0x1e0] sm:$0xff]
  %v9195 = vld [vmem:[#allocation3 + $0x1e8] sm:$0xff]
  %v9196 = vld [vmem:[#allocation3 + $0x1f0] sm:$0xff]
  %v9197 = vld [vmem:[#allocation3 + $0x1f8] sm:$0xff]
  %9198 = vmatprep.subr.bf16.mxu0 %v9135
  %9199 = vmatpush1.bf16.msra.mxu0 %v9134
  %9200 = vmatprep.subr.bf16.mxu0 %v9139
  %9201 = vmatpush1.bf16.msra.mxu0 %v9138
  %9202 = vmatprep.subr.bf16.mxu0 %v9143
  %9203 = vmatpush1.bf16.msra.mxu0 %v9142
  %9204 = vmatprep.subr.bf16.mxu0 %v9147
  %9205 = vmatpush1.bf16.msra.mxu0 %v9146
  %9206 = vmatprep.subr.bf16.mxu0 %v9151
  %9207 = vmatpush1.bf16.msra.mxu0 %v9150
  %9208 = vmatprep.subr.bf16.mxu0 %v9155
  %9209 = vmatpush1.bf16.msra.mxu0 %v9154
  %9210 = vmatprep.subr.bf16.mxu0 %v9159
  %9211 = vmatpush1.bf16.msra.mxu0 %v9158
  %9212 = vmatprep.subr.bf16.mxu0 %v9163
  %9213 = vmatpush1.bf16.msra.mxu0 %v9162
  %9214 = vmatprep.subr.bf16.mxu0 %v9167
  %9215 = vmatpush1.bf16.msra.mxu0 %v9166
  %9216 = vmatprep.subr.bf16.mxu0 %v9171
  %9217 = vmatpush1.bf16.msra.mxu0 %v9170
  %9218 = vmatprep.subr.bf16.mxu0 %v9175
  %9219 = vmatpush1.bf16.msra.mxu0 %v9174
  %9220 = vmatprep.subr.bf16.mxu0 %v9179
  %9221 = vmatpush1.bf16.msra.mxu0 %v9178
  %9222 = vmatprep.subr.bf16.mxu0 %v9183
  %9223 = vmatpush1.bf16.msra.mxu0 %v9182
  %9224 = vmatprep.subr.bf16.mxu0 %v9187
  %9225 = vmatpush1.bf16.msra.mxu0 %v9186
  %9226 = vmatprep.subr.bf16.mxu0 %v9191
  %9227 = vmatpush1.bf16.msra.mxu0 %v9190
  %9228 = vmatprep.subr.bf16.mxu0 %v9195
  %9229 = vmatpush1.bf16.msra.mxu0 %v9194
  %9230 = vmatprep.mubr.bf16.mxu0 %v8163
  %9231 = vmatmul.mubr.bf16.gmra.mrb[0].mxu0 %v9133
  %v9232 = vpop.f32.mrb[0].mxu0
  %v9233 = vadd.f32 %v1446, %v9232
  %v9234 = vpop.f32.mrb[0].mxu0
  %v9235 = vadd.f32 %v1450, %v9234
  %v9236 = vpop.f32.mrb[0].mxu0
  %v9237 = vpop.f32.mrb[0].mxu0
  %9238 = vdwg.mxu0
  %9239 = vmatprep.subr.bf16.mxu0 %v9137
  %9240 = vmatpush1.bf16.msra.mxu0 %v9136
  %9241 = vmatprep.subr.bf16.mxu0 %v9141
  %9242 = vmatpush1.bf16.msra.mxu0 %v9140
  %9243 = vmatprep.subr.bf16.mxu0 %v9145
  %9244 = vmatpush1.bf16.msra.mxu0 %v9144
  %9245 = vmatprep.subr.bf16.mxu0 %v9149
  %9246 = vmatpush1.bf16.msra.mxu0 %v9148
  %9247 = vmatprep.subr.bf16.mxu0 %v9153
  %9248 = vmatpush1.bf16.msra.mxu0 %v9152
  %9249 = vmatprep.subr.bf16.mxu0 %v9157
  %9250 = vmatpush1.bf16.msra.mxu0 %v9156
  %9251 = vmatprep.subr.bf16.mxu0 %v9161
  %9252 = vmatpush1.bf16.msra.mxu0 %v9160
  %9253 = vmatprep.subr.bf16.mxu0 %v9165
  %9254 = vmatpush1.bf16.msra.mxu0 %v9164
  %9255 = vmatprep.subr.bf16.mxu0 %v9169
  %9256 = vmatpush1.bf16.msra.mxu0 %v9168
  %9257 = vmatprep.subr.bf16.mxu0 %v9173
  %9258 = vmatpush1.bf16.msra.mxu0 %v9172
  %9259 = vmatprep.subr.bf16.mxu0 %v9177
  %9260 = vmatpush1.bf16.msra.mxu0 %v9176
  %9261 = vmatprep.subr.bf16.mxu0 %v9181
  %9262 = vmatpush1.bf16.msra.mxu0 %v9180
  %9263 = vmatprep.subr.bf16.mxu0 %v9185
  %9264 = vmatpush1.bf16.msra.mxu0 %v9184
  %9265 = vmatprep.subr.bf16.mxu0 %v9189
  %9266 = vmatpush1.bf16.msra.mxu0 %v9188
  %9267 = vmatprep.subr.bf16.mxu0 %v9193
  %9268 = vmatpush1.bf16.msra.mxu0 %v9192
  %9269 = vmatprep.subr.bf16.mxu0 %v9197
  %9270 = vmatpush1.bf16.msra.mxu0 %v9196
  %9271 = vmatprep.mubr.bf16.mxu0 %v8163
  %9272 = vmatmul.mubr.bf16.gmra.mrb[0].mxu0 %v9133
  %v9273 = vpop.f32.mrb[0].mxu0
  %v9274 = vadd.f32 %v1454, %v9273
  %v9275 = vpop.f32.mrb[0].mxu0
  %v9276 = vadd.f32 %v1458, %v9275
  %v9277 = vpop.f32.mrb[0].mxu0
  %v9278 = vpop.f32.mrb[0].mxu0
  %9279 = vdwg.mxu0
  %v9280 = vxor.u32 %v9233, 2147483648
  %v9281 = vmul.f32 %v9280, 1.442695
  %v9282 = vpow.pop %v9281
  %v9283 = vadd.f32 %v9282, 1.0
  %v9284 = vrcp.pop %v9283
  %v9285 = vmul.f32 1.0, %v9284
  %v9286 = vxor.u32 %v9235, 2147483648
  %v9287 = vmul.f32 %v9286, 1.442695
  %v9288 = vpow.pop %v9287
  %v9289 = vadd.f32 %v9288, 1.0
  %v9290 = vrcp.pop %v9289
  %v9291 = vmul.f32 1.0, %v9290
  %v9292 = vtanh.pop %v9274
  %v9293 = vxor.u32 %v9276, 2147483648
  %v9294 = vmul.f32 %v9293, 1.442695
  %v9295 = vpow.pop %v9294
  %v9296 = vadd.f32 %v9295, 1.0
  %v9297 = vrcp.pop %v9296
  %v9298 = vmul.f32 1.0, %v9297
  %v9299 = vmul.f32 %v9291, %v8160
  %v9300 = vmul.f32 %v9285, %v9292
  %v9301 = vadd.f32 %v9299, %v9300
  %v9302 = vtanh.pop %v9301
  %v9303 = vmul.f32 %v9298, %v9302
  %v9304 = vpack.c.bf16 %v9303, %v9303
  %v9305 = vpack.c.bf16 %v8334, %v8334
  %v9306 = vld [vmem:[#allocation4] sm:$0xff]
  %v9307 = vld [vmem:[#allocation4 + $0x8] sm:$0xff]
  %v9308 = vld [vmem:[#allocation4 + $0x10] sm:$0xff]
  %v9309 = vld [vmem:[#allocation4 + $0x18] sm:$0xff]
  %v9310 = vld [vmem:[#allocation4 + $0x20] sm:$0xff]
  %v9311 = vld [vmem:[#allocation4 + $0x28] sm:$0xff]
  %v9312 = vld [vmem:[#allocation4 + $0x30] sm:$0xff]
  %v9313 = vld [vmem:[#allocation4 + $0x38] sm:$0xff]
  %v9314 = vld [vmem:[#allocation4 + $0x40] sm:$0xff]
  %v9315 = vld [vmem:[#allocation4 + $0x48] sm:$0xff]
  %v9316 = vld [vmem:[#allocation4 + $0x50] sm:$0xff]
  %v9317 = vld [vmem:[#allocation4 + $0x58] sm:$0xff]
  %v9318 = vld [vmem:[#allocation4 + $0x60] sm:$0xff]
  %v9319 = vld [vmem:[#allocation4 + $0x68] sm:$0xff]
  %v9320 = vld [vmem:[#allocation4 + $0x70] sm:$0xff]
  %v9321 = vld [vmem:[#allocation4 + $0x78] sm:$0xff]
  %v9322 = vld [vmem:[#allocation4 + $0x80] sm:$0xff]
  %v9323 = vld [vmem:[#allocation4 + $0x88] sm:$0xff]
  %v9324 = vld [vmem:[#allocation4 + $0x90] sm:$0xff]
  %v9325 = vld [vmem:[#allocation4 + $0x98] sm:$0xff]
  %v9326 = vld [vmem:[#allocation4 + $0xa0] sm:$0xff]
  %v9327 = vld [vmem:[#allocation4 + $0xa8] sm:$0xff]
  %v9328 = vld [vmem:[#allocation4 + $0xb0] sm:$0xff]
  %v9329 = vld [vmem:[#allocation4 + $0xb8] sm:$0xff]
  %v9330 = vld [vmem:[#allocation4 + $0xc0] sm:$0xff]
  %v9331 = vld [vmem:[#allocation4 + $0xc8] sm:$0xff]
  %v9332 = vld [vmem:[#allocation4 + $0xd0] sm:$0xff]
  %v9333 = vld [vmem:[#allocation4 + $0xd8] sm:$0xff]
  %v9334 = vld [vmem:[#allocation4 + $0xe0] sm:$0xff]
  %v9335 = vld [vmem:[#allocation4 + $0xe8] sm:$0xff]
  %v9336 = vld [vmem:[#allocation4 + $0xf0] sm:$0xff]
  %v9337 = vld [vmem:[#allocation4 + $0xf8] sm:$0xff]
  %v9338 = vld [vmem:[#allocation4 + $0x100] sm:$0xff]
  %v9339 = vld [vmem:[#allocation4 + $0x108] sm:$0xff]
  %v9340 = vld [vmem:[#allocation4 + $0x110] sm:$0xff]
  %v9341 = vld [vmem:[#allocation4 + $0x118] sm:$0xff]
  %v9342 = vld [vmem:[#allocation4 + $0x120] sm:$0xff]
  %v9343 = vld [vmem:[#allocation4 + $0x128] sm:$0xff]
  %v9344 = vld [vmem:[#allocation4 + $0x130] sm:$0xff]
  %v9345 = vld [vmem:[#allocation4 + $0x138] sm:$0xff]
  %v9346 = vld [vmem:[#allocation4 + $0x140] sm:$0xff]
  %v9347 = vld [vmem:[#allocation4 + $0x148] sm:$0xff]
  %v9348 = vld [vmem:[#allocation4 + $0x150] sm:$0xff]
  %v9349 = vld [vmem:[#allocation4 + $0x158] sm:$0xff]
  %v9350 = vld [vmem:[#allocation4 + $0x160] sm:$0xff]
  %v9351 = vld [vmem:[#allocation4 + $0x168] sm:$0xff]
  %v9352 = vld [vmem:[#allocation4 + $0x170] sm:$0xff]
  %v9353 = vld [vmem:[#allocation4 + $0x178] sm:$0xff]
  %v9354 = vld [vmem:[#allocation4 + $0x180] sm:$0xff]
  %v9355 = vld [vmem:[#allocation4 + $0x188] sm:$0xff]
  %v9356 = vld [vmem:[#allocation4 + $0x190] sm:$0xff]
  %v9357 = vld [vmem:[#allocation4 + $0x198] sm:$0xff]
  %v9358 = vld [vmem:[#allocation4 + $0x1a0] sm:$0xff]
  %v9359 = vld [vmem:[#allocation4 + $0x1a8] sm:$0xff]
  %v9360 = vld [vmem:[#allocation4 + $0x1b0] sm:$0xff]
  %v9361 = vld [vmem:[#allocation4 + $0x1b8] sm:$0xff]
  %v9362 = vld [vmem:[#allocation4 + $0x1c0] sm:$0xff]
  %v9363 = vld [vmem:[#allocation4 + $0x1c8] sm:$0xff]
  %v9364 = vld [vmem:[#allocation4 + $0x1d0] sm:$0xff]
  %v9365 = vld [vmem:[#allocation4 + $0x1d8] sm:$0xff]
  %v9366 = vld [vmem:[#allocation4 + $0x1e0] sm:$0xff]
  %v9367 = vld [vmem:[#allocation4 + $0x1e8] sm:$0xff]
  %v9368 = vld [vmem:[#allocation4 + $0x1f0] sm:$0xff]
  %v9369 = vld [vmem:[#allocation4 + $0x1f8] sm:$0xff]
  %9370 = vmatprep.subr.bf16.mxu0 %v9307
  %9371 = vmatpush1.bf16.msra.mxu0 %v9306
  %9372 = vmatprep.subr.bf16.mxu0 %v9311
  %9373 = vmatpush1.bf16.msra.mxu0 %v9310
  %9374 = vmatprep.subr.bf16.mxu0 %v9315
  %9375 = vmatpush1.bf16.msra.mxu0 %v9314
  %9376 = vmatprep.subr.bf16.mxu0 %v9319
  %9377 = vmatpush1.bf16.msra.mxu0 %v9318
  %9378 = vmatprep.subr.bf16.mxu0 %v9323
  %9379 = vmatpush1.bf16.msra.mxu0 %v9322
  %9380 = vmatprep.subr.bf16.mxu0 %v9327
  %9381 = vmatpush1.bf16.msra.mxu0 %v9326
  %9382 = vmatprep.subr.bf16.mxu0 %v9331
  %9383 = vmatpush1.bf16.msra.mxu0 %v9330
  %9384 = vmatprep.subr.bf16.mxu0 %v9335
  %9385 = vmatpush1.bf16.msra.mxu0 %v9334
  %9386 = vmatprep.subr.bf16.mxu0 %v9339
  %9387 = vmatpush1.bf16.msra.mxu0 %v9338
  %9388 = vmatprep.subr.bf16.mxu0 %v9343
  %9389 = vmatpush1.bf16.msra.mxu0 %v9342
  %9390 = vmatprep.subr.bf16.mxu0 %v9347
  %9391 = vmatpush1.bf16.msra.mxu0 %v9346
  %9392 = vmatprep.subr.bf16.mxu0 %v9351
  %9393 = vmatpush1.bf16.msra.mxu0 %v9350
  %9394 = vmatprep.subr.bf16.mxu0 %v9355
  %9395 = vmatpush1.bf16.msra.mxu0 %v9354
  %9396 = vmatprep.subr.bf16.mxu0 %v9359
  %9397 = vmatpush1.bf16.msra.mxu0 %v9358
  %9398 = vmatprep.subr.bf16.mxu0 %v9363
  %9399 = vmatpush1.bf16.msra.mxu0 %v9362
  %9400 = vmatprep.subr.bf16.mxu0 %v9367
  %9401 = vmatpush1.bf16.msra.mxu0 %v9366
  %9402 = vmatprep.mubr.bf16.mxu0 %v9305
  %9403 = vmatmul.mubr.bf16.gmra.mrb[0].mxu0 %v9304
  %v9404 = vpop.f32.mrb[0].mxu0
  %v9405 = vadd.f32 %v1468, %v9404
  %v9406 = vpop.f32.mrb[0].mxu0
  %v9407 = vadd.f32 %v1472, %v9406
  %v9408 = vpop.f32.mrb[0].mxu0
  %v9409 = vpop.f32.mrb[0].mxu0
  %9410 = vdwg.mxu0
  %9411 = vmatprep.subr.bf16.mxu0 %v9309
  %9412 = vmatpush1.bf16.msra.mxu0 %v9308
  %9413 = vmatprep.subr.bf16.mxu0 %v9313
  %9414 = vmatpush1.bf16.msra.mxu0 %v9312
  %9415 = vmatprep.subr.bf16.mxu0 %v9317
  %9416 = vmatpush1.bf16.msra.mxu0 %v9316
  %9417 = vmatprep.subr.bf16.mxu0 %v9321
  %9418 = vmatpush1.bf16.msra.mxu0 %v9320
  %9419 = vmatprep.subr.bf16.mxu0 %v9325
  %9420 = vmatpush1.bf16.msra.mxu0 %v9324
  %9421 = vmatprep.subr.bf16.mxu0 %v9329
  %9422 = vmatpush1.bf16.msra.mxu0 %v9328
  %9423 = vmatprep.subr.bf16.mxu0 %v9333
  %9424 = vmatpush1.bf16.msra.mxu0 %v9332
  %9425 = vmatprep.subr.bf16.mxu0 %v9337
  %9426 = vmatpush1.bf16.msra.mxu0 %v9336
  %9427 = vmatprep.subr.bf16.mxu0 %v9341
  %9428 = vmatpush1.bf16.msra.mxu0 %v9340
  %9429 = vmatprep.subr.bf16.mxu0 %v9345
  %9430 = vmatpush1.bf16.msra.mxu0 %v9344
  %9431 = vmatprep.subr.bf16.mxu0 %v9349
  %9432 = vmatpush1.bf16.msra.mxu0 %v9348
  %9433 = vmatprep.subr.bf16.mxu0 %v9353
  %9434 = vmatpush1.bf16.msra.mxu0 %v9352
  %9435 = vmatprep.subr.bf16.mxu0 %v9357
  %9436 = vmatpush1.bf16.msra.mxu0 %v9356
  %9437 = vmatprep.subr.bf16.mxu0 %v9361
  %9438 = vmatpush1.bf16.msra.mxu0 %v9360
  %9439 = vmatprep.subr.bf16.mxu0 %v9365
  %9440 = vmatpush1.bf16.msra.mxu0 %v9364
  %9441 = vmatprep.subr.bf16.mxu0 %v9369
  %9442 = vmatpush1.bf16.msra.mxu0 %v9368
  %9443 = vmatprep.mubr.bf16.mxu0 %v9305
  %9444 = vmatmul.mubr.bf16.gmra.mrb[0].mxu0 %v9304
  %v9445 = vpop.f32.mrb[0].mxu0
  %v9446 = vadd.f32 %v1476, %v9445
  %v9447 = vpop.f32.mrb[0].mxu0
  %v9448 = vadd.f32 %v1480, %v9447
  %v9449 = vpop.f32.mrb[0].mxu0
  %v9450 = vpop.f32.mrb[0].mxu0
  %9451 = vdwg.mxu0
  %v9452 = vxor.u32 %v9405, 2147483648
  %v9453 = vmul.f32 %v9452, 1.442695
  %v9454 = vpow.pop %v9453
  %v9455 = vadd.f32 %v9454, 1.0
  %v9456 = vrcp.pop %v9455
  %v9457 = vmul.f32 1.0, %v9456
  %v9458 = vxor.u32 %v9407, 2147483648
  %v9459 = vmul.f32 %v9458, 1.442695
  %v9460 = vpow.pop %v9459
  %v9461 = vadd.f32 %v9460, 1.0
  %v9462 = vrcp.pop %v9461
  %v9463 = vmul.f32 1.0, %v9462
  %v9464 = vtanh.pop %v9446
  %v9465 = vxor.u32 %v9448, 2147483648
  %v9466 = vmul.f32 %v9465, 1.442695
  %v9467 = vpow.pop %v9466
  %v9468 = vadd.f32 %v9467, 1.0
  %v9469 = vrcp.pop %v9468
  %v9470 = vmul.f32 1.0, %v9469
  %v9471 = vmul.f32 %v9463, %v8332
  %v9472 = vmul.f32 %v9457, %v9464
  %v9473 = vadd.f32 %v9471, %v9472
  %v9474 = vtanh.pop %v9473
  %v9475 = vmul.f32 %v9470, %v9474
  %9476 = vst [vmem:[%s10 + $0x30] sm:$0xff] %v9475
  %v9477 = vld [vmem:[#allocation2 + $0xe0] sm:$0xff]
  %v9478 = vld [vmem:[#allocation2 + $0xe8] sm:$0xff]
  %v9479 = vld [vmem:[#allocation2 + $0xf0] sm:$0xff]
  %v9480 = vld [vmem:[#allocation2 + $0xf8] sm:$0xff]
  %v9481 = vld [vmem:[%s3] sm:$0xff]
  %v9482 = vld [vmem:[%s3 + $0x8] sm:$0xff]
  %v9483 = vld [vmem:[%s3 + $0x10] sm:$0xff]
  %v9484 = vld [vmem:[%s3 + $0x18] sm:$0xff]
  %v9485 = vld [vmem:[%s3 + $0x20] sm:$0xff]
  %v9486 = vld [vmem:[%s3 + $0x28] sm:$0xff]
  %v9487 = vld [vmem:[%s3 + $0x30] sm:$0xff]
  %v9488 = vld [vmem:[%s3 + $0x38] sm:$0xff]
  %v9489 = vld [vmem:[%s3 + $0x40] sm:$0xff]
  %v9490 = vld [vmem:[%s3 + $0x48] sm:$0xff]
  %v9491 = vld [vmem:[%s3 + $0x50] sm:$0xff]
  %v9492 = vld [vmem:[%s3 + $0x58] sm:$0xff]
  %v9493 = vld [vmem:[%s3 + $0x60] sm:$0xff]
  %v9494 = vld [vmem:[%s3 + $0x68] sm:$0xff]
  %v9495 = vld [vmem:[%s3 + $0x70] sm:$0xff]
  %v9496 = vld [vmem:[%s3 + $0x78] sm:$0xff]
  %v9497 = vld [vmem:[%s3 + $0x80] sm:$0xff]
  %v9498 = vld [vmem:[%s3 + $0x88] sm:$0xff]
  %v9499 = vld [vmem:[%s3 + $0x90] sm:$0xff]
  %v9500 = vld [vmem:[%s3 + $0x98] sm:$0xff]
  %v9501 = vld [vmem:[%s3 + $0xa0] sm:$0xff]
  %v9502 = vld [vmem:[%s3 + $0xa8] sm:$0xff]
  %v9503 = vld [vmem:[%s3 + $0xb0] sm:$0xff]
  %v9504 = vld [vmem:[%s3 + $0xb8] sm:$0xff]
  %v9505 = vld [vmem:[%s3 + $0xc0] sm:$0xff]
  %v9506 = vld [vmem:[%s3 + $0xc8] sm:$0xff]
  %v9507 = vld [vmem:[%s3 + $0xd0] sm:$0xff]
  %v9508 = vld [vmem:[%s3 + $0xd8] sm:$0xff]
  %v9509 = vld [vmem:[%s3 + $0xe0] sm:$0xff]
  %v9510 = vld [vmem:[%s3 + $0xe8] sm:$0xff]
  %v9511 = vld [vmem:[%s3 + $0xf0] sm:$0xff]
  %v9512 = vld [vmem:[%s3 + $0xf8] sm:$0xff]
  %v9545 = vunpack.c.l.b16 %v9481
  %v9546 = vunpack.c.h.b16 %v9481
  %v9547 = vunpack.c.l.b16 %v9482
  %v9548 = vunpack.c.h.b16 %v9482
  %v9549 = vunpack.c.l.b16 %v9483
  %v9550 = vunpack.c.h.b16 %v9483
  %v9551 = vunpack.c.l.b16 %v9484
  %v9552 = vunpack.c.h.b16 %v9484
  %v9553 = vunpack.c.l.b16 %v9485
  %v9554 = vunpack.c.h.b16 %v9485
  %v9555 = vunpack.c.l.b16 %v9486
  %v9556 = vunpack.c.h.b16 %v9486
  %v9557 = vunpack.c.l.b16 %v9487
  %v9558 = vunpack.c.h.b16 %v9487
  %v9559 = vunpack.c.l.b16 %v9488
  %v9560 = vunpack.c.h.b16 %v9488
  %v9561 = vunpack.c.l.b16 %v9489
  %v9562 = vunpack.c.h.b16 %v9489
  %v9563 = vunpack.c.l.b16 %v9490
  %v9564 = vunpack.c.h.b16 %v9490
  %v9565 = vunpack.c.l.b16 %v9491
  %v9566 = vunpack.c.h.b16 %v9491
  %v9567 = vunpack.c.l.b16 %v9492
  %v9568 = vunpack.c.h.b16 %v9492
  %v9569 = vunpack.c.l.b16 %v9493
  %v9570 = vunpack.c.h.b16 %v9493
  %v9571 = vunpack.c.l.b16 %v9494
  %v9572 = vunpack.c.h.b16 %v9494
  %v9573 = vunpack.c.l.b16 %v9495
  %v9574 = vunpack.c.h.b16 %v9495
  %v9575 = vunpack.c.l.b16 %v9496
  %v9576 = vunpack.c.h.b16 %v9496
  %v9577 = vunpack.c.l.b16 %v9497
  %v9578 = vunpack.c.h.b16 %v9497
  %v9579 = vunpack.c.l.b16 %v9498
  %v9580 = vunpack.c.h.b16 %v9498
  %v9581 = vunpack.c.l.b16 %v9499
  %v9582 = vunpack.c.h.b16 %v9499
  %v9583 = vunpack.c.l.b16 %v9500
  %v9584 = vunpack.c.h.b16 %v9500
  %v9585 = vunpack.c.l.b16 %v9501
  %v9586 = vunpack.c.h.b16 %v9501
  %v9587 = vunpack.c.l.b16 %v9502
  %v9588 = vunpack.c.h.b16 %v9502
  %v9589 = vunpack.c.l.b16 %v9503
  %v9590 = vunpack.c.h.b16 %v9503
  %v9591 = vunpack.c.l.b16 %v9504
  %v9592 = vunpack.c.h.b16 %v9504
  %v9593 = vunpack.c.l.b16 %v9505
  %v9594 = vunpack.c.h.b16 %v9505
  %v9595 = vunpack.c.l.b16 %v9506
  %v9596 = vunpack.c.h.b16 %v9506
  %v9597 = vunpack.c.l.b16 %v9507
  %v9598 = vunpack.c.h.b16 %v9507
  %v9599 = vunpack.c.l.b16 %v9508
  %v9600 = vunpack.c.h.b16 %v9508
  %v9601 = vunpack.c.l.b16 %v9509
  %v9602 = vunpack.c.h.b16 %v9509
  %v9603 = vunpack.c.l.b16 %v9510
  %v9604 = vunpack.c.h.b16 %v9510
  %v9605 = vunpack.c.l.b16 %v9511
  %v9606 = vunpack.c.h.b16 %v9511
  %v9607 = vunpack.c.l.b16 %v9512
  %v9608 = vunpack.c.h.b16 %v9512
  %v9609 = vpack.c.b16 %v9549, %v9545
  %v9610 = vpack.c.b16 %v9550, %v9546
  %v9611 = vpack.c.b16 %v9551, %v9547
  %v9612 = vpack.c.b16 %v9552, %v9548
  %v9613 = vpack.c.b16 %v9557, %v9553
  %v9614 = vpack.c.b16 %v9558, %v9554
  %v9615 = vpack.c.b16 %v9559, %v9555
  %v9616 = vpack.c.b16 %v9560, %v9556
  %v9617 = vpack.c.b16 %v9565, %v9561
  %v9618 = vpack.c.b16 %v9566, %v9562
  %v9619 = vpack.c.b16 %v9567, %v9563
  %v9620 = vpack.c.b16 %v9568, %v9564
  %v9621 = vpack.c.b16 %v9573, %v9569
  %v9622 = vpack.c.b16 %v9574, %v9570
  %v9623 = vpack.c.b16 %v9575, %v9571
  %v9624 = vpack.c.b16 %v9576, %v9572
  %v9625 = vpack.c.b16 %v9581, %v9577
  %v9626 = vpack.c.b16 %v9582, %v9578
  %v9627 = vpack.c.b16 %v9583, %v9579
  %v9628 = vpack.c.b16 %v9584, %v9580
  %v9629 = vpack.c.b16 %v9589, %v9585
  %v9630 = vpack.c.b16 %v9590, %v9586
  %v9631 = vpack.c.b16 %v9591, %v9587
  %v9632 = vpack.c.b16 %v9592, %v9588
  %v9633 = vpack.c.b16 %v9597, %v9593
  %v9634 = vpack.c.b16 %v9598, %v9594
  %v9635 = vpack.c.b16 %v9599, %v9595
  %v9636 = vpack.c.b16 %v9600, %v9596
  %v9637 = vpack.c.b16 %v9605, %v9601
  %v9638 = vpack.c.b16 %v9606, %v9602
  %v9639 = vpack.c.b16 %v9607, %v9603
  %v9640 = vpack.c.b16 %v9608, %v9604
  %9673 = vmatprep.subr.bf16.mxu0 %v9610
  %9674 = vmatpush1.bf16.msra.mxu0 %v9609
  %9675 = vmatprep.subr.bf16.mxu0 %v9614
  %9676 = vmatpush1.bf16.msra.mxu0 %v9613
  %9677 = vmatprep.subr.bf16.mxu0 %v9618
  %9678 = vmatpush1.bf16.msra.mxu0 %v9617
  %9679 = vmatprep.subr.bf16.mxu0 %v9622
  %9680 = vmatpush1.bf16.msra.mxu0 %v9621
  %9681 = vmatprep.subr.bf16.mxu0 %v9626
  %9682 = vmatpush1.bf16.msra.mxu0 %v9625
  %9683 = vmatprep.subr.bf16.mxu0 %v9630
  %9684 = vmatpush1.bf16.msra.mxu0 %v9629
  %9685 = vmatprep.subr.bf16.mxu0 %v9634
  %9686 = vmatpush1.bf16.msra.mxu0 %v9633
  %9687 = vmatprep.subr.bf16.mxu0 %v9638
  %9688 = vmatpush1.bf16.msra.mxu0 %v9637
  %9689 = vmatprep.subr.bf16.mxu0 0
  %9690 = vmatpush1.bf16.msra.mxu0 0
  %9691 = vmatprep.subr.bf16.mxu0 0
  %9692 = vmatpush1.bf16.msra.mxu0 0
  %9693 = vmatprep.subr.bf16.mxu0 0
  %9694 = vmatpush1.bf16.msra.mxu0 0
  %9695 = vmatprep.subr.bf16.mxu0 0
  %9696 = vmatpush1.bf16.msra.mxu0 0
  %9697 = vmatprep.subr.bf16.mxu0 0
  %9698 = vmatpush1.bf16.msra.mxu0 0
  %9699 = vmatprep.subr.bf16.mxu0 0
  %9700 = vmatpush1.bf16.msra.mxu0 0
  %9701 = vmatprep.subr.bf16.mxu0 0
  %9702 = vmatpush1.bf16.msra.mxu0 0
  %9703 = vmatprep.subr.bf16.mxu0 0
  %9704 = vmatpush1.bf16.msra.mxu0 0
  %9705 = vmatprep.mubr.bf16.mxu0 0
  %9706 = vmatmul.mubr.bf16.gmra.mrb[0].mxu0 %v8642
  %v9707 = vpop.f32.mrb[0].mxu0
  %v9708 = vadd.f32 0.0, %v9707
  %v9709 = vpop.f32.mrb[0].mxu0
  %v9710 = vadd.f32 0.0, %v9709
  %v9711 = vpop.f32.mrb[0].mxu0
  %v9712 = vpop.f32.mrb[0].mxu0
  %9713 = vdwg.mxu0
  %9714 = vmatprep.subr.bf16.mxu0 %v9612
  %9715 = vmatpush1.bf16.msra.mxu0 %v9611
  %9716 = vmatprep.subr.bf16.mxu0 %v9616
  %9717 = vmatpush1.bf16.msra.mxu0 %v9615
  %9718 = vmatprep.subr.bf16.mxu0 %v9620
  %9719 = vmatpush1.bf16.msra.mxu0 %v9619
  %9720 = vmatprep.subr.bf16.mxu0 %v9624
  %9721 = vmatpush1.bf16.msra.mxu0 %v9623
  %9722 = vmatprep.subr.bf16.mxu0 %v9628
  %9723 = vmatpush1.bf16.msra.mxu0 %v9627
  %9724 = vmatprep.subr.bf16.mxu0 %v9632
  %9725 = vmatpush1.bf16.msra.mxu0 %v9631
  %9726 = vmatprep.subr.bf16.mxu0 %v9636
  %9727 = vmatpush1.bf16.msra.mxu0 %v9635
  %9728 = vmatprep.subr.bf16.mxu0 %v9640
  %9729 = vmatpush1.bf16.msra.mxu0 %v9639
  %9730 = vmatprep.subr.bf16.mxu0 0
  %9731 = vmatpush1.bf16.msra.mxu0 0
  %9732 = vmatprep.subr.bf16.mxu0 0
  %9733 = vmatpush1.bf16.msra.mxu0 0
  %9734 = vmatprep.subr.bf16.mxu0 0
  %9735 = vmatpush1.bf16.msra.mxu0 0
  %9736 = vmatprep.subr.bf16.mxu0 0
  %9737 = vmatpush1.bf16.msra.mxu0 0
  %9738 = vmatprep.subr.bf16.mxu0 0
  %9739 = vmatpush1.bf16.msra.mxu0 0
  %9740 = vmatprep.subr.bf16.mxu0 0
  %9741 = vmatpush1.bf16.msra.mxu0 0
  %9742 = vmatprep.subr.bf16.mxu0 0
  %9743 = vmatpush1.bf16.msra.mxu0 0
  %9744 = vmatprep.subr.bf16.mxu0 0
  %9745 = vmatpush1.bf16.msra.mxu0 0
  %9746 = vmatprep.mubr.bf16.mxu0 0
  %9747 = vmatmul.mubr.bf16.gmra.mrb[0].mxu0 %v8642
  %v9748 = vpop.f32.mrb[0].mxu0
  %v9749 = vadd.f32 0.0, %v9748
  %v9750 = vpop.f32.mrb[0].mxu0
  %v9751 = vadd.f32 0.0, %v9750
  %v9752 = vpop.f32.mrb[0].mxu0
  %v9753 = vpop.f32.mrb[0].mxu0
  %9754 = vdwg.mxu0
  %v9755 = vadd.f32 %v9477, %v9708
  %v9756 = vadd.f32 %v9478, %v9710
  %v9757 = vadd.f32 %v9479, %v9749
  %v9758 = vadd.f32 %v9480, %v9751
  %v9759 = vxor.u32 %v9755, 2147483648
  %v9760 = vmul.f32 %v9759, 1.442695
  %v9761 = vpow.pop %v9760
  %v9762 = vadd.f32 %v9761, 1.0
  %v9763 = vrcp.pop %v9762
  %v9764 = vmul.f32 1.0, %v9763
  %v9765 = vxor.u32 %v9756, 2147483648
  %v9766 = vmul.f32 %v9765, 1.442695
  %v9767 = vpow.pop %v9766
  %v9768 = vadd.f32 %v9767, 1.0
  %v9769 = vrcp.pop %v9768
  %v9770 = vmul.f32 1.0, %v9769
  %v9771 = vtanh.pop %v9757
  %v9772 = vxor.u32 %v9758, 2147483648
  %v9773 = vmul.f32 %v9772, 1.442695
  %v9774 = vpow.pop %v9773
  %v9775 = vadd.f32 %v9774, 1.0
  %v9776 = vrcp.pop %v9775
  %v9777 = vmul.f32 1.0, %v9776
  %v9778 = vmul.f32 %v9770, %v8639
  %v9779 = vmul.f32 %v9764, %v9771
  %v9780 = vadd.f32 %v9778, %v9779
  %v9781 = vtanh.pop %v9780
  %v9782 = vmul.f32 %v9777, %v9781
  %v9783 = vpack.c.bf16 %v9782, %v9782
  %v9784 = vld [vmem:[%s4] sm:$0xff]
  %v9785 = vld [vmem:[%s4 + $0x8] sm:$0xff]
  %v9786 = vld [vmem:[%s4 + $0x10] sm:$0xff]
  %v9787 = vld [vmem:[%s4 + $0x18] sm:$0xff]
  %v9788 = vld [vmem:[%s4 + $0x20] sm:$0xff]
  %v9789 = vld [vmem:[%s4 + $0x28] sm:$0xff]
  %v9790 = vld [vmem:[%s4 + $0x30] sm:$0xff]
  %v9791 = vld [vmem:[%s4 + $0x38] sm:$0xff]
  %v9792 = vld [vmem:[%s4 + $0x40] sm:$0xff]
  %v9793 = vld [vmem:[%s4 + $0x48] sm:$0xff]
  %v9794 = vld [vmem:[%s4 + $0x50] sm:$0xff]
  %v9795 = vld [vmem:[%s4 + $0x58] sm:$0xff]
  %v9796 = vld [vmem:[%s4 + $0x60] sm:$0xff]
  %v9797 = vld [vmem:[%s4 + $0x68] sm:$0xff]
  %v9798 = vld [vmem:[%s4 + $0x70] sm:$0xff]
  %v9799 = vld [vmem:[%s4 + $0x78] sm:$0xff]
  %v9800 = vld [vmem:[%s4 + $0x80] sm:$0xff]
  %v9801 = vld [vmem:[%s4 + $0x88] sm:$0xff]
  %v9802 = vld [vmem:[%s4 + $0x90] sm:$0xff]
  %v9803 = vld [vmem:[%s4 + $0x98] sm:$0xff]
  %v9804 = vld [vmem:[%s4 + $0xa0] sm:$0xff]
  %v9805 = vld [vmem:[%s4 + $0xa8] sm:$0xff]
  %v9806 = vld [vmem:[%s4 + $0xb0] sm:$0xff]
  %v9807 = vld [vmem:[%s4 + $0xb8] sm:$0xff]
  %v9808 = vld [vmem:[%s4 + $0xc0] sm:$0xff]
  %v9809 = vld [vmem:[%s4 + $0xc8] sm:$0xff]
  %v9810 = vld [vmem:[%s4 + $0xd0] sm:$0xff]
  %v9811 = vld [vmem:[%s4 + $0xd8] sm:$0xff]
  %v9812 = vld [vmem:[%s4 + $0xe0] sm:$0xff]
  %v9813 = vld [vmem:[%s4 + $0xe8] sm:$0xff]
  %v9814 = vld [vmem:[%s4 + $0xf0] sm:$0xff]
  %v9815 = vld [vmem:[%s4 + $0xf8] sm:$0xff]
  %v9816 = vld [vmem:[%s4 + $0x100] sm:$0xff]
  %v9817 = vld [vmem:[%s4 + $0x108] sm:$0xff]
  %v9818 = vld [vmem:[%s4 + $0x110] sm:$0xff]
  %v9819 = vld [vmem:[%s4 + $0x118] sm:$0xff]
  %v9820 = vld [vmem:[%s4 + $0x120] sm:$0xff]
  %v9821 = vld [vmem:[%s4 + $0x128] sm:$0xff]
  %v9822 = vld [vmem:[%s4 + $0x130] sm:$0xff]
  %v9823 = vld [vmem:[%s4 + $0x138] sm:$0xff]
  %v9824 = vld [vmem:[%s4 + $0x140] sm:$0xff]
  %v9825 = vld [vmem:[%s4 + $0x148] sm:$0xff]
  %v9826 = vld [vmem:[%s4 + $0x150] sm:$0xff]
  %v9827 = vld [vmem:[%s4 + $0x158] sm:$0xff]
  %v9828 = vld [vmem:[%s4 + $0x160] sm:$0xff]
  %v9829 = vld [vmem:[%s4 + $0x168] sm:$0xff]
  %v9830 = vld [vmem:[%s4 + $0x170] sm:$0xff]
  %v9831 = vld [vmem:[%s4 + $0x178] sm:$0xff]
  %v9832 = vld [vmem:[%s4 + $0x180] sm:$0xff]
  %v9833 = vld [vmem:[%s4 + $0x188] sm:$0xff]
  %v9834 = vld [vmem:[%s4 + $0x190] sm:$0xff]
  %v9835 = vld [vmem:[%s4 + $0x198] sm:$0xff]
  %v9836 = vld [vmem:[%s4 + $0x1a0] sm:$0xff]
  %v9837 = vld [vmem:[%s4 + $0x1a8] sm:$0xff]
  %v9838 = vld [vmem:[%s4 + $0x1b0] sm:$0xff]
  %v9839 = vld [vmem:[%s4 + $0x1b8] sm:$0xff]
  %v9840 = vld [vmem:[%s4 + $0x1c0] sm:$0xff]
  %v9841 = vld [vmem:[%s4 + $0x1c8] sm:$0xff]
  %v9842 = vld [vmem:[%s4 + $0x1d0] sm:$0xff]
  %v9843 = vld [vmem:[%s4 + $0x1d8] sm:$0xff]
  %v9844 = vld [vmem:[%s4 + $0x1e0] sm:$0xff]
  %v9845 = vld [vmem:[%s4 + $0x1e8] sm:$0xff]
  %v9846 = vld [vmem:[%s4 + $0x1f0] sm:$0xff]
  %v9847 = vld [vmem:[%s4 + $0x1f8] sm:$0xff]
  %v9912 = vunpack.c.l.b16 %v9784
  %v9913 = vunpack.c.h.b16 %v9784
  %v9914 = vunpack.c.l.b16 %v9785
  %v9915 = vunpack.c.h.b16 %v9785
  %v9916 = vunpack.c.l.b16 %v9786
  %v9917 = vunpack.c.h.b16 %v9786
  %v9918 = vunpack.c.l.b16 %v9787
  %v9919 = vunpack.c.h.b16 %v9787
  %v9920 = vunpack.c.l.b16 %v9788
  %v9921 = vunpack.c.h.b16 %v9788
  %v9922 = vunpack.c.l.b16 %v9789
  %v9923 = vunpack.c.h.b16 %v9789
  %v9924 = vunpack.c.l.b16 %v9790
  %v9925 = vunpack.c.h.b16 %v9790
  %v9926 = vunpack.c.l.b16 %v9791
  %v9927 = vunpack.c.h.b16 %v9791
  %v9928 = vunpack.c.l.b16 %v9792
  %v9929 = vunpack.c.h.b16 %v9792
  %v9930 = vunpack.c.l.b16 %v9793
  %v9931 = vunpack.c.h.b16 %v9793
  %v9932 = vunpack.c.l.b16 %v9794
  %v9933 = vunpack.c.h.b16 %v9794
  %v9934 = vunpack.c.l.b16 %v9795
  %v9935 = vunpack.c.h.b16 %v9795
  %v9936 = vunpack.c.l.b16 %v9796
  %v9937 = vunpack.c.h.b16 %v9796
  %v9938 = vunpack.c.l.b16 %v9797
  %v9939 = vunpack.c.h.b16 %v9797
  %v9940 = vunpack.c.l.b16 %v9798
  %v9941 = vunpack.c.h.b16 %v9798
  %v9942 = vunpack.c.l.b16 %v9799
  %v9943 = vunpack.c.h.b16 %v9799
  %v9944 = vunpack.c.l.b16 %v9800
  %v9945 = vunpack.c.h.b16 %v9800
  %v9946 = vunpack.c.l.b16 %v9801
  %v9947 = vunpack.c.h.b16 %v9801
  %v9948 = vunpack.c.l.b16 %v9802
  %v9949 = vunpack.c.h.b16 %v9802
  %v9950 = vunpack.c.l.b16 %v9803
  %v9951 = vunpack.c.h.b16 %v9803
  %v9952 = vunpack.c.l.b16 %v9804
  %v9953 = vunpack.c.h.b16 %v9804
  %v9954 = vunpack.c.l.b16 %v9805
  %v9955 = vunpack.c.h.b16 %v9805
  %v9956 = vunpack.c.l.b16 %v9806
  %v9957 = vunpack.c.h.b16 %v9806
  %v9958 = vunpack.c.l.b16 %v9807
  %v9959 = vunpack.c.h.b16 %v9807
  %v9960 = vunpack.c.l.b16 %v9808
  %v9961 = vunpack.c.h.b16 %v9808
  %v9962 = vunpack.c.l.b16 %v9809
  %v9963 = vunpack.c.h.b16 %v9809
  %v9964 = vunpack.c.l.b16 %v9810
  %v9965 = vunpack.c.h.b16 %v9810
  %v9966 = vunpack.c.l.b16 %v9811
  %v9967 = vunpack.c.h.b16 %v9811
  %v9968 = vunpack.c.l.b16 %v9812
  %v9969 = vunpack.c.h.b16 %v9812
  %v9970 = vunpack.c.l.b16 %v9813
  %v9971 = vunpack.c.h.b16 %v9813
  %v9972 = vunpack.c.l.b16 %v9814
  %v9973 = vunpack.c.h.b16 %v9814
  %v9974 = vunpack.c.l.b16 %v9815
  %v9975 = vunpack.c.h.b16 %v9815
  %v9976 = vunpack.c.l.b16 %v9816
  %v9977 = vunpack.c.h.b16 %v9816
  %v9978 = vunpack.c.l.b16 %v9817
  %v9979 = vunpack.c.h.b16 %v9817
  %v9980 = vunpack.c.l.b16 %v9818
  %v9981 = vunpack.c.h.b16 %v9818
  %v9982 = vunpack.c.l.b16 %v9819
  %v9983 = vunpack.c.h.b16 %v9819
  %v9984 = vunpack.c.l.b16 %v9820
  %v9985 = vunpack.c.h.b16 %v9820
  %v9986 = vunpack.c.l.b16 %v9821
  %v9987 = vunpack.c.h.b16 %v9821
  %v9988 = vunpack.c.l.b16 %v9822
  %v9989 = vunpack.c.h.b16 %v9822
  %v9990 = vunpack.c.l.b16 %v9823
  %v9991 = vunpack.c.h.b16 %v9823
  %v9992 = vunpack.c.l.b16 %v9824
  %v9993 = vunpack.c.h.b16 %v9824
  %v9994 = vunpack.c.l.b16 %v9825
  %v9995 = vunpack.c.h.b16 %v9825
  %v9996 = vunpack.c.l.b16 %v9826
  %v9997 = vunpack.c.h.b16 %v9826
  %v9998 = vunpack.c.l.b16 %v9827
  %v9999 = vunpack.c.h.b16 %v9827
  %v10000 = vunpack.c.l.b16 %v9828
  %v10001 = vunpack.c.h.b16 %v9828
  %v10002 = vunpack.c.l.b16 %v9829
  %v10003 = vunpack.c.h.b16 %v9829
  %v10004 = vunpack.c.l.b16 %v9830
  %v10005 = vunpack.c.h.b16 %v9830
  %v10006 = vunpack.c.l.b16 %v9831
  %v10007 = vunpack.c.h.b16 %v9831
  %v10008 = vunpack.c.l.b16 %v9832
  %v10009 = vunpack.c.h.b16 %v9832
  %v10010 = vunpack.c.l.b16 %v9833
  %v10011 = vunpack.c.h.b16 %v9833
  %v10012 = vunpack.c.l.b16 %v9834
  %v10013 = vunpack.c.h.b16 %v9834
  %v10014 = vunpack.c.l.b16 %v9835
  %v10015 = vunpack.c.h.b16 %v9835
  %v10016 = vunpack.c.l.b16 %v9836
  %v10017 = vunpack.c.h.b16 %v9836
  %v10018 = vunpack.c.l.b16 %v9837
  %v10019 = vunpack.c.h.b16 %v9837
  %v10020 = vunpack.c.l.b16 %v9838
  %v10021 = vunpack.c.h.b16 %v9838
  %v10022 = vunpack.c.l.b16 %v9839
  %v10023 = vunpack.c.h.b16 %v9839
  %v10024 = vunpack.c.l.b16 %v9840
  %v10025 = vunpack.c.h.b16 %v9840
  %v10026 = vunpack.c.l.b16 %v9841
  %v10027 = vunpack.c.h.b16 %v9841
  %v10028 = vunpack.c.l.b16 %v9842
  %v10029 = vunpack.c.h.b16 %v9842
  %v10030 = vunpack.c.l.b16 %v9843
  %v10031 = vunpack.c.h.b16 %v9843
  %v10032 = vunpack.c.l.b16 %v9844
  %v10033 = vunpack.c.h.b16 %v9844
  %v10034 = vunpack.c.l.b16 %v9845
  %v10035 = vunpack.c.h.b16 %v9845
  %v10036 = vunpack.c.l.b16 %v9846
  %v10037 = vunpack.c.h.b16 %v9846
  %v10038 = vunpack.c.l.b16 %v9847
  %v10039 = vunpack.c.h.b16 %v9847
  %v10040 = vpack.c.b16 %v9916, %v9912
  %v10041 = vpack.c.b16 %v9917, %v9913
  %v10042 = vpack.c.b16 %v9918, %v9914
  %v10043 = vpack.c.b16 %v9919, %v9915
  %v10044 = vpack.c.b16 %v9924, %v9920
  %v10045 = vpack.c.b16 %v9925, %v9921
  %v10046 = vpack.c.b16 %v9926, %v9922
  %v10047 = vpack.c.b16 %v9927, %v9923
  %v10048 = vpack.c.b16 %v9932, %v9928
  %v10049 = vpack.c.b16 %v9933, %v9929
  %v10050 = vpack.c.b16 %v9934, %v9930
  %v10051 = vpack.c.b16 %v9935, %v9931
  %v10052 = vpack.c.b16 %v9940, %v9936
  %v10053 = vpack.c.b16 %v9941, %v9937
  %v10054 = vpack.c.b16 %v9942, %v9938
  %v10055 = vpack.c.b16 %v9943, %v9939
  %v10056 = vpack.c.b16 %v9948, %v9944
  %v10057 = vpack.c.b16 %v9949, %v9945
  %v10058 = vpack.c.b16 %v9950, %v9946
  %v10059 = vpack.c.b16 %v9951, %v9947
  %v10060 = vpack.c.b16 %v9956, %v9952
  %v10061 = vpack.c.b16 %v9957, %v9953
  %v10062 = vpack.c.b16 %v9958, %v9954
  %v10063 = vpack.c.b16 %v9959, %v9955
  %v10064 = vpack.c.b16 %v9964, %v9960
  %v10065 = vpack.c.b16 %v9965, %v9961
  %v10066 = vpack.c.b16 %v9966, %v9962
  %v10067 = vpack.c.b16 %v9967, %v9963
  %v10068 = vpack.c.b16 %v9972, %v9968
  %v10069 = vpack.c.b16 %v9973, %v9969
  %v10070 = vpack.c.b16 %v9974, %v9970
  %v10071 = vpack.c.b16 %v9975, %v9971
  %v10072 = vpack.c.b16 %v9980, %v9976
  %v10073 = vpack.c.b16 %v9981, %v9977
  %v10074 = vpack.c.b16 %v9982, %v9978
  %v10075 = vpack.c.b16 %v9983, %v9979
  %v10076 = vpack.c.b16 %v9988, %v9984
  %v10077 = vpack.c.b16 %v9989, %v9985
  %v10078 = vpack.c.b16 %v9990, %v9986
  %v10079 = vpack.c.b16 %v9991, %v9987
  %v10080 = vpack.c.b16 %v9996, %v9992
  %v10081 = vpack.c.b16 %v9997, %v9993
  %v10082 = vpack.c.b16 %v9998, %v9994
  %v10083 = vpack.c.b16 %v9999, %v9995
  %v10084 = vpack.c.b16 %v10004, %v10000
  %v10085 = vpack.c.b16 %v10005, %v10001
  %v10086 = vpack.c.b16 %v10006, %v10002
  %v10087 = vpack.c.b16 %v10007, %v10003
  %v10088 = vpack.c.b16 %v10012, %v10008
  %v10089 = vpack.c.b16 %v10013, %v10009
  %v10090 = vpack.c.b16 %v10014, %v10010
  %v10091 = vpack.c.b16 %v10015, %v10011
  %v10092 = vpack.c.b16 %v10020, %v10016
  %v10093 = vpack.c.b16 %v10021, %v10017
  %v10094 = vpack.c.b16 %v10022, %v10018
  %v10095 = vpack.c.b16 %v10023, %v10019
  %v10096 = vpack.c.b16 %v10028, %v10024
  %v10097 = vpack.c.b16 %v10029, %v10025
  %v10098 = vpack.c.b16 %v10030, %v10026
  %v10099 = vpack.c.b16 %v10031, %v10027
  %v10100 = vpack.c.b16 %v10036, %v10032
  %v10101 = vpack.c.b16 %v10037, %v10033
  %v10102 = vpack.c.b16 %v10038, %v10034
  %v10103 = vpack.c.b16 %v10039, %v10035
  %10168 = vmatprep.subr.bf16.mxu0 %v10041
  %10169 = vmatpush1.bf16.msra.mxu0 %v10040
  %10170 = vmatprep.subr.bf16.mxu0 %v10045
  %10171 = vmatpush1.bf16.msra.mxu0 %v10044
  %10172 = vmatprep.subr.bf16.mxu0 %v10049
  %10173 = vmatpush1.bf16.msra.mxu0 %v10048
  %10174 = vmatprep.subr.bf16.mxu0 %v10053
  %10175 = vmatpush1.bf16.msra.mxu0 %v10052
  %10176 = vmatprep.subr.bf16.mxu0 %v10057
  %10177 = vmatpush1.bf16.msra.mxu0 %v10056
  %10178 = vmatprep.subr.bf16.mxu0 %v10061
  %10179 = vmatpush1.bf16.msra.mxu0 %v10060
  %10180 = vmatprep.subr.bf16.mxu0 %v10065
  %10181 = vmatpush1.bf16.msra.mxu0 %v10064
  %10182 = vmatprep.subr.bf16.mxu0 %v10069
  %10183 = vmatpush1.bf16.msra.mxu0 %v10068
  %10184 = vmatprep.subr.bf16.mxu0 %v10073
  %10185 = vmatpush1.bf16.msra.mxu0 %v10072
  %10186 = vmatprep.subr.bf16.mxu0 %v10077
  %10187 = vmatpush1.bf16.msra.mxu0 %v10076
  %10188 = vmatprep.subr.bf16.mxu0 %v10081
  %10189 = vmatpush1.bf16.msra.mxu0 %v10080
  %10190 = vmatprep.subr.bf16.mxu0 %v10085
  %10191 = vmatpush1.bf16.msra.mxu0 %v10084
  %10192 = vmatprep.subr.bf16.mxu0 %v10089
  %10193 = vmatpush1.bf16.msra.mxu0 %v10088
  %10194 = vmatprep.subr.bf16.mxu0 %v10093
  %10195 = vmatpush1.bf16.msra.mxu0 %v10092
  %10196 = vmatprep.subr.bf16.mxu0 %v10097
  %10197 = vmatpush1.bf16.msra.mxu0 %v10096
  %10198 = vmatprep.subr.bf16.mxu0 %v10101
  %10199 = vmatpush1.bf16.msra.mxu0 %v10100
  %10200 = vmatprep.mubr.bf16.mxu0 %v9133
  %10201 = vmatmul.mubr.bf16.gmra.mrb[0].mxu0 %v9783
  %v10202 = vpop.f32.mrb[0].mxu0
  %v10203 = vadd.f32 %v1424, %v10202
  %v10204 = vpop.f32.mrb[0].mxu0
  %v10205 = vadd.f32 %v1428, %v10204
  %v10206 = vpop.f32.mrb[0].mxu0
  %v10207 = vpop.f32.mrb[0].mxu0
  %10208 = vdwg.mxu0
  %10209 = vmatprep.subr.bf16.mxu0 %v10043
  %10210 = vmatpush1.bf16.msra.mxu0 %v10042
  %10211 = vmatprep.subr.bf16.mxu0 %v10047
  %10212 = vmatpush1.bf16.msra.mxu0 %v10046
  %10213 = vmatprep.subr.bf16.mxu0 %v10051
  %10214 = vmatpush1.bf16.msra.mxu0 %v10050
  %10215 = vmatprep.subr.bf16.mxu0 %v10055
  %10216 = vmatpush1.bf16.msra.mxu0 %v10054
  %10217 = vmatprep.subr.bf16.mxu0 %v10059
  %10218 = vmatpush1.bf16.msra.mxu0 %v10058
  %10219 = vmatprep.subr.bf16.mxu0 %v10063
  %10220 = vmatpush1.bf16.msra.mxu0 %v10062
  %10221 = vmatprep.subr.bf16.mxu0 %v10067
  %10222 = vmatpush1.bf16.msra.mxu0 %v10066
  %10223 = vmatprep.subr.bf16.mxu0 %v10071
  %10224 = vmatpush1.bf16.msra.mxu0 %v10070
  %10225 = vmatprep.subr.bf16.mxu0 %v10075
  %10226 = vmatpush1.bf16.msra.mxu0 %v10074
  %10227 = vmatprep.subr.bf16.mxu0 %v10079
  %10228 = vmatpush1.bf16.msra.mxu0 %v10078
  %10229 = vmatprep.subr.bf16.mxu0 %v10083
  %10230 = vmatpush1.bf16.msra.mxu0 %v10082
  %10231 = vmatprep.subr.bf16.mxu0 %v10087
  %10232 = vmatpush1.bf16.msra.mxu0 %v10086
  %10233 = vmatprep.subr.bf16.mxu0 %v10091
  %10234 = vmatpush1.bf16.msra.mxu0 %v10090
  %10235 = vmatprep.subr.bf16.mxu0 %v10095
  %10236 = vmatpush1.bf16.msra.mxu0 %v10094
  %10237 = vmatprep.subr.bf16.mxu0 %v10099
  %10238 = vmatpush1.bf16.msra.mxu0 %v10098
  %10239 = vmatprep.subr.bf16.mxu0 %v10103
  %10240 = vmatpush1.bf16.msra.mxu0 %v10102
  %10241 = vmatprep.mubr.bf16.mxu0 %v9133
  %10242 = vmatmul.mubr.bf16.gmra.mrb[0].mxu0 %v9783
  %v10243 = vpop.f32.mrb[0].mxu0
  %v10244 = vadd.f32 %v1432, %v10243
  %v10245 = vpop.f32.mrb[0].mxu0
  %v10246 = vadd.f32 %v1436, %v10245
  %v10247 = vpop.f32.mrb[0].mxu0
  %v10248 = vpop.f32.mrb[0].mxu0
  %10249 = vdwg.mxu0
  %v10250 = vxor.u32 %v10203, 2147483648
  %v10251 = vmul.f32 %v10250, 1.442695
  %v10252 = vpow.pop %v10251
  %v10253 = vadd.f32 %v10252, 1.0
  %v10254 = vrcp.pop %v10253
  %v10255 = vmul.f32 1.0, %v10254
  %v10256 = vxor.u32 %v10205, 2147483648
  %v10257 = vmul.f32 %v10256, 1.442695
  %v10258 = vpow.pop %v10257
  %v10259 = vadd.f32 %v10258, 1.0
  %v10260 = vrcp.pop %v10259
  %v10261 = vmul.f32 1.0, %v10260
  %v10262 = vtanh.pop %v10244
  %v10263 = vxor.u32 %v10246, 2147483648
  %v10264 = vmul.f32 %v10263, 1.442695
  %v10265 = vpow.pop %v10264
  %v10266 = vadd.f32 %v10265, 1.0
  %v10267 = vrcp.pop %v10266
  %v10268 = vmul.f32 1.0, %v10267
  %v10269 = vmul.f32 %v10261, %v9130
  %v10270 = vmul.f32 %v10255, %v10262
  %v10271 = vadd.f32 %v10269, %v10270
  %v10272 = vtanh.pop %v10271
  %v10273 = vmul.f32 %v10268, %v10272
  %v10274 = vpack.c.bf16 %v10273, %v10273
  %v10275 = vld [vmem:[#allocation3] sm:$0xff]
  %v10276 = vld [vmem:[#allocation3 + $0x8] sm:$0xff]
  %v10277 = vld [vmem:[#allocation3 + $0x10] sm:$0xff]
  %v10278 = vld [vmem:[#allocation3 + $0x18] sm:$0xff]
  %v10279 = vld [vmem:[#allocation3 + $0x20] sm:$0xff]
  %v10280 = vld [vmem:[#allocation3 + $0x28] sm:$0xff]
  %v10281 = vld [vmem:[#allocation3 + $0x30] sm:$0xff]
  %v10282 = vld [vmem:[#allocation3 + $0x38] sm:$0xff]
  %v10283 = vld [vmem:[#allocation3 + $0x40] sm:$0xff]
  %v10284 = vld [vmem:[#allocation3 + $0x48] sm:$0xff]
  %v10285 = vld [vmem:[#allocation3 + $0x50] sm:$0xff]
  %v10286 = vld [vmem:[#allocation3 + $0x58] sm:$0xff]
  %v10287 = vld [vmem:[#allocation3 + $0x60] sm:$0xff]
  %v10288 = vld [vmem:[#allocation3 + $0x68] sm:$0xff]
  %v10289 = vld [vmem:[#allocation3 + $0x70] sm:$0xff]
  %v10290 = vld [vmem:[#allocation3 + $0x78] sm:$0xff]
  %v10291 = vld [vmem:[#allocation3 + $0x80] sm:$0xff]
  %v10292 = vld [vmem:[#allocation3 + $0x88] sm:$0xff]
  %v10293 = vld [vmem:[#allocation3 + $0x90] sm:$0xff]
  %v10294 = vld [vmem:[#allocation3 + $0x98] sm:$0xff]
  %v10295 = vld [vmem:[#allocation3 + $0xa0] sm:$0xff]
  %v10296 = vld [vmem:[#allocation3 + $0xa8] sm:$0xff]
  %v10297 = vld [vmem:[#allocation3 + $0xb0] sm:$0xff]
  %v10298 = vld [vmem:[#allocation3 + $0xb8] sm:$0xff]
  %v10299 = vld [vmem:[#allocation3 + $0xc0] sm:$0xff]
  %v10300 = vld [vmem:[#allocation3 + $0xc8] sm:$0xff]
  %v10301 = vld [vmem:[#allocation3 + $0xd0] sm:$0xff]
  %v10302 = vld [vmem:[#allocation3 + $0xd8] sm:$0xff]
  %v10303 = vld [vmem:[#allocation3 + $0xe0] sm:$0xff]
  %v10304 = vld [vmem:[#allocation3 + $0xe8] sm:$0xff]
  %v10305 = vld [vmem:[#allocation3 + $0xf0] sm:$0xff]
  %v10306 = vld [vmem:[#allocation3 + $0xf8] sm:$0xff]
  %v10307 = vld [vmem:[#allocation3 + $0x100] sm:$0xff]
  %v10308 = vld [vmem:[#allocation3 + $0x108] sm:$0xff]
  %v10309 = vld [vmem:[#allocation3 + $0x110] sm:$0xff]
  %v10310 = vld [vmem:[#allocation3 + $0x118] sm:$0xff]
  %v10311 = vld [vmem:[#allocation3 + $0x120] sm:$0xff]
  %v10312 = vld [vmem:[#allocation3 + $0x128] sm:$0xff]
  %v10313 = vld [vmem:[#allocation3 + $0x130] sm:$0xff]
  %v10314 = vld [vmem:[#allocation3 + $0x138] sm:$0xff]
  %v10315 = vld [vmem:[#allocation3 + $0x140] sm:$0xff]
  %v10316 = vld [vmem:[#allocation3 + $0x148] sm:$0xff]
  %v10317 = vld [vmem:[#allocation3 + $0x150] sm:$0xff]
  %v10318 = vld [vmem:[#allocation3 + $0x158] sm:$0xff]
  %v10319 = vld [vmem:[#allocation3 + $0x160] sm:$0xff]
  %v10320 = vld [vmem:[#allocation3 + $0x168] sm:$0xff]
  %v10321 = vld [vmem:[#allocation3 + $0x170] sm:$0xff]
  %v10322 = vld [vmem:[#allocation3 + $0x178] sm:$0xff]
  %v10323 = vld [vmem:[#allocation3 + $0x180] sm:$0xff]
  %v10324 = vld [vmem:[#allocation3 + $0x188] sm:$0xff]
  %v10325 = vld [vmem:[#allocation3 + $0x190] sm:$0xff]
  %v10326 = vld [vmem:[#allocation3 + $0x198] sm:$0xff]
  %v10327 = vld [vmem:[#allocation3 + $0x1a0] sm:$0xff]
  %v10328 = vld [vmem:[#allocation3 + $0x1a8] sm:$0xff]
  %v10329 = vld [vmem:[#allocation3 + $0x1b0] sm:$0xff]
  %v10330 = vld [vmem:[#allocation3 + $0x1b8] sm:$0xff]
  %v10331 = vld [vmem:[#allocation3 + $0x1c0] sm:$0xff]
  %v10332 = vld [vmem:[#allocation3 + $0x1c8] sm:$0xff]
  %v10333 = vld [vmem:[#allocation3 + $0x1d0] sm:$0xff]
  %v10334 = vld [vmem:[#allocation3 + $0x1d8] sm:$0xff]
  %v10335 = vld [vmem:[#allocation3 + $0x1e0] sm:$0xff]
  %v10336 = vld [vmem:[#allocation3 + $0x1e8] sm:$0xff]
  %v10337 = vld [vmem:[#allocation3 + $0x1f0] sm:$0xff]
  %v10338 = vld [vmem:[#allocation3 + $0x1f8] sm:$0xff]
  %10339 = vmatprep.subr.bf16.mxu0 %v10276
  %10340 = vmatpush1.bf16.msra.mxu0 %v10275
  %10341 = vmatprep.subr.bf16.mxu0 %v10280
  %10342 = vmatpush1.bf16.msra.mxu0 %v10279
  %10343 = vmatprep.subr.bf16.mxu0 %v10284
  %10344 = vmatpush1.bf16.msra.mxu0 %v10283
  %10345 = vmatprep.subr.bf16.mxu0 %v10288
  %10346 = vmatpush1.bf16.msra.mxu0 %v10287
  %10347 = vmatprep.subr.bf16.mxu0 %v10292
  %10348 = vmatpush1.bf16.msra.mxu0 %v10291
  %10349 = vmatprep.subr.bf16.mxu0 %v10296
  %10350 = vmatpush1.bf16.msra.mxu0 %v10295
  %10351 = vmatprep.subr.bf16.mxu0 %v10300
  %10352 = vmatpush1.bf16.msra.mxu0 %v10299
  %10353 = vmatprep.subr.bf16.mxu0 %v10304
  %10354 = vmatpush1.bf16.msra.mxu0 %v10303
  %10355 = vmatprep.subr.bf16.mxu0 %v10308
  %10356 = vmatpush1.bf16.msra.mxu0 %v10307
  %10357 = vmatprep.subr.bf16.mxu0 %v10312
  %10358 = vmatpush1.bf16.msra.mxu0 %v10311
  %10359 = vmatprep.subr.bf16.mxu0 %v10316
  %10360 = vmatpush1.bf16.msra.mxu0 %v10315
  %10361 = vmatprep.subr.bf16.mxu0 %v10320
  %10362 = vmatpush1.bf16.msra.mxu0 %v10319
  %10363 = vmatprep.subr.bf16.mxu0 %v10324
  %10364 = vmatpush1.bf16.msra.mxu0 %v10323
  %10365 = vmatprep.subr.bf16.mxu0 %v10328
  %10366 = vmatpush1.bf16.msra.mxu0 %v10327
  %10367 = vmatprep.subr.bf16.mxu0 %v10332
  %10368 = vmatpush1.bf16.msra.mxu0 %v10331
  %10369 = vmatprep.subr.bf16.mxu0 %v10336
  %10370 = vmatpush1.bf16.msra.mxu0 %v10335
  %10371 = vmatprep.mubr.bf16.mxu0 %v9304
  %10372 = vmatmul.mubr.bf16.gmra.mrb[0].mxu0 %v10274
  %v10373 = vpop.f32.mrb[0].mxu0
  %v10374 = vadd.f32 %v1446, %v10373
  %v10375 = vpop.f32.mrb[0].mxu0
  %v10376 = vadd.f32 %v1450, %v10375
  %v10377 = vpop.f32.mrb[0].mxu0
  %v10378 = vpop.f32.mrb[0].mxu0
  %10379 = vdwg.mxu0
  %10380 = vmatprep.subr.bf16.mxu0 %v10278
  %10381 = vmatpush1.bf16.msra.mxu0 %v10277
  %10382 = vmatprep.subr.bf16.mxu0 %v10282
  %10383 = vmatpush1.bf16.msra.mxu0 %v10281
  %10384 = vmatprep.subr.bf16.mxu0 %v10286
  %10385 = vmatpush1.bf16.msra.mxu0 %v10285
  %10386 = vmatprep.subr.bf16.mxu0 %v10290
  %10387 = vmatpush1.bf16.msra.mxu0 %v10289
  %10388 = vmatprep.subr.bf16.mxu0 %v10294
  %10389 = vmatpush1.bf16.msra.mxu0 %v10293
  %10390 = vmatprep.subr.bf16.mxu0 %v10298
  %10391 = vmatpush1.bf16.msra.mxu0 %v10297
  %10392 = vmatprep.subr.bf16.mxu0 %v10302
  %10393 = vmatpush1.bf16.msra.mxu0 %v10301
  %10394 = vmatprep.subr.bf16.mxu0 %v10306
  %10395 = vmatpush1.bf16.msra.mxu0 %v10305
  %10396 = vmatprep.subr.bf16.mxu0 %v10310
  %10397 = vmatpush1.bf16.msra.mxu0 %v10309
  %10398 = vmatprep.subr.bf16.mxu0 %v10314
  %10399 = vmatpush1.bf16.msra.mxu0 %v10313
  %10400 = vmatprep.subr.bf16.mxu0 %v10318
  %10401 = vmatpush1.bf16.msra.mxu0 %v10317
  %10402 = vmatprep.subr.bf16.mxu0 %v10322
  %10403 = vmatpush1.bf16.msra.mxu0 %v10321
  %10404 = vmatprep.subr.bf16.mxu0 %v10326
  %10405 = vmatpush1.bf16.msra.mxu0 %v10325
  %10406 = vmatprep.subr.bf16.mxu0 %v10330
  %10407 = vmatpush1.bf16.msra.mxu0 %v10329
  %10408 = vmatprep.subr.bf16.mxu0 %v10334
  %10409 = vmatpush1.bf16.msra.mxu0 %v10333
  %10410 = vmatprep.subr.bf16.mxu0 %v10338
  %10411 = vmatpush1.bf16.msra.mxu0 %v10337
  %10412 = vmatprep.mubr.bf16.mxu0 %v9304
  %10413 = vmatmul.mubr.bf16.gmra.mrb[0].mxu0 %v10274
  %v10414 = vpop.f32.mrb[0].mxu0
  %v10415 = vadd.f32 %v1454, %v10414
  %v10416 = vpop.f32.mrb[0].mxu0
  %v10417 = vadd.f32 %v1458, %v10416
  %v10418 = vpop.f32.mrb[0].mxu0
  %v10419 = vpop.f32.mrb[0].mxu0
  %10420 = vdwg.mxu0
  %v10421 = vxor.u32 %v10374, 2147483648
  %v10422 = vmul.f32 %v10421, 1.442695
  %v10423 = vpow.pop %v10422
  %v10424 = vadd.f32 %v10423, 1.0
  %v10425 = vrcp.pop %v10424
  %v10426 = vmul.f32 1.0, %v10425
  %v10427 = vxor.u32 %v10376, 2147483648
  %v10428 = vmul.f32 %v10427, 1.442695
  %v10429 = vpow.pop %v10428
  %v10430 = vadd.f32 %v10429, 1.0
  %v10431 = vrcp.pop %v10430
  %v10432 = vmul.f32 1.0, %v10431
  %v10433 = vtanh.pop %v10415
  %v10434 = vxor.u32 %v10417, 2147483648
  %v10435 = vmul.f32 %v10434, 1.442695
  %v10436 = vpow.pop %v10435
  %v10437 = vadd.f32 %v10436, 1.0
  %v10438 = vrcp.pop %v10437
  %v10439 = vmul.f32 1.0, %v10438
  %v10440 = vmul.f32 %v10432, %v9301
  %v10441 = vmul.f32 %v10426, %v10433
  %v10442 = vadd.f32 %v10440, %v10441
  %v10443 = vtanh.pop %v10442
  %v10444 = vmul.f32 %v10439, %v10443
  %v10445 = vpack.c.bf16 %v10444, %v10444
  %v10446 = vpack.c.bf16 %v9475, %v9475
  %v10447 = vld [vmem:[#allocation4] sm:$0xff]
  %v10448 = vld [vmem:[#allocation4 + $0x8] sm:$0xff]
  %v10449 = vld [vmem:[#allocation4 + $0x10] sm:$0xff]
  %v10450 = vld [vmem:[#allocation4 + $0x18] sm:$0xff]
  %v10451 = vld [vmem:[#allocation4 + $0x20] sm:$0xff]
  %v10452 = vld [vmem:[#allocation4 + $0x28] sm:$0xff]
  %v10453 = vld [vmem:[#allocation4 + $0x30] sm:$0xff]
  %v10454 = vld [vmem:[#allocation4 + $0x38] sm:$0xff]
  %v10455 = vld [vmem:[#allocation4 + $0x40] sm:$0xff]
  %v10456 = vld [vmem:[#allocation4 + $0x48] sm:$0xff]
  %v10457 = vld [vmem:[#allocation4 + $0x50] sm:$0xff]
  %v10458 = vld [vmem:[#allocation4 + $0x58] sm:$0xff]
  %v10459 = vld [vmem:[#allocation4 + $0x60] sm:$0xff]
  %v10460 = vld [vmem:[#allocation4 + $0x68] sm:$0xff]
  %v10461 = vld [vmem:[#allocation4 + $0x70] sm:$0xff]
  %v10462 = vld [vmem:[#allocation4 + $0x78] sm:$0xff]
  %v10463 = vld [vmem:[#allocation4 + $0x80] sm:$0xff]
  %v10464 = vld [vmem:[#allocation4 + $0x88] sm:$0xff]
  %v10465 = vld [vmem:[#allocation4 + $0x90] sm:$0xff]
  %v10466 = vld [vmem:[#allocation4 + $0x98] sm:$0xff]
  %v10467 = vld [vmem:[#allocation4 + $0xa0] sm:$0xff]
  %v10468 = vld [vmem:[#allocation4 + $0xa8] sm:$0xff]
  %v10469 = vld [vmem:[#allocation4 + $0xb0] sm:$0xff]
  %v10470 = vld [vmem:[#allocation4 + $0xb8] sm:$0xff]
  %v10471 = vld [vmem:[#allocation4 + $0xc0] sm:$0xff]
  %v10472 = vld [vmem:[#allocation4 + $0xc8] sm:$0xff]
  %v10473 = vld [vmem:[#allocation4 + $0xd0] sm:$0xff]
  %v10474 = vld [vmem:[#allocation4 + $0xd8] sm:$0xff]
  %v10475 = vld [vmem:[#allocation4 + $0xe0] sm:$0xff]
  %v10476 = vld [vmem:[#allocation4 + $0xe8] sm:$0xff]
  %v10477 = vld [vmem:[#allocation4 + $0xf0] sm:$0xff]
  %v10478 = vld [vmem:[#allocation4 + $0xf8] sm:$0xff]
  %v10479 = vld [vmem:[#allocation4 + $0x100] sm:$0xff]
  %v10480 = vld [vmem:[#allocation4 + $0x108] sm:$0xff]
  %v10481 = vld [vmem:[#allocation4 + $0x110] sm:$0xff]
  %v10482 = vld [vmem:[#allocation4 + $0x118] sm:$0xff]
  %v10483 = vld [vmem:[#allocation4 + $0x120] sm:$0xff]
  %v10484 = vld [vmem:[#allocation4 + $0x128] sm:$0xff]
  %v10485 = vld [vmem:[#allocation4 + $0x130] sm:$0xff]
  %v10486 = vld [vmem:[#allocation4 + $0x138] sm:$0xff]
  %v10487 = vld [vmem:[#allocation4 + $0x140] sm:$0xff]
  %v10488 = vld [vmem:[#allocation4 + $0x148] sm:$0xff]
  %v10489 = vld [vmem:[#allocation4 + $0x150] sm:$0xff]
  %v10490 = vld [vmem:[#allocation4 + $0x158] sm:$0xff]
  %v10491 = vld [vmem:[#allocation4 + $0x160] sm:$0xff]
  %v10492 = vld [vmem:[#allocation4 + $0x168] sm:$0xff]
  %v10493 = vld [vmem:[#allocation4 + $0x170] sm:$0xff]
  %v10494 = vld [vmem:[#allocation4 + $0x178] sm:$0xff]
  %v10495 = vld [vmem:[#allocation4 + $0x180] sm:$0xff]
  %v10496 = vld [vmem:[#allocation4 + $0x188] sm:$0xff]
  %v10497 = vld [vmem:[#allocation4 + $0x190] sm:$0xff]
  %v10498 = vld [vmem:[#allocation4 + $0x198] sm:$0xff]
  %v10499 = vld [vmem:[#allocation4 + $0x1a0] sm:$0xff]
  %v10500 = vld [vmem:[#allocation4 + $0x1a8] sm:$0xff]
  %v10501 = vld [vmem:[#allocation4 + $0x1b0] sm:$0xff]
  %v10502 = vld [vmem:[#allocation4 + $0x1b8] sm:$0xff]
  %v10503 = vld [vmem:[#allocation4 + $0x1c0] sm:$0xff]
  %v10504 = vld [vmem:[#allocation4 + $0x1c8] sm:$0xff]
  %v10505 = vld [vmem:[#allocation4 + $0x1d0] sm:$0xff]
  %v10506 = vld [vmem:[#allocation4 + $0x1d8] sm:$0xff]
  %v10507 = vld [vmem:[#allocation4 + $0x1e0] sm:$0xff]
  %v10508 = vld [vmem:[#allocation4 + $0x1e8] sm:$0xff]
  %v10509 = vld [vmem:[#allocation4 + $0x1f0] sm:$0xff]
  %v10510 = vld [vmem:[#allocation4 + $0x1f8] sm:$0xff]
  %10511 = vmatprep.subr.bf16.mxu0 %v10448
  %10512 = vmatpush1.bf16.msra.mxu0 %v10447
  %10513 = vmatprep.subr.bf16.mxu0 %v10452
  %10514 = vmatpush1.bf16.msra.mxu0 %v10451
  %10515 = vmatprep.subr.bf16.mxu0 %v10456
  %10516 = vmatpush1.bf16.msra.mxu0 %v10455
  %10517 = vmatprep.subr.bf16.mxu0 %v10460
  %10518 = vmatpush1.bf16.msra.mxu0 %v10459
  %10519 = vmatprep.subr.bf16.mxu0 %v10464
  %10520 = vmatpush1.bf16.msra.mxu0 %v10463
  %10521 = vmatprep.subr.bf16.mxu0 %v10468
  %10522 = vmatpush1.bf16.msra.mxu0 %v10467
  %10523 = vmatprep.subr.bf16.mxu0 %v10472
  %10524 = vmatpush1.bf16.msra.mxu0 %v10471
  %10525 = vmatprep.subr.bf16.mxu0 %v10476
  %10526 = vmatpush1.bf16.msra.mxu0 %v10475
  %10527 = vmatprep.subr.bf16.mxu0 %v10480
  %10528 = vmatpush1.bf16.msra.mxu0 %v10479
  %10529 = vmatprep.subr.bf16.mxu0 %v10484
  %10530 = vmatpush1.bf16.msra.mxu0 %v10483
  %10531 = vmatprep.subr.bf16.mxu0 %v10488
  %10532 = vmatpush1.bf16.msra.mxu0 %v10487
  %10533 = vmatprep.subr.bf16.mxu0 %v10492
  %10534 = vmatpush1.bf16.msra.mxu0 %v10491
  %10535 = vmatprep.subr.bf16.mxu0 %v10496
  %10536 = vmatpush1.bf16.msra.mxu0 %v10495
  %10537 = vmatprep.subr.bf16.mxu0 %v10500
  %10538 = vmatpush1.bf16.msra.mxu0 %v10499
  %10539 = vmatprep.subr.bf16.mxu0 %v10504
  %10540 = vmatpush1.bf16.msra.mxu0 %v10503
  %10541 = vmatprep.subr.bf16.mxu0 %v10508
  %10542 = vmatpush1.bf16.msra.mxu0 %v10507
  %10543 = vmatprep.mubr.bf16.mxu0 %v10446
  %10544 = vmatmul.mubr.bf16.gmra.mrb[0].mxu0 %v10445
  %v10545 = vpop.f32.mrb[0].mxu0
  %v10546 = vadd.f32 %v1468, %v10545
  %v10547 = vpop.f32.mrb[0].mxu0
  %v10548 = vadd.f32 %v1472, %v10547
  %v10549 = vpop.f32.mrb[0].mxu0
  %v10550 = vpop.f32.mrb[0].mxu0
  %10551 = vdwg.mxu0
  %10552 = vmatprep.subr.bf16.mxu0 %v10450
  %10553 = vmatpush1.bf16.msra.mxu0 %v10449
  %10554 = vmatprep.subr.bf16.mxu0 %v10454
  %10555 = vmatpush1.bf16.msra.mxu0 %v10453
  %10556 = vmatprep.subr.bf16.mxu0 %v10458
  %10557 = vmatpush1.bf16.msra.mxu0 %v10457
  %10558 = vmatprep.subr.bf16.mxu0 %v10462
  %10559 = vmatpush1.bf16.msra.mxu0 %v10461
  %10560 = vmatprep.subr.bf16.mxu0 %v10466
  %10561 = vmatpush1.bf16.msra.mxu0 %v10465
  %10562 = vmatprep.subr.bf16.mxu0 %v10470
  %10563 = vmatpush1.bf16.msra.mxu0 %v10469
  %10564 = vmatprep.subr.bf16.mxu0 %v10474
  %10565 = vmatpush1.bf16.msra.mxu0 %v10473
  %10566 = vmatprep.subr.bf16.mxu0 %v10478
  %10567 = vmatpush1.bf16.msra.mxu0 %v10477
  %10568 = vmatprep.subr.bf16.mxu0 %v10482
  %10569 = vmatpush1.bf16.msra.mxu0 %v10481
  %10570 = vmatprep.subr.bf16.mxu0 %v10486
  %10571 = vmatpush1.bf16.msra.mxu0 %v10485
  %10572 = vmatprep.subr.bf16.mxu0 %v10490
  %10573 = vmatpush1.bf16.msra.mxu0 %v10489
  %10574 = vmatprep.subr.bf16.mxu0 %v10494
  %10575 = vmatpush1.bf16.msra.mxu0 %v10493
  %10576 = vmatprep.subr.bf16.mxu0 %v10498
  %10577 = vmatpush1.bf16.msra.mxu0 %v10497
  %10578 = vmatprep.subr.bf16.mxu0 %v10502
  %10579 = vmatpush1.bf16.msra.mxu0 %v10501
  %10580 = vmatprep.subr.bf16.mxu0 %v10506
  %10581 = vmatpush1.bf16.msra.mxu0 %v10505
  %10582 = vmatprep.subr.bf16.mxu0 %v10510
  %10583 = vmatpush1.bf16.msra.mxu0 %v10509
  %10584 = vmatprep.mubr.bf16.mxu0 %v10446
  %10585 = vmatmul.mubr.bf16.gmra.mrb[0].mxu0 %v10445
  %v10586 = vpop.f32.mrb[0].mxu0
  %v10587 = vadd.f32 %v1476, %v10586
  %v10588 = vpop.f32.mrb[0].mxu0
  %v10589 = vadd.f32 %v1480, %v10588
  %v10590 = vpop.f32.mrb[0].mxu0
  %v10591 = vpop.f32.mrb[0].mxu0
  %10592 = vdwg.mxu0
  %v10593 = vxor.u32 %v10546, 2147483648
  %v10594 = vmul.f32 %v10593, 1.442695
  %v10595 = vpow.pop %v10594
  %v10596 = vadd.f32 %v10595, 1.0
  %v10597 = vrcp.pop %v10596
  %v10598 = vmul.f32 1.0, %v10597
  %v10599 = vxor.u32 %v10548, 2147483648
  %v10600 = vmul.f32 %v10599, 1.442695
  %v10601 = vpow.pop %v10600
  %v10602 = vadd.f32 %v10601, 1.0
  %v10603 = vrcp.pop %v10602
  %v10604 = vmul.f32 1.0, %v10603
  %v10605 = vtanh.pop %v10587
  %v10606 = vxor.u32 %v10589, 2147483648
  %v10607 = vmul.f32 %v10606, 1.442695
  %v10608 = vpow.pop %v10607
  %v10609 = vadd.f32 %v10608, 1.0
  %v10610 = vrcp.pop %v10609
  %v10611 = vmul.f32 1.0, %v10610
  %v10612 = vmul.f32 %v10604, %v9473
  %v10613 = vmul.f32 %v10598, %v10605
  %v10614 = vadd.f32 %v10612, %v10613
  %v10615 = vtanh.pop %v10614
  %v10616 = vmul.f32 %v10611, %v10615
  %10617 = vst [vmem:[%s10 + $0x38] sm:$0xff] %v10616
  // Predicated region
  $region108: #{lstm_autoencoder_forward.1} parent=0 // pred_check
    _
  $region109: #{lstm_autoencoder_forward.1} parent=0 // pred_check_branch
    %10619 = sbr.rel (0) target = $region111
  $region110: #{lstm_autoencoder_forward.1} parent=0 // pred_region
    _
  $region111: #{lstm_autoencoder_forward.1} parent=0 // pred_fallthru
    _
  // Predicated region
  $region112: #{lstm_autoencoder_forward.1} parent=0 // pred_check
    _
  $region113: #{lstm_autoencoder_forward.1} parent=0 // pred_check_branch
    %10621 = sbr.rel (0) target = $region115
  $region114: #{lstm_autoencoder_forward.1} parent=0 // pred_region
    _
  $region115: #{lstm_autoencoder_forward.1} parent=0 // pred_fallthru
    _
  %10622 = vsyncmov [#allocation5]
  %s10623 = vpop.sfrf %10622
  %p10624 = scmp.eq.s32.totalorder %s10623, 0
  %p10625 = pneg %p10624
  %10627 = shalt.err (%p10625)
  %s10628 = scalar_lea.sflag [#allocation5], 1
  %10629 = vsyncmov %s10628
  %s10630 = vpop.sfrf %10629
  %p10631 = scmp.eq.s32.totalorder %s10630, 0
  %p10632 = pneg %p10631
  %10634 = shalt.err (%p10632)

</llo_original>
